<compile_context>
chip_gen: v5e
topology: v5e:2x2
jax: 0.10.0
libtpu: 0.0.40
codegen_flags: <defaults>
</compile_context>

<pallas_src>
import math
import jax
import jax.numpy as jnp
from jax.experimental import pallas as pl
from jax.experimental.pallas import tpu as pltpu

LANE = 128


def _round_up(v, m):
    return (v + m - 1) // m * m


def _make_resblock_kernel(H, W, Wp, KH, KW, C, Cp, TH, res_scale, mxu_dtype):
    P = KH // 2                 # 'same' padding
    HR = TH + 2 * P             # h-slab rows (output rows + conv2 halo)
    XR = TH + 4 * P             # x-window rows (h rows + conv1 halo)
    WF = Wp + 2 * P             # padded width of x window / h slab

    def kernel(x_hbm, w1_ref, b1_ref, w2_ref, b2_ref, o_ref,
               xwin, h_ref, acc_ref, dma_sem):
        n = pl.program_id(0)
        t = pl.program_id(1)
        r0 = pl.multiple_of(t * TH, TH)          # first output row of this tile

        # ---- fetch the haloed x row window for this tile (bounded VMEM) ----------
        cp = pltpu.make_async_copy(x_hbm.at[n, pl.ds(r0, XR)], xwin, dma_sem)
        cp.start()

        # Only the column border strips act as conv2's zero padding; the interior is
        # fully overwritten below (no full-slab memset).
        h_ref[:, 0:P, :] = jnp.zeros((HR, P, Cp), h_ref.dtype)
        h_ref[:, P + Wp:, :] = jnp.zeros((HR, P, Cp), h_ref.dtype)

        cp.wait()

        # ---- conv1 + bias + ReLU: tap-accumulated MXU matmuls --------------------
        acc_ref[...] = jnp.zeros_like(acc_ref)
        for dh in range(KH):
            for dw in range(KW):
                k = dh * KW + dw
                sl = xwin[dh:dh + HR, dw:dw + Wp, :].reshape(HR * Wp, Cp)
                acc_ref[...] += jnp.dot(sl.astype(mxu_dtype),
                                        w1_ref[k * Cp:(k + 1) * Cp, :],
                                        preferred_element_type=jnp.float32)
        h = jnp.maximum(acc_ref[...] + b1_ref[...], 0.0).reshape(HR, Wp, Cp)

        # h rows outside the real image are conv2 ZERO padding (also covers the rows
        # added when H was padded up to a multiple of TH).
        row = jax.lax.broadcasted_iota(jnp.int32, (HR, Wp, Cp), 0)
        h = jnp.where((row >= P - r0) & (row < H + P - r0), h, 0.0)
        h_ref[:, P:P + Wp, :] = h.astype(h_ref.dtype)
        if Wp > W:   # zero the width-alignment padding columns (static slice)
            h_ref[:, P + W:P + Wp, :] = jnp.zeros((HR, Wp - W, Cp), h_ref.dtype)

        # ---- conv2 + bias + res_scale + residual add ------------------------------
        acc_ref[0:TH * Wp, :] = jnp.zeros((TH * Wp, Cp), jnp.float32)
        for dh in range(KH):
            for dw in range(KW):
                k = dh * KW + dw
                sl = h_ref[dh:dh + TH, dw:dw + Wp, :].reshape(TH * Wp, Cp)
                acc_ref[0:TH * Wp, :] += jnp.dot(sl,
                                                 w2_ref[k * Cp:(k + 1) * Cp, :],
                                                 preferred_element_type=jnp.float32)

        out = acc_ref[0:TH * Wp, :] + b2_ref[...]
        if res_scale != 1.0:
            out = out * jnp.float32(res_scale)
        out = out.reshape(TH, Wp, Cp) + xwin[2 * P:2 * P + TH, P:P + Wp, :]  # residual
        # de-padded HBM writeback: only the real C channels leave the kernel
        o_ref[0] = out[:, :, :C].astype(o_ref.dtype)

    return kernel


def resblock_forward(x_nchw, w1_oihw, b1, w2_oihw, b2, res_scale=1.0,
                     use_bf16_mxu=False):
    """ResBlock.forward: conv2(relu(conv1(x))) * res_scale + x   (NCHW in / NCHW out)."""
    N, C, H, W = map(int, x_nchw.shape)
    KH, KW = int(w1_oihw.shape[2]), int(w1_oihw.shape[3])
    assert KH == KW and KH % 2 == 1, "square odd kernels only (EDSR default_conv)"
    P = KH // 2

    Cp = _round_up(C, LANE)          # lane-dense channels for the MXU
    Wp = _round_up(W, 8)             # sublane-aligned width

    mxu_dtype = jnp.bfloat16 if use_bf16_mxu else jnp.float32
    msize = 2 if use_bf16_mxu else 4

    # ---- VMEM-budget-aware row tile -------------------------------------------------
    try:
        vmem_cap = int(pltpu.get_tpu_info().vmem_capacity_bytes)
    except Exception:
        vmem_cap = 64 * 1024 * 1024                      # conservative (v7x per-TC)
    budget = int(0.30 * vmem_cap)
    TH = 8
    for th in range(8, 257, 8):
        xr, hr, wf = th + 4 * P, th + 2 * P, Wp + 2 * P
        foot = (xr * wf * Cp * 4            # x row window (f32 for residual precision)
                + hr * wf * Cp * msize      # h slab
                + hr * Wp * Cp * 4)         # f32 tap accumulator
        if foot <= budget:
            TH = th
    TH = min(TH, _round_up(H, 8))
    Hp = _round_up(H, TH)
    XR, HR, WF = TH + 4 * P, TH + 2 * P, Wp + 2 * P

    # NCHW -> NHWC, 'same' padding (+ conv1 halo rows), width/channel alignment pad.
    x_nhwc = jnp.transpose(x_nchw, (0, 2, 3, 1))
    x_p = jnp.pad(x_nhwc, ((0, 0),
                           (2 * P, Hp - H + 2 * P),
                           (P, Wp - W + P),
                           (0, Cp - C)))

    def prep_w(w_oihw):
        w = jnp.transpose(w_oihw, (2, 3, 1, 0))                        # OIHW -> HWIO
        w = jnp.pad(w, ((0, 0), (0, 0), (0, Cp - C), (0, Cp - C)))
        return w.reshape(KH * KW * Cp, Cp).astype(mxu_dtype)           # tap-major blocks

    w1f, w2f = prep_w(w1_oihw), prep_w(w2_oihw)
    b1p = jnp.pad(b1, (0, Cp - C)).astype(jnp.float32).reshape(1, Cp)
    b2p = jnp.pad(b2, (0, Cp - C)).astype(jnp.float32).reshape(1, Cp)

    kern = _make_resblock_kernel(H, W, Wp, KH, KW, C, Cp, TH,
                                 float(res_scale), mxu_dtype)

    # advisory cost estimate (real MACs / bytes, not the Cp-padded ones)
    flops = 2 * 2 * N * H * W * KH * KW * C * C
    bytes_accessed = (x_p.size * 4 + N * Hp * Wp * C * 4
                      + (w1f.size + w2f.size) * msize + 2 * Cp * 4)
    cost = pl.CostEstimate(flops=int(flops), transcendentals=0,
                           bytes_accessed=int(bytes_accessed))

    scratch_bytes = XR * WF * Cp * 4 + HR * WF * Cp * msize + HR * Wp * Cp * 4
    weight_bytes = 2 * (KH * KW * Cp * Cp * msize) * 2 + 2 * (Cp * 4) * 2   # dbl-buffered
    out_bytes = 2 * TH * Wp * C * 4
    vmem_limit = max(32 << 20, 2 * scratch_bytes + weight_bytes + out_bytes + (16 << 20))
    vmem_limit = int(min(vmem_limit, int(0.9 * vmem_cap)))

    out = pl.pallas_call(
        kern,
        out_shape=jax.ShapeDtypeStruct((N, Hp, Wp, C), x_nchw.dtype),
        grid=(N, Hp // TH),
        in_specs=[
            pl.BlockSpec(memory_space=pl.ANY),                          # x: manual row-window DMA
            pl.BlockSpec((KH * KW * Cp, Cp), lambda n, t: (0, 0)),      # w1 (tap-major)
            pl.BlockSpec((1, Cp), lambda n, t: (0, 0)),                 # b1
            pl.BlockSpec((KH * KW * Cp, Cp), lambda n, t: (0, 0)),      # w2
            pl.BlockSpec((1, Cp), lambda n, t: (0, 0)),                 # b2
        ],
        out_specs=pl.BlockSpec((1, TH, Wp, C), lambda n, t: (n, t, 0, 0)),
        scratch_shapes=[
            pltpu.VMEM((XR, WF, Cp), jnp.float32),      # haloed x row window
            pltpu.VMEM((HR, WF, Cp), mxu_dtype),        # zero-bordered h slab
            pltpu.VMEM((HR * Wp, Cp), jnp.float32),     # f32 tap accumulator
            pltpu.SemaphoreType.DMA,                    # row-window copy semaphore
        ],
        compiler_params=pltpu.CompilerParams(
            dimension_semantics=("parallel", "parallel"),
            vmem_limit_bytes=vmem_limit),
        cost_estimate=cost,
    )(x_p, w1f, b1p, w2f, b2p)

    out = out[:, :H, :W, :]                      # drop H/W alignment padding
    return jnp.transpose(out, (0, 3, 1, 2))      # NHWC -> NCHW


def _ref_conv_nchw(x, w_oihw, b):
    y = jax.lax.conv_general_dilated(
        x, w_oihw, window_strides=(1, 1), padding="SAME",
        dimension_numbers=("NCHW", "OIHW", "NCHW"))
    return y + b.reshape(1, -1, 1, 1)


if __name__ == "__main__":
    key = jax.random.PRNGKey(0)
    N, C, H, W = 2, 4, 16, 16   # n_feats = 4
    K = 3                       # kernel_size = 3
    res_scale = 1.0

    k1, k2, k3, k4, k5 = jax.random.split(key, 5)
    fan_in = C * K * K
    bound = 1.0 / math.sqrt(fan_in)   # PyTorch Conv2d default init range
    w1 = jax.random.uniform(k1, (C, C, K, K), jnp.float32, -bound, bound)
    b1 = jax.random.uniform(k2, (C,), jnp.float32, -bound, bound)
    w2 = jax.random.uniform(k3, (C, C, K, K), jnp.float32, -bound, bound)
    b2 = jax.random.uniform(k4, (C,), jnp.float32, -bound, bound)
    x = jax.random.normal(k5, (N, C, H, W), jnp.float32)

    # pure-JAX reference of the same forward pass
    ref = _ref_conv_nchw(jax.nn.relu(_ref_conv_nchw(x, w1, b1)), w2, b2) * res_scale + x

    # f32 MXU-operand path (strict check)
    out = jax.block_until_ready(
        resblock_forward(x, w1, b1, w2, b2, res_scale=res_scale))
    assert out.shape == x.shape and out.dtype == x.dtype
    assert jnp.allclose(out, ref, atol=1e-4, rtol=1e-4), "f32 path mismatch vs reference"

    # bf16 MXU-operand / f32-accumulate path (v6e/v7x throughput), looser tolerance
    out_bf16 = jax.block_until_ready(
        resblock_forward(x, w1, b1, w2, b2, res_scale=res_scale, use_bf16_mxu=True))
    assert jnp.allclose(out_bf16, ref, atol=2e-2, rtol=2e-2), "bf16 path mismatch vs reference"

    print("KERNEL_OK")
</pallas_src>

<mosaic_0001>
module attributes {stable_mosaic.version = 11 : i64} {
  func.func @kernel(%arg0: i32, %arg1: i32, %arg2: memref<2x20x18x128xf32, #tpu.memory_space<any>>, %arg3: memref<1152x128xf32, #tpu.memory_space<vmem>>, %arg4: memref<1x128xf32, #tpu.memory_space<vmem>>, %arg5: memref<1152x128xf32, #tpu.memory_space<vmem>>, %arg6: memref<1x128xf32, #tpu.memory_space<vmem>>, %arg7: memref<1x16x16x4xf32, #tpu.memory_space<vmem>>, %arg8: memref<20x18x128xf32, #tpu.memory_space<vmem>>, %arg9: memref<18x18x128xf32, #tpu.memory_space<vmem>>, %arg10: memref<288x128xf32, #tpu.memory_space<vmem>>, %arg11: memref<!tpu.dma_semaphore, #tpu.memory_space<semaphore_mem>>) attributes {dimension_semantics = [#tpu.dimension_semantics<parallel>, #tpu.dimension_semantics<parallel>], iteration_bounds = array<i64: 2, 1>, scalar_prefetch = 0 : i64, scratch_operands = 4 : i64, tpu.core_type = #tpu.core_type<tc>, window_params = [{}, {pipeline_mode = #tpu.pipeline_mode<synchronous>, transform_indices = @transform_1, window_bounds = array<i64: 1152, 128>}, {pipeline_mode = #tpu.pipeline_mode<synchronous>, transform_indices = @transform_2, window_bounds = array<i64: 1, 128>}, {pipeline_mode = #tpu.pipeline_mode<synchronous>, transform_indices = @transform_3, window_bounds = array<i64: 1152, 128>}, {pipeline_mode = #tpu.pipeline_mode<synchronous>, transform_indices = @transform_4, window_bounds = array<i64: 1, 128>}, {transform_indices = @transform_5, window_bounds = array<i64: 1, 16, 16, 4>}]} {
    %c16_i32 = arith.constant 16 : i32
    %0 = arith.muli %arg1, %c16_i32 : i32
    %1 = tpu.assume_multiple %0, 16 : i32
    %c0_i32 = arith.constant 0 : i32
    %c0_i32_0 = arith.constant 0 : i32
    %2 = tpu.memref_slice %arg2[%arg0, %1, %c0_i32, %c0_i32_0] : memref<2x20x18x128xf32, #tpu.memory_space<any>> -> memref<1x20x18x128xf32, #tpu.memory_space<any>>
    %3 = tpu.memref_squeeze %2 : memref<1x20x18x128xf32, #tpu.memory_space<any>> -> memref<20x18x128xf32, #tpu.memory_space<any>>
    tpu.enqueue_dma source(%3 : memref<20x18x128xf32, #tpu.memory_space<any>>) target(%arg8 : memref<20x18x128xf32, #tpu.memory_space<vmem>>) target_semaphore(%arg11 : memref<!tpu.dma_semaphore, #tpu.memory_space<semaphore_mem>>)
    %cst = arith.constant 0.000000e+00 : f32
    %4 = vector.broadcast %cst : f32 to vector<18x1x128xf32>
    %c0 = arith.constant 0 : index
    %c0_1 = arith.constant 0 : index
    %c0_2 = arith.constant 0 : index
    %5 = vector.load %arg9[%c0, %c0_1, %c0_2] : memref<18x18x128xf32, #tpu.memory_space<vmem>>, vector<18x1x128xf32>
    tpu.vector_store %arg9[%c0, %c0_1, %c0_2], %4 {strides = array<i32>} : memref<18x18x128xf32, #tpu.memory_space<vmem>>, vector<18x1x128xf32>,
    %cst_3 = arith.constant 0.000000e+00 : f32
    %6 = vector.broadcast %cst_3 : f32 to vector<18x1x128xf32>
    %c0_4 = arith.constant 0 : index
    %c17 = arith.constant 17 : index
    %c0_5 = arith.constant 0 : index
    %7 = vector.load %arg9[%c0_4, %c17, %c0_5] : memref<18x18x128xf32, #tpu.memory_space<vmem>>, vector<18x1x128xf32>
    tpu.vector_store %arg9[%c0_4, %c17, %c0_5], %6 {strides = array<i32>} : memref<18x18x128xf32, #tpu.memory_space<vmem>>, vector<18x1x128xf32>,
    %c0_i32_6 = arith.constant 0 : i32
    %c0_i32_7 = arith.constant 0 : i32
    %8 = tpu.memref_slice %arg2[%arg0, %1, %c0_i32_6, %c0_i32_7] : memref<2x20x18x128xf32, #tpu.memory_space<any>> -> memref<1x20x18x128xf32, #tpu.memory_space<any>>
    %9 = tpu.memref_squeeze %8 : memref<1x20x18x128xf32, #tpu.memory_space<any>> -> memref<20x18x128xf32, #tpu.memory_space<any>>
    tpu.wait_dma2 semaphore(%arg11 : memref<!tpu.dma_semaphore, #tpu.memory_space<semaphore_mem>>) src(%9 : memref<20x18x128xf32, #tpu.memory_space<any>>) dst(%arg8 : memref<20x18x128xf32, #tpu.memory_space<vmem>>)
    %cst_8 = arith.constant 0.000000e+00 : f32
    %10 = vector.broadcast %cst_8 : f32 to vector<288x128xf32>
    %c0_9 = arith.constant 0 : index
    %c0_10 = arith.constant 0 : index
    %11 = vector.load %arg10[%c0_9, %c0_10] : memref<288x128xf32, #tpu.memory_space<vmem>>, vector<288x128xf32>
    tpu.vector_store %arg10[%c0_9, %c0_10], %10 {strides = array<i32>} : memref<288x128xf32, #tpu.memory_space<vmem>>, vector<288x128xf32>,
    %c0_11 = arith.constant 0 : index
    %c0_12 = arith.constant 0 : index
    %c0_13 = arith.constant 0 : index
    %12 = vector.load %arg8[%c0_11, %c0_12, %c0_13] : memref<20x18x128xf32, #tpu.memory_space<vmem>>, vector<18x16x128xf32>
    %13 = vector.shape_cast %12 : vector<18x16x128xf32> to vector<288x128xf32>
    %c0_14 = arith.constant 0 : index
    %c0_15 = arith.constant 0 : index
    %14 = vector.load %arg10[%c0_14, %c0_15] : memref<288x128xf32, #tpu.memory_space<vmem>>, vector<288x128xf32>
    %c0_16 = arith.constant 0 : index
    %c0_17 = arith.constant 0 : index
    %15 = vector.load %arg3[%c0_16, %c0_17] : memref<1152x128xf32, #tpu.memory_space<vmem>>, vector<128x128xf32>
    %cst_18 = arith.constant dense<0.000000e+00> : vector<288x128xf32>
    %16 = tpu.matmul %13, %15, %cst_18 {dimension_numbers = #tpu.dot_dimension_numbers<[1], [0], [0], [1], [0, 0, 1, 1], [], []>} : vector<288x128xf32>, vector<128x128xf32>, vector<288x128xf32> -> vector<288x128xf32>
    %17 = arith.addf %14, %16 : vector<288x128xf32>
    %c0_19 = arith.constant 0 : index
    %c0_20 = arith.constant 0 : index
    %18 = vector.load %arg10[%c0_19, %c0_20] : memref<288x128xf32, #tpu.memory_space<vmem>>, vector<288x128xf32>
    tpu.vector_store %arg10[%c0_19, %c0_20], %17 {strides = array<i32>} : memref<288x128xf32, #tpu.memory_space<vmem>>, vector<288x128xf32>,
    %c0_21 = arith.constant 0 : index
    %c1 = arith.constant 1 : index
    %c0_22 = arith.constant 0 : index
    %19 = vector.load %arg8[%c0_21, %c1, %c0_22] : memref<20x18x128xf32, #tpu.memory_space<vmem>>, vector<18x16x128xf32>
    %20 = vector.shape_cast %19 : vector<18x16x128xf32> to vector<288x128xf32>
    %c0_23 = arith.constant 0 : index
    %c0_24 = arith.constant 0 : index
    %21 = vector.load %arg10[%c0_23, %c0_24] : memref<288x128xf32, #tpu.memory_space<vmem>>, vector<288x128xf32>
    %c128 = arith.constant 128 : index
    %c0_25 = arith.constant 0 : index
    %22 = vector.load %arg3[%c128, %c0_25] : memref<1152x128xf32, #tpu.memory_space<vmem>>, vector<128x128xf32>
    %cst_26 = arith.constant dense<0.000000e+00> : vector<288x128xf32>
    %23 = tpu.matmul %20, %22, %cst_26 {dimension_numbers = #tpu.dot_dimension_numbers<[1], [0], [0], [1], [0, 0, 1, 1], [], []>} : vector<288x128xf32>, vector<128x128xf32>, vector<288x128xf32> -> vector<288x128xf32>
    %24 = arith.addf %21, %23 : vector<288x128xf32>
    %c0_27 = arith.constant 0 : index
    %c0_28 = arith.constant 0 : index
    %25 = vector.load %arg10[%c0_27, %c0_28] : memref<288x128xf32, #tpu.memory_space<vmem>>, vector<288x128xf32>
    tpu.vector_store %arg10[%c0_27, %c0_28], %24 {strides = array<i32>} : memref<288x128xf32, #tpu.memory_space<vmem>>, vector<288x128xf32>,
    %c0_29 = arith.constant 0 : index
    %c2 = arith.constant 2 : index
    %c0_30 = arith.constant 0 : index
    %26 = vector.load %arg8[%c0_29, %c2, %c0_30] : memref<20x18x128xf32, #tpu.memory_space<vmem>>, vector<18x16x128xf32>
    %27 = vector.shape_cast %26 : vector<18x16x128xf32> to vector<288x128xf32>
    %c0_31 = arith.constant 0 : index
    %c0_32 = arith.constant 0 : index
    %28 = vector.load %arg10[%c0_31, %c0_32] : memref<288x128xf32, #tpu.memory_space<vmem>>, vector<288x128xf32>
    %c256 = arith.constant 256 : index
    %c0_33 = arith.constant 0 : index
    %29 = vector.load %arg3[%c256, %c0_33] : memref<1152x128xf32, #tpu.memory_space<vmem>>, vector<128x128xf32>
    %cst_34 = arith.constant dense<0.000000e+00> : vector<288x128xf32>
    %30 = tpu.matmul %27, %29, %cst_34 {dimension_numbers = #tpu.dot_dimension_numbers<[1], [0], [0], [1], [0, 0, 1, 1], [], []>} : vector<288x128xf32>, vector<128x128xf32>, vector<288x128xf32> -> vector<288x128xf32>
    %31 = arith.addf %28, %30 : vector<288x128xf32>
    %c0_35 = arith.constant 0 : index
    %c0_36 = arith.constant 0 : index
    %32 = vector.load %arg10[%c0_35, %c0_36] : memref<288x128xf32, #tpu.memory_space<vmem>>, vector<288x128xf32>
    tpu.vector_store %arg10[%c0_35, %c0_36], %31 {strides = array<i32>} : memref<288x128xf32, #tpu.memory_space<vmem>>, vector<288x128xf32>,
    %c1_37 = arith.constant 1 : index
    %c0_38 = arith.constant 0 : index
    %c0_39 = arith.constant 0 : index
    %33 = vector.load %arg8[%c1_37, %c0_38, %c0_39] : memref<20x18x128xf32, #tpu.memory_space<vmem>>, vector<18x16x128xf32>
    %34 = vector.shape_cast %33 : vector<18x16x128xf32> to vector<288x128xf32>
    %c0_40 = arith.constant 0 : index
    %c0_41 = arith.constant 0 : index
    %35 = vector.load %arg10[%c0_40, %c0_41] : memref<288x128xf32, #tpu.memory_space<vmem>>, vector<288x128xf32>
    %c384 = arith.constant 384 : index
    %c0_42 = arith.constant 0 : index
    %36 = vector.load %arg3[%c384, %c0_42] : memref<1152x128xf32, #tpu.memory_space<vmem>>, vector<128x128xf32>
    %cst_43 = arith.constant dense<0.000000e+00> : vector<288x128xf32>
    %37 = tpu.matmul %34, %36, %cst_43 {dimension_numbers = #tpu.dot_dimension_numbers<[1], [0], [0], [1], [0, 0, 1, 1], [], []>} : vector<288x128xf32>, vector<128x128xf32>, vector<288x128xf32> -> vector<288x128xf32>
    %38 = arith.addf %35, %37 : vector<288x128xf32>
    %c0_44 = arith.constant 0 : index
    %c0_45 = arith.constant 0 : index
    %39 = vector.load %arg10[%c0_44, %c0_45] : memref<288x128xf32, #tpu.memory_space<vmem>>, vector<288x128xf32>
    tpu.vector_store %arg10[%c0_44, %c0_45], %38 {strides = array<i32>} : memref<288x128xf32, #tpu.memory_space<vmem>>, vector<288x128xf32>,
    %c1_46 = arith.constant 1 : index
    %c1_47 = arith.constant 1 : index
    %c0_48 = arith.constant 0 : index
    %40 = vector.load %arg8[%c1_46, %c1_47, %c0_48] : memref<20x18x128xf32, #tpu.memory_space<vmem>>, vector<18x16x128xf32>
    %41 = vector.shape_cast %40 : vector<18x16x128xf32> to vector<288x128xf32>
    %c0_49 = arith.constant 0 : index
    %c0_50 = arith.constant 0 : index
    %42 = vector.load %arg10[%c0_49, %c0_50] : memref<288x128xf32, #tpu.memory_space<vmem>>, vector<288x128xf32>
    %c512 = arith.constant 512 : index
    %c0_51 = arith.constant 0 : index
    %43 = vector.load %arg3[%c512, %c0_51] : memref<1152x128xf32, #tpu.memory_space<vmem>>, vector<128x128xf32>
    %cst_52 = arith.constant dense<0.000000e+00> : vector<288x128xf32>
    %44 = tpu.matmul %41, %43, %cst_52 {dimension_numbers = #tpu.dot_dimension_numbers<[1], [0], [0], [1], [0, 0, 1, 1], [], []>} : vector<288x128xf32>, vector<128x128xf32>, vector<288x128xf32> -> vector<288x128xf32>
    %45 = arith.addf %42, %44 : vector<288x128xf32>
    %c0_53 = arith.constant 0 : index
    %c0_54 = arith.constant 0 : index
    %46 = vector.load %arg10[%c0_53, %c0_54] : memref<288x128xf32, #tpu.memory_space<vmem>>, vector<288x128xf32>
    tpu.vector_store %arg10[%c0_53, %c0_54], %45 {strides = array<i32>} : memref<288x128xf32, #tpu.memory_space<vmem>>, vector<288x128xf32>,
    %c1_55 = arith.constant 1 : index
    %c2_56 = arith.constant 2 : index
    %c0_57 = arith.constant 0 : index
    %47 = vector.load %arg8[%c1_55, %c2_56, %c0_57] : memref<20x18x128xf32, #tpu.memory_space<vmem>>, vector<18x16x128xf32>
    %48 = vector.shape_cast %47 : vector<18x16x128xf32> to vector<288x128xf32>
    %c0_58 = arith.constant 0 : index
    %c0_59 = arith.constant 0 : index
    %49 = vector.load %arg10[%c0_58, %c0_59] : memref<288x128xf32, #tpu.memory_space<vmem>>, vector<288x128xf32>
    %c640 = arith.constant 640 : index
    %c0_60 = arith.constant 0 : index
    %50 = vector.load %arg3[%c640, %c0_60] : memref<1152x128xf32, #tpu.memory_space<vmem>>, vector<128x128xf32>
    %cst_61 = arith.constant dense<0.000000e+00> : vector<288x128xf32>
    %51 = tpu.matmul %48, %50, %cst_61 {dimension_numbers = #tpu.dot_dimension_numbers<[1], [0], [0], [1], [0, 0, 1, 1], [], []>} : vector<288x128xf32>, vector<128x128xf32>, vector<288x128xf32> -> vector<288x128xf32>
    %52 = arith.addf %49, %51 : vector<288x128xf32>
    %c0_62 = arith.constant 0 : index
    %c0_63 = arith.constant 0 : index
    %53 = vector.load %arg10[%c0_62, %c0_63] : memref<288x128xf32, #tpu.memory_space<vmem>>, vector<288x128xf32>
    tpu.vector_store %arg10[%c0_62, %c0_63], %52 {strides = array<i32>} : memref<288x128xf32, #tpu.memory_space<vmem>>, vector<288x128xf32>,
    %c2_64 = arith.constant 2 : index
    %c0_65 = arith.constant 0 : index
    %c0_66 = arith.constant 0 : index
    %54 = vector.load %arg8[%c2_64, %c0_65, %c0_66] : memref<20x18x128xf32, #tpu.memory_space<vmem>>, vector<18x16x128xf32>
    %55 = vector.shape_cast %54 : vector<18x16x128xf32> to vector<288x128xf32>
    %c0_67 = arith.constant 0 : index
    %c0_68 = arith.constant 0 : index
    %56 = vector.load %arg10[%c0_67, %c0_68] : memref<288x128xf32, #tpu.memory_space<vmem>>, vector<288x128xf32>
    %c768 = arith.constant 768 : index
    %c0_69 = arith.constant 0 : index
    %57 = vector.load %arg3[%c768, %c0_69] : memref<1152x128xf32, #tpu.memory_space<vmem>>, vector<128x128xf32>
    %cst_70 = arith.constant dense<0.000000e+00> : vector<288x128xf32>
    %58 = tpu.matmul %55, %57, %cst_70 {dimension_numbers = #tpu.dot_dimension_numbers<[1], [0], [0], [1], [0, 0, 1, 1], [], []>} : vector<288x128xf32>, vector<128x128xf32>, vector<288x128xf32> -> vector<288x128xf32>
    %59 = arith.addf %56, %58 : vector<288x128xf32>
    %c0_71 = arith.constant 0 : index
    %c0_72 = arith.constant 0 : index
    %60 = vector.load %arg10[%c0_71, %c0_72] : memref<288x128xf32, #tpu.memory_space<vmem>>, vector<288x128xf32>
    tpu.vector_store %arg10[%c0_71, %c0_72], %59 {strides = array<i32>} : memref<288x128xf32, #tpu.memory_space<vmem>>, vector<288x128xf32>,
    %c2_73 = arith.constant 2 : index
    %c1_74 = arith.constant 1 : index
    %c0_75 = arith.constant 0 : index
    %61 = vector.load %arg8[%c2_73, %c1_74, %c0_75] : memref<20x18x128xf32, #tpu.memory_space<vmem>>, vector<18x16x128xf32>
    %62 = vector.shape_cast %61 : vector<18x16x128xf32> to vector<288x128xf32>
    %c0_76 = arith.constant 0 : index
    %c0_77 = arith.constant 0 : index
    %63 = vector.load %arg10[%c0_76, %c0_77] : memref<288x128xf32, #tpu.memory_space<vmem>>, vector<288x128xf32>
    %c896 = arith.constant 896 : index
    %c0_78 = arith.constant 0 : index
    %64 = vector.load %arg3[%c896, %c0_78] : memref<1152x128xf32, #tpu.memory_space<vmem>>, vector<128x128xf32>
    %cst_79 = arith.constant dense<0.000000e+00> : vector<288x128xf32>
    %65 = tpu.matmul %62, %64, %cst_79 {dimension_numbers = #tpu.dot_dimension_numbers<[1], [0], [0], [1], [0, 0, 1, 1], [], []>} : vector<288x128xf32>, vector<128x128xf32>, vector<288x128xf32> -> vector<288x128xf32>
    %66 = arith.addf %63, %65 : vector<288x128xf32>
    %c0_80 = arith.constant 0 : index
    %c0_81 = arith.constant 0 : index
    %67 = vector.load %arg10[%c0_80, %c0_81] : memref<288x128xf32, #tpu.memory_space<vmem>>, vector<288x128xf32>
    tpu.vector_store %arg10[%c0_80, %c0_81], %66 {strides = array<i32>} : memref<288x128xf32, #tpu.memory_space<vmem>>, vector<288x128xf32>,
    %c2_82 = arith.constant 2 : index
    %c2_83 = arith.constant 2 : index
    %c0_84 = arith.constant 0 : index
    %68 = vector.load %arg8[%c2_82, %c2_83, %c0_84] : memref<20x18x128xf32, #tpu.memory_space<vmem>>, vector<18x16x128xf32>
    %69 = vector.shape_cast %68 : vector<18x16x128xf32> to vector<288x128xf32>
    %c0_85 = arith.constant 0 : index
    %c0_86 = arith.constant 0 : index
    %70 = vector.load %arg10[%c0_85, %c0_86] : memref<288x128xf32, #tpu.memory_space<vmem>>, vector<288x128xf32>
    %c1024 = arith.constant 1024 : index
    %c0_87 = arith.constant 0 : index
    %71 = vector.load %arg3[%c1024, %c0_87] : memref<1152x128xf32, #tpu.memory_space<vmem>>, vector<128x128xf32>
    %cst_88 = arith.constant dense<0.000000e+00> : vector<288x128xf32>
    %72 = tpu.matmul %69, %71, %cst_88 {dimension_numbers = #tpu.dot_dimension_numbers<[1], [0], [0], [1], [0, 0, 1, 1], [], []>} : vector<288x128xf32>, vector<128x128xf32>, vector<288x128xf32> -> vector<288x128xf32>
    %73 = arith.addf %70, %72 : vector<288x128xf32>
    %c0_89 = arith.constant 0 : index
    %c0_90 = arith.constant 0 : index
    %74 = vector.load %arg10[%c0_89, %c0_90] : memref<288x128xf32, #tpu.memory_space<vmem>>, vector<288x128xf32>
    tpu.vector_store %arg10[%c0_89, %c0_90], %73 {strides = array<i32>} : memref<288x128xf32, #tpu.memory_space<vmem>>, vector<288x128xf32>,
    %c0_91 = arith.constant 0 : index
    %c0_92 = arith.constant 0 : index
    %75 = vector.load %arg10[%c0_91, %c0_92] : memref<288x128xf32, #tpu.memory_space<vmem>>, vector<288x128xf32>
    %c0_93 = arith.constant 0 : index
    %c0_94 = arith.constant 0 : index
    %76 = vector.load %arg4[%c0_93, %c0_94] : memref<1x128xf32, #tpu.memory_space<vmem>>, vector<1x128xf32>
    %77 = vector.broadcast %76 : vector<1x128xf32> to vector<288x128xf32>
    %78 = arith.addf %75, %77 : vector<288x128xf32>
    %cst_95 = arith.constant 0.000000e+00 : f32
    %79 = vector.broadcast %cst_95 : f32 to vector<288x128xf32>
    %80 = arith.maximumf %78, %79 : vector<288x128xf32>
    %81 = vector.shape_cast %80 : vector<288x128xf32> to vector<18x16x128xf32>
    %82 = tpu.iota {dimensions = array<i32: 0>} : vector<18x16x128xi32>
    %c1_i32 = arith.constant 1 : i32
    %83 = arith.subi %c1_i32, %1 : i32
    %84 = vector.broadcast %83 : i32 to vector<18x16x128xi32>
    %85 = arith.cmpi sge, %82, %84 : vector<18x16x128xi32>
    %c17_i32 = arith.constant 17 : i32
    %86 = arith.subi %c17_i32, %1 : i32
    %87 = vector.broadcast %86 : i32 to vector<18x16x128xi32>
    %88 = arith.cmpi slt, %82, %87 : vector<18x16x128xi32>
    %89 = arith.andi %85, %88 : vector<18x16x128xi1>
    %cst_96 = arith.constant 0.000000e+00 : f32
    %90 = vector.broadcast %cst_96 : f32 to vector<18x16x128xf32>
    %91 = arith.select %89, %81, %90 : vector<18x16x128xi1>, vector<18x16x128xf32>
    %c0_97 = arith.constant 0 : index
    %c1_98 = arith.constant 1 : index
    %c0_99 = arith.constant 0 : index
    %92 = vector.load %arg9[%c0_97, %c1_98, %c0_99] : memref<18x18x128xf32, #tpu.memory_space<vmem>>, vector<18x16x128xf32>
    tpu.vector_store %arg9[%c0_97, %c1_98, %c0_99], %91 {strides = array<i32>} : memref<18x18x128xf32, #tpu.memory_space<vmem>>, vector<18x16x128xf32>,
    %cst_100 = arith.constant 0.000000e+00 : f32
    %93 = vector.broadcast %cst_100 : f32 to vector<256x128xf32>
    %c0_101 = arith.constant 0 : index
    %c0_102 = arith.constant 0 : index
    %94 = vector.load %arg10[%c0_101, %c0_102] : memref<288x128xf32, #tpu.memory_space<vmem>>, vector<256x128xf32>
    tpu.vector_store %arg10[%c0_101, %c0_102], %93 {strides = array<i32>} : memref<288x128xf32, #tpu.memory_space<vmem>>, vector<256x128xf32>,
    %c0_103 = arith.constant 0 : index
    %c0_104 = arith.constant 0 : index
    %c0_105 = arith.constant 0 : index
    %95 = vector.load %arg9[%c0_103, %c0_104, %c0_105] : memref<18x18x128xf32, #tpu.memory_space<vmem>>, vector<16x16x128xf32>
    %96 = vector.shape_cast %95 : vector<16x16x128xf32> to vector<256x128xf32>
    %c0_106 = arith.constant 0 : index
    %c0_107 = arith.constant 0 : index
    %97 = vector.load %arg10[%c0_106, %c0_107] : memref<288x128xf32, #tpu.memory_space<vmem>>, vector<256x128xf32>
    %c0_108 = arith.constant 0 : index
    %c0_109 = arith.constant 0 : index
    %98 = vector.load %arg5[%c0_108, %c0_109] : memref<1152x128xf32, #tpu.memory_space<vmem>>, vector<128x128xf32>
    %cst_110 = arith.constant dense<0.000000e+00> : vector<256x128xf32>
    %99 = tpu.matmul %96, %98, %cst_110 {dimension_numbers = #tpu.dot_dimension_numbers<[1], [0], [0], [1], [0, 0, 1, 1], [], []>} : vector<256x128xf32>, vector<128x128xf32>, vector<256x128xf32> -> vector<256x128xf32>
    %100 = arith.addf %97, %99 : vector<256x128xf32>
    %c0_111 = arith.constant 0 : index
    %c0_112 = arith.constant 0 : index
    %101 = vector.load %arg10[%c0_111, %c0_112] : memref<288x128xf32, #tpu.memory_space<vmem>>, vector<256x128xf32>
    tpu.vector_store %arg10[%c0_111, %c0_112], %100 {strides = array<i32>} : memref<288x128xf32, #tpu.memory_space<vmem>>, vector<256x128xf32>,
    %c0_113 = arith.constant 0 : index
    %c1_114 = arith.constant 1 : index
    %c0_115 = arith.constant 0 : index
    %102 = vector.load %arg9[%c0_113, %c1_114, %c0_115] : memref<18x18x128xf32, #tpu.memory_space<vmem>>, vector<16x16x128xf32>
    %103 = vector.shape_cast %102 : vector<16x16x128xf32> to vector<256x128xf32>
    %c0_116 = arith.constant 0 : index
    %c0_117 = arith.constant 0 : index
    %104 = vector.load %arg10[%c0_116, %c0_117] : memref<288x128xf32, #tpu.memory_space<vmem>>, vector<256x128xf32>
    %c128_118 = arith.constant 128 : index
    %c0_119 = arith.constant 0 : index
    %105 = vector.load %arg5[%c128_118, %c0_119] : memref<1152x128xf32, #tpu.memory_space<vmem>>, vector<128x128xf32>
    %cst_120 = arith.constant dense<0.000000e+00> : vector<256x128xf32>
    %106 = tpu.matmul %103, %105, %cst_120 {dimension_numbers = #tpu.dot_dimension_numbers<[1], [0], [0], [1], [0, 0, 1, 1], [], []>} : vector<256x128xf32>, vector<128x128xf32>, vector<256x128xf32> -> vector<256x128xf32>
    %107 = arith.addf %104, %106 : vector<256x128xf32>
    %c0_121 = arith.constant 0 : index
    %c0_122 = arith.constant 0 : index
    %108 = vector.load %arg10[%c0_121, %c0_122] : memref<288x128xf32, #tpu.memory_space<vmem>>, vector<256x128xf32>
    tpu.vector_store %arg10[%c0_121, %c0_122], %107 {strides = array<i32>} : memref<288x128xf32, #tpu.memory_space<vmem>>, vector<256x128xf32>,
    %c0_123 = arith.constant 0 : index
    %c2_124 = arith.constant 2 : index
    %c0_125 = arith.constant 0 : index
    %109 = vector.load %arg9[%c0_123, %c2_124, %c0_125] : memref<18x18x128xf32, #tpu.memory_space<vmem>>, vector<16x16x128xf32>
    %110 = vector.shape_cast %109 : vector<16x16x128xf32> to vector<256x128xf32>
    %c0_126 = arith.constant 0 : index
    %c0_127 = arith.constant 0 : index
    %111 = vector.load %arg10[%c0_126, %c0_127] : memref<288x128xf32, #tpu.memory_space<vmem>>, vector<256x128xf32>
    %c256_128 = arith.constant 256 : index
    %c0_129 = arith.constant 0 : index
    %112 = vector.load %arg5[%c256_128, %c0_129] : memref<1152x128xf32, #tpu.memory_space<vmem>>, vector<128x128xf32>
    %cst_130 = arith.constant dense<0.000000e+00> : vector<256x128xf32>
    %113 = tpu.matmul %110, %112, %cst_130 {dimension_numbers = #tpu.dot_dimension_numbers<[1], [0], [0], [1], [0, 0, 1, 1], [], []>} : vector<256x128xf32>, vector<128x128xf32>, vector<256x128xf32> -> vector<256x128xf32>
    %114 = arith.addf %111, %113 : vector<256x128xf32>
    %c0_131 = arith.constant 0 : index
    %c0_132 = arith.constant 0 : index
    %115 = vector.load %arg10[%c0_131, %c0_132] : memref<288x128xf32, #tpu.memory_space<vmem>>, vector<256x128xf32>
    tpu.vector_store %arg10[%c0_131, %c0_132], %114 {strides = array<i32>} : memref<288x128xf32, #tpu.memory_space<vmem>>, vector<256x128xf32>,
    %c1_133 = arith.constant 1 : index
    %c0_134 = arith.constant 0 : index
    %c0_135 = arith.constant 0 : index
    %116 = vector.load %arg9[%c1_133, %c0_134, %c0_135] : memref<18x18x128xf32, #tpu.memory_space<vmem>>, vector<16x16x128xf32>
    %117 = vector.shape_cast %116 : vector<16x16x128xf32> to vector<256x128xf32>
    %c0_136 = arith.constant 0 : index
    %c0_137 = arith.constant 0 : index
    %118 = vector.load %arg10[%c0_136, %c0_137] : memref<288x128xf32, #tpu.memory_space<vmem>>, vector<256x128xf32>
    %c384_138 = arith.constant 384 : index
    %c0_139 = arith.constant 0 : index
    %119 = vector.load %arg5[%c384_138, %c0_139] : memref<1152x128xf32, #tpu.memory_space<vmem>>, vector<128x128xf32>
    %cst_140 = arith.constant dense<0.000000e+00> : vector<256x128xf32>
    %120 = tpu.matmul %117, %119, %cst_140 {dimension_numbers = #tpu.dot_dimension_numbers<[1], [0], [0], [1], [0, 0, 1, 1], [], []>} : vector<256x128xf32>, vector<128x128xf32>, vector<256x128xf32> -> vector<256x128xf32>
    %121 = arith.addf %118, %120 : vector<256x128xf32>
    %c0_141 = arith.constant 0 : index
    %c0_142 = arith.constant 0 : index
    %122 = vector.load %arg10[%c0_141, %c0_142] : memref<288x128xf32, #tpu.memory_space<vmem>>, vector<256x128xf32>
    tpu.vector_store %arg10[%c0_141, %c0_142], %121 {strides = array<i32>} : memref<288x128xf32, #tpu.memory_space<vmem>>, vector<256x128xf32>,
    %c1_143 = arith.constant 1 : index
    %c1_144 = arith.constant 1 : index
    %c0_145 = arith.constant 0 : index
    %123 = vector.load %arg9[%c1_143, %c1_144, %c0_145] : memref<18x18x128xf32, #tpu.memory_space<vmem>>, vector<16x16x128xf32>
    %124 = vector.shape_cast %123 : vector<16x16x128xf32> to vector<256x128xf32>
    %c0_146 = arith.constant 0 : index
    %c0_147 = arith.constant 0 : index
    %125 = vector.load %arg10[%c0_146, %c0_147] : memref<288x128xf32, #tpu.memory_space<vmem>>, vector<256x128xf32>
    %c512_148 = arith.constant 512 : index
    %c0_149 = arith.constant 0 : index
    %126 = vector.load %arg5[%c512_148, %c0_149] : memref<1152x128xf32, #tpu.memory_space<vmem>>, vector<128x128xf32>
    %cst_150 = arith.constant dense<0.000000e+00> : vector<256x128xf32>
    %127 = tpu.matmul %124, %126, %cst_150 {dimension_numbers = #tpu.dot_dimension_numbers<[1], [0], [0], [1], [0, 0, 1, 1], [], []>} : vector<256x128xf32>, vector<128x128xf32>, vector<256x128xf32> -> vector<256x128xf32>
    %128 = arith.addf %125, %127 : vector<256x128xf32>
    %c0_151 = arith.constant 0 : index
    %c0_152 = arith.constant 0 : index
    %129 = vector.load %arg10[%c0_151, %c0_152] : memref<288x128xf32, #tpu.memory_space<vmem>>, vector<256x128xf32>
    tpu.vector_store %arg10[%c0_151, %c0_152], %128 {strides = array<i32>} : memref<288x128xf32, #tpu.memory_space<vmem>>, vector<256x128xf32>,
    %c1_153 = arith.constant 1 : index
    %c2_154 = arith.constant 2 : index
    %c0_155 = arith.constant 0 : index
    %130 = vector.load %arg9[%c1_153, %c2_154, %c0_155] : memref<18x18x128xf32, #tpu.memory_space<vmem>>, vector<16x16x128xf32>
    %131 = vector.shape_cast %130 : vector<16x16x128xf32> to vector<256x128xf32>
    %c0_156 = arith.constant 0 : index
    %c0_157 = arith.constant 0 : index
    %132 = vector.load %arg10[%c0_156, %c0_157] : memref<288x128xf32, #tpu.memory_space<vmem>>, vector<256x128xf32>
    %c640_158 = arith.constant 640 : index
    %c0_159 = arith.constant 0 : index
    %133 = vector.load %arg5[%c640_158, %c0_159] : memref<1152x128xf32, #tpu.memory_space<vmem>>, vector<128x128xf32>
    %cst_160 = arith.constant dense<0.000000e+00> : vector<256x128xf32>
    %134 = tpu.matmul %131, %133, %cst_160 {dimension_numbers = #tpu.dot_dimension_numbers<[1], [0], [0], [1], [0, 0, 1, 1], [], []>} : vector<256x128xf32>, vector<128x128xf32>, vector<256x128xf32> -> vector<256x128xf32>
    %135 = arith.addf %132, %134 : vector<256x128xf32>
    %c0_161 = arith.constant 0 : index
    %c0_162 = arith.constant 0 : index
    %136 = vector.load %arg10[%c0_161, %c0_162] : memref<288x128xf32, #tpu.memory_space<vmem>>, vector<256x128xf32>
    tpu.vector_store %arg10[%c0_161, %c0_162], %135 {strides = array<i32>} : memref<288x128xf32, #tpu.memory_space<vmem>>, vector<256x128xf32>,
    %c2_163 = arith.constant 2 : index
    %c0_164 = arith.constant 0 : index
    %c0_165 = arith.constant 0 : index
    %137 = vector.load %arg9[%c2_163, %c0_164, %c0_165] : memref<18x18x128xf32, #tpu.memory_space<vmem>>, vector<16x16x128xf32>
    %138 = vector.shape_cast %137 : vector<16x16x128xf32> to vector<256x128xf32>
    %c0_166 = arith.constant 0 : index
    %c0_167 = arith.constant 0 : index
    %139 = vector.load %arg10[%c0_166, %c0_167] : memref<288x128xf32, #tpu.memory_space<vmem>>, vector<256x128xf32>
    %c768_168 = arith.constant 768 : index
    %c0_169 = arith.constant 0 : index
    %140 = vector.load %arg5[%c768_168, %c0_169] : memref<1152x128xf32, #tpu.memory_space<vmem>>, vector<128x128xf32>
    %cst_170 = arith.constant dense<0.000000e+00> : vector<256x128xf32>
    %141 = tpu.matmul %138, %140, %cst_170 {dimension_numbers = #tpu.dot_dimension_numbers<[1], [0], [0], [1], [0, 0, 1, 1], [], []>} : vector<256x128xf32>, vector<128x128xf32>, vector<256x128xf32> -> vector<256x128xf32>
    %142 = arith.addf %139, %141 : vector<256x128xf32>
    %c0_171 = arith.constant 0 : index
    %c0_172 = arith.constant 0 : index
    %143 = vector.load %arg10[%c0_171, %c0_172] : memref<288x128xf32, #tpu.memory_space<vmem>>, vector<256x128xf32>
    tpu.vector_store %arg10[%c0_171, %c0_172], %142 {strides = array<i32>} : memref<288x128xf32, #tpu.memory_space<vmem>>, vector<256x128xf32>,
    %c2_173 = arith.constant 2 : index
    %c1_174 = arith.constant 1 : index
    %c0_175 = arith.constant 0 : index
    %144 = vector.load %arg9[%c2_173, %c1_174, %c0_175] : memref<18x18x128xf32, #tpu.memory_space<vmem>>, vector<16x16x128xf32>
    %145 = vector.shape_cast %144 : vector<16x16x128xf32> to vector<256x128xf32>
    %c0_176 = arith.constant 0 : index
    %c0_177 = arith.constant 0 : index
    %146 = vector.load %arg10[%c0_176, %c0_177] : memref<288x128xf32, #tpu.memory_space<vmem>>, vector<256x128xf32>
    %c896_178 = arith.constant 896 : index
    %c0_179 = arith.constant 0 : index
    %147 = vector.load %arg5[%c896_178, %c0_179] : memref<1152x128xf32, #tpu.memory_space<vmem>>, vector<128x128xf32>
    %cst_180 = arith.constant dense<0.000000e+00> : vector<256x128xf32>
    %148 = tpu.matmul %145, %147, %cst_180 {dimension_numbers = #tpu.dot_dimension_numbers<[1], [0], [0], [1], [0, 0, 1, 1], [], []>} : vector<256x128xf32>, vector<128x128xf32>, vector<256x128xf32> -> vector<256x128xf32>
    %149 = arith.addf %146, %148 : vector<256x128xf32>
    %c0_181 = arith.constant 0 : index
    %c0_182 = arith.constant 0 : index
    %150 = vector.load %arg10[%c0_181, %c0_182] : memref<288x128xf32, #tpu.memory_space<vmem>>, vector<256x128xf32>
    tpu.vector_store %arg10[%c0_181, %c0_182], %149 {strides = array<i32>} : memref<288x128xf32, #tpu.memory_space<vmem>>, vector<256x128xf32>,
    %c2_183 = arith.constant 2 : index
    %c2_184 = arith.constant 2 : index
    %c0_185 = arith.constant 0 : index
    %151 = vector.load %arg9[%c2_183, %c2_184, %c0_185] : memref<18x18x128xf32, #tpu.memory_space<vmem>>, vector<16x16x128xf32>
    %152 = vector.shape_cast %151 : vector<16x16x128xf32> to vector<256x128xf32>
    %c0_186 = arith.constant 0 : index
    %c0_187 = arith.constant 0 : index
    %153 = vector.load %arg10[%c0_186, %c0_187] : memref<288x128xf32, #tpu.memory_space<vmem>>, vector<256x128xf32>
    %c1024_188 = arith.constant 1024 : index
    %c0_189 = arith.constant 0 : index
    %154 = vector.load %arg5[%c1024_188, %c0_189] : memref<1152x128xf32, #tpu.memory_space<vmem>>, vector<128x128xf32>
    %cst_190 = arith.constant dense<0.000000e+00> : vector<256x128xf32>
    %155 = tpu.matmul %152, %154, %cst_190 {dimension_numbers = #tpu.dot_dimension_numbers<[1], [0], [0], [1], [0, 0, 1, 1], [], []>} : vector<256x128xf32>, vector<128x128xf32>, vector<256x128xf32> -> vector<256x128xf32>
    %156 = arith.addf %153, %155 : vector<256x128xf32>
    %c0_191 = arith.constant 0 : index
    %c0_192 = arith.constant 0 : index
    %157 = vector.load %arg10[%c0_191, %c0_192] : memref<288x128xf32, #tpu.memory_space<vmem>>, vector<256x128xf32>
    tpu.vector_store %arg10[%c0_191, %c0_192], %156 {strides = array<i32>} : memref<288x128xf32, #tpu.memory_space<vmem>>, vector<256x128xf32>,
    %c0_193 = arith.constant 0 : index
    %c0_194 = arith.constant 0 : index
    %158 = vector.load %arg10[%c0_193, %c0_194] : memref<288x128xf32, #tpu.memory_space<vmem>>, vector<256x128xf32>
    %c0_195 = arith.constant 0 : index
    %c0_196 = arith.constant 0 : index
    %159 = vector.load %arg6[%c0_195, %c0_196] : memref<1x128xf32, #tpu.memory_space<vmem>>, vector<1x128xf32>
    %160 = vector.broadcast %159 : vector<1x128xf32> to vector<256x128xf32>
    %161 = arith.addf %158, %160 : vector<256x128xf32>
    %162 = vector.shape_cast %161 : vector<256x128xf32> to vector<16x16x128xf32>
    %c2_197 = arith.constant 2 : index
    %c1_198 = arith.constant 1 : index
    %c0_199 = arith.constant 0 : index
    %163 = vector.load %arg8[%c2_197, %c1_198, %c0_199] : memref<20x18x128xf32, #tpu.memory_space<vmem>>, vector<16x16x128xf32>
    %164 = arith.addf %162, %163 : vector<16x16x128xf32>
    %165 = vector.extract_strided_slice %164 {offsets = [0, 0, 0], sizes = [16, 16, 4], strides = [1, 1, 1]} : vector<16x16x128xf32> to vector<16x16x4xf32>
    %c0_200 = arith.constant 0 : index
    %c0_201 = arith.constant 0 : index
    %c0_202 = arith.constant 0 : index
    %c0_203 = arith.constant 0 : index
    %166 = vector.load %arg7[%c0_200, %c0_201, %c0_202, %c0_203] : memref<1x16x16x4xf32, #tpu.memory_space<vmem>>, vector<1x16x16x4xf32>
    %167 = vector.shape_cast %166 : vector<1x16x16x4xf32> to vector<16x16x4xf32>
    %168 = vector.shape_cast %165 : vector<16x16x4xf32> to vector<1x16x16x4xf32>
    tpu.vector_store %arg7[%c0_200, %c0_201, %c0_202, %c0_203], %168 {strides = array<i32>} : memref<1x16x16x4xf32, #tpu.memory_space<vmem>>, vector<1x16x16x4xf32>,
    return
  }
  func.func @transform_1(%arg0: i32, %arg1: i32) -> (i32, i32) {
    %c0_i32 = arith.constant 0 : i32
    %c0_i32_0 = arith.constant 0 : i32
    %c0_i32_1 = arith.constant 0 : i32
    return %c0_i32, %c0_i32_0 : i32, i32
  }
  func.func @transform_2(%arg0: i32, %arg1: i32) -> (i32, i32) {
    %c0_i32 = arith.constant 0 : i32
    %c0_i32_0 = arith.constant 0 : i32
    %c0_i32_1 = arith.constant 0 : i32
    return %c0_i32, %c0_i32_0 : i32, i32
  }
  func.func @transform_3(%arg0: i32, %arg1: i32) -> (i32, i32) {
    %c0_i32 = arith.constant 0 : i32
    %c0_i32_0 = arith.constant 0 : i32
    %c0_i32_1 = arith.constant 0 : i32
    return %c0_i32, %c0_i32_0 : i32, i32
  }
  func.func @transform_4(%arg0: i32, %arg1: i32) -> (i32, i32) {
    %c0_i32 = arith.constant 0 : i32
    %c0_i32_0 = arith.constant 0 : i32
    %c0_i32_1 = arith.constant 0 : i32
    return %c0_i32, %c0_i32_0 : i32, i32
  }
  func.func @transform_5(%arg0: i32, %arg1: i32) -> (i32, i32, i32, i32) {
    %c0_i32 = arith.constant 0 : i32
    %c0_i32_0 = arith.constant 0 : i32
    %c0_i32_1 = arith.constant 0 : i32
    return %arg0, %arg1, %c0_i32, %c0_i32_0 : i32, i32, i32, i32
  }
}

</mosaic_0001>

<llo_original>
// kernel: tpu_custom_call.1
$region0: #{tpu_custom_call.1}
  #allocation0 [shape = 'u32[]', space=smem, size = 0x4, offset = 0x4, fixed_abs, tag = 'smem constant byte address 0x4 - core index']
  #allocation1 [shape = 'u32[72,128]{1,0:T(1,128)}', space=vmem, size = 0x9000, scoped, tag = 'internal scratch']
  #allocation2 [shape = 'f32[20,18,128]{2,1,0:T(8,128)}', space=vmem, size = 0x3c000, scoped, tag = 'scratch operand']
  #allocation3 [shape = 'f32[18,18,128]{2,1,0:T(8,128)}', space=vmem, size = 0x36000, scoped, tag = 'scratch operand']
  #allocation4 [shape = 'f32[288,128]{1,0:T(8,128)}', space=vmem, size = 0x24000, scoped, tag = 'scratch operand']
  #allocation5 [shape = 's32[1]{0}', space=sflag, size = 0x4, scoped, tag = 'scratch operand']
  #allocation8 [shape = 's32[]', space=sflag, size = 0x4, offset = 0, fixed_abs, tag = 'sflag constant byte address 0x0 - dummy sync flag']
  %s0 = inlined_call_operand.vmem [shape: f32[2,20,18,128], index: 0, kind: input, shape index: {}]
  %s1 = inlined_call_operand.vmem [shape: f32[1152,128], index: 1, kind: input, shape index: {}]
  %s2 = inlined_call_operand.vmem [shape: f32[1,128], index: 2, kind: input, shape index: {}]
  %s3 = inlined_call_operand.hbm [shape: f32[1152,128], index: 3, kind: input, shape index: {}]
  %s4 = inlined_call_operand.vmem [shape: f32[1,128], index: 4, kind: input, shape index: {}]
  %s5 = inlined_call_operand.vmem [shape: f32[2,16,16,4], index: 5, kind: output, shape index: {}]
  %s6 = sld [smem:[#allocation0]]
  $region75: #{tpu_custom_call.1} parent=0
    _
  %s8 = ssub.s32 1, %s6
  %s9 = scalar_select 0, %s8, %s6
  $region1: #{tpu_custom_call.1} parent=0
    #allocation6 [shape = 'u8[589824]{0}', space=vmem, size = 0x90000, scoped, tag = 'input window, operand 3, single buffered']
    #allocation7 [shape = 's32[2]{0}', space=sflag, size = 0x8, scoped, tag = 'scoped memory for tpu_custom_call.1']
    %10 = vsyncpa [#allocation7], 0
    loop: start=0, step=1, limit=4
    $region2: #{tpu_custom_call.1} parent=1 // loop_pre_header
      _
    $region3: #{tpu_custom_call.1} parent=1 // loop_header
      %s12 = sphi 0, %s16
      %p13 = scmp.ge.s32.totalorder %s12, 4
      %s19 = sphi 0, %s31
      %s20 = sphi 0, %s27
      %s21 = sphi 0, %s19
      %s22 = sphi 0, %s20
      %s23 = sphi 0, %s21
      %s24 = sphi 0, %s22
      %s32 = sphi 0, %s32
      %s34 = sphi 0, %s32
      %s35 = sphi 0, %s34
      %s49 = sphi 0, %s35
      %s53 = sphi 0, %s53
      %s55 = sphi 0, %s53
      %s56 = sphi 0, %s55
      %s70 = sphi 0, %s56
      %s74 = sphi 0, %s74
      %s76 = sphi 0, %s74
      %s77 = sphi 0, %s76
      %s91 = sphi 0, %s77
      %s95 = sphi 0, %s95
      %s97 = sphi 0, %s95
      %s98 = sphi 0, %s97
      %s112 = sphi 0, %s98
      %s120 = sphi 0, %s122
      %s123 = sphi 0, %s120
      %s124 = sphi 0, %s123
      %s140 = sphi 0, %s124
    $region4: #{tpu_custom_call.1} parent=1 // loop_header_branch
      %15 = sbr.rel (%p13) target = $region8
    $region5: #{tpu_custom_call.1} parent=1 // loop_body
      %s17 = ssub.s32 %s12, 1
      %s18 = ssub.s32 %s12, 2
      %s25 = sadd.s32 1, %s20
      %p26 = scmp.ge.s32.totalorder %s25, 1
      %s27 = scalar_select %p26, 0, %s25
      %s28 = sadd.s32 1, %s19
      %s29 = scalar_select %p26, %s28, %s19
      %p30 = scmp.ge.s32.totalorder %s29, 2
      %s31 = scalar_select %p30, 0, %s29
      %s33 = sadd.s32 %s32, 1
      %p36 = scmp.eq.s32.totalorder %s12, 1
      %p37 = scmp.ne.s32.totalorder %s32, %s34
      %p38 = scmp.eq.s32.totalorder %s12, 0
      %p39 = por %p37, %p38
      %p40 = scmp.ne.s32.totalorder %s32, %s34
      %p41 = scmp.eq.s32.totalorder %s17, 1
      %p42 = por %p40, %p41
      %p43 = scmp.ne.s32.totalorder %s34, %s35
      %p44 = scmp.eq.s32.totalorder %s17, 0
      %p45 = por %p43, %p44
      %p46 = scmp.ne.s32.totalorder %s34, %s35
      %p47 = scmp.eq.s32.totalorder %s18, 1
      %p48 = por %p46, %p47
      %p50 = scmp.ne.s32.totalorder %s35, %s49
      %p51 = scmp.eq.s32.totalorder %s18, 0
      %p52 = por %p50, %p51
      %s54 = sadd.s32 %s53, 1
      %p57 = scmp.eq.s32.totalorder %s12, 1
      %p58 = scmp.ne.s32.totalorder %s53, %s55
      %p59 = scmp.eq.s32.totalorder %s12, 0
      %p60 = por %p58, %p59
      %p61 = scmp.ne.s32.totalorder %s53, %s55
      %p62 = scmp.eq.s32.totalorder %s17, 1
      %p63 = por %p61, %p62
      %p64 = scmp.ne.s32.totalorder %s55, %s56
      %p65 = scmp.eq.s32.totalorder %s17, 0
      %p66 = por %p64, %p65
      %p67 = scmp.ne.s32.totalorder %s55, %s56
      %p68 = scmp.eq.s32.totalorder %s18, 1
      %p69 = por %p67, %p68
      %p71 = scmp.ne.s32.totalorder %s56, %s70
      %p72 = scmp.eq.s32.totalorder %s18, 0
      %p73 = por %p71, %p72
      %s75 = sadd.s32 %s74, 1
      %p78 = scmp.eq.s32.totalorder %s12, 1
      %p79 = scmp.ne.s32.totalorder %s74, %s76
      %p80 = scmp.eq.s32.totalorder %s12, 0
      %p81 = por %p79, %p80
      %p82 = scmp.ne.s32.totalorder %s74, %s76
      %p83 = scmp.eq.s32.totalorder %s17, 1
      %p84 = por %p82, %p83
      %p85 = scmp.ne.s32.totalorder %s76, %s77
      %p86 = scmp.eq.s32.totalorder %s17, 0
      %p87 = por %p85, %p86
      %p88 = scmp.ne.s32.totalorder %s76, %s77
      %p89 = scmp.eq.s32.totalorder %s18, 1
      %p90 = por %p88, %p89
      %p92 = scmp.ne.s32.totalorder %s77, %s91
      %p93 = scmp.eq.s32.totalorder %s18, 0
      %p94 = por %p92, %p93
      %s96 = sadd.s32 %s95, 1
      %p99 = scmp.eq.s32.totalorder %s12, 1
      %p100 = scmp.ne.s32.totalorder %s95, %s97
      %p101 = scmp.eq.s32.totalorder %s12, 0
      %p102 = por %p100, %p101
      %p103 = scmp.ne.s32.totalorder %s95, %s97
      %p104 = scmp.eq.s32.totalorder %s17, 1
      %p105 = por %p103, %p104
      %p106 = scmp.ne.s32.totalorder %s97, %s98
      %p107 = scmp.eq.s32.totalorder %s17, 0
      %p108 = por %p106, %p107
      %p109 = scmp.ne.s32.totalorder %s97, %s98
      %p110 = scmp.eq.s32.totalorder %s18, 1
      %p111 = por %p109, %p110
      %p113 = scmp.ne.s32.totalorder %s98, %s112
      %p114 = scmp.eq.s32.totalorder %s18, 0
      %p115 = por %p113, %p114
      %s116 = ssub.s32 %s19, %s31
      %s117 = ssub.s32 %s20, %s27
      %s118 = sor.u32 %s116, %s117
      %p119 = scmp.eq.s32.totalorder %s118, 0
      %s121 = sadd.s32 %s120, 1
      %s122 = scalar_select %p119, %s120, %s121
      %p125 = pneg %p119
      %p126 = scmp.eq.s32.totalorder %s12, 1
      %p127 = por %p125, %p126
      %p128 = scmp.ne.s32.totalorder %s120, %s123
      %p129 = scmp.eq.s32.totalorder %s12, 0
      %p130 = por %p128, %p129
      %p131 = scmp.ne.s32.totalorder %s120, %s123
      %p132 = scmp.eq.s32.totalorder %s17, 1
      %p133 = por %p131, %p132
      %p134 = scmp.ne.s32.totalorder %s123, %s124
      %p135 = scmp.eq.s32.totalorder %s17, 0
      %p136 = por %p134, %p135
      %p137 = scmp.ne.s32.totalorder %s123, %s124
      %p138 = scmp.eq.s32.totalorder %s18, 1
      %p139 = por %p137, %p138
      %p141 = scmp.ne.s32.totalorder %s124, %s140
      %p142 = scmp.eq.s32.totalorder %s18, 0
      %p143 = por %p141, %p142
      %p144 = scmp.le.s32.totalorder 1, %s12
      %p145 = scmp.lt.s32.totalorder %s12, 3
      %p146 = pnand %p144, %p145
      %p147 = pneg %p146
      // Predicated region
      $region9: #{tpu_custom_call.1} parent=5 // pred_check
        _
      $region10: #{tpu_custom_call.1} parent=5 // pred_check_branch
        %149 = sbr.rel (%p146) target = $region12
      $region11: #{tpu_custom_call.1} parent=5 // pred_region
        %s150 = ssub.s32 %s12, 1
        // Predicated region
        $region13: #{tpu_custom_call.1} parent=11 // pred_check
          %p151 = pneg %p45
        $region14: #{tpu_custom_call.1} parent=11 // pred_check_branch
          %153 = sbr.rel (%p151) target = $region16
        $region15: #{tpu_custom_call.1} parent=11 // pred_region
          _
        $region16: #{tpu_custom_call.1} parent=11 // pred_fallthru
          _
        // Predicated region
        $region17: #{tpu_custom_call.1} parent=11 // pred_check
          %p154 = pneg %p66
        $region18: #{tpu_custom_call.1} parent=11 // pred_check_branch
          %156 = sbr.rel (%p154) target = $region20
        $region19: #{tpu_custom_call.1} parent=11 // pred_region
          _
        $region20: #{tpu_custom_call.1} parent=11 // pred_fallthru
          _
        // Predicated region
        $region21: #{tpu_custom_call.1} parent=11 // pred_check
          %p157 = pneg %p87
        $region22: #{tpu_custom_call.1} parent=11 // pred_check_branch
          %159 = sbr.rel (%p157) target = $region24
        $region23: #{tpu_custom_call.1} parent=11 // pred_region
          %161 = vsyncadd [#allocation7], 0
          %s162 = sshll.u32 %s3, 4
          %s163 = int_to_ptr.hbm [resolvable:$true] %s162
          %s164 = sshll.u32 [#allocation6], 4
          %s165 = int_to_ptr.vmem [resolvable:$true] %s164
          %170 = dma.hbm_to_vmem [thread:$0]  %s163, 18432, %s165, [#allocation7], 128, 128, 8
        $region24: #{tpu_custom_call.1} parent=11 // pred_fallthru
          _
        // Predicated region
        $region25: #{tpu_custom_call.1} parent=11 // pred_check
          %p171 = pneg %p108
        $region26: #{tpu_custom_call.1} parent=11 // pred_check_branch
          %173 = sbr.rel (%p171) target = $region28
        $region27: #{tpu_custom_call.1} parent=11 // pred_region
          _
        $region28: #{tpu_custom_call.1} parent=11 // pred_fallthru
          _
      $region12: #{tpu_custom_call.1} parent=5 // pred_fallthru
        _
      %p174 = scmp.lt.s32.totalorder %s12, 2
      // Predicated region
      $region29: #{tpu_custom_call.1} parent=5 // pred_check
        %p175 = pneg %p174
      $region30: #{tpu_custom_call.1} parent=5 // pred_check_branch
        %177 = sbr.rel (%p175) target = $region32
      $region31: #{tpu_custom_call.1} parent=5 // pred_region
        _
      $region32: #{tpu_custom_call.1} parent=5 // pred_fallthru
        _
      %p178 = scmp.le.s32.totalorder 1, %s12
      %p179 = scmp.lt.s32.totalorder %s12, 3
      %p180 = pnand %p178, %p179
      %p181 = pneg %p180
      // Predicated region
      $region33: #{tpu_custom_call.1} parent=5 // pred_check
        _
      $region34: #{tpu_custom_call.1} parent=5 // pred_check_branch
        %183 = sbr.rel (%p180) target = $region36
      $region35: #{tpu_custom_call.1} parent=5 // pred_region
        %s184 = ssub.s32 %s12, 1
        // Predicated region
        $region37: #{tpu_custom_call.1} parent=35 // pred_check
          %p185 = pneg %p87
        $region38: #{tpu_custom_call.1} parent=35 // pred_check_branch
          %187 = sbr.rel (%p185) target = $region40
        $region39: #{tpu_custom_call.1} parent=35 // pred_region
          %189 = dma.done [#allocation7], 18432
        $region40: #{tpu_custom_call.1} parent=35 // pred_fallthru
          _
        %p190 = pneg %p45
        %p191 = pneg %p42
        %p192 = pneg %p66
        %p193 = pneg %p63
        %p194 = pneg %p87
        %p195 = pneg %p84
        %p196 = pneg %p108
        %p197 = pneg %p105
        %p198 = pneg %p136
        %p199 = pneg %p133
        %s200 = smul.u32 16, %s22
        %p201 = scmp.lt.s32.totalorder %s21, 1
        %s202 = scalar_select %p201, %s21, 1
        %p203 = scmp.lt.s32.totalorder %s200, 15
        %s204 = scalar_select %p203, %s200, 15
        %s205 = smul.addr %s204, 2
        %s206 = smul.addr %s202, 32
        %s207 = sadd.s32 %s205, %s206
        %s208 = smul.addr %s207, 8
        %s209 = scalar_lea.vmem %s5, %s208
        %s210 = smul.u32 16, %s22
        %p211 = scmp.lt.s32.totalorder %s21, 1
        %s212 = scalar_select %p211, %s21, 1
        %p213 = scmp.lt.s32.totalorder %s210, 15
        %s214 = scalar_select %p213, %s210, 15
        %s215 = smul.addr %s214, 2
        %s216 = smul.addr %s212, 32
        %s217 = sadd.s32 %s215, %s216
        %s218 = smul.addr %s217, 8
        %s219 = scalar_lea.vmem %s5, %s218
        %s220 = smul.u32 16, %s22
        %s221 = smul.u32 %s22, 16
        %s222 = smul.u32 %s221, 24
        %s223 = smul.u32 %s21, 480
        %s224 = sadd.s32 %s222, %s223
        %s225 = scalar_lea.vmem %s0, %s224
        // Predicated region
        $region41: #{tpu_custom_call.1} parent=35 // pred_check
          _
        $region42: #{tpu_custom_call.1} parent=35 // pred_check_branch
          %227 = sbr.rel (0) target = $region44
        $region43: #{tpu_custom_call.1} parent=35 // pred_region
          %s228 = scalar_lea.vmem %s225, 16
          %s229 = scalar_lea.vmem [#allocation2], 16
          loop: start=0, step=1, limit=1
          $region45: #{tpu_custom_call.1} parent=43 // loop_pre_header
            _
          $region46: #{tpu_custom_call.1} parent=43 // loop_header
            %s231 = sphi 0, %s235
            %p232 = scmp.ge.s32.totalorder %s231, 1
            %s236 = sphi %s225, %s225
            %s237 = sphi [#allocation2], [#allocation2]
          $region47: #{tpu_custom_call.1} parent=43 // loop_header_branch
            %234 = sbr.rel (%p232) target = $region51
          $region48: #{tpu_custom_call.1} parent=43 // loop_body
            %v238 = vld [vmem:[%s236] sm:$0xff]
            %239 = vst [vmem:[%s237] sm:$0xff] %v238
            %v240 = vld [vmem:[%s236 + $0x8] sm:$0xff]
            %241 = vst [vmem:[%s237 + $0x8] sm:$0xff] %v240
            %v242 = vld [vmem:[%s236 + $0x18] sm:$0xff]
            %243 = vst [vmem:[%s237 + $0x18] sm:$0xff] %v242
            %v244 = vld [vmem:[%s236 + $0x20] sm:$0xff]
            %245 = vst [vmem:[%s237 + $0x20] sm:$0xff] %v244
            %v246 = vld [vmem:[%s236 + $0x30] sm:$0xff]
            %247 = vst [vmem:[%s237 + $0x30] sm:$0xff] %v246
            %v248 = vld [vmem:[%s236 + $0x38] sm:$0xff]
            %249 = vst [vmem:[%s237 + $0x38] sm:$0xff] %v248
            %v250 = vld [vmem:[%s236 + $0x48] sm:$0xff]
            %251 = vst [vmem:[%s237 + $0x48] sm:$0xff] %v250
            %v252 = vld [vmem:[%s236 + $0x50] sm:$0xff]
            %253 = vst [vmem:[%s237 + $0x50] sm:$0xff] %v252
            %v254 = vld [vmem:[%s236 + $0x60] sm:$0xff]
            %255 = vst [vmem:[%s237 + $0x60] sm:$0xff] %v254
            %v256 = vld [vmem:[%s236 + $0x68] sm:$0xff]
            %257 = vst [vmem:[%s237 + $0x68] sm:$0xff] %v256
            %v258 = vld [vmem:[%s236 + $0x78] sm:$0xff]
            %259 = vst [vmem:[%s237 + $0x78] sm:$0xff] %v258
            %v260 = vld [vmem:[%s236 + $0x80] sm:$0xff]
            %261 = vst [vmem:[%s237 + $0x80] sm:$0xff] %v260
            %v262 = vld [vmem:[%s236 + $0x90] sm:$0xff]
            %263 = vst [vmem:[%s237 + $0x90] sm:$0xff] %v262
            %v264 = vld [vmem:[%s236 + $0x98] sm:$0xff]
            %265 = vst [vmem:[%s237 + $0x98] sm:$0xff] %v264
            %v266 = vld [vmem:[%s236 + $0xa8] sm:$0xff]
            %267 = vst [vmem:[%s237 + $0xa8] sm:$0xff] %v266
            %v268 = vld [vmem:[%s236 + $0xb0] sm:$0xff]
            %269 = vst [vmem:[%s237 + $0xb0] sm:$0xff] %v268
            %v270 = vld [vmem:[%s236 + $0xc0] sm:$0xff]
            %271 = vst [vmem:[%s237 + $0xc0] sm:$0xff] %v270
            %v272 = vld [vmem:[%s236 + $0xc8] sm:$0xff]
            %273 = vst [vmem:[%s237 + $0xc8] sm:$0xff] %v272
            %v274 = vld [vmem:[%s236 + $0xd8] sm:$0xff]
            %275 = vst [vmem:[%s237 + $0xd8] sm:$0xff] %v274
            %v276 = vld [vmem:[%s236 + $0xe0] sm:$0xff]
            %277 = vst [vmem:[%s237 + $0xe0] sm:$0xff] %v276
            %v278 = vld [vmem:[%s236 + $0xf0] sm:$0xff]
            %279 = vst [vmem:[%s237 + $0xf0] sm:$0xff] %v278
            %v280 = vld [vmem:[%s236 + $0xf8] sm:$0xff]
            %281 = vst [vmem:[%s237 + $0xf8] sm:$0xff] %v280
            %v282 = vld [vmem:[%s236 + $0x108] sm:$0xff]
            %283 = vst [vmem:[%s237 + $0x108] sm:$0xff] %v282
            %v284 = vld [vmem:[%s236 + $0x110] sm:$0xff]
            %285 = vst [vmem:[%s237 + $0x110] sm:$0xff] %v284
            %v286 = vld [vmem:[%s236 + $0x120] sm:$0xff]
            %287 = vst [vmem:[%s237 + $0x120] sm:$0xff] %v286
            %v288 = vld [vmem:[%s236 + $0x128] sm:$0xff]
            %289 = vst [vmem:[%s237 + $0x128] sm:$0xff] %v288
            %v290 = vld [vmem:[%s236 + $0x138] sm:$0xff]
            %291 = vst [vmem:[%s237 + $0x138] sm:$0xff] %v290
            %v292 = vld [vmem:[%s236 + $0x140] sm:$0xff]
            %293 = vst [vmem:[%s237 + $0x140] sm:$0xff] %v292
            %v294 = vld [vmem:[%s236 + $0x150] sm:$0xff]
            %295 = vst [vmem:[%s237 + $0x150] sm:$0xff] %v294
            %v296 = vld [vmem:[%s236 + $0x158] sm:$0xff]
            %297 = vst [vmem:[%s237 + $0x158] sm:$0xff] %v296
            %v298 = vld [vmem:[%s236 + $0x168] sm:$0xff]
            %299 = vst [vmem:[%s237 + $0x168] sm:$0xff] %v298
            %v300 = vld [vmem:[%s236 + $0x170] sm:$0xff]
            %301 = vst [vmem:[%s237 + $0x170] sm:$0xff] %v300
            %v302 = vld [vmem:[%s236 + $0x180] sm:$0xff]
            %303 = vst [vmem:[%s237 + $0x180] sm:$0xff] %v302
            %v304 = vld [vmem:[%s236 + $0x188] sm:$0xff]
            %305 = vst [vmem:[%s237 + $0x188] sm:$0xff] %v304
            %v306 = vld [vmem:[%s236 + $0x198] sm:$0xff]
            %307 = vst [vmem:[%s237 + $0x198] sm:$0xff] %v306
            %v308 = vld [vmem:[%s236 + $0x1a0] sm:$0xff]
            %309 = vst [vmem:[%s237 + $0x1a0] sm:$0xff] %v308
            %v310 = vld [vmem:[%s236 + $0x1b0] sm:$0xff]
            %311 = vst [vmem:[%s237 + $0x1b0] sm:$0xff] %v310
            %v312 = vld [vmem:[%s236 + $0x1b8] sm:$0xff]
            %313 = vst [vmem:[%s237 + $0x1b8] sm:$0xff] %v312
            %v314 = vld [vmem:[%s236 + $0x1c8] sm:$0xff]
            %315 = vst [vmem:[%s237 + $0x1c8] sm:$0xff] %v314
            %v316 = vld [vmem:[%s236 + $0x1d0] sm:$0xff]
            %317 = vst [vmem:[%s237 + $0x1d0] sm:$0xff] %v316
          $region49: #{tpu_custom_call.1} parent=43 // loop_footer
            %s235 = sadd.s32 1, %s231
          $region50: #{tpu_custom_call.1} parent=43 // loop_footer_branch
            %230 = sbr.rel target = $region46
          $region51: #{tpu_custom_call.1} parent=43 // loop_exit
            _
          %s319 = ssub.s32 4, 1
          loop: start=0, step=1, limit=1
          $region52: #{tpu_custom_call.1} parent=43 // loop_pre_header
            _
          $region53: #{tpu_custom_call.1} parent=43 // loop_header
            %s321 = sphi 0, %s325
            %p322 = scmp.ge.s32.totalorder %s321, 1
            %s326 = sphi %s228, %s228
            %s327 = sphi %s229, %s229
          $region54: #{tpu_custom_call.1} parent=43 // loop_header_branch
            %324 = sbr.rel (%p322) target = $region58
          $region55: #{tpu_custom_call.1} parent=43 // loop_body
            %v328 = vld [vmem:[%s326] sm:%s319]
            %329 = vst [vmem:[%s327] sm:%s319] %v328
            %v330 = vld [vmem:[%s326 + $0x18] sm:%s319]
            %331 = vst [vmem:[%s327 + $0x18] sm:%s319] %v330
            %v332 = vld [vmem:[%s326 + $0x30] sm:%s319]
            %333 = vst [vmem:[%s327 + $0x30] sm:%s319] %v332
            %v334 = vld [vmem:[%s326 + $0x48] sm:%s319]
            %335 = vst [vmem:[%s327 + $0x48] sm:%s319] %v334
            %v336 = vld [vmem:[%s326 + $0x60] sm:%s319]
            %337 = vst [vmem:[%s327 + $0x60] sm:%s319] %v336
            %v338 = vld [vmem:[%s326 + $0x78] sm:%s319]
            %339 = vst [vmem:[%s327 + $0x78] sm:%s319] %v338
            %v340 = vld [vmem:[%s326 + $0x90] sm:%s319]
            %341 = vst [vmem:[%s327 + $0x90] sm:%s319] %v340
            %v342 = vld [vmem:[%s326 + $0xa8] sm:%s319]
            %343 = vst [vmem:[%s327 + $0xa8] sm:%s319] %v342
            %v344 = vld [vmem:[%s326 + $0xc0] sm:%s319]
            %345 = vst [vmem:[%s327 + $0xc0] sm:%s319] %v344
            %v346 = vld [vmem:[%s326 + $0xd8] sm:%s319]
            %347 = vst [vmem:[%s327 + $0xd8] sm:%s319] %v346
            %v348 = vld [vmem:[%s326 + $0xf0] sm:%s319]
            %349 = vst [vmem:[%s327 + $0xf0] sm:%s319] %v348
            %v350 = vld [vmem:[%s326 + $0x108] sm:%s319]
            %351 = vst [vmem:[%s327 + $0x108] sm:%s319] %v350
            %v352 = vld [vmem:[%s326 + $0x120] sm:%s319]
            %353 = vst [vmem:[%s327 + $0x120] sm:%s319] %v352
            %v354 = vld [vmem:[%s326 + $0x138] sm:%s319]
            %355 = vst [vmem:[%s327 + $0x138] sm:%s319] %v354
            %v356 = vld [vmem:[%s326 + $0x150] sm:%s319]
            %357 = vst [vmem:[%s327 + $0x150] sm:%s319] %v356
            %v358 = vld [vmem:[%s326 + $0x168] sm:%s319]
            %359 = vst [vmem:[%s327 + $0x168] sm:%s319] %v358
            %v360 = vld [vmem:[%s326 + $0x180] sm:%s319]
            %361 = vst [vmem:[%s327 + $0x180] sm:%s319] %v360
            %v362 = vld [vmem:[%s326 + $0x198] sm:%s319]
            %363 = vst [vmem:[%s327 + $0x198] sm:%s319] %v362
            %v364 = vld [vmem:[%s326 + $0x1b0] sm:%s319]
            %365 = vst [vmem:[%s327 + $0x1b0] sm:%s319] %v364
            %v366 = vld [vmem:[%s326 + $0x1c8] sm:%s319]
            %367 = vst [vmem:[%s327 + $0x1c8] sm:%s319] %v366
          $region56: #{tpu_custom_call.1} parent=43 // loop_footer
            %s325 = sadd.s32 1, %s321
          $region57: #{tpu_custom_call.1} parent=43 // loop_footer_branch
            %320 = sbr.rel target = $region53
          $region58: #{tpu_custom_call.1} parent=43 // loop_exit
            _
        $region44: #{tpu_custom_call.1} parent=35 // pred_fallthru
          _
        // Predicated region
        $region59: #{tpu_custom_call.1} parent=35 // pred_check
          _
        $region60: #{tpu_custom_call.1} parent=35 // pred_check_branch
          %370 = sbr.rel (0) target = $region62
        $region61: #{tpu_custom_call.1} parent=35 // pred_region
          %371 = vsyncadd [#allocation5], 5760
        $region62: #{tpu_custom_call.1} parent=35 // pred_fallthru
          _
        %372 = vst [vmem:[#allocation3] sm:$0x1] 0.0
        %373 = vst [vmem:[#allocation3 + $0x18] sm:$0x1] 0.0
        %374 = vst [vmem:[#allocation3 + $0x30] sm:$0x1] 0.0
        %375 = vst [vmem:[#allocation3 + $0x48] sm:$0x1] 0.0
        %376 = vst [vmem:[#allocation3 + $0x60] sm:$0x1] 0.0
        %377 = vst [vmem:[#allocation3 + $0x78] sm:$0x1] 0.0
        %378 = vst [vmem:[#allocation3 + $0x90] sm:$0x1] 0.0
        %379 = vst [vmem:[#allocation3 + $0xa8] sm:$0x1] 0.0
        %380 = vst [vmem:[#allocation3 + $0xc0] sm:$0x1] 0.0
        %381 = vst [vmem:[#allocation3 + $0xd8] sm:$0x1] 0.0
        %382 = vst [vmem:[#allocation3 + $0xf0] sm:$0x1] 0.0
        %383 = vst [vmem:[#allocation3 + $0x108] sm:$0x1] 0.0
        %384 = vst [vmem:[#allocation3 + $0x120] sm:$0x1] 0.0
        %385 = vst [vmem:[#allocation3 + $0x138] sm:$0x1] 0.0
        %386 = vst [vmem:[#allocation3 + $0x150] sm:$0x1] 0.0
        %387 = vst [vmem:[#allocation3 + $0x168] sm:$0x1] 0.0
        %388 = vst [vmem:[#allocation3 + $0x180] sm:$0x1] 0.0
        %389 = vst [vmem:[#allocation3 + $0x198] sm:$0x1] 0.0
        %390 = vst [vmem:[#allocation3 + $0x11] sm:$0x1] 0.0
        %391 = vst [vmem:[#allocation3 + $0x29] sm:$0x1] 0.0
        %392 = vst [vmem:[#allocation3 + $0x41] sm:$0x1] 0.0
        %393 = vst [vmem:[#allocation3 + $0x59] sm:$0x1] 0.0
        %394 = vst [vmem:[#allocation3 + $0x71] sm:$0x1] 0.0
        %395 = vst [vmem:[#allocation3 + $0x89] sm:$0x1] 0.0
        %396 = vst [vmem:[#allocation3 + $0xa1] sm:$0x1] 0.0
        %397 = vst [vmem:[#allocation3 + $0xb9] sm:$0x1] 0.0
        %398 = vst [vmem:[#allocation3 + $0xd1] sm:$0x1] 0.0
        %399 = vst [vmem:[#allocation3 + $0xe9] sm:$0x1] 0.0
        %400 = vst [vmem:[#allocation3 + $0x101] sm:$0x1] 0.0
        %401 = vst [vmem:[#allocation3 + $0x119] sm:$0x1] 0.0
        %402 = vst [vmem:[#allocation3 + $0x131] sm:$0x1] 0.0
        %403 = vst [vmem:[#allocation3 + $0x149] sm:$0x1] 0.0
        %404 = vst [vmem:[#allocation3 + $0x161] sm:$0x1] 0.0
        %405 = vst [vmem:[#allocation3 + $0x179] sm:$0x1] 0.0
        %406 = vst [vmem:[#allocation3 + $0x191] sm:$0x1] 0.0
        %407 = vst [vmem:[#allocation3 + $0x1a9] sm:$0x1] 0.0
        %s408 = smul.u32 20, 18
        %s409 = smul.u32 %s408, 1
        %s410 = sshll.u32 %s409, 4
        %411 = dma.done [#allocation5], %s410
        %412 = vst [vmem:[#allocation4] sm:$0xff] 0.0
        %413 = vst [vmem:[#allocation4 + $0x8] sm:$0xff] 0.0
        %414 = vst [vmem:[#allocation4 + $0x10] sm:$0xff] 0.0
        %415 = vst [vmem:[#allocation4 + $0x18] sm:$0xff] 0.0
        %416 = vst [vmem:[#allocation4 + $0x20] sm:$0xff] 0.0
        %417 = vst [vmem:[#allocation4 + $0x28] sm:$0xff] 0.0
        %418 = vst [vmem:[#allocation4 + $0x30] sm:$0xff] 0.0
        %419 = vst [vmem:[#allocation4 + $0x38] sm:$0xff] 0.0
        %420 = vst [vmem:[#allocation4 + $0x40] sm:$0xff] 0.0
        %421 = vst [vmem:[#allocation4 + $0x48] sm:$0xff] 0.0
        %422 = vst [vmem:[#allocation4 + $0x50] sm:$0xff] 0.0
        %423 = vst [vmem:[#allocation4 + $0x58] sm:$0xff] 0.0
        %424 = vst [vmem:[#allocation4 + $0x60] sm:$0xff] 0.0
        %425 = vst [vmem:[#allocation4 + $0x68] sm:$0xff] 0.0
        %426 = vst [vmem:[#allocation4 + $0x70] sm:$0xff] 0.0
        %427 = vst [vmem:[#allocation4 + $0x78] sm:$0xff] 0.0
        %428 = vst [vmem:[#allocation4 + $0x80] sm:$0xff] 0.0
        %429 = vst [vmem:[#allocation4 + $0x88] sm:$0xff] 0.0
        %430 = vst [vmem:[#allocation4 + $0x90] sm:$0xff] 0.0
        %431 = vst [vmem:[#allocation4 + $0x98] sm:$0xff] 0.0
        %432 = vst [vmem:[#allocation4 + $0xa0] sm:$0xff] 0.0
        %433 = vst [vmem:[#allocation4 + $0xa8] sm:$0xff] 0.0
        %434 = vst [vmem:[#allocation4 + $0xb0] sm:$0xff] 0.0
        %435 = vst [vmem:[#allocation4 + $0xb8] sm:$0xff] 0.0
        %436 = vst [vmem:[#allocation4 + $0xc0] sm:$0xff] 0.0
        %437 = vst [vmem:[#allocation4 + $0xc8] sm:$0xff] 0.0
        %438 = vst [vmem:[#allocation4 + $0xd0] sm:$0xff] 0.0
        %439 = vst [vmem:[#allocation4 + $0xd8] sm:$0xff] 0.0
        %440 = vst [vmem:[#allocation4 + $0xe0] sm:$0xff] 0.0
        %441 = vst [vmem:[#allocation4 + $0xe8] sm:$0xff] 0.0
        %442 = vst [vmem:[#allocation4 + $0xf0] sm:$0xff] 0.0
        %443 = vst [vmem:[#allocation4 + $0xf8] sm:$0xff] 0.0
        %444 = vst [vmem:[#allocation4 + $0x100] sm:$0xff] 0.0
        %445 = vst [vmem:[#allocation4 + $0x108] sm:$0xff] 0.0
        %446 = vst [vmem:[#allocation4 + $0x110] sm:$0xff] 0.0
        %447 = vst [vmem:[#allocation4 + $0x118] sm:$0xff] 0.0
        %v448 = vld [vmem:[#allocation2] sm:$0xff]
        %v449 = vld [vmem:[#allocation2 + $0x8] sm:$0xff]
        %v450 = vld [vmem:[#allocation2 + $0x18] sm:$0xff]
        %v451 = vld [vmem:[#allocation2 + $0x20] sm:$0xff]
        %v452 = vld [vmem:[#allocation2 + $0x30] sm:$0xff]
        %v453 = vld [vmem:[#allocation2 + $0x38] sm:$0xff]
        %v454 = vld [vmem:[#allocation2 + $0x48] sm:$0xff]
        %v455 = vld [vmem:[#allocation2 + $0x50] sm:$0xff]
        %v456 = vld [vmem:[#allocation2 + $0x60] sm:$0xff]
        %v457 = vld [vmem:[#allocation2 + $0x68] sm:$0xff]
        %v458 = vld [vmem:[#allocation2 + $0x78] sm:$0xff]
        %v459 = vld [vmem:[#allocation2 + $0x80] sm:$0xff]
        %v460 = vld [vmem:[#allocation2 + $0x90] sm:$0xff]
        %v461 = vld [vmem:[#allocation2 + $0x98] sm:$0xff]
        %v462 = vld [vmem:[#allocation2 + $0xa8] sm:$0xff]
        %v463 = vld [vmem:[#allocation2 + $0xb0] sm:$0xff]
        %v464 = vld [vmem:[#allocation2 + $0xc0] sm:$0xff]
        %v465 = vld [vmem:[#allocation2 + $0xc8] sm:$0xff]
        %v466 = vld [vmem:[#allocation2 + $0xd8] sm:$0xff]
        %v467 = vld [vmem:[#allocation2 + $0xe0] sm:$0xff]
        %v468 = vld [vmem:[#allocation2 + $0xf0] sm:$0xff]
        %v469 = vld [vmem:[#allocation2 + $0xf8] sm:$0xff]
        %v470 = vld [vmem:[#allocation2 + $0x108] sm:$0xff]
        %v471 = vld [vmem:[#allocation2 + $0x110] sm:$0xff]
        %v472 = vld [vmem:[#allocation2 + $0x120] sm:$0xff]
        %v473 = vld [vmem:[#allocation2 + $0x128] sm:$0xff]
        %v474 = vld [vmem:[#allocation2 + $0x138] sm:$0xff]
        %v475 = vld [vmem:[#allocation2 + $0x140] sm:$0xff]
        %v476 = vld [vmem:[#allocation2 + $0x150] sm:$0xff]
        %v477 = vld [vmem:[#allocation2 + $0x158] sm:$0xff]
        %v478 = vld [vmem:[#allocation2 + $0x168] sm:$0xff]
        %v479 = vld [vmem:[#allocation2 + $0x170] sm:$0xff]
        %v480 = vld [vmem:[#allocation2 + $0x180] sm:$0xff]
        %v481 = vld [vmem:[#allocation2 + $0x188] sm:$0xff]
        %v482 = vld [vmem:[#allocation2 + $0x198] sm:$0xff]
        %v483 = vld [vmem:[#allocation2 + $0x1a0] sm:$0xff]
        %v484 = vld [vmem:[#allocation4] sm:$0xff]
        %v485 = vld [vmem:[#allocation4 + $0x8] sm:$0xff]
        %v486 = vld [vmem:[#allocation4 + $0x10] sm:$0xff]
        %v487 = vld [vmem:[#allocation4 + $0x18] sm:$0xff]
        %v488 = vld [vmem:[#allocation4 + $0x20] sm:$0xff]
        %v489 = vld [vmem:[#allocation4 + $0x28] sm:$0xff]
        %v490 = vld [vmem:[#allocation4 + $0x30] sm:$0xff]
        %v491 = vld [vmem:[#allocation4 + $0x38] sm:$0xff]
        %v492 = vld [vmem:[#allocation4 + $0x40] sm:$0xff]
        %v493 = vld [vmem:[#allocation4 + $0x48] sm:$0xff]
        %v494 = vld [vmem:[#allocation4 + $0x50] sm:$0xff]
        %v495 = vld [vmem:[#allocation4 + $0x58] sm:$0xff]
        %v496 = vld [vmem:[#allocation4 + $0x60] sm:$0xff]
        %v497 = vld [vmem:[#allocation4 + $0x68] sm:$0xff]
        %v498 = vld [vmem:[#allocation4 + $0x70] sm:$0xff]
        %v499 = vld [vmem:[#allocation4 + $0x78] sm:$0xff]
        %v500 = vld [vmem:[#allocation4 + $0x80] sm:$0xff]
        %v501 = vld [vmem:[#allocation4 + $0x88] sm:$0xff]
        %v502 = vld [vmem:[#allocation4 + $0x90] sm:$0xff]
        %v503 = vld [vmem:[#allocation4 + $0x98] sm:$0xff]
        %v504 = vld [vmem:[#allocation4 + $0xa0] sm:$0xff]
        %v505 = vld [vmem:[#allocation4 + $0xa8] sm:$0xff]
        %v506 = vld [vmem:[#allocation4 + $0xb0] sm:$0xff]
        %v507 = vld [vmem:[#allocation4 + $0xb8] sm:$0xff]
        %v508 = vld [vmem:[#allocation4 + $0xc0] sm:$0xff]
        %v509 = vld [vmem:[#allocation4 + $0xc8] sm:$0xff]
        %v510 = vld [vmem:[#allocation4 + $0xd0] sm:$0xff]
        %v511 = vld [vmem:[#allocation4 + $0xd8] sm:$0xff]
        %v512 = vld [vmem:[#allocation4 + $0xe0] sm:$0xff]
        %v513 = vld [vmem:[#allocation4 + $0xe8] sm:$0xff]
        %v514 = vld [vmem:[#allocation4 + $0xf0] sm:$0xff]
        %v515 = vld [vmem:[#allocation4 + $0xf8] sm:$0xff]
        %v516 = vld [vmem:[#allocation4 + $0x100] sm:$0xff]
        %v517 = vld [vmem:[#allocation4 + $0x108] sm:$0xff]
        %v518 = vld [vmem:[#allocation4 + $0x110] sm:$0xff]
        %v519 = vld [vmem:[#allocation4 + $0x118] sm:$0xff]
        %v520 = vld [vmem:[%s1] sm:$0xff]
        %v521 = vld [vmem:[%s1 + $0x8] sm:$0xff]
        %v522 = vld [vmem:[%s1 + $0x10] sm:$0xff]
        %v523 = vld [vmem:[%s1 + $0x18] sm:$0xff]
        %v524 = vld [vmem:[%s1 + $0x20] sm:$0xff]
        %v525 = vld [vmem:[%s1 + $0x28] sm:$0xff]
        %v526 = vld [vmem:[%s1 + $0x30] sm:$0xff]
        %v527 = vld [vmem:[%s1 + $0x38] sm:$0xff]
        %v528 = vld [vmem:[%s1 + $0x40] sm:$0xff]
        %v529 = vld [vmem:[%s1 + $0x48] sm:$0xff]
        %v530 = vld [vmem:[%s1 + $0x50] sm:$0xff]
        %v531 = vld [vmem:[%s1 + $0x58] sm:$0xff]
        %v532 = vld [vmem:[%s1 + $0x60] sm:$0xff]
        %v533 = vld [vmem:[%s1 + $0x68] sm:$0xff]
        %v534 = vld [vmem:[%s1 + $0x70] sm:$0xff]
        %v535 = vld [vmem:[%s1 + $0x78] sm:$0xff]
        %536 = vmatpush.msra.mxu0 %v535
        %537 = vmatpush.msra.mxu0 %v534
        %538 = vmatpush.msra.mxu0 %v533
        %539 = vmatpush.msra.mxu0 %v532
        %540 = vmatpush.msra.mxu0 %v531
        %541 = vmatpush.msra.mxu0 %v530
        %542 = vmatpush.msra.mxu0 %v529
        %543 = vmatpush.msra.mxu0 %v528
        %544 = vmatpush.msra.mxu0 %v527
        %545 = vmatpush.msra.mxu0 %v526
        %546 = vmatpush.msra.mxu0 %v525
        %547 = vmatpush.msra.mxu0 %v524
        %548 = vmatpush.msra.mxu0 %v523
        %549 = vmatpush.msra.mxu0 %v522
        %550 = vmatpush.msra.mxu0 %v521
        %551 = vmatpush.msra.mxu0 %v520
        %552 = vmatmul.f32.gmra.mxu0 %v448
        %v553 = vpop.f32.mrf.mxu0
        %v554 = vadd.f32 0.0, %v553
        %555 = vmatmul.f32.gmra.mxu0 %v449
        %v556 = vpop.f32.mrf.mxu0
        %v557 = vadd.f32 0.0, %v556
        %558 = vmatmul.f32.gmra.mxu0 %v450
        %v559 = vpop.f32.mrf.mxu0
        %v560 = vadd.f32 0.0, %v559
        %561 = vmatmul.f32.gmra.mxu0 %v451
        %v562 = vpop.f32.mrf.mxu0
        %v563 = vadd.f32 0.0, %v562
        %564 = vmatmul.f32.gmra.mxu0 %v452
        %v565 = vpop.f32.mrf.mxu0
        %v566 = vadd.f32 0.0, %v565
        %567 = vmatmul.f32.gmra.mxu0 %v453
        %v568 = vpop.f32.mrf.mxu0
        %v569 = vadd.f32 0.0, %v568
        %570 = vmatmul.f32.gmra.mxu0 %v454
        %v571 = vpop.f32.mrf.mxu0
        %v572 = vadd.f32 0.0, %v571
        %573 = vmatmul.f32.gmra.mxu0 %v455
        %v574 = vpop.f32.mrf.mxu0
        %v575 = vadd.f32 0.0, %v574
        %576 = vmatmul.f32.gmra.mxu0 %v456
        %v577 = vpop.f32.mrf.mxu0
        %v578 = vadd.f32 0.0, %v577
        %579 = vmatmul.f32.gmra.mxu0 %v457
        %v580 = vpop.f32.mrf.mxu0
        %v581 = vadd.f32 0.0, %v580
        %582 = vmatmul.f32.gmra.mxu0 %v458
        %v583 = vpop.f32.mrf.mxu0
        %v584 = vadd.f32 0.0, %v583
        %585 = vmatmul.f32.gmra.mxu0 %v459
        %v586 = vpop.f32.mrf.mxu0
        %v587 = vadd.f32 0.0, %v586
        %588 = vmatmul.f32.gmra.mxu0 %v460
        %v589 = vpop.f32.mrf.mxu0
        %v590 = vadd.f32 0.0, %v589
        %591 = vmatmul.f32.gmra.mxu0 %v461
        %v592 = vpop.f32.mrf.mxu0
        %v593 = vadd.f32 0.0, %v592
        %594 = vmatmul.f32.gmra.mxu0 %v462
        %v595 = vpop.f32.mrf.mxu0
        %v596 = vadd.f32 0.0, %v595
        %597 = vmatmul.f32.gmra.mxu0 %v463
        %v598 = vpop.f32.mrf.mxu0
        %v599 = vadd.f32 0.0, %v598
        %600 = vmatmul.f32.gmra.mxu0 %v464
        %v601 = vpop.f32.mrf.mxu0
        %v602 = vadd.f32 0.0, %v601
        %603 = vmatmul.f32.gmra.mxu0 %v465
        %v604 = vpop.f32.mrf.mxu0
        %v605 = vadd.f32 0.0, %v604
        %606 = vmatmul.f32.gmra.mxu0 %v466
        %v607 = vpop.f32.mrf.mxu0
        %v608 = vadd.f32 0.0, %v607
        %609 = vmatmul.f32.gmra.mxu0 %v467
        %v610 = vpop.f32.mrf.mxu0
        %v611 = vadd.f32 0.0, %v610
        %612 = vmatmul.f32.gmra.mxu0 %v468
        %v613 = vpop.f32.mrf.mxu0
        %v614 = vadd.f32 0.0, %v613
        %615 = vmatmul.f32.gmra.mxu0 %v469
        %v616 = vpop.f32.mrf.mxu0
        %v617 = vadd.f32 0.0, %v616
        %618 = vmatmul.f32.gmra.mxu0 %v470
        %v619 = vpop.f32.mrf.mxu0
        %v620 = vadd.f32 0.0, %v619
        %621 = vmatmul.f32.gmra.mxu0 %v471
        %v622 = vpop.f32.mrf.mxu0
        %v623 = vadd.f32 0.0, %v622
        %624 = vmatmul.f32.gmra.mxu0 %v472
        %v625 = vpop.f32.mrf.mxu0
        %v626 = vadd.f32 0.0, %v625
        %627 = vmatmul.f32.gmra.mxu0 %v473
        %v628 = vpop.f32.mrf.mxu0
        %v629 = vadd.f32 0.0, %v628
        %630 = vmatmul.f32.gmra.mxu0 %v474
        %v631 = vpop.f32.mrf.mxu0
        %v632 = vadd.f32 0.0, %v631
        %633 = vmatmul.f32.gmra.mxu0 %v475
        %v634 = vpop.f32.mrf.mxu0
        %v635 = vadd.f32 0.0, %v634
        %636 = vmatmul.f32.gmra.mxu0 %v476
        %v637 = vpop.f32.mrf.mxu0
        %v638 = vadd.f32 0.0, %v637
        %639 = vmatmul.f32.gmra.mxu0 %v477
        %v640 = vpop.f32.mrf.mxu0
        %v641 = vadd.f32 0.0, %v640
        %642 = vmatmul.f32.gmra.mxu0 %v478
        %v643 = vpop.f32.mrf.mxu0
        %v644 = vadd.f32 0.0, %v643
        %645 = vmatmul.f32.gmra.mxu0 %v479
        %v646 = vpop.f32.mrf.mxu0
        %v647 = vadd.f32 0.0, %v646
        %648 = vmatmul.f32.gmra.mxu0 %v480
        %v649 = vpop.f32.mrf.mxu0
        %v650 = vadd.f32 0.0, %v649
        %651 = vmatmul.f32.gmra.mxu0 %v481
        %v652 = vpop.f32.mrf.mxu0
        %v653 = vadd.f32 0.0, %v652
        %654 = vmatmul.f32.gmra.mxu0 %v482
        %v655 = vpop.f32.mrf.mxu0
        %v656 = vadd.f32 0.0, %v655
        %657 = vmatmul.f32.gmra.mxu0 %v483
        %v658 = vpop.f32.mrf.mxu0
        %v659 = vadd.f32 0.0, %v658
        %660 = vdwg.mxu0
        %v661 = vadd.f32 %v484, %v554
        %v662 = vadd.f32 %v485, %v557
        %v663 = vadd.f32 %v486, %v560
        %v664 = vadd.f32 %v487, %v563
        %v665 = vadd.f32 %v488, %v566
        %v666 = vadd.f32 %v489, %v569
        %v667 = vadd.f32 %v490, %v572
        %v668 = vadd.f32 %v491, %v575
        %v669 = vadd.f32 %v492, %v578
        %v670 = vadd.f32 %v493, %v581
        %v671 = vadd.f32 %v494, %v584
        %v672 = vadd.f32 %v495, %v587
        %v673 = vadd.f32 %v496, %v590
        %v674 = vadd.f32 %v497, %v593
        %v675 = vadd.f32 %v498, %v596
        %v676 = vadd.f32 %v499, %v599
        %v677 = vadd.f32 %v500, %v602
        %v678 = vadd.f32 %v501, %v605
        %v679 = vadd.f32 %v502, %v608
        %v680 = vadd.f32 %v503, %v611
        %v681 = vadd.f32 %v504, %v614
        %v682 = vadd.f32 %v505, %v617
        %v683 = vadd.f32 %v506, %v620
        %v684 = vadd.f32 %v507, %v623
        %v685 = vadd.f32 %v508, %v626
        %v686 = vadd.f32 %v509, %v629
        %v687 = vadd.f32 %v510, %v632
        %v688 = vadd.f32 %v511, %v635
        %v689 = vadd.f32 %v512, %v638
        %v690 = vadd.f32 %v513, %v641
        %v691 = vadd.f32 %v514, %v644
        %v692 = vadd.f32 %v515, %v647
        %v693 = vadd.f32 %v516, %v650
        %v694 = vadd.f32 %v517, %v653
        %v695 = vadd.f32 %v518, %v656
        %v696 = vadd.f32 %v519, %v659
        %697 = vst [vmem:[#allocation4] sm:$0xff] %v661
        %698 = vst [vmem:[#allocation4 + $0x8] sm:$0xff] %v662
        %699 = vst [vmem:[#allocation4 + $0x10] sm:$0xff] %v663
        %700 = vst [vmem:[#allocation4 + $0x18] sm:$0xff] %v664
        %701 = vst [vmem:[#allocation4 + $0x20] sm:$0xff] %v665
        %702 = vst [vmem:[#allocation4 + $0x28] sm:$0xff] %v666
        %703 = vst [vmem:[#allocation4 + $0x30] sm:$0xff] %v667
        %704 = vst [vmem:[#allocation4 + $0x38] sm:$0xff] %v668
        %705 = vst [vmem:[#allocation4 + $0x40] sm:$0xff] %v669
        %706 = vst [vmem:[#allocation4 + $0x48] sm:$0xff] %v670
        %707 = vst [vmem:[#allocation4 + $0x50] sm:$0xff] %v671
        %708 = vst [vmem:[#allocation4 + $0x58] sm:$0xff] %v672
        %709 = vst [vmem:[#allocation4 + $0x60] sm:$0xff] %v673
        %710 = vst [vmem:[#allocation4 + $0x68] sm:$0xff] %v674
        %711 = vst [vmem:[#allocation4 + $0x70] sm:$0xff] %v675
        %712 = vst [vmem:[#allocation4 + $0x78] sm:$0xff] %v676
        %713 = vst [vmem:[#allocation4 + $0x80] sm:$0xff] %v677
        %714 = vst [vmem:[#allocation4 + $0x88] sm:$0xff] %v678
        %715 = vst [vmem:[#allocation4 + $0x90] sm:$0xff] %v679
        %716 = vst [vmem:[#allocation4 + $0x98] sm:$0xff] %v680
        %717 = vst [vmem:[#allocation4 + $0xa0] sm:$0xff] %v681
        %718 = vst [vmem:[#allocation4 + $0xa8] sm:$0xff] %v682
        %719 = vst [vmem:[#allocation4 + $0xb0] sm:$0xff] %v683
        %720 = vst [vmem:[#allocation4 + $0xb8] sm:$0xff] %v684
        %721 = vst [vmem:[#allocation4 + $0xc0] sm:$0xff] %v685
        %722 = vst [vmem:[#allocation4 + $0xc8] sm:$0xff] %v686
        %723 = vst [vmem:[#allocation4 + $0xd0] sm:$0xff] %v687
        %724 = vst [vmem:[#allocation4 + $0xd8] sm:$0xff] %v688
        %725 = vst [vmem:[#allocation4 + $0xe0] sm:$0xff] %v689
        %726 = vst [vmem:[#allocation4 + $0xe8] sm:$0xff] %v690
        %727 = vst [vmem:[#allocation4 + $0xf0] sm:$0xff] %v691
        %728 = vst [vmem:[#allocation4 + $0xf8] sm:$0xff] %v692
        %729 = vst [vmem:[#allocation4 + $0x100] sm:$0xff] %v693
        %730 = vst [vmem:[#allocation4 + $0x108] sm:$0xff] %v694
        %731 = vst [vmem:[#allocation4 + $0x110] sm:$0xff] %v695
        %732 = vst [vmem:[#allocation4 + $0x118] sm:$0xff] %v696
        %v733 = vld [vmem:[#allocation2 + $0x1] sm:$0xff]
        %v734 = vld [vmem:[#allocation2 + $0x9] sm:$0xff]
        %v735 = vld [vmem:[#allocation2 + $0x19] sm:$0xff]
        %v736 = vld [vmem:[#allocation2 + $0x21] sm:$0xff]
        %v737 = vld [vmem:[#allocation2 + $0x31] sm:$0xff]
        %v738 = vld [vmem:[#allocation2 + $0x39] sm:$0xff]
        %v739 = vld [vmem:[#allocation2 + $0x49] sm:$0xff]
        %v740 = vld [vmem:[#allocation2 + $0x51] sm:$0xff]
        %v741 = vld [vmem:[#allocation2 + $0x61] sm:$0xff]
        %v742 = vld [vmem:[#allocation2 + $0x69] sm:$0xff]
        %v743 = vld [vmem:[#allocation2 + $0x79] sm:$0xff]
        %v744 = vld [vmem:[#allocation2 + $0x81] sm:$0xff]
        %v745 = vld [vmem:[#allocation2 + $0x91] sm:$0xff]
        %v746 = vld [vmem:[#allocation2 + $0x99] sm:$0xff]
        %v747 = vld [vmem:[#allocation2 + $0xa9] sm:$0xff]
        %v748 = vld [vmem:[#allocation2 + $0xb1] sm:$0xff]
        %v749 = vld [vmem:[#allocation2 + $0xc1] sm:$0xff]
        %v750 = vld [vmem:[#allocation2 + $0xc9] sm:$0xff]
        %v751 = vld [vmem:[#allocation2 + $0xd9] sm:$0xff]
        %v752 = vld [vmem:[#allocation2 + $0xe1] sm:$0xff]
        %v753 = vld [vmem:[#allocation2 + $0xf1] sm:$0xff]
        %v754 = vld [vmem:[#allocation2 + $0xf9] sm:$0xff]
        %v755 = vld [vmem:[#allocation2 + $0x109] sm:$0xff]
        %v756 = vld [vmem:[#allocation2 + $0x111] sm:$0xff]
        %v757 = vld [vmem:[#allocation2 + $0x121] sm:$0xff]
        %v758 = vld [vmem:[#allocation2 + $0x129] sm:$0xff]
        %v759 = vld [vmem:[#allocation2 + $0x139] sm:$0xff]
        %v760 = vld [vmem:[#allocation2 + $0x141] sm:$0xff]
        %v761 = vld [vmem:[#allocation2 + $0x151] sm:$0xff]
        %v762 = vld [vmem:[#allocation2 + $0x159] sm:$0xff]
        %v763 = vld [vmem:[#allocation2 + $0x169] sm:$0xff]
        %v764 = vld [vmem:[#allocation2 + $0x171] sm:$0xff]
        %v765 = vld [vmem:[#allocation2 + $0x181] sm:$0xff]
        %v766 = vld [vmem:[#allocation2 + $0x189] sm:$0xff]
        %v767 = vld [vmem:[#allocation2 + $0x199] sm:$0xff]
        %v768 = vld [vmem:[#allocation2 + $0x1a1] sm:$0xff]
        %v769 = vld [vmem:[#allocation4] sm:$0xff]
        %v770 = vld [vmem:[#allocation4 + $0x8] sm:$0xff]
        %v771 = vld [vmem:[#allocation4 + $0x10] sm:$0xff]
        %v772 = vld [vmem:[#allocation4 + $0x18] sm:$0xff]
        %v773 = vld [vmem:[#allocation4 + $0x20] sm:$0xff]
        %v774 = vld [vmem:[#allocation4 + $0x28] sm:$0xff]
        %v775 = vld [vmem:[#allocation4 + $0x30] sm:$0xff]
        %v776 = vld [vmem:[#allocation4 + $0x38] sm:$0xff]
        %v777 = vld [vmem:[#allocation4 + $0x40] sm:$0xff]
        %v778 = vld [vmem:[#allocation4 + $0x48] sm:$0xff]
        %v779 = vld [vmem:[#allocation4 + $0x50] sm:$0xff]
        %v780 = vld [vmem:[#allocation4 + $0x58] sm:$0xff]
        %v781 = vld [vmem:[#allocation4 + $0x60] sm:$0xff]
        %v782 = vld [vmem:[#allocation4 + $0x68] sm:$0xff]
        %v783 = vld [vmem:[#allocation4 + $0x70] sm:$0xff]
        %v784 = vld [vmem:[#allocation4 + $0x78] sm:$0xff]
        %v785 = vld [vmem:[#allocation4 + $0x80] sm:$0xff]
        %v786 = vld [vmem:[#allocation4 + $0x88] sm:$0xff]
        %v787 = vld [vmem:[#allocation4 + $0x90] sm:$0xff]
        %v788 = vld [vmem:[#allocation4 + $0x98] sm:$0xff]
        %v789 = vld [vmem:[#allocation4 + $0xa0] sm:$0xff]
        %v790 = vld [vmem:[#allocation4 + $0xa8] sm:$0xff]
        %v791 = vld [vmem:[#allocation4 + $0xb0] sm:$0xff]
        %v792 = vld [vmem:[#allocation4 + $0xb8] sm:$0xff]
        %v793 = vld [vmem:[#allocation4 + $0xc0] sm:$0xff]
        %v794 = vld [vmem:[#allocation4 + $0xc8] sm:$0xff]
        %v795 = vld [vmem:[#allocation4 + $0xd0] sm:$0xff]
        %v796 = vld [vmem:[#allocation4 + $0xd8] sm:$0xff]
        %v797 = vld [vmem:[#allocation4 + $0xe0] sm:$0xff]
        %v798 = vld [vmem:[#allocation4 + $0xe8] sm:$0xff]
        %v799 = vld [vmem:[#allocation4 + $0xf0] sm:$0xff]
        %v800 = vld [vmem:[#allocation4 + $0xf8] sm:$0xff]
        %v801 = vld [vmem:[#allocation4 + $0x100] sm:$0xff]
        %v802 = vld [vmem:[#allocation4 + $0x108] sm:$0xff]
        %v803 = vld [vmem:[#allocation4 + $0x110] sm:$0xff]
        %v804 = vld [vmem:[#allocation4 + $0x118] sm:$0xff]
        %v805 = vld [vmem:[%s1 + $0x80] sm:$0xff]
        %v806 = vld [vmem:[%s1 + $0x88] sm:$0xff]
        %v807 = vld [vmem:[%s1 + $0x90] sm:$0xff]
        %v808 = vld [vmem:[%s1 + $0x98] sm:$0xff]
        %v809 = vld [vmem:[%s1 + $0xa0] sm:$0xff]
        %v810 = vld [vmem:[%s1 + $0xa8] sm:$0xff]
        %v811 = vld [vmem:[%s1 + $0xb0] sm:$0xff]
        %v812 = vld [vmem:[%s1 + $0xb8] sm:$0xff]
        %v813 = vld [vmem:[%s1 + $0xc0] sm:$0xff]
        %v814 = vld [vmem:[%s1 + $0xc8] sm:$0xff]
        %v815 = vld [vmem:[%s1 + $0xd0] sm:$0xff]
        %v816 = vld [vmem:[%s1 + $0xd8] sm:$0xff]
        %v817 = vld [vmem:[%s1 + $0xe0] sm:$0xff]
        %v818 = vld [vmem:[%s1 + $0xe8] sm:$0xff]
        %v819 = vld [vmem:[%s1 + $0xf0] sm:$0xff]
        %v820 = vld [vmem:[%s1 + $0xf8] sm:$0xff]
        %821 = vmatpush.msra.mxu0 %v820
        %822 = vmatpush.msra.mxu0 %v819
        %823 = vmatpush.msra.mxu0 %v818
        %824 = vmatpush.msra.mxu0 %v817
        %825 = vmatpush.msra.mxu0 %v816
        %826 = vmatpush.msra.mxu0 %v815
        %827 = vmatpush.msra.mxu0 %v814
        %828 = vmatpush.msra.mxu0 %v813
        %829 = vmatpush.msra.mxu0 %v812
        %830 = vmatpush.msra.mxu0 %v811
        %831 = vmatpush.msra.mxu0 %v810
        %832 = vmatpush.msra.mxu0 %v809
        %833 = vmatpush.msra.mxu0 %v808
        %834 = vmatpush.msra.mxu0 %v807
        %835 = vmatpush.msra.mxu0 %v806
        %836 = vmatpush.msra.mxu0 %v805
        %837 = vmatmul.f32.gmra.mxu0 %v733
        %v838 = vpop.f32.mrf.mxu0
        %v839 = vadd.f32 0.0, %v838
        %840 = vmatmul.f32.gmra.mxu0 %v734
        %v841 = vpop.f32.mrf.mxu0
        %v842 = vadd.f32 0.0, %v841
        %843 = vmatmul.f32.gmra.mxu0 %v735
        %v844 = vpop.f32.mrf.mxu0
        %v845 = vadd.f32 0.0, %v844
        %846 = vmatmul.f32.gmra.mxu0 %v736
        %v847 = vpop.f32.mrf.mxu0
        %v848 = vadd.f32 0.0, %v847
        %849 = vmatmul.f32.gmra.mxu0 %v737
        %v850 = vpop.f32.mrf.mxu0
        %v851 = vadd.f32 0.0, %v850
        %852 = vmatmul.f32.gmra.mxu0 %v738
        %v853 = vpop.f32.mrf.mxu0
        %v854 = vadd.f32 0.0, %v853
        %855 = vmatmul.f32.gmra.mxu0 %v739
        %v856 = vpop.f32.mrf.mxu0
        %v857 = vadd.f32 0.0, %v856
        %858 = vmatmul.f32.gmra.mxu0 %v740
        %v859 = vpop.f32.mrf.mxu0
        %v860 = vadd.f32 0.0, %v859
        %861 = vmatmul.f32.gmra.mxu0 %v741
        %v862 = vpop.f32.mrf.mxu0
        %v863 = vadd.f32 0.0, %v862
        %864 = vmatmul.f32.gmra.mxu0 %v742
        %v865 = vpop.f32.mrf.mxu0
        %v866 = vadd.f32 0.0, %v865
        %867 = vmatmul.f32.gmra.mxu0 %v743
        %v868 = vpop.f32.mrf.mxu0
        %v869 = vadd.f32 0.0, %v868
        %870 = vmatmul.f32.gmra.mxu0 %v744
        %v871 = vpop.f32.mrf.mxu0
        %v872 = vadd.f32 0.0, %v871
        %873 = vmatmul.f32.gmra.mxu0 %v745
        %v874 = vpop.f32.mrf.mxu0
        %v875 = vadd.f32 0.0, %v874
        %876 = vmatmul.f32.gmra.mxu0 %v746
        %v877 = vpop.f32.mrf.mxu0
        %v878 = vadd.f32 0.0, %v877
        %879 = vmatmul.f32.gmra.mxu0 %v747
        %v880 = vpop.f32.mrf.mxu0
        %v881 = vadd.f32 0.0, %v880
        %882 = vmatmul.f32.gmra.mxu0 %v748
        %v883 = vpop.f32.mrf.mxu0
        %v884 = vadd.f32 0.0, %v883
        %885 = vmatmul.f32.gmra.mxu0 %v749
        %v886 = vpop.f32.mrf.mxu0
        %v887 = vadd.f32 0.0, %v886
        %888 = vmatmul.f32.gmra.mxu0 %v750
        %v889 = vpop.f32.mrf.mxu0
        %v890 = vadd.f32 0.0, %v889
        %891 = vmatmul.f32.gmra.mxu0 %v751
        %v892 = vpop.f32.mrf.mxu0
        %v893 = vadd.f32 0.0, %v892
        %894 = vmatmul.f32.gmra.mxu0 %v752
        %v895 = vpop.f32.mrf.mxu0
        %v896 = vadd.f32 0.0, %v895
        %897 = vmatmul.f32.gmra.mxu0 %v753
        %v898 = vpop.f32.mrf.mxu0
        %v899 = vadd.f32 0.0, %v898
        %900 = vmatmul.f32.gmra.mxu0 %v754
        %v901 = vpop.f32.mrf.mxu0
        %v902 = vadd.f32 0.0, %v901
        %903 = vmatmul.f32.gmra.mxu0 %v755
        %v904 = vpop.f32.mrf.mxu0
        %v905 = vadd.f32 0.0, %v904
        %906 = vmatmul.f32.gmra.mxu0 %v756
        %v907 = vpop.f32.mrf.mxu0
        %v908 = vadd.f32 0.0, %v907
        %909 = vmatmul.f32.gmra.mxu0 %v757
        %v910 = vpop.f32.mrf.mxu0
        %v911 = vadd.f32 0.0, %v910
        %912 = vmatmul.f32.gmra.mxu0 %v758
        %v913 = vpop.f32.mrf.mxu0
        %v914 = vadd.f32 0.0, %v913
        %915 = vmatmul.f32.gmra.mxu0 %v759
        %v916 = vpop.f32.mrf.mxu0
        %v917 = vadd.f32 0.0, %v916
        %918 = vmatmul.f32.gmra.mxu0 %v760
        %v919 = vpop.f32.mrf.mxu0
        %v920 = vadd.f32 0.0, %v919
        %921 = vmatmul.f32.gmra.mxu0 %v761
        %v922 = vpop.f32.mrf.mxu0
        %v923 = vadd.f32 0.0, %v922
        %924 = vmatmul.f32.gmra.mxu0 %v762
        %v925 = vpop.f32.mrf.mxu0
        %v926 = vadd.f32 0.0, %v925
        %927 = vmatmul.f32.gmra.mxu0 %v763
        %v928 = vpop.f32.mrf.mxu0
        %v929 = vadd.f32 0.0, %v928
        %930 = vmatmul.f32.gmra.mxu0 %v764
        %v931 = vpop.f32.mrf.mxu0
        %v932 = vadd.f32 0.0, %v931
        %933 = vmatmul.f32.gmra.mxu0 %v765
        %v934 = vpop.f32.mrf.mxu0
        %v935 = vadd.f32 0.0, %v934
        %936 = vmatmul.f32.gmra.mxu0 %v766
        %v937 = vpop.f32.mrf.mxu0
        %v938 = vadd.f32 0.0, %v937
        %939 = vmatmul.f32.gmra.mxu0 %v767
        %v940 = vpop.f32.mrf.mxu0
        %v941 = vadd.f32 0.0, %v940
        %942 = vmatmul.f32.gmra.mxu0 %v768
        %v943 = vpop.f32.mrf.mxu0
        %v944 = vadd.f32 0.0, %v943
        %945 = vdwg.mxu0
        %v946 = vadd.f32 %v769, %v839
        %v947 = vadd.f32 %v770, %v842
        %v948 = vadd.f32 %v771, %v845
        %v949 = vadd.f32 %v772, %v848
        %v950 = vadd.f32 %v773, %v851
        %v951 = vadd.f32 %v774, %v854
        %v952 = vadd.f32 %v775, %v857
        %v953 = vadd.f32 %v776, %v860
        %v954 = vadd.f32 %v777, %v863
        %v955 = vadd.f32 %v778, %v866
        %v956 = vadd.f32 %v779, %v869
        %v957 = vadd.f32 %v780, %v872
        %v958 = vadd.f32 %v781, %v875
        %v959 = vadd.f32 %v782, %v878
        %v960 = vadd.f32 %v783, %v881
        %v961 = vadd.f32 %v784, %v884
        %v962 = vadd.f32 %v785, %v887
        %v963 = vadd.f32 %v786, %v890
        %v964 = vadd.f32 %v787, %v893
        %v965 = vadd.f32 %v788, %v896
        %v966 = vadd.f32 %v789, %v899
        %v967 = vadd.f32 %v790, %v902
        %v968 = vadd.f32 %v791, %v905
        %v969 = vadd.f32 %v792, %v908
        %v970 = vadd.f32 %v793, %v911
        %v971 = vadd.f32 %v794, %v914
        %v972 = vadd.f32 %v795, %v917
        %v973 = vadd.f32 %v796, %v920
        %v974 = vadd.f32 %v797, %v923
        %v975 = vadd.f32 %v798, %v926
        %v976 = vadd.f32 %v799, %v929
        %v977 = vadd.f32 %v800, %v932
        %v978 = vadd.f32 %v801, %v935
        %v979 = vadd.f32 %v802, %v938
        %v980 = vadd.f32 %v803, %v941
        %v981 = vadd.f32 %v804, %v944
        %982 = vst [vmem:[#allocation4] sm:$0xff] %v946
        %983 = vst [vmem:[#allocation4 + $0x8] sm:$0xff] %v947
        %984 = vst [vmem:[#allocation4 + $0x10] sm:$0xff] %v948
        %985 = vst [vmem:[#allocation4 + $0x18] sm:$0xff] %v949
        %986 = vst [vmem:[#allocation4 + $0x20] sm:$0xff] %v950
        %987 = vst [vmem:[#allocation4 + $0x28] sm:$0xff] %v951
        %988 = vst [vmem:[#allocation4 + $0x30] sm:$0xff] %v952
        %989 = vst [vmem:[#allocation4 + $0x38] sm:$0xff] %v953
        %990 = vst [vmem:[#allocation4 + $0x40] sm:$0xff] %v954
        %991 = vst [vmem:[#allocation4 + $0x48] sm:$0xff] %v955
        %992 = vst [vmem:[#allocation4 + $0x50] sm:$0xff] %v956
        %993 = vst [vmem:[#allocation4 + $0x58] sm:$0xff] %v957
        %994 = vst [vmem:[#allocation4 + $0x60] sm:$0xff] %v958
        %995 = vst [vmem:[#allocation4 + $0x68] sm:$0xff] %v959
        %996 = vst [vmem:[#allocation4 + $0x70] sm:$0xff] %v960
        %997 = vst [vmem:[#allocation4 + $0x78] sm:$0xff] %v961
        %998 = vst [vmem:[#allocation4 + $0x80] sm:$0xff] %v962
        %999 = vst [vmem:[#allocation4 + $0x88] sm:$0xff] %v963
        %1000 = vst [vmem:[#allocation4 + $0x90] sm:$0xff] %v964
        %1001 = vst [vmem:[#allocation4 + $0x98] sm:$0xff] %v965
        %1002 = vst [vmem:[#allocation4 + $0xa0] sm:$0xff] %v966
        %1003 = vst [vmem:[#allocation4 + $0xa8] sm:$0xff] %v967
        %1004 = vst [vmem:[#allocation4 + $0xb0] sm:$0xff] %v968
        %1005 = vst [vmem:[#allocation4 + $0xb8] sm:$0xff] %v969
        %1006 = vst [vmem:[#allocation4 + $0xc0] sm:$0xff] %v970
        %1007 = vst [vmem:[#allocation4 + $0xc8] sm:$0xff] %v971
        %1008 = vst [vmem:[#allocation4 + $0xd0] sm:$0xff] %v972
        %1009 = vst [vmem:[#allocation4 + $0xd8] sm:$0xff] %v973
        %1010 = vst [vmem:[#allocation4 + $0xe0] sm:$0xff] %v974
        %1011 = vst [vmem:[#allocation4 + $0xe8] sm:$0xff] %v975
        %1012 = vst [vmem:[#allocation4 + $0xf0] sm:$0xff] %v976
        %1013 = vst [vmem:[#allocation4 + $0xf8] sm:$0xff] %v977
        %1014 = vst [vmem:[#allocation4 + $0x100] sm:$0xff] %v978
        %1015 = vst [vmem:[#allocation4 + $0x108] sm:$0xff] %v979
        %1016 = vst [vmem:[#allocation4 + $0x110] sm:$0xff] %v980
        %1017 = vst [vmem:[#allocation4 + $0x118] sm:$0xff] %v981
        %v1018 = vld [vmem:[#allocation2 + $0x2] sm:$0xff]
        %v1019 = vld [vmem:[#allocation2 + $0xa] sm:$0xff]
        %v1020 = vld [vmem:[#allocation2 + $0x1a] sm:$0xff]
        %v1021 = vld [vmem:[#allocation2 + $0x22] sm:$0xff]
        %v1022 = vld [vmem:[#allocation2 + $0x32] sm:$0xff]
        %v1023 = vld [vmem:[#allocation2 + $0x3a] sm:$0xff]
        %v1024 = vld [vmem:[#allocation2 + $0x4a] sm:$0xff]
        %v1025 = vld [vmem:[#allocation2 + $0x52] sm:$0xff]
        %v1026 = vld [vmem:[#allocation2 + $0x62] sm:$0xff]
        %v1027 = vld [vmem:[#allocation2 + $0x6a] sm:$0xff]
        %v1028 = vld [vmem:[#allocation2 + $0x7a] sm:$0xff]
        %v1029 = vld [vmem:[#allocation2 + $0x82] sm:$0xff]
        %v1030 = vld [vmem:[#allocation2 + $0x92] sm:$0xff]
        %v1031 = vld [vmem:[#allocation2 + $0x9a] sm:$0xff]
        %v1032 = vld [vmem:[#allocation2 + $0xaa] sm:$0xff]
        %v1033 = vld [vmem:[#allocation2 + $0xb2] sm:$0xff]
        %v1034 = vld [vmem:[#allocation2 + $0xc2] sm:$0xff]
        %v1035 = vld [vmem:[#allocation2 + $0xca] sm:$0xff]
        %v1036 = vld [vmem:[#allocation2 + $0xda] sm:$0xff]
        %v1037 = vld [vmem:[#allocation2 + $0xe2] sm:$0xff]
        %v1038 = vld [vmem:[#allocation2 + $0xf2] sm:$0xff]
        %v1039 = vld [vmem:[#allocation2 + $0xfa] sm:$0xff]
        %v1040 = vld [vmem:[#allocation2 + $0x10a] sm:$0xff]
        %v1041 = vld [vmem:[#allocation2 + $0x112] sm:$0xff]
        %v1042 = vld [vmem:[#allocation2 + $0x122] sm:$0xff]
        %v1043 = vld [vmem:[#allocation2 + $0x12a] sm:$0xff]
        %v1044 = vld [vmem:[#allocation2 + $0x13a] sm:$0xff]
        %v1045 = vld [vmem:[#allocation2 + $0x142] sm:$0xff]
        %v1046 = vld [vmem:[#allocation2 + $0x152] sm:$0xff]
        %v1047 = vld [vmem:[#allocation2 + $0x15a] sm:$0xff]
        %v1048 = vld [vmem:[#allocation2 + $0x16a] sm:$0xff]
        %v1049 = vld [vmem:[#allocation2 + $0x172] sm:$0xff]
        %v1050 = vld [vmem:[#allocation2 + $0x182] sm:$0xff]
        %v1051 = vld [vmem:[#allocation2 + $0x18a] sm:$0xff]
        %v1052 = vld [vmem:[#allocation2 + $0x19a] sm:$0xff]
        %v1053 = vld [vmem:[#allocation2 + $0x1a2] sm:$0xff]
        %v1054 = vld [vmem:[#allocation4] sm:$0xff]
        %v1055 = vld [vmem:[#allocation4 + $0x8] sm:$0xff]
        %v1056 = vld [vmem:[#allocation4 + $0x10] sm:$0xff]
        %v1057 = vld [vmem:[#allocation4 + $0x18] sm:$0xff]
        %v1058 = vld [vmem:[#allocation4 + $0x20] sm:$0xff]
        %v1059 = vld [vmem:[#allocation4 + $0x28] sm:$0xff]
        %v1060 = vld [vmem:[#allocation4 + $0x30] sm:$0xff]
        %v1061 = vld [vmem:[#allocation4 + $0x38] sm:$0xff]
        %v1062 = vld [vmem:[#allocation4 + $0x40] sm:$0xff]
        %v1063 = vld [vmem:[#allocation4 + $0x48] sm:$0xff]
        %v1064 = vld [vmem:[#allocation4 + $0x50] sm:$0xff]
        %v1065 = vld [vmem:[#allocation4 + $0x58] sm:$0xff]
        %v1066 = vld [vmem:[#allocation4 + $0x60] sm:$0xff]
        %v1067 = vld [vmem:[#allocation4 + $0x68] sm:$0xff]
        %v1068 = vld [vmem:[#allocation4 + $0x70] sm:$0xff]
        %v1069 = vld [vmem:[#allocation4 + $0x78] sm:$0xff]
        %v1070 = vld [vmem:[#allocation4 + $0x80] sm:$0xff]
        %v1071 = vld [vmem:[#allocation4 + $0x88] sm:$0xff]
        %v1072 = vld [vmem:[#allocation4 + $0x90] sm:$0xff]
        %v1073 = vld [vmem:[#allocation4 + $0x98] sm:$0xff]
        %v1074 = vld [vmem:[#allocation4 + $0xa0] sm:$0xff]
        %v1075 = vld [vmem:[#allocation4 + $0xa8] sm:$0xff]
        %v1076 = vld [vmem:[#allocation4 + $0xb0] sm:$0xff]
        %v1077 = vld [vmem:[#allocation4 + $0xb8] sm:$0xff]
        %v1078 = vld [vmem:[#allocation4 + $0xc0] sm:$0xff]
        %v1079 = vld [vmem:[#allocation4 + $0xc8] sm:$0xff]
        %v1080 = vld [vmem:[#allocation4 + $0xd0] sm:$0xff]
        %v1081 = vld [vmem:[#allocation4 + $0xd8] sm:$0xff]
        %v1082 = vld [vmem:[#allocation4 + $0xe0] sm:$0xff]
        %v1083 = vld [vmem:[#allocation4 + $0xe8] sm:$0xff]
        %v1084 = vld [vmem:[#allocation4 + $0xf0] sm:$0xff]
        %v1085 = vld [vmem:[#allocation4 + $0xf8] sm:$0xff]
        %v1086 = vld [vmem:[#allocation4 + $0x100] sm:$0xff]
        %v1087 = vld [vmem:[#allocation4 + $0x108] sm:$0xff]
        %v1088 = vld [vmem:[#allocation4 + $0x110] sm:$0xff]
        %v1089 = vld [vmem:[#allocation4 + $0x118] sm:$0xff]
        %v1090 = vld [vmem:[%s1 + $0x100] sm:$0xff]
        %v1091 = vld [vmem:[%s1 + $0x108] sm:$0xff]
        %v1092 = vld [vmem:[%s1 + $0x110] sm:$0xff]
        %v1093 = vld [vmem:[%s1 + $0x118] sm:$0xff]
        %v1094 = vld [vmem:[%s1 + $0x120] sm:$0xff]
        %v1095 = vld [vmem:[%s1 + $0x128] sm:$0xff]
        %v1096 = vld [vmem:[%s1 + $0x130] sm:$0xff]
        %v1097 = vld [vmem:[%s1 + $0x138] sm:$0xff]
        %v1098 = vld [vmem:[%s1 + $0x140] sm:$0xff]
        %v1099 = vld [vmem:[%s1 + $0x148] sm:$0xff]
        %v1100 = vld [vmem:[%s1 + $0x150] sm:$0xff]
        %v1101 = vld [vmem:[%s1 + $0x158] sm:$0xff]
        %v1102 = vld [vmem:[%s1 + $0x160] sm:$0xff]
        %v1103 = vld [vmem:[%s1 + $0x168] sm:$0xff]
        %v1104 = vld [vmem:[%s1 + $0x170] sm:$0xff]
        %v1105 = vld [vmem:[%s1 + $0x178] sm:$0xff]
        %1106 = vmatpush.msra.mxu0 %v1105
        %1107 = vmatpush.msra.mxu0 %v1104
        %1108 = vmatpush.msra.mxu0 %v1103
        %1109 = vmatpush.msra.mxu0 %v1102
        %1110 = vmatpush.msra.mxu0 %v1101
        %1111 = vmatpush.msra.mxu0 %v1100
        %1112 = vmatpush.msra.mxu0 %v1099
        %1113 = vmatpush.msra.mxu0 %v1098
        %1114 = vmatpush.msra.mxu0 %v1097
        %1115 = vmatpush.msra.mxu0 %v1096
        %1116 = vmatpush.msra.mxu0 %v1095
        %1117 = vmatpush.msra.mxu0 %v1094
        %1118 = vmatpush.msra.mxu0 %v1093
        %1119 = vmatpush.msra.mxu0 %v1092
        %1120 = vmatpush.msra.mxu0 %v1091
        %1121 = vmatpush.msra.mxu0 %v1090
        %1122 = vmatmul.f32.gmra.mxu0 %v1018
        %v1123 = vpop.f32.mrf.mxu0
        %v1124 = vadd.f32 0.0, %v1123
        %1125 = vmatmul.f32.gmra.mxu0 %v1019
        %v1126 = vpop.f32.mrf.mxu0
        %v1127 = vadd.f32 0.0, %v1126
        %1128 = vmatmul.f32.gmra.mxu0 %v1020
        %v1129 = vpop.f32.mrf.mxu0
        %v1130 = vadd.f32 0.0, %v1129
        %1131 = vmatmul.f32.gmra.mxu0 %v1021
        %v1132 = vpop.f32.mrf.mxu0
        %v1133 = vadd.f32 0.0, %v1132
        %1134 = vmatmul.f32.gmra.mxu0 %v1022
        %v1135 = vpop.f32.mrf.mxu0
        %v1136 = vadd.f32 0.0, %v1135
        %1137 = vmatmul.f32.gmra.mxu0 %v1023
        %v1138 = vpop.f32.mrf.mxu0
        %v1139 = vadd.f32 0.0, %v1138
        %1140 = vmatmul.f32.gmra.mxu0 %v1024
        %v1141 = vpop.f32.mrf.mxu0
        %v1142 = vadd.f32 0.0, %v1141
        %1143 = vmatmul.f32.gmra.mxu0 %v1025
        %v1144 = vpop.f32.mrf.mxu0
        %v1145 = vadd.f32 0.0, %v1144
        %1146 = vmatmul.f32.gmra.mxu0 %v1026
        %v1147 = vpop.f32.mrf.mxu0
        %v1148 = vadd.f32 0.0, %v1147
        %1149 = vmatmul.f32.gmra.mxu0 %v1027
        %v1150 = vpop.f32.mrf.mxu0
        %v1151 = vadd.f32 0.0, %v1150
        %1152 = vmatmul.f32.gmra.mxu0 %v1028
        %v1153 = vpop.f32.mrf.mxu0
        %v1154 = vadd.f32 0.0, %v1153
        %1155 = vmatmul.f32.gmra.mxu0 %v1029
        %v1156 = vpop.f32.mrf.mxu0
        %v1157 = vadd.f32 0.0, %v1156
        %1158 = vmatmul.f32.gmra.mxu0 %v1030
        %v1159 = vpop.f32.mrf.mxu0
        %v1160 = vadd.f32 0.0, %v1159
        %1161 = vmatmul.f32.gmra.mxu0 %v1031
        %v1162 = vpop.f32.mrf.mxu0
        %v1163 = vadd.f32 0.0, %v1162
        %1164 = vmatmul.f32.gmra.mxu0 %v1032
        %v1165 = vpop.f32.mrf.mxu0
        %v1166 = vadd.f32 0.0, %v1165
        %1167 = vmatmul.f32.gmra.mxu0 %v1033
        %v1168 = vpop.f32.mrf.mxu0
        %v1169 = vadd.f32 0.0, %v1168
        %1170 = vmatmul.f32.gmra.mxu0 %v1034
        %v1171 = vpop.f32.mrf.mxu0
        %v1172 = vadd.f32 0.0, %v1171
        %1173 = vmatmul.f32.gmra.mxu0 %v1035
        %v1174 = vpop.f32.mrf.mxu0
        %v1175 = vadd.f32 0.0, %v1174
        %1176 = vmatmul.f32.gmra.mxu0 %v1036
        %v1177 = vpop.f32.mrf.mxu0
        %v1178 = vadd.f32 0.0, %v1177
        %1179 = vmatmul.f32.gmra.mxu0 %v1037
        %v1180 = vpop.f32.mrf.mxu0
        %v1181 = vadd.f32 0.0, %v1180
        %1182 = vmatmul.f32.gmra.mxu0 %v1038
        %v1183 = vpop.f32.mrf.mxu0
        %v1184 = vadd.f32 0.0, %v1183
        %1185 = vmatmul.f32.gmra.mxu0 %v1039
        %v1186 = vpop.f32.mrf.mxu0
        %v1187 = vadd.f32 0.0, %v1186
        %1188 = vmatmul.f32.gmra.mxu0 %v1040
        %v1189 = vpop.f32.mrf.mxu0
        %v1190 = vadd.f32 0.0, %v1189
        %1191 = vmatmul.f32.gmra.mxu0 %v1041
        %v1192 = vpop.f32.mrf.mxu0
        %v1193 = vadd.f32 0.0, %v1192
        %1194 = vmatmul.f32.gmra.mxu0 %v1042
        %v1195 = vpop.f32.mrf.mxu0
        %v1196 = vadd.f32 0.0, %v1195
        %1197 = vmatmul.f32.gmra.mxu0 %v1043
        %v1198 = vpop.f32.mrf.mxu0
        %v1199 = vadd.f32 0.0, %v1198
        %1200 = vmatmul.f32.gmra.mxu0 %v1044
        %v1201 = vpop.f32.mrf.mxu0
        %v1202 = vadd.f32 0.0, %v1201
        %1203 = vmatmul.f32.gmra.mxu0 %v1045
        %v1204 = vpop.f32.mrf.mxu0
        %v1205 = vadd.f32 0.0, %v1204
        %1206 = vmatmul.f32.gmra.mxu0 %v1046
        %v1207 = vpop.f32.mrf.mxu0
        %v1208 = vadd.f32 0.0, %v1207
        %1209 = vmatmul.f32.gmra.mxu0 %v1047
        %v1210 = vpop.f32.mrf.mxu0
        %v1211 = vadd.f32 0.0, %v1210
        %1212 = vmatmul.f32.gmra.mxu0 %v1048
        %v1213 = vpop.f32.mrf.mxu0
        %v1214 = vadd.f32 0.0, %v1213
        %1215 = vmatmul.f32.gmra.mxu0 %v1049
        %v1216 = vpop.f32.mrf.mxu0
        %v1217 = vadd.f32 0.0, %v1216
        %1218 = vmatmul.f32.gmra.mxu0 %v1050
        %v1219 = vpop.f32.mrf.mxu0
        %v1220 = vadd.f32 0.0, %v1219
        %1221 = vmatmul.f32.gmra.mxu0 %v1051
        %v1222 = vpop.f32.mrf.mxu0
        %v1223 = vadd.f32 0.0, %v1222
        %1224 = vmatmul.f32.gmra.mxu0 %v1052
        %v1225 = vpop.f32.mrf.mxu0
        %v1226 = vadd.f32 0.0, %v1225
        %1227 = vmatmul.f32.gmra.mxu0 %v1053
        %v1228 = vpop.f32.mrf.mxu0
        %v1229 = vadd.f32 0.0, %v1228
        %1230 = vdwg.mxu0
        %v1231 = vadd.f32 %v1054, %v1124
        %v1232 = vadd.f32 %v1055, %v1127
        %v1233 = vadd.f32 %v1056, %v1130
        %v1234 = vadd.f32 %v1057, %v1133
        %v1235 = vadd.f32 %v1058, %v1136
        %v1236 = vadd.f32 %v1059, %v1139
        %v1237 = vadd.f32 %v1060, %v1142
        %v1238 = vadd.f32 %v1061, %v1145
        %v1239 = vadd.f32 %v1062, %v1148
        %v1240 = vadd.f32 %v1063, %v1151
        %v1241 = vadd.f32 %v1064, %v1154
        %v1242 = vadd.f32 %v1065, %v1157
        %v1243 = vadd.f32 %v1066, %v1160
        %v1244 = vadd.f32 %v1067, %v1163
        %v1245 = vadd.f32 %v1068, %v1166
        %v1246 = vadd.f32 %v1069, %v1169
        %v1247 = vadd.f32 %v1070, %v1172
        %v1248 = vadd.f32 %v1071, %v1175
        %v1249 = vadd.f32 %v1072, %v1178
        %v1250 = vadd.f32 %v1073, %v1181
        %v1251 = vadd.f32 %v1074, %v1184
        %v1252 = vadd.f32 %v1075, %v1187
        %v1253 = vadd.f32 %v1076, %v1190
        %v1254 = vadd.f32 %v1077, %v1193
        %v1255 = vadd.f32 %v1078, %v1196
        %v1256 = vadd.f32 %v1079, %v1199
        %v1257 = vadd.f32 %v1080, %v1202
        %v1258 = vadd.f32 %v1081, %v1205
        %v1259 = vadd.f32 %v1082, %v1208
        %v1260 = vadd.f32 %v1083, %v1211
        %v1261 = vadd.f32 %v1084, %v1214
        %v1262 = vadd.f32 %v1085, %v1217
        %v1263 = vadd.f32 %v1086, %v1220
        %v1264 = vadd.f32 %v1087, %v1223
        %v1265 = vadd.f32 %v1088, %v1226
        %v1266 = vadd.f32 %v1089, %v1229
        %1267 = vst [vmem:[#allocation4] sm:$0xff] %v1231
        %1268 = vst [vmem:[#allocation4 + $0x8] sm:$0xff] %v1232
        %1269 = vst [vmem:[#allocation4 + $0x10] sm:$0xff] %v1233
        %1270 = vst [vmem:[#allocation4 + $0x18] sm:$0xff] %v1234
        %1271 = vst [vmem:[#allocation4 + $0x20] sm:$0xff] %v1235
        %1272 = vst [vmem:[#allocation4 + $0x28] sm:$0xff] %v1236
        %1273 = vst [vmem:[#allocation4 + $0x30] sm:$0xff] %v1237
        %1274 = vst [vmem:[#allocation4 + $0x38] sm:$0xff] %v1238
        %1275 = vst [vmem:[#allocation4 + $0x40] sm:$0xff] %v1239
        %1276 = vst [vmem:[#allocation4 + $0x48] sm:$0xff] %v1240
        %1277 = vst [vmem:[#allocation4 + $0x50] sm:$0xff] %v1241
        %1278 = vst [vmem:[#allocation4 + $0x58] sm:$0xff] %v1242
        %1279 = vst [vmem:[#allocation4 + $0x60] sm:$0xff] %v1243
        %1280 = vst [vmem:[#allocation4 + $0x68] sm:$0xff] %v1244
        %1281 = vst [vmem:[#allocation4 + $0x70] sm:$0xff] %v1245
        %1282 = vst [vmem:[#allocation4 + $0x78] sm:$0xff] %v1246
        %1283 = vst [vmem:[#allocation4 + $0x80] sm:$0xff] %v1247
        %1284 = vst [vmem:[#allocation4 + $0x88] sm:$0xff] %v1248
        %1285 = vst [vmem:[#allocation4 + $0x90] sm:$0xff] %v1249
        %1286 = vst [vmem:[#allocation4 + $0x98] sm:$0xff] %v1250
        %1287 = vst [vmem:[#allocation4 + $0xa0] sm:$0xff] %v1251
        %1288 = vst [vmem:[#allocation4 + $0xa8] sm:$0xff] %v1252
        %1289 = vst [vmem:[#allocation4 + $0xb0] sm:$0xff] %v1253
        %1290 = vst [vmem:[#allocation4 + $0xb8] sm:$0xff] %v1254
        %1291 = vst [vmem:[#allocation4 + $0xc0] sm:$0xff] %v1255
        %1292 = vst [vmem:[#allocation4 + $0xc8] sm:$0xff] %v1256
        %1293 = vst [vmem:[#allocation4 + $0xd0] sm:$0xff] %v1257
        %1294 = vst [vmem:[#allocation4 + $0xd8] sm:$0xff] %v1258
        %1295 = vst [vmem:[#allocation4 + $0xe0] sm:$0xff] %v1259
        %1296 = vst [vmem:[#allocation4 + $0xe8] sm:$0xff] %v1260
        %1297 = vst [vmem:[#allocation4 + $0xf0] sm:$0xff] %v1261
        %1298 = vst [vmem:[#allocation4 + $0xf8] sm:$0xff] %v1262
        %1299 = vst [vmem:[#allocation4 + $0x100] sm:$0xff] %v1263
        %1300 = vst [vmem:[#allocation4 + $0x108] sm:$0xff] %v1264
        %1301 = vst [vmem:[#allocation4 + $0x110] sm:$0xff] %v1265
        %1302 = vst [vmem:[#allocation4 + $0x118] sm:$0xff] %v1266
        %s1303 = scalar_lea.vmem [#allocation2], 24
        %v1304 = vld [vmem:[%s1303] sm:$0xff]
        %v1305 = vld [vmem:[%s1303 + $0x8] sm:$0xff]
        %v1306 = vld [vmem:[%s1303 + $0x18] sm:$0xff]
        %v1307 = vld [vmem:[%s1303 + $0x20] sm:$0xff]
        %v1308 = vld [vmem:[%s1303 + $0x30] sm:$0xff]
        %v1309 = vld [vmem:[%s1303 + $0x38] sm:$0xff]
        %v1310 = vld [vmem:[%s1303 + $0x48] sm:$0xff]
        %v1311 = vld [vmem:[%s1303 + $0x50] sm:$0xff]
        %v1312 = vld [vmem:[%s1303 + $0x60] sm:$0xff]
        %v1313 = vld [vmem:[%s1303 + $0x68] sm:$0xff]
        %v1314 = vld [vmem:[%s1303 + $0x78] sm:$0xff]
        %v1315 = vld [vmem:[%s1303 + $0x80] sm:$0xff]
        %v1316 = vld [vmem:[%s1303 + $0x90] sm:$0xff]
        %v1317 = vld [vmem:[%s1303 + $0x98] sm:$0xff]
        %v1318 = vld [vmem:[%s1303 + $0xa8] sm:$0xff]
        %v1319 = vld [vmem:[%s1303 + $0xb0] sm:$0xff]
        %v1320 = vld [vmem:[%s1303 + $0xc0] sm:$0xff]
        %v1321 = vld [vmem:[%s1303 + $0xc8] sm:$0xff]
        %v1322 = vld [vmem:[%s1303 + $0xd8] sm:$0xff]
        %v1323 = vld [vmem:[%s1303 + $0xe0] sm:$0xff]
        %v1324 = vld [vmem:[%s1303 + $0xf0] sm:$0xff]
        %v1325 = vld [vmem:[%s1303 + $0xf8] sm:$0xff]
        %v1326 = vld [vmem:[%s1303 + $0x108] sm:$0xff]
        %v1327 = vld [vmem:[%s1303 + $0x110] sm:$0xff]
        %v1328 = vld [vmem:[%s1303 + $0x120] sm:$0xff]
        %v1329 = vld [vmem:[%s1303 + $0x128] sm:$0xff]
        %v1330 = vld [vmem:[%s1303 + $0x138] sm:$0xff]
        %v1331 = vld [vmem:[%s1303 + $0x140] sm:$0xff]
        %v1332 = vld [vmem:[%s1303 + $0x150] sm:$0xff]
        %v1333 = vld [vmem:[%s1303 + $0x158] sm:$0xff]
        %v1334 = vld [vmem:[%s1303 + $0x168] sm:$0xff]
        %v1335 = vld [vmem:[%s1303 + $0x170] sm:$0xff]
        %v1336 = vld [vmem:[%s1303 + $0x180] sm:$0xff]
        %v1337 = vld [vmem:[%s1303 + $0x188] sm:$0xff]
        %v1338 = vld [vmem:[%s1303 + $0x198] sm:$0xff]
        %v1339 = vld [vmem:[%s1303 + $0x1a0] sm:$0xff]
        %v1340 = vld [vmem:[#allocation4] sm:$0xff]
        %v1341 = vld [vmem:[#allocation4 + $0x8] sm:$0xff]
        %v1342 = vld [vmem:[#allocation4 + $0x10] sm:$0xff]
        %v1343 = vld [vmem:[#allocation4 + $0x18] sm:$0xff]
        %v1344 = vld [vmem:[#allocation4 + $0x20] sm:$0xff]
        %v1345 = vld [vmem:[#allocation4 + $0x28] sm:$0xff]
        %v1346 = vld [vmem:[#allocation4 + $0x30] sm:$0xff]
        %v1347 = vld [vmem:[#allocation4 + $0x38] sm:$0xff]
        %v1348 = vld [vmem:[#allocation4 + $0x40] sm:$0xff]
        %v1349 = vld [vmem:[#allocation4 + $0x48] sm:$0xff]
        %v1350 = vld [vmem:[#allocation4 + $0x50] sm:$0xff]
        %v1351 = vld [vmem:[#allocation4 + $0x58] sm:$0xff]
        %v1352 = vld [vmem:[#allocation4 + $0x60] sm:$0xff]
        %v1353 = vld [vmem:[#allocation4 + $0x68] sm:$0xff]
        %v1354 = vld [vmem:[#allocation4 + $0x70] sm:$0xff]
        %v1355 = vld [vmem:[#allocation4 + $0x78] sm:$0xff]
        %v1356 = vld [vmem:[#allocation4 + $0x80] sm:$0xff]
        %v1357 = vld [vmem:[#allocation4 + $0x88] sm:$0xff]
        %v1358 = vld [vmem:[#allocation4 + $0x90] sm:$0xff]
        %v1359 = vld [vmem:[#allocation4 + $0x98] sm:$0xff]
        %v1360 = vld [vmem:[#allocation4 + $0xa0] sm:$0xff]
        %v1361 = vld [vmem:[#allocation4 + $0xa8] sm:$0xff]
        %v1362 = vld [vmem:[#allocation4 + $0xb0] sm:$0xff]
        %v1363 = vld [vmem:[#allocation4 + $0xb8] sm:$0xff]
        %v1364 = vld [vmem:[#allocation4 + $0xc0] sm:$0xff]
        %v1365 = vld [vmem:[#allocation4 + $0xc8] sm:$0xff]
        %v1366 = vld [vmem:[#allocation4 + $0xd0] sm:$0xff]
        %v1367 = vld [vmem:[#allocation4 + $0xd8] sm:$0xff]
        %v1368 = vld [vmem:[#allocation4 + $0xe0] sm:$0xff]
        %v1369 = vld [vmem:[#allocation4 + $0xe8] sm:$0xff]
        %v1370 = vld [vmem:[#allocation4 + $0xf0] sm:$0xff]
        %v1371 = vld [vmem:[#allocation4 + $0xf8] sm:$0xff]
        %v1372 = vld [vmem:[#allocation4 + $0x100] sm:$0xff]
        %v1373 = vld [vmem:[#allocation4 + $0x108] sm:$0xff]
        %v1374 = vld [vmem:[#allocation4 + $0x110] sm:$0xff]
        %v1375 = vld [vmem:[#allocation4 + $0x118] sm:$0xff]
        %v1376 = vld [vmem:[%s1 + $0x180] sm:$0xff]
        %v1377 = vld [vmem:[%s1 + $0x188] sm:$0xff]
        %v1378 = vld [vmem:[%s1 + $0x190] sm:$0xff]
        %v1379 = vld [vmem:[%s1 + $0x198] sm:$0xff]
        %v1380 = vld [vmem:[%s1 + $0x1a0] sm:$0xff]
        %v1381 = vld [vmem:[%s1 + $0x1a8] sm:$0xff]
        %v1382 = vld [vmem:[%s1 + $0x1b0] sm:$0xff]
        %v1383 = vld [vmem:[%s1 + $0x1b8] sm:$0xff]
        %v1384 = vld [vmem:[%s1 + $0x1c0] sm:$0xff]
        %v1385 = vld [vmem:[%s1 + $0x1c8] sm:$0xff]
        %v1386 = vld [vmem:[%s1 + $0x1d0] sm:$0xff]
        %v1387 = vld [vmem:[%s1 + $0x1d8] sm:$0xff]
        %v1388 = vld [vmem:[%s1 + $0x1e0] sm:$0xff]
        %v1389 = vld [vmem:[%s1 + $0x1e8] sm:$0xff]
        %v1390 = vld [vmem:[%s1 + $0x1f0] sm:$0xff]
        %v1391 = vld [vmem:[%s1 + $0x1f8] sm:$0xff]
        %1392 = vmatpush.msra.mxu0 %v1391
        %1393 = vmatpush.msra.mxu0 %v1390
        %1394 = vmatpush.msra.mxu0 %v1389
        %1395 = vmatpush.msra.mxu0 %v1388
        %1396 = vmatpush.msra.mxu0 %v1387
        %1397 = vmatpush.msra.mxu0 %v1386
        %1398 = vmatpush.msra.mxu0 %v1385
        %1399 = vmatpush.msra.mxu0 %v1384
        %1400 = vmatpush.msra.mxu0 %v1383
        %1401 = vmatpush.msra.mxu0 %v1382
        %1402 = vmatpush.msra.mxu0 %v1381
        %1403 = vmatpush.msra.mxu0 %v1380
        %1404 = vmatpush.msra.mxu0 %v1379
        %1405 = vmatpush.msra.mxu0 %v1378
        %1406 = vmatpush.msra.mxu0 %v1377
        %1407 = vmatpush.msra.mxu0 %v1376
        %1408 = vmatmul.f32.gmra.mxu0 %v1304
        %v1409 = vpop.f32.mrf.mxu0
        %v1410 = vadd.f32 0.0, %v1409
        %1411 = vmatmul.f32.gmra.mxu0 %v1305
        %v1412 = vpop.f32.mrf.mxu0
        %v1413 = vadd.f32 0.0, %v1412
        %1414 = vmatmul.f32.gmra.mxu0 %v1306
        %v1415 = vpop.f32.mrf.mxu0
        %v1416 = vadd.f32 0.0, %v1415
        %1417 = vmatmul.f32.gmra.mxu0 %v1307
        %v1418 = vpop.f32.mrf.mxu0
        %v1419 = vadd.f32 0.0, %v1418
        %1420 = vmatmul.f32.gmra.mxu0 %v1308
        %v1421 = vpop.f32.mrf.mxu0
        %v1422 = vadd.f32 0.0, %v1421
        %1423 = vmatmul.f32.gmra.mxu0 %v1309
        %v1424 = vpop.f32.mrf.mxu0
        %v1425 = vadd.f32 0.0, %v1424
        %1426 = vmatmul.f32.gmra.mxu0 %v1310
        %v1427 = vpop.f32.mrf.mxu0
        %v1428 = vadd.f32 0.0, %v1427
        %1429 = vmatmul.f32.gmra.mxu0 %v1311
        %v1430 = vpop.f32.mrf.mxu0
        %v1431 = vadd.f32 0.0, %v1430
        %1432 = vmatmul.f32.gmra.mxu0 %v1312
        %v1433 = vpop.f32.mrf.mxu0
        %v1434 = vadd.f32 0.0, %v1433
        %1435 = vmatmul.f32.gmra.mxu0 %v1313
        %v1436 = vpop.f32.mrf.mxu0
        %v1437 = vadd.f32 0.0, %v1436
        %1438 = vmatmul.f32.gmra.mxu0 %v1314
        %v1439 = vpop.f32.mrf.mxu0
        %v1440 = vadd.f32 0.0, %v1439
        %1441 = vmatmul.f32.gmra.mxu0 %v1315
        %v1442 = vpop.f32.mrf.mxu0
        %v1443 = vadd.f32 0.0, %v1442
        %1444 = vmatmul.f32.gmra.mxu0 %v1316
        %v1445 = vpop.f32.mrf.mxu0
        %v1446 = vadd.f32 0.0, %v1445
        %1447 = vmatmul.f32.gmra.mxu0 %v1317
        %v1448 = vpop.f32.mrf.mxu0
        %v1449 = vadd.f32 0.0, %v1448
        %1450 = vmatmul.f32.gmra.mxu0 %v1318
        %v1451 = vpop.f32.mrf.mxu0
        %v1452 = vadd.f32 0.0, %v1451
        %1453 = vmatmul.f32.gmra.mxu0 %v1319
        %v1454 = vpop.f32.mrf.mxu0
        %v1455 = vadd.f32 0.0, %v1454
        %1456 = vmatmul.f32.gmra.mxu0 %v1320
        %v1457 = vpop.f32.mrf.mxu0
        %v1458 = vadd.f32 0.0, %v1457
        %1459 = vmatmul.f32.gmra.mxu0 %v1321
        %v1460 = vpop.f32.mrf.mxu0
        %v1461 = vadd.f32 0.0, %v1460
        %1462 = vmatmul.f32.gmra.mxu0 %v1322
        %v1463 = vpop.f32.mrf.mxu0
        %v1464 = vadd.f32 0.0, %v1463
        %1465 = vmatmul.f32.gmra.mxu0 %v1323
        %v1466 = vpop.f32.mrf.mxu0
        %v1467 = vadd.f32 0.0, %v1466
        %1468 = vmatmul.f32.gmra.mxu0 %v1324
        %v1469 = vpop.f32.mrf.mxu0
        %v1470 = vadd.f32 0.0, %v1469
        %1471 = vmatmul.f32.gmra.mxu0 %v1325
        %v1472 = vpop.f32.mrf.mxu0
        %v1473 = vadd.f32 0.0, %v1472
        %1474 = vmatmul.f32.gmra.mxu0 %v1326
        %v1475 = vpop.f32.mrf.mxu0
        %v1476 = vadd.f32 0.0, %v1475
        %1477 = vmatmul.f32.gmra.mxu0 %v1327
        %v1478 = vpop.f32.mrf.mxu0
        %v1479 = vadd.f32 0.0, %v1478
        %1480 = vmatmul.f32.gmra.mxu0 %v1328
        %v1481 = vpop.f32.mrf.mxu0
        %v1482 = vadd.f32 0.0, %v1481
        %1483 = vmatmul.f32.gmra.mxu0 %v1329
        %v1484 = vpop.f32.mrf.mxu0
        %v1485 = vadd.f32 0.0, %v1484
        %1486 = vmatmul.f32.gmra.mxu0 %v1330
        %v1487 = vpop.f32.mrf.mxu0
        %v1488 = vadd.f32 0.0, %v1487
        %1489 = vmatmul.f32.gmra.mxu0 %v1331
        %v1490 = vpop.f32.mrf.mxu0
        %v1491 = vadd.f32 0.0, %v1490
        %1492 = vmatmul.f32.gmra.mxu0 %v1332
        %v1493 = vpop.f32.mrf.mxu0
        %v1494 = vadd.f32 0.0, %v1493
        %1495 = vmatmul.f32.gmra.mxu0 %v1333
        %v1496 = vpop.f32.mrf.mxu0
        %v1497 = vadd.f32 0.0, %v1496
        %1498 = vmatmul.f32.gmra.mxu0 %v1334
        %v1499 = vpop.f32.mrf.mxu0
        %v1500 = vadd.f32 0.0, %v1499
        %1501 = vmatmul.f32.gmra.mxu0 %v1335
        %v1502 = vpop.f32.mrf.mxu0
        %v1503 = vadd.f32 0.0, %v1502
        %1504 = vmatmul.f32.gmra.mxu0 %v1336
        %v1505 = vpop.f32.mrf.mxu0
        %v1506 = vadd.f32 0.0, %v1505
        %1507 = vmatmul.f32.gmra.mxu0 %v1337
        %v1508 = vpop.f32.mrf.mxu0
        %v1509 = vadd.f32 0.0, %v1508
        %1510 = vmatmul.f32.gmra.mxu0 %v1338
        %v1511 = vpop.f32.mrf.mxu0
        %v1512 = vadd.f32 0.0, %v1511
        %1513 = vmatmul.f32.gmra.mxu0 %v1339
        %v1514 = vpop.f32.mrf.mxu0
        %v1515 = vadd.f32 0.0, %v1514
        %1516 = vdwg.mxu0
        %v1517 = vadd.f32 %v1340, %v1410
        %v1518 = vadd.f32 %v1341, %v1413
        %v1519 = vadd.f32 %v1342, %v1416
        %v1520 = vadd.f32 %v1343, %v1419
        %v1521 = vadd.f32 %v1344, %v1422
        %v1522 = vadd.f32 %v1345, %v1425
        %v1523 = vadd.f32 %v1346, %v1428
        %v1524 = vadd.f32 %v1347, %v1431
        %v1525 = vadd.f32 %v1348, %v1434
        %v1526 = vadd.f32 %v1349, %v1437
        %v1527 = vadd.f32 %v1350, %v1440
        %v1528 = vadd.f32 %v1351, %v1443
        %v1529 = vadd.f32 %v1352, %v1446
        %v1530 = vadd.f32 %v1353, %v1449
        %v1531 = vadd.f32 %v1354, %v1452
        %v1532 = vadd.f32 %v1355, %v1455
        %v1533 = vadd.f32 %v1356, %v1458
        %v1534 = vadd.f32 %v1357, %v1461
        %v1535 = vadd.f32 %v1358, %v1464
        %v1536 = vadd.f32 %v1359, %v1467
        %v1537 = vadd.f32 %v1360, %v1470
        %v1538 = vadd.f32 %v1361, %v1473
        %v1539 = vadd.f32 %v1362, %v1476
        %v1540 = vadd.f32 %v1363, %v1479
        %v1541 = vadd.f32 %v1364, %v1482
        %v1542 = vadd.f32 %v1365, %v1485
        %v1543 = vadd.f32 %v1366, %v1488
        %v1544 = vadd.f32 %v1367, %v1491
        %v1545 = vadd.f32 %v1368, %v1494
        %v1546 = vadd.f32 %v1369, %v1497
        %v1547 = vadd.f32 %v1370, %v1500
        %v1548 = vadd.f32 %v1371, %v1503
        %v1549 = vadd.f32 %v1372, %v1506
        %v1550 = vadd.f32 %v1373, %v1509
        %v1551 = vadd.f32 %v1374, %v1512
        %v1552 = vadd.f32 %v1375, %v1515
        %1553 = vst [vmem:[#allocation4] sm:$0xff] %v1517
        %1554 = vst [vmem:[#allocation4 + $0x8] sm:$0xff] %v1518
        %1555 = vst [vmem:[#allocation4 + $0x10] sm:$0xff] %v1519
        %1556 = vst [vmem:[#allocation4 + $0x18] sm:$0xff] %v1520
        %1557 = vst [vmem:[#allocation4 + $0x20] sm:$0xff] %v1521
        %1558 = vst [vmem:[#allocation4 + $0x28] sm:$0xff] %v1522
        %1559 = vst [vmem:[#allocation4 + $0x30] sm:$0xff] %v1523
        %1560 = vst [vmem:[#allocation4 + $0x38] sm:$0xff] %v1524
        %1561 = vst [vmem:[#allocation4 + $0x40] sm:$0xff] %v1525
        %1562 = vst [vmem:[#allocation4 + $0x48] sm:$0xff] %v1526
        %1563 = vst [vmem:[#allocation4 + $0x50] sm:$0xff] %v1527
        %1564 = vst [vmem:[#allocation4 + $0x58] sm:$0xff] %v1528
        %1565 = vst [vmem:[#allocation4 + $0x60] sm:$0xff] %v1529
        %1566 = vst [vmem:[#allocation4 + $0x68] sm:$0xff] %v1530
        %1567 = vst [vmem:[#allocation4 + $0x70] sm:$0xff] %v1531
        %1568 = vst [vmem:[#allocation4 + $0x78] sm:$0xff] %v1532
        %1569 = vst [vmem:[#allocation4 + $0x80] sm:$0xff] %v1533
        %1570 = vst [vmem:[#allocation4 + $0x88] sm:$0xff] %v1534
        %1571 = vst [vmem:[#allocation4 + $0x90] sm:$0xff] %v1535
        %1572 = vst [vmem:[#allocation4 + $0x98] sm:$0xff] %v1536
        %1573 = vst [vmem:[#allocation4 + $0xa0] sm:$0xff] %v1537
        %1574 = vst [vmem:[#allocation4 + $0xa8] sm:$0xff] %v1538
        %1575 = vst [vmem:[#allocation4 + $0xb0] sm:$0xff] %v1539
        %1576 = vst [vmem:[#allocation4 + $0xb8] sm:$0xff] %v1540
        %1577 = vst [vmem:[#allocation4 + $0xc0] sm:$0xff] %v1541
        %1578 = vst [vmem:[#allocation4 + $0xc8] sm:$0xff] %v1542
        %1579 = vst [vmem:[#allocation4 + $0xd0] sm:$0xff] %v1543
        %1580 = vst [vmem:[#allocation4 + $0xd8] sm:$0xff] %v1544
        %1581 = vst [vmem:[#allocation4 + $0xe0] sm:$0xff] %v1545
        %1582 = vst [vmem:[#allocation4 + $0xe8] sm:$0xff] %v1546
        %1583 = vst [vmem:[#allocation4 + $0xf0] sm:$0xff] %v1547
        %1584 = vst [vmem:[#allocation4 + $0xf8] sm:$0xff] %v1548
        %1585 = vst [vmem:[#allocation4 + $0x100] sm:$0xff] %v1549
        %1586 = vst [vmem:[#allocation4 + $0x108] sm:$0xff] %v1550
        %1587 = vst [vmem:[#allocation4 + $0x110] sm:$0xff] %v1551
        %1588 = vst [vmem:[#allocation4 + $0x118] sm:$0xff] %v1552
        %v1589 = vld [vmem:[%s1303 + $0x1] sm:$0xff]
        %v1590 = vld [vmem:[%s1303 + $0x9] sm:$0xff]
        %v1591 = vld [vmem:[%s1303 + $0x19] sm:$0xff]
        %v1592 = vld [vmem:[%s1303 + $0x21] sm:$0xff]
        %v1593 = vld [vmem:[%s1303 + $0x31] sm:$0xff]
        %v1594 = vld [vmem:[%s1303 + $0x39] sm:$0xff]
        %v1595 = vld [vmem:[%s1303 + $0x49] sm:$0xff]
        %v1596 = vld [vmem:[%s1303 + $0x51] sm:$0xff]
        %v1597 = vld [vmem:[%s1303 + $0x61] sm:$0xff]
        %v1598 = vld [vmem:[%s1303 + $0x69] sm:$0xff]
        %v1599 = vld [vmem:[%s1303 + $0x79] sm:$0xff]
        %v1600 = vld [vmem:[%s1303 + $0x81] sm:$0xff]
        %v1601 = vld [vmem:[%s1303 + $0x91] sm:$0xff]
        %v1602 = vld [vmem:[%s1303 + $0x99] sm:$0xff]
        %v1603 = vld [vmem:[%s1303 + $0xa9] sm:$0xff]
        %v1604 = vld [vmem:[%s1303 + $0xb1] sm:$0xff]
        %v1605 = vld [vmem:[%s1303 + $0xc1] sm:$0xff]
        %v1606 = vld [vmem:[%s1303 + $0xc9] sm:$0xff]
        %v1607 = vld [vmem:[%s1303 + $0xd9] sm:$0xff]
        %v1608 = vld [vmem:[%s1303 + $0xe1] sm:$0xff]
        %v1609 = vld [vmem:[%s1303 + $0xf1] sm:$0xff]
        %v1610 = vld [vmem:[%s1303 + $0xf9] sm:$0xff]
        %v1611 = vld [vmem:[%s1303 + $0x109] sm:$0xff]
        %v1612 = vld [vmem:[%s1303 + $0x111] sm:$0xff]
        %v1613 = vld [vmem:[%s1303 + $0x121] sm:$0xff]
        %v1614 = vld [vmem:[%s1303 + $0x129] sm:$0xff]
        %v1615 = vld [vmem:[%s1303 + $0x139] sm:$0xff]
        %v1616 = vld [vmem:[%s1303 + $0x141] sm:$0xff]
        %v1617 = vld [vmem:[%s1303 + $0x151] sm:$0xff]
        %v1618 = vld [vmem:[%s1303 + $0x159] sm:$0xff]
        %v1619 = vld [vmem:[%s1303 + $0x169] sm:$0xff]
        %v1620 = vld [vmem:[%s1303 + $0x171] sm:$0xff]
        %v1621 = vld [vmem:[%s1303 + $0x181] sm:$0xff]
        %v1622 = vld [vmem:[%s1303 + $0x189] sm:$0xff]
        %v1623 = vld [vmem:[%s1303 + $0x199] sm:$0xff]
        %v1624 = vld [vmem:[%s1303 + $0x1a1] sm:$0xff]
        %v1625 = vld [vmem:[#allocation4] sm:$0xff]
        %v1626 = vld [vmem:[#allocation4 + $0x8] sm:$0xff]
        %v1627 = vld [vmem:[#allocation4 + $0x10] sm:$0xff]
        %v1628 = vld [vmem:[#allocation4 + $0x18] sm:$0xff]
        %v1629 = vld [vmem:[#allocation4 + $0x20] sm:$0xff]
        %v1630 = vld [vmem:[#allocation4 + $0x28] sm:$0xff]
        %v1631 = vld [vmem:[#allocation4 + $0x30] sm:$0xff]
        %v1632 = vld [vmem:[#allocation4 + $0x38] sm:$0xff]
        %v1633 = vld [vmem:[#allocation4 + $0x40] sm:$0xff]
        %v1634 = vld [vmem:[#allocation4 + $0x48] sm:$0xff]
        %v1635 = vld [vmem:[#allocation4 + $0x50] sm:$0xff]
        %v1636 = vld [vmem:[#allocation4 + $0x58] sm:$0xff]
        %v1637 = vld [vmem:[#allocation4 + $0x60] sm:$0xff]
        %v1638 = vld [vmem:[#allocation4 + $0x68] sm:$0xff]
        %v1639 = vld [vmem:[#allocation4 + $0x70] sm:$0xff]
        %v1640 = vld [vmem:[#allocation4 + $0x78] sm:$0xff]
        %v1641 = vld [vmem:[#allocation4 + $0x80] sm:$0xff]
        %v1642 = vld [vmem:[#allocation4 + $0x88] sm:$0xff]
        %v1643 = vld [vmem:[#allocation4 + $0x90] sm:$0xff]
        %v1644 = vld [vmem:[#allocation4 + $0x98] sm:$0xff]
        %v1645 = vld [vmem:[#allocation4 + $0xa0] sm:$0xff]
        %v1646 = vld [vmem:[#allocation4 + $0xa8] sm:$0xff]
        %v1647 = vld [vmem:[#allocation4 + $0xb0] sm:$0xff]
        %v1648 = vld [vmem:[#allocation4 + $0xb8] sm:$0xff]
        %v1649 = vld [vmem:[#allocation4 + $0xc0] sm:$0xff]
        %v1650 = vld [vmem:[#allocation4 + $0xc8] sm:$0xff]
        %v1651 = vld [vmem:[#allocation4 + $0xd0] sm:$0xff]
        %v1652 = vld [vmem:[#allocation4 + $0xd8] sm:$0xff]
        %v1653 = vld [vmem:[#allocation4 + $0xe0] sm:$0xff]
        %v1654 = vld [vmem:[#allocation4 + $0xe8] sm:$0xff]
        %v1655 = vld [vmem:[#allocation4 + $0xf0] sm:$0xff]
        %v1656 = vld [vmem:[#allocation4 + $0xf8] sm:$0xff]
        %v1657 = vld [vmem:[#allocation4 + $0x100] sm:$0xff]
        %v1658 = vld [vmem:[#allocation4 + $0x108] sm:$0xff]
        %v1659 = vld [vmem:[#allocation4 + $0x110] sm:$0xff]
        %v1660 = vld [vmem:[#allocation4 + $0x118] sm:$0xff]
        %v1661 = vld [vmem:[%s1 + $0x200] sm:$0xff]
        %v1662 = vld [vmem:[%s1 + $0x208] sm:$0xff]
        %v1663 = vld [vmem:[%s1 + $0x210] sm:$0xff]
        %v1664 = vld [vmem:[%s1 + $0x218] sm:$0xff]
        %v1665 = vld [vmem:[%s1 + $0x220] sm:$0xff]
        %v1666 = vld [vmem:[%s1 + $0x228] sm:$0xff]
        %v1667 = vld [vmem:[%s1 + $0x230] sm:$0xff]
        %v1668 = vld [vmem:[%s1 + $0x238] sm:$0xff]
        %v1669 = vld [vmem:[%s1 + $0x240] sm:$0xff]
        %v1670 = vld [vmem:[%s1 + $0x248] sm:$0xff]
        %v1671 = vld [vmem:[%s1 + $0x250] sm:$0xff]
        %v1672 = vld [vmem:[%s1 + $0x258] sm:$0xff]
        %v1673 = vld [vmem:[%s1 + $0x260] sm:$0xff]
        %v1674 = vld [vmem:[%s1 + $0x268] sm:$0xff]
        %v1675 = vld [vmem:[%s1 + $0x270] sm:$0xff]
        %v1676 = vld [vmem:[%s1 + $0x278] sm:$0xff]
        %1677 = vmatpush.msra.mxu0 %v1676
        %1678 = vmatpush.msra.mxu0 %v1675
        %1679 = vmatpush.msra.mxu0 %v1674
        %1680 = vmatpush.msra.mxu0 %v1673
        %1681 = vmatpush.msra.mxu0 %v1672
        %1682 = vmatpush.msra.mxu0 %v1671
        %1683 = vmatpush.msra.mxu0 %v1670
        %1684 = vmatpush.msra.mxu0 %v1669
        %1685 = vmatpush.msra.mxu0 %v1668
        %1686 = vmatpush.msra.mxu0 %v1667
        %1687 = vmatpush.msra.mxu0 %v1666
        %1688 = vmatpush.msra.mxu0 %v1665
        %1689 = vmatpush.msra.mxu0 %v1664
        %1690 = vmatpush.msra.mxu0 %v1663
        %1691 = vmatpush.msra.mxu0 %v1662
        %1692 = vmatpush.msra.mxu0 %v1661
        %1693 = vmatmul.f32.gmra.mxu0 %v1589
        %v1694 = vpop.f32.mrf.mxu0
        %v1695 = vadd.f32 0.0, %v1694
        %1696 = vmatmul.f32.gmra.mxu0 %v1590
        %v1697 = vpop.f32.mrf.mxu0
        %v1698 = vadd.f32 0.0, %v1697
        %1699 = vmatmul.f32.gmra.mxu0 %v1591
        %v1700 = vpop.f32.mrf.mxu0
        %v1701 = vadd.f32 0.0, %v1700
        %1702 = vmatmul.f32.gmra.mxu0 %v1592
        %v1703 = vpop.f32.mrf.mxu0
        %v1704 = vadd.f32 0.0, %v1703
        %1705 = vmatmul.f32.gmra.mxu0 %v1593
        %v1706 = vpop.f32.mrf.mxu0
        %v1707 = vadd.f32 0.0, %v1706
        %1708 = vmatmul.f32.gmra.mxu0 %v1594
        %v1709 = vpop.f32.mrf.mxu0
        %v1710 = vadd.f32 0.0, %v1709
        %1711 = vmatmul.f32.gmra.mxu0 %v1595
        %v1712 = vpop.f32.mrf.mxu0
        %v1713 = vadd.f32 0.0, %v1712
        %1714 = vmatmul.f32.gmra.mxu0 %v1596
        %v1715 = vpop.f32.mrf.mxu0
        %v1716 = vadd.f32 0.0, %v1715
        %1717 = vmatmul.f32.gmra.mxu0 %v1597
        %v1718 = vpop.f32.mrf.mxu0
        %v1719 = vadd.f32 0.0, %v1718
        %1720 = vmatmul.f32.gmra.mxu0 %v1598
        %v1721 = vpop.f32.mrf.mxu0
        %v1722 = vadd.f32 0.0, %v1721
        %1723 = vmatmul.f32.gmra.mxu0 %v1599
        %v1724 = vpop.f32.mrf.mxu0
        %v1725 = vadd.f32 0.0, %v1724
        %1726 = vmatmul.f32.gmra.mxu0 %v1600
        %v1727 = vpop.f32.mrf.mxu0
        %v1728 = vadd.f32 0.0, %v1727
        %1729 = vmatmul.f32.gmra.mxu0 %v1601
        %v1730 = vpop.f32.mrf.mxu0
        %v1731 = vadd.f32 0.0, %v1730
        %1732 = vmatmul.f32.gmra.mxu0 %v1602
        %v1733 = vpop.f32.mrf.mxu0
        %v1734 = vadd.f32 0.0, %v1733
        %1735 = vmatmul.f32.gmra.mxu0 %v1603
        %v1736 = vpop.f32.mrf.mxu0
        %v1737 = vadd.f32 0.0, %v1736
        %1738 = vmatmul.f32.gmra.mxu0 %v1604
        %v1739 = vpop.f32.mrf.mxu0
        %v1740 = vadd.f32 0.0, %v1739
        %1741 = vmatmul.f32.gmra.mxu0 %v1605
        %v1742 = vpop.f32.mrf.mxu0
        %v1743 = vadd.f32 0.0, %v1742
        %1744 = vmatmul.f32.gmra.mxu0 %v1606
        %v1745 = vpop.f32.mrf.mxu0
        %v1746 = vadd.f32 0.0, %v1745
        %1747 = vmatmul.f32.gmra.mxu0 %v1607
        %v1748 = vpop.f32.mrf.mxu0
        %v1749 = vadd.f32 0.0, %v1748
        %1750 = vmatmul.f32.gmra.mxu0 %v1608
        %v1751 = vpop.f32.mrf.mxu0
        %v1752 = vadd.f32 0.0, %v1751
        %1753 = vmatmul.f32.gmra.mxu0 %v1609
        %v1754 = vpop.f32.mrf.mxu0
        %v1755 = vadd.f32 0.0, %v1754
        %1756 = vmatmul.f32.gmra.mxu0 %v1610
        %v1757 = vpop.f32.mrf.mxu0
        %v1758 = vadd.f32 0.0, %v1757
        %1759 = vmatmul.f32.gmra.mxu0 %v1611
        %v1760 = vpop.f32.mrf.mxu0
        %v1761 = vadd.f32 0.0, %v1760
        %1762 = vmatmul.f32.gmra.mxu0 %v1612
        %v1763 = vpop.f32.mrf.mxu0
        %v1764 = vadd.f32 0.0, %v1763
        %1765 = vmatmul.f32.gmra.mxu0 %v1613
        %v1766 = vpop.f32.mrf.mxu0
        %v1767 = vadd.f32 0.0, %v1766
        %1768 = vmatmul.f32.gmra.mxu0 %v1614
        %v1769 = vpop.f32.mrf.mxu0
        %v1770 = vadd.f32 0.0, %v1769
        %1771 = vmatmul.f32.gmra.mxu0 %v1615
        %v1772 = vpop.f32.mrf.mxu0
        %v1773 = vadd.f32 0.0, %v1772
        %1774 = vmatmul.f32.gmra.mxu0 %v1616
        %v1775 = vpop.f32.mrf.mxu0
        %v1776 = vadd.f32 0.0, %v1775
        %1777 = vmatmul.f32.gmra.mxu0 %v1617
        %v1778 = vpop.f32.mrf.mxu0
        %v1779 = vadd.f32 0.0, %v1778
        %1780 = vmatmul.f32.gmra.mxu0 %v1618
        %v1781 = vpop.f32.mrf.mxu0
        %v1782 = vadd.f32 0.0, %v1781
        %1783 = vmatmul.f32.gmra.mxu0 %v1619
        %v1784 = vpop.f32.mrf.mxu0
        %v1785 = vadd.f32 0.0, %v1784
        %1786 = vmatmul.f32.gmra.mxu0 %v1620
        %v1787 = vpop.f32.mrf.mxu0
        %v1788 = vadd.f32 0.0, %v1787
        %1789 = vmatmul.f32.gmra.mxu0 %v1621
        %v1790 = vpop.f32.mrf.mxu0
        %v1791 = vadd.f32 0.0, %v1790
        %1792 = vmatmul.f32.gmra.mxu0 %v1622
        %v1793 = vpop.f32.mrf.mxu0
        %v1794 = vadd.f32 0.0, %v1793
        %1795 = vmatmul.f32.gmra.mxu0 %v1623
        %v1796 = vpop.f32.mrf.mxu0
        %v1797 = vadd.f32 0.0, %v1796
        %1798 = vmatmul.f32.gmra.mxu0 %v1624
        %v1799 = vpop.f32.mrf.mxu0
        %v1800 = vadd.f32 0.0, %v1799
        %1801 = vdwg.mxu0
        %v1802 = vadd.f32 %v1625, %v1695
        %v1803 = vadd.f32 %v1626, %v1698
        %v1804 = vadd.f32 %v1627, %v1701
        %v1805 = vadd.f32 %v1628, %v1704
        %v1806 = vadd.f32 %v1629, %v1707
        %v1807 = vadd.f32 %v1630, %v1710
        %v1808 = vadd.f32 %v1631, %v1713
        %v1809 = vadd.f32 %v1632, %v1716
        %v1810 = vadd.f32 %v1633, %v1719
        %v1811 = vadd.f32 %v1634, %v1722
        %v1812 = vadd.f32 %v1635, %v1725
        %v1813 = vadd.f32 %v1636, %v1728
        %v1814 = vadd.f32 %v1637, %v1731
        %v1815 = vadd.f32 %v1638, %v1734
        %v1816 = vadd.f32 %v1639, %v1737
        %v1817 = vadd.f32 %v1640, %v1740
        %v1818 = vadd.f32 %v1641, %v1743
        %v1819 = vadd.f32 %v1642, %v1746
        %v1820 = vadd.f32 %v1643, %v1749
        %v1821 = vadd.f32 %v1644, %v1752
        %v1822 = vadd.f32 %v1645, %v1755
        %v1823 = vadd.f32 %v1646, %v1758
        %v1824 = vadd.f32 %v1647, %v1761
        %v1825 = vadd.f32 %v1648, %v1764
        %v1826 = vadd.f32 %v1649, %v1767
        %v1827 = vadd.f32 %v1650, %v1770
        %v1828 = vadd.f32 %v1651, %v1773
        %v1829 = vadd.f32 %v1652, %v1776
        %v1830 = vadd.f32 %v1653, %v1779
        %v1831 = vadd.f32 %v1654, %v1782
        %v1832 = vadd.f32 %v1655, %v1785
        %v1833 = vadd.f32 %v1656, %v1788
        %v1834 = vadd.f32 %v1657, %v1791
        %v1835 = vadd.f32 %v1658, %v1794
        %v1836 = vadd.f32 %v1659, %v1797
        %v1837 = vadd.f32 %v1660, %v1800
        %1838 = vst [vmem:[#allocation4] sm:$0xff] %v1802
        %1839 = vst [vmem:[#allocation4 + $0x8] sm:$0xff] %v1803
        %1840 = vst [vmem:[#allocation4 + $0x10] sm:$0xff] %v1804
        %1841 = vst [vmem:[#allocation4 + $0x18] sm:$0xff] %v1805
        %1842 = vst [vmem:[#allocation4 + $0x20] sm:$0xff] %v1806
        %1843 = vst [vmem:[#allocation4 + $0x28] sm:$0xff] %v1807
        %1844 = vst [vmem:[#allocation4 + $0x30] sm:$0xff] %v1808
        %1845 = vst [vmem:[#allocation4 + $0x38] sm:$0xff] %v1809
        %1846 = vst [vmem:[#allocation4 + $0x40] sm:$0xff] %v1810
        %1847 = vst [vmem:[#allocation4 + $0x48] sm:$0xff] %v1811
        %1848 = vst [vmem:[#allocation4 + $0x50] sm:$0xff] %v1812
        %1849 = vst [vmem:[#allocation4 + $0x58] sm:$0xff] %v1813
        %1850 = vst [vmem:[#allocation4 + $0x60] sm:$0xff] %v1814
        %1851 = vst [vmem:[#allocation4 + $0x68] sm:$0xff] %v1815
        %1852 = vst [vmem:[#allocation4 + $0x70] sm:$0xff] %v1816
        %1853 = vst [vmem:[#allocation4 + $0x78] sm:$0xff] %v1817
        %1854 = vst [vmem:[#allocation4 + $0x80] sm:$0xff] %v1818
        %1855 = vst [vmem:[#allocation4 + $0x88] sm:$0xff] %v1819
        %1856 = vst [vmem:[#allocation4 + $0x90] sm:$0xff] %v1820
        %1857 = vst [vmem:[#allocation4 + $0x98] sm:$0xff] %v1821
        %1858 = vst [vmem:[#allocation4 + $0xa0] sm:$0xff] %v1822
        %1859 = vst [vmem:[#allocation4 + $0xa8] sm:$0xff] %v1823
        %1860 = vst [vmem:[#allocation4 + $0xb0] sm:$0xff] %v1824
        %1861 = vst [vmem:[#allocation4 + $0xb8] sm:$0xff] %v1825
        %1862 = vst [vmem:[#allocation4 + $0xc0] sm:$0xff] %v1826
        %1863 = vst [vmem:[#allocation4 + $0xc8] sm:$0xff] %v1827
        %1864 = vst [vmem:[#allocation4 + $0xd0] sm:$0xff] %v1828
        %1865 = vst [vmem:[#allocation4 + $0xd8] sm:$0xff] %v1829
        %1866 = vst [vmem:[#allocation4 + $0xe0] sm:$0xff] %v1830
        %1867 = vst [vmem:[#allocation4 + $0xe8] sm:$0xff] %v1831
        %1868 = vst [vmem:[#allocation4 + $0xf0] sm:$0xff] %v1832
        %1869 = vst [vmem:[#allocation4 + $0xf8] sm:$0xff] %v1833
        %1870 = vst [vmem:[#allocation4 + $0x100] sm:$0xff] %v1834
        %1871 = vst [vmem:[#allocation4 + $0x108] sm:$0xff] %v1835
        %1872 = vst [vmem:[#allocation4 + $0x110] sm:$0xff] %v1836
        %1873 = vst [vmem:[#allocation4 + $0x118] sm:$0xff] %v1837
        %v1874 = vld [vmem:[%s1303 + $0x2] sm:$0xff]
        %v1875 = vld [vmem:[%s1303 + $0xa] sm:$0xff]
        %v1876 = vld [vmem:[%s1303 + $0x1a] sm:$0xff]
        %v1877 = vld [vmem:[%s1303 + $0x22] sm:$0xff]
        %v1878 = vld [vmem:[%s1303 + $0x32] sm:$0xff]
        %v1879 = vld [vmem:[%s1303 + $0x3a] sm:$0xff]
        %v1880 = vld [vmem:[%s1303 + $0x4a] sm:$0xff]
        %v1881 = vld [vmem:[%s1303 + $0x52] sm:$0xff]
        %v1882 = vld [vmem:[%s1303 + $0x62] sm:$0xff]
        %v1883 = vld [vmem:[%s1303 + $0x6a] sm:$0xff]
        %v1884 = vld [vmem:[%s1303 + $0x7a] sm:$0xff]
        %v1885 = vld [vmem:[%s1303 + $0x82] sm:$0xff]
        %v1886 = vld [vmem:[%s1303 + $0x92] sm:$0xff]
        %v1887 = vld [vmem:[%s1303 + $0x9a] sm:$0xff]
        %v1888 = vld [vmem:[%s1303 + $0xaa] sm:$0xff]
        %v1889 = vld [vmem:[%s1303 + $0xb2] sm:$0xff]
        %v1890 = vld [vmem:[%s1303 + $0xc2] sm:$0xff]
        %v1891 = vld [vmem:[%s1303 + $0xca] sm:$0xff]
        %v1892 = vld [vmem:[%s1303 + $0xda] sm:$0xff]
        %v1893 = vld [vmem:[%s1303 + $0xe2] sm:$0xff]
        %v1894 = vld [vmem:[%s1303 + $0xf2] sm:$0xff]
        %v1895 = vld [vmem:[%s1303 + $0xfa] sm:$0xff]
        %v1896 = vld [vmem:[%s1303 + $0x10a] sm:$0xff]
        %v1897 = vld [vmem:[%s1303 + $0x112] sm:$0xff]
        %v1898 = vld [vmem:[%s1303 + $0x122] sm:$0xff]
        %v1899 = vld [vmem:[%s1303 + $0x12a] sm:$0xff]
        %v1900 = vld [vmem:[%s1303 + $0x13a] sm:$0xff]
        %v1901 = vld [vmem:[%s1303 + $0x142] sm:$0xff]
        %v1902 = vld [vmem:[%s1303 + $0x152] sm:$0xff]
        %v1903 = vld [vmem:[%s1303 + $0x15a] sm:$0xff]
        %v1904 = vld [vmem:[%s1303 + $0x16a] sm:$0xff]
        %v1905 = vld [vmem:[%s1303 + $0x172] sm:$0xff]
        %v1906 = vld [vmem:[%s1303 + $0x182] sm:$0xff]
        %v1907 = vld [vmem:[%s1303 + $0x18a] sm:$0xff]
        %v1908 = vld [vmem:[%s1303 + $0x19a] sm:$0xff]
        %v1909 = vld [vmem:[%s1303 + $0x1a2] sm:$0xff]
        %v1910 = vld [vmem:[#allocation4] sm:$0xff]
        %v1911 = vld [vmem:[#allocation4 + $0x8] sm:$0xff]
        %v1912 = vld [vmem:[#allocation4 + $0x10] sm:$0xff]
        %v1913 = vld [vmem:[#allocation4 + $0x18] sm:$0xff]
        %v1914 = vld [vmem:[#allocation4 + $0x20] sm:$0xff]
        %v1915 = vld [vmem:[#allocation4 + $0x28] sm:$0xff]
        %v1916 = vld [vmem:[#allocation4 + $0x30] sm:$0xff]
        %v1917 = vld [vmem:[#allocation4 + $0x38] sm:$0xff]
        %v1918 = vld [vmem:[#allocation4 + $0x40] sm:$0xff]
        %v1919 = vld [vmem:[#allocation4 + $0x48] sm:$0xff]
        %v1920 = vld [vmem:[#allocation4 + $0x50] sm:$0xff]
        %v1921 = vld [vmem:[#allocation4 + $0x58] sm:$0xff]
        %v1922 = vld [vmem:[#allocation4 + $0x60] sm:$0xff]
        %v1923 = vld [vmem:[#allocation4 + $0x68] sm:$0xff]
        %v1924 = vld [vmem:[#allocation4 + $0x70] sm:$0xff]
        %v1925 = vld [vmem:[#allocation4 + $0x78] sm:$0xff]
        %v1926 = vld [vmem:[#allocation4 + $0x80] sm:$0xff]
        %v1927 = vld [vmem:[#allocation4 + $0x88] sm:$0xff]
        %v1928 = vld [vmem:[#allocation4 + $0x90] sm:$0xff]
        %v1929 = vld [vmem:[#allocation4 + $0x98] sm:$0xff]
        %v1930 = vld [vmem:[#allocation4 + $0xa0] sm:$0xff]
        %v1931 = vld [vmem:[#allocation4 + $0xa8] sm:$0xff]
        %v1932 = vld [vmem:[#allocation4 + $0xb0] sm:$0xff]
        %v1933 = vld [vmem:[#allocation4 + $0xb8] sm:$0xff]
        %v1934 = vld [vmem:[#allocation4 + $0xc0] sm:$0xff]
        %v1935 = vld [vmem:[#allocation4 + $0xc8] sm:$0xff]
        %v1936 = vld [vmem:[#allocation4 + $0xd0] sm:$0xff]
        %v1937 = vld [vmem:[#allocation4 + $0xd8] sm:$0xff]
        %v1938 = vld [vmem:[#allocation4 + $0xe0] sm:$0xff]
        %v1939 = vld [vmem:[#allocation4 + $0xe8] sm:$0xff]
        %v1940 = vld [vmem:[#allocation4 + $0xf0] sm:$0xff]
        %v1941 = vld [vmem:[#allocation4 + $0xf8] sm:$0xff]
        %v1942 = vld [vmem:[#allocation4 + $0x100] sm:$0xff]
        %v1943 = vld [vmem:[#allocation4 + $0x108] sm:$0xff]
        %v1944 = vld [vmem:[#allocation4 + $0x110] sm:$0xff]
        %v1945 = vld [vmem:[#allocation4 + $0x118] sm:$0xff]
        %v1946 = vld [vmem:[%s1 + $0x280] sm:$0xff]
        %v1947 = vld [vmem:[%s1 + $0x288] sm:$0xff]
        %v1948 = vld [vmem:[%s1 + $0x290] sm:$0xff]
        %v1949 = vld [vmem:[%s1 + $0x298] sm:$0xff]
        %v1950 = vld [vmem:[%s1 + $0x2a0] sm:$0xff]
        %v1951 = vld [vmem:[%s1 + $0x2a8] sm:$0xff]
        %v1952 = vld [vmem:[%s1 + $0x2b0] sm:$0xff]
        %v1953 = vld [vmem:[%s1 + $0x2b8] sm:$0xff]
        %v1954 = vld [vmem:[%s1 + $0x2c0] sm:$0xff]
        %v1955 = vld [vmem:[%s1 + $0x2c8] sm:$0xff]
        %v1956 = vld [vmem:[%s1 + $0x2d0] sm:$0xff]
        %v1957 = vld [vmem:[%s1 + $0x2d8] sm:$0xff]
        %v1958 = vld [vmem:[%s1 + $0x2e0] sm:$0xff]
        %v1959 = vld [vmem:[%s1 + $0x2e8] sm:$0xff]
        %v1960 = vld [vmem:[%s1 + $0x2f0] sm:$0xff]
        %v1961 = vld [vmem:[%s1 + $0x2f8] sm:$0xff]
        %1962 = vmatpush.msra.mxu0 %v1961
        %1963 = vmatpush.msra.mxu0 %v1960
        %1964 = vmatpush.msra.mxu0 %v1959
        %1965 = vmatpush.msra.mxu0 %v1958
        %1966 = vmatpush.msra.mxu0 %v1957
        %1967 = vmatpush.msra.mxu0 %v1956
        %1968 = vmatpush.msra.mxu0 %v1955
        %1969 = vmatpush.msra.mxu0 %v1954
        %1970 = vmatpush.msra.mxu0 %v1953
        %1971 = vmatpush.msra.mxu0 %v1952
        %1972 = vmatpush.msra.mxu0 %v1951
        %1973 = vmatpush.msra.mxu0 %v1950
        %1974 = vmatpush.msra.mxu0 %v1949
        %1975 = vmatpush.msra.mxu0 %v1948
        %1976 = vmatpush.msra.mxu0 %v1947
        %1977 = vmatpush.msra.mxu0 %v1946
        %1978 = vmatmul.f32.gmra.mxu0 %v1874
        %v1979 = vpop.f32.mrf.mxu0
        %v1980 = vadd.f32 0.0, %v1979
        %1981 = vmatmul.f32.gmra.mxu0 %v1875
        %v1982 = vpop.f32.mrf.mxu0
        %v1983 = vadd.f32 0.0, %v1982
        %1984 = vmatmul.f32.gmra.mxu0 %v1876
        %v1985 = vpop.f32.mrf.mxu0
        %v1986 = vadd.f32 0.0, %v1985
        %1987 = vmatmul.f32.gmra.mxu0 %v1877
        %v1988 = vpop.f32.mrf.mxu0
        %v1989 = vadd.f32 0.0, %v1988
        %1990 = vmatmul.f32.gmra.mxu0 %v1878
        %v1991 = vpop.f32.mrf.mxu0
        %v1992 = vadd.f32 0.0, %v1991
        %1993 = vmatmul.f32.gmra.mxu0 %v1879
        %v1994 = vpop.f32.mrf.mxu0
        %v1995 = vadd.f32 0.0, %v1994
        %1996 = vmatmul.f32.gmra.mxu0 %v1880
        %v1997 = vpop.f32.mrf.mxu0
        %v1998 = vadd.f32 0.0, %v1997
        %1999 = vmatmul.f32.gmra.mxu0 %v1881
        %v2000 = vpop.f32.mrf.mxu0
        %v2001 = vadd.f32 0.0, %v2000
        %2002 = vmatmul.f32.gmra.mxu0 %v1882
        %v2003 = vpop.f32.mrf.mxu0
        %v2004 = vadd.f32 0.0, %v2003
        %2005 = vmatmul.f32.gmra.mxu0 %v1883
        %v2006 = vpop.f32.mrf.mxu0
        %v2007 = vadd.f32 0.0, %v2006
        %2008 = vmatmul.f32.gmra.mxu0 %v1884
        %v2009 = vpop.f32.mrf.mxu0
        %v2010 = vadd.f32 0.0, %v2009
        %2011 = vmatmul.f32.gmra.mxu0 %v1885
        %v2012 = vpop.f32.mrf.mxu0
        %v2013 = vadd.f32 0.0, %v2012
        %2014 = vmatmul.f32.gmra.mxu0 %v1886
        %v2015 = vpop.f32.mrf.mxu0
        %v2016 = vadd.f32 0.0, %v2015
        %2017 = vmatmul.f32.gmra.mxu0 %v1887
        %v2018 = vpop.f32.mrf.mxu0
        %v2019 = vadd.f32 0.0, %v2018
        %2020 = vmatmul.f32.gmra.mxu0 %v1888
        %v2021 = vpop.f32.mrf.mxu0
        %v2022 = vadd.f32 0.0, %v2021
        %2023 = vmatmul.f32.gmra.mxu0 %v1889
        %v2024 = vpop.f32.mrf.mxu0
        %v2025 = vadd.f32 0.0, %v2024
        %2026 = vmatmul.f32.gmra.mxu0 %v1890
        %v2027 = vpop.f32.mrf.mxu0
        %v2028 = vadd.f32 0.0, %v2027
        %2029 = vmatmul.f32.gmra.mxu0 %v1891
        %v2030 = vpop.f32.mrf.mxu0
        %v2031 = vadd.f32 0.0, %v2030
        %2032 = vmatmul.f32.gmra.mxu0 %v1892
        %v2033 = vpop.f32.mrf.mxu0
        %v2034 = vadd.f32 0.0, %v2033
        %2035 = vmatmul.f32.gmra.mxu0 %v1893
        %v2036 = vpop.f32.mrf.mxu0
        %v2037 = vadd.f32 0.0, %v2036
        %2038 = vmatmul.f32.gmra.mxu0 %v1894
        %v2039 = vpop.f32.mrf.mxu0
        %v2040 = vadd.f32 0.0, %v2039
        %2041 = vmatmul.f32.gmra.mxu0 %v1895
        %v2042 = vpop.f32.mrf.mxu0
        %v2043 = vadd.f32 0.0, %v2042
        %2044 = vmatmul.f32.gmra.mxu0 %v1896
        %v2045 = vpop.f32.mrf.mxu0
        %v2046 = vadd.f32 0.0, %v2045
        %2047 = vmatmul.f32.gmra.mxu0 %v1897
        %v2048 = vpop.f32.mrf.mxu0
        %v2049 = vadd.f32 0.0, %v2048
        %2050 = vmatmul.f32.gmra.mxu0 %v1898
        %v2051 = vpop.f32.mrf.mxu0
        %v2052 = vadd.f32 0.0, %v2051
        %2053 = vmatmul.f32.gmra.mxu0 %v1899
        %v2054 = vpop.f32.mrf.mxu0
        %v2055 = vadd.f32 0.0, %v2054
        %2056 = vmatmul.f32.gmra.mxu0 %v1900
        %v2057 = vpop.f32.mrf.mxu0
        %v2058 = vadd.f32 0.0, %v2057
        %2059 = vmatmul.f32.gmra.mxu0 %v1901
        %v2060 = vpop.f32.mrf.mxu0
        %v2061 = vadd.f32 0.0, %v2060
        %2062 = vmatmul.f32.gmra.mxu0 %v1902
        %v2063 = vpop.f32.mrf.mxu0
        %v2064 = vadd.f32 0.0, %v2063
        %2065 = vmatmul.f32.gmra.mxu0 %v1903
        %v2066 = vpop.f32.mrf.mxu0
        %v2067 = vadd.f32 0.0, %v2066
        %2068 = vmatmul.f32.gmra.mxu0 %v1904
        %v2069 = vpop.f32.mrf.mxu0
        %v2070 = vadd.f32 0.0, %v2069
        %2071 = vmatmul.f32.gmra.mxu0 %v1905
        %v2072 = vpop.f32.mrf.mxu0
        %v2073 = vadd.f32 0.0, %v2072
        %2074 = vmatmul.f32.gmra.mxu0 %v1906
        %v2075 = vpop.f32.mrf.mxu0
        %v2076 = vadd.f32 0.0, %v2075
        %2077 = vmatmul.f32.gmra.mxu0 %v1907
        %v2078 = vpop.f32.mrf.mxu0
        %v2079 = vadd.f32 0.0, %v2078
        %2080 = vmatmul.f32.gmra.mxu0 %v1908
        %v2081 = vpop.f32.mrf.mxu0
        %v2082 = vadd.f32 0.0, %v2081
        %2083 = vmatmul.f32.gmra.mxu0 %v1909
        %v2084 = vpop.f32.mrf.mxu0
        %v2085 = vadd.f32 0.0, %v2084
        %2086 = vdwg.mxu0
        %v2087 = vadd.f32 %v1910, %v1980
        %v2088 = vadd.f32 %v1911, %v1983
        %v2089 = vadd.f32 %v1912, %v1986
        %v2090 = vadd.f32 %v1913, %v1989
        %v2091 = vadd.f32 %v1914, %v1992
        %v2092 = vadd.f32 %v1915, %v1995
        %v2093 = vadd.f32 %v1916, %v1998
        %v2094 = vadd.f32 %v1917, %v2001
        %v2095 = vadd.f32 %v1918, %v2004
        %v2096 = vadd.f32 %v1919, %v2007
        %v2097 = vadd.f32 %v1920, %v2010
        %v2098 = vadd.f32 %v1921, %v2013
        %v2099 = vadd.f32 %v1922, %v2016
        %v2100 = vadd.f32 %v1923, %v2019
        %v2101 = vadd.f32 %v1924, %v2022
        %v2102 = vadd.f32 %v1925, %v2025
        %v2103 = vadd.f32 %v1926, %v2028
        %v2104 = vadd.f32 %v1927, %v2031
        %v2105 = vadd.f32 %v1928, %v2034
        %v2106 = vadd.f32 %v1929, %v2037
        %v2107 = vadd.f32 %v1930, %v2040
        %v2108 = vadd.f32 %v1931, %v2043
        %v2109 = vadd.f32 %v1932, %v2046
        %v2110 = vadd.f32 %v1933, %v2049
        %v2111 = vadd.f32 %v1934, %v2052
        %v2112 = vadd.f32 %v1935, %v2055
        %v2113 = vadd.f32 %v1936, %v2058
        %v2114 = vadd.f32 %v1937, %v2061
        %v2115 = vadd.f32 %v1938, %v2064
        %v2116 = vadd.f32 %v1939, %v2067
        %v2117 = vadd.f32 %v1940, %v2070
        %v2118 = vadd.f32 %v1941, %v2073
        %v2119 = vadd.f32 %v1942, %v2076
        %v2120 = vadd.f32 %v1943, %v2079
        %v2121 = vadd.f32 %v1944, %v2082
        %v2122 = vadd.f32 %v1945, %v2085
        %2123 = vst [vmem:[#allocation4] sm:$0xff] %v2087
        %2124 = vst [vmem:[#allocation4 + $0x8] sm:$0xff] %v2088
        %2125 = vst [vmem:[#allocation4 + $0x10] sm:$0xff] %v2089
        %2126 = vst [vmem:[#allocation4 + $0x18] sm:$0xff] %v2090
        %2127 = vst [vmem:[#allocation4 + $0x20] sm:$0xff] %v2091
        %2128 = vst [vmem:[#allocation4 + $0x28] sm:$0xff] %v2092
        %2129 = vst [vmem:[#allocation4 + $0x30] sm:$0xff] %v2093
        %2130 = vst [vmem:[#allocation4 + $0x38] sm:$0xff] %v2094
        %2131 = vst [vmem:[#allocation4 + $0x40] sm:$0xff] %v2095
        %2132 = vst [vmem:[#allocation4 + $0x48] sm:$0xff] %v2096
        %2133 = vst [vmem:[#allocation4 + $0x50] sm:$0xff] %v2097
        %2134 = vst [vmem:[#allocation4 + $0x58] sm:$0xff] %v2098
        %2135 = vst [vmem:[#allocation4 + $0x60] sm:$0xff] %v2099
        %2136 = vst [vmem:[#allocation4 + $0x68] sm:$0xff] %v2100
        %2137 = vst [vmem:[#allocation4 + $0x70] sm:$0xff] %v2101
        %2138 = vst [vmem:[#allocation4 + $0x78] sm:$0xff] %v2102
        %2139 = vst [vmem:[#allocation4 + $0x80] sm:$0xff] %v2103
        %2140 = vst [vmem:[#allocation4 + $0x88] sm:$0xff] %v2104
        %2141 = vst [vmem:[#allocation4 + $0x90] sm:$0xff] %v2105
        %2142 = vst [vmem:[#allocation4 + $0x98] sm:$0xff] %v2106
        %2143 = vst [vmem:[#allocation4 + $0xa0] sm:$0xff] %v2107
        %2144 = vst [vmem:[#allocation4 + $0xa8] sm:$0xff] %v2108
        %2145 = vst [vmem:[#allocation4 + $0xb0] sm:$0xff] %v2109
        %2146 = vst [vmem:[#allocation4 + $0xb8] sm:$0xff] %v2110
        %2147 = vst [vmem:[#allocation4 + $0xc0] sm:$0xff] %v2111
        %2148 = vst [vmem:[#allocation4 + $0xc8] sm:$0xff] %v2112
        %2149 = vst [vmem:[#allocation4 + $0xd0] sm:$0xff] %v2113
        %2150 = vst [vmem:[#allocation4 + $0xd8] sm:$0xff] %v2114
        %2151 = vst [vmem:[#allocation4 + $0xe0] sm:$0xff] %v2115
        %2152 = vst [vmem:[#allocation4 + $0xe8] sm:$0xff] %v2116
        %2153 = vst [vmem:[#allocation4 + $0xf0] sm:$0xff] %v2117
        %2154 = vst [vmem:[#allocation4 + $0xf8] sm:$0xff] %v2118
        %2155 = vst [vmem:[#allocation4 + $0x100] sm:$0xff] %v2119
        %2156 = vst [vmem:[#allocation4 + $0x108] sm:$0xff] %v2120
        %2157 = vst [vmem:[#allocation4 + $0x110] sm:$0xff] %v2121
        %2158 = vst [vmem:[#allocation4 + $0x118] sm:$0xff] %v2122
        %s2159 = scalar_lea.vmem [#allocation2], 48
        %v2160 = vld [vmem:[%s2159] sm:$0xff]
        %v2161 = vld [vmem:[%s2159 + $0x8] sm:$0xff]
        %v2162 = vld [vmem:[%s2159 + $0x18] sm:$0xff]
        %v2163 = vld [vmem:[%s2159 + $0x20] sm:$0xff]
        %v2164 = vld [vmem:[%s2159 + $0x30] sm:$0xff]
        %v2165 = vld [vmem:[%s2159 + $0x38] sm:$0xff]
        %v2166 = vld [vmem:[%s2159 + $0x48] sm:$0xff]
        %v2167 = vld [vmem:[%s2159 + $0x50] sm:$0xff]
        %v2168 = vld [vmem:[%s2159 + $0x60] sm:$0xff]
        %v2169 = vld [vmem:[%s2159 + $0x68] sm:$0xff]
        %v2170 = vld [vmem:[%s2159 + $0x78] sm:$0xff]
        %v2171 = vld [vmem:[%s2159 + $0x80] sm:$0xff]
        %v2172 = vld [vmem:[%s2159 + $0x90] sm:$0xff]
        %v2173 = vld [vmem:[%s2159 + $0x98] sm:$0xff]
        %v2174 = vld [vmem:[%s2159 + $0xa8] sm:$0xff]
        %v2175 = vld [vmem:[%s2159 + $0xb0] sm:$0xff]
        %v2176 = vld [vmem:[%s2159 + $0xc0] sm:$0xff]
        %v2177 = vld [vmem:[%s2159 + $0xc8] sm:$0xff]
        %v2178 = vld [vmem:[%s2159 + $0xd8] sm:$0xff]
        %v2179 = vld [vmem:[%s2159 + $0xe0] sm:$0xff]
        %v2180 = vld [vmem:[%s2159 + $0xf0] sm:$0xff]
        %v2181 = vld [vmem:[%s2159 + $0xf8] sm:$0xff]
        %v2182 = vld [vmem:[%s2159 + $0x108] sm:$0xff]
        %v2183 = vld [vmem:[%s2159 + $0x110] sm:$0xff]
        %v2184 = vld [vmem:[%s2159 + $0x120] sm:$0xff]
        %v2185 = vld [vmem:[%s2159 + $0x128] sm:$0xff]
        %v2186 = vld [vmem:[%s2159 + $0x138] sm:$0xff]
        %v2187 = vld [vmem:[%s2159 + $0x140] sm:$0xff]
        %v2188 = vld [vmem:[%s2159 + $0x150] sm:$0xff]
        %v2189 = vld [vmem:[%s2159 + $0x158] sm:$0xff]
        %v2190 = vld [vmem:[%s2159 + $0x168] sm:$0xff]
        %v2191 = vld [vmem:[%s2159 + $0x170] sm:$0xff]
        %v2192 = vld [vmem:[%s2159 + $0x180] sm:$0xff]
        %v2193 = vld [vmem:[%s2159 + $0x188] sm:$0xff]
        %v2194 = vld [vmem:[%s2159 + $0x198] sm:$0xff]
        %v2195 = vld [vmem:[%s2159 + $0x1a0] sm:$0xff]
        %v2196 = vld [vmem:[#allocation4] sm:$0xff]
        %v2197 = vld [vmem:[#allocation4 + $0x8] sm:$0xff]
        %v2198 = vld [vmem:[#allocation4 + $0x10] sm:$0xff]
        %v2199 = vld [vmem:[#allocation4 + $0x18] sm:$0xff]
        %v2200 = vld [vmem:[#allocation4 + $0x20] sm:$0xff]
        %v2201 = vld [vmem:[#allocation4 + $0x28] sm:$0xff]
        %v2202 = vld [vmem:[#allocation4 + $0x30] sm:$0xff]
        %v2203 = vld [vmem:[#allocation4 + $0x38] sm:$0xff]
        %v2204 = vld [vmem:[#allocation4 + $0x40] sm:$0xff]
        %v2205 = vld [vmem:[#allocation4 + $0x48] sm:$0xff]
        %v2206 = vld [vmem:[#allocation4 + $0x50] sm:$0xff]
        %v2207 = vld [vmem:[#allocation4 + $0x58] sm:$0xff]
        %v2208 = vld [vmem:[#allocation4 + $0x60] sm:$0xff]
        %v2209 = vld [vmem:[#allocation4 + $0x68] sm:$0xff]
        %v2210 = vld [vmem:[#allocation4 + $0x70] sm:$0xff]
        %v2211 = vld [vmem:[#allocation4 + $0x78] sm:$0xff]
        %v2212 = vld [vmem:[#allocation4 + $0x80] sm:$0xff]
        %v2213 = vld [vmem:[#allocation4 + $0x88] sm:$0xff]
        %v2214 = vld [vmem:[#allocation4 + $0x90] sm:$0xff]
        %v2215 = vld [vmem:[#allocation4 + $0x98] sm:$0xff]
        %v2216 = vld [vmem:[#allocation4 + $0xa0] sm:$0xff]
        %v2217 = vld [vmem:[#allocation4 + $0xa8] sm:$0xff]
        %v2218 = vld [vmem:[#allocation4 + $0xb0] sm:$0xff]
        %v2219 = vld [vmem:[#allocation4 + $0xb8] sm:$0xff]
        %v2220 = vld [vmem:[#allocation4 + $0xc0] sm:$0xff]
        %v2221 = vld [vmem:[#allocation4 + $0xc8] sm:$0xff]
        %v2222 = vld [vmem:[#allocation4 + $0xd0] sm:$0xff]
        %v2223 = vld [vmem:[#allocation4 + $0xd8] sm:$0xff]
        %v2224 = vld [vmem:[#allocation4 + $0xe0] sm:$0xff]
        %v2225 = vld [vmem:[#allocation4 + $0xe8] sm:$0xff]
        %v2226 = vld [vmem:[#allocation4 + $0xf0] sm:$0xff]
        %v2227 = vld [vmem:[#allocation4 + $0xf8] sm:$0xff]
        %v2228 = vld [vmem:[#allocation4 + $0x100] sm:$0xff]
        %v2229 = vld [vmem:[#allocation4 + $0x108] sm:$0xff]
        %v2230 = vld [vmem:[#allocation4 + $0x110] sm:$0xff]
        %v2231 = vld [vmem:[#allocation4 + $0x118] sm:$0xff]
        %v2232 = vld [vmem:[%s1 + $0x300] sm:$0xff]
        %v2233 = vld [vmem:[%s1 + $0x308] sm:$0xff]
        %v2234 = vld [vmem:[%s1 + $0x310] sm:$0xff]
        %v2235 = vld [vmem:[%s1 + $0x318] sm:$0xff]
        %v2236 = vld [vmem:[%s1 + $0x320] sm:$0xff]
        %v2237 = vld [vmem:[%s1 + $0x328] sm:$0xff]
        %v2238 = vld [vmem:[%s1 + $0x330] sm:$0xff]
        %v2239 = vld [vmem:[%s1 + $0x338] sm:$0xff]
        %v2240 = vld [vmem:[%s1 + $0x340] sm:$0xff]
        %v2241 = vld [vmem:[%s1 + $0x348] sm:$0xff]
        %v2242 = vld [vmem:[%s1 + $0x350] sm:$0xff]
        %v2243 = vld [vmem:[%s1 + $0x358] sm:$0xff]
        %v2244 = vld [vmem:[%s1 + $0x360] sm:$0xff]
        %v2245 = vld [vmem:[%s1 + $0x368] sm:$0xff]
        %v2246 = vld [vmem:[%s1 + $0x370] sm:$0xff]
        %v2247 = vld [vmem:[%s1 + $0x378] sm:$0xff]
        %2248 = vmatpush.msra.mxu0 %v2247
        %2249 = vmatpush.msra.mxu0 %v2246
        %2250 = vmatpush.msra.mxu0 %v2245
        %2251 = vmatpush.msra.mxu0 %v2244
        %2252 = vmatpush.msra.mxu0 %v2243
        %2253 = vmatpush.msra.mxu0 %v2242
        %2254 = vmatpush.msra.mxu0 %v2241
        %2255 = vmatpush.msra.mxu0 %v2240
        %2256 = vmatpush.msra.mxu0 %v2239
        %2257 = vmatpush.msra.mxu0 %v2238
        %2258 = vmatpush.msra.mxu0 %v2237
        %2259 = vmatpush.msra.mxu0 %v2236
        %2260 = vmatpush.msra.mxu0 %v2235
        %2261 = vmatpush.msra.mxu0 %v2234
        %2262 = vmatpush.msra.mxu0 %v2233
        %2263 = vmatpush.msra.mxu0 %v2232
        %2264 = vmatmul.f32.gmra.mxu0 %v2160
        %v2265 = vpop.f32.mrf.mxu0
        %v2266 = vadd.f32 0.0, %v2265
        %2267 = vmatmul.f32.gmra.mxu0 %v2161
        %v2268 = vpop.f32.mrf.mxu0
        %v2269 = vadd.f32 0.0, %v2268
        %2270 = vmatmul.f32.gmra.mxu0 %v2162
        %v2271 = vpop.f32.mrf.mxu0
        %v2272 = vadd.f32 0.0, %v2271
        %2273 = vmatmul.f32.gmra.mxu0 %v2163
        %v2274 = vpop.f32.mrf.mxu0
        %v2275 = vadd.f32 0.0, %v2274
        %2276 = vmatmul.f32.gmra.mxu0 %v2164
        %v2277 = vpop.f32.mrf.mxu0
        %v2278 = vadd.f32 0.0, %v2277
        %2279 = vmatmul.f32.gmra.mxu0 %v2165
        %v2280 = vpop.f32.mrf.mxu0
        %v2281 = vadd.f32 0.0, %v2280
        %2282 = vmatmul.f32.gmra.mxu0 %v2166
        %v2283 = vpop.f32.mrf.mxu0
        %v2284 = vadd.f32 0.0, %v2283
        %2285 = vmatmul.f32.gmra.mxu0 %v2167
        %v2286 = vpop.f32.mrf.mxu0
        %v2287 = vadd.f32 0.0, %v2286
        %2288 = vmatmul.f32.gmra.mxu0 %v2168
        %v2289 = vpop.f32.mrf.mxu0
        %v2290 = vadd.f32 0.0, %v2289
        %2291 = vmatmul.f32.gmra.mxu0 %v2169
        %v2292 = vpop.f32.mrf.mxu0
        %v2293 = vadd.f32 0.0, %v2292
        %2294 = vmatmul.f32.gmra.mxu0 %v2170
        %v2295 = vpop.f32.mrf.mxu0
        %v2296 = vadd.f32 0.0, %v2295
        %2297 = vmatmul.f32.gmra.mxu0 %v2171
        %v2298 = vpop.f32.mrf.mxu0
        %v2299 = vadd.f32 0.0, %v2298
        %2300 = vmatmul.f32.gmra.mxu0 %v2172
        %v2301 = vpop.f32.mrf.mxu0
        %v2302 = vadd.f32 0.0, %v2301
        %2303 = vmatmul.f32.gmra.mxu0 %v2173
        %v2304 = vpop.f32.mrf.mxu0
        %v2305 = vadd.f32 0.0, %v2304
        %2306 = vmatmul.f32.gmra.mxu0 %v2174
        %v2307 = vpop.f32.mrf.mxu0
        %v2308 = vadd.f32 0.0, %v2307
        %2309 = vmatmul.f32.gmra.mxu0 %v2175
        %v2310 = vpop.f32.mrf.mxu0
        %v2311 = vadd.f32 0.0, %v2310
        %2312 = vmatmul.f32.gmra.mxu0 %v2176
        %v2313 = vpop.f32.mrf.mxu0
        %v2314 = vadd.f32 0.0, %v2313
        %2315 = vmatmul.f32.gmra.mxu0 %v2177
        %v2316 = vpop.f32.mrf.mxu0
        %v2317 = vadd.f32 0.0, %v2316
        %2318 = vmatmul.f32.gmra.mxu0 %v2178
        %v2319 = vpop.f32.mrf.mxu0
        %v2320 = vadd.f32 0.0, %v2319
        %2321 = vmatmul.f32.gmra.mxu0 %v2179
        %v2322 = vpop.f32.mrf.mxu0
        %v2323 = vadd.f32 0.0, %v2322
        %2324 = vmatmul.f32.gmra.mxu0 %v2180
        %v2325 = vpop.f32.mrf.mxu0
        %v2326 = vadd.f32 0.0, %v2325
        %2327 = vmatmul.f32.gmra.mxu0 %v2181
        %v2328 = vpop.f32.mrf.mxu0
        %v2329 = vadd.f32 0.0, %v2328
        %2330 = vmatmul.f32.gmra.mxu0 %v2182
        %v2331 = vpop.f32.mrf.mxu0
        %v2332 = vadd.f32 0.0, %v2331
        %2333 = vmatmul.f32.gmra.mxu0 %v2183
        %v2334 = vpop.f32.mrf.mxu0
        %v2335 = vadd.f32 0.0, %v2334
        %2336 = vmatmul.f32.gmra.mxu0 %v2184
        %v2337 = vpop.f32.mrf.mxu0
        %v2338 = vadd.f32 0.0, %v2337
        %2339 = vmatmul.f32.gmra.mxu0 %v2185
        %v2340 = vpop.f32.mrf.mxu0
        %v2341 = vadd.f32 0.0, %v2340
        %2342 = vmatmul.f32.gmra.mxu0 %v2186
        %v2343 = vpop.f32.mrf.mxu0
        %v2344 = vadd.f32 0.0, %v2343
        %2345 = vmatmul.f32.gmra.mxu0 %v2187
        %v2346 = vpop.f32.mrf.mxu0
        %v2347 = vadd.f32 0.0, %v2346
        %2348 = vmatmul.f32.gmra.mxu0 %v2188
        %v2349 = vpop.f32.mrf.mxu0
        %v2350 = vadd.f32 0.0, %v2349
        %2351 = vmatmul.f32.gmra.mxu0 %v2189
        %v2352 = vpop.f32.mrf.mxu0
        %v2353 = vadd.f32 0.0, %v2352
        %2354 = vmatmul.f32.gmra.mxu0 %v2190
        %v2355 = vpop.f32.mrf.mxu0
        %v2356 = vadd.f32 0.0, %v2355
        %2357 = vmatmul.f32.gmra.mxu0 %v2191
        %v2358 = vpop.f32.mrf.mxu0
        %v2359 = vadd.f32 0.0, %v2358
        %2360 = vmatmul.f32.gmra.mxu0 %v2192
        %v2361 = vpop.f32.mrf.mxu0
        %v2362 = vadd.f32 0.0, %v2361
        %2363 = vmatmul.f32.gmra.mxu0 %v2193
        %v2364 = vpop.f32.mrf.mxu0
        %v2365 = vadd.f32 0.0, %v2364
        %2366 = vmatmul.f32.gmra.mxu0 %v2194
        %v2367 = vpop.f32.mrf.mxu0
        %v2368 = vadd.f32 0.0, %v2367
        %2369 = vmatmul.f32.gmra.mxu0 %v2195
        %v2370 = vpop.f32.mrf.mxu0
        %v2371 = vadd.f32 0.0, %v2370
        %2372 = vdwg.mxu0
        %v2373 = vadd.f32 %v2196, %v2266
        %v2374 = vadd.f32 %v2197, %v2269
        %v2375 = vadd.f32 %v2198, %v2272
        %v2376 = vadd.f32 %v2199, %v2275
        %v2377 = vadd.f32 %v2200, %v2278
        %v2378 = vadd.f32 %v2201, %v2281
        %v2379 = vadd.f32 %v2202, %v2284
        %v2380 = vadd.f32 %v2203, %v2287
        %v2381 = vadd.f32 %v2204, %v2290
        %v2382 = vadd.f32 %v2205, %v2293
        %v2383 = vadd.f32 %v2206, %v2296
        %v2384 = vadd.f32 %v2207, %v2299
        %v2385 = vadd.f32 %v2208, %v2302
        %v2386 = vadd.f32 %v2209, %v2305
        %v2387 = vadd.f32 %v2210, %v2308
        %v2388 = vadd.f32 %v2211, %v2311
        %v2389 = vadd.f32 %v2212, %v2314
        %v2390 = vadd.f32 %v2213, %v2317
        %v2391 = vadd.f32 %v2214, %v2320
        %v2392 = vadd.f32 %v2215, %v2323
        %v2393 = vadd.f32 %v2216, %v2326
        %v2394 = vadd.f32 %v2217, %v2329
        %v2395 = vadd.f32 %v2218, %v2332
        %v2396 = vadd.f32 %v2219, %v2335
        %v2397 = vadd.f32 %v2220, %v2338
        %v2398 = vadd.f32 %v2221, %v2341
        %v2399 = vadd.f32 %v2222, %v2344
        %v2400 = vadd.f32 %v2223, %v2347
        %v2401 = vadd.f32 %v2224, %v2350
        %v2402 = vadd.f32 %v2225, %v2353
        %v2403 = vadd.f32 %v2226, %v2356
        %v2404 = vadd.f32 %v2227, %v2359
        %v2405 = vadd.f32 %v2228, %v2362
        %v2406 = vadd.f32 %v2229, %v2365
        %v2407 = vadd.f32 %v2230, %v2368
        %v2408 = vadd.f32 %v2231, %v2371
        %2409 = vst [vmem:[#allocation4] sm:$0xff] %v2373
        %2410 = vst [vmem:[#allocation4 + $0x8] sm:$0xff] %v2374
        %2411 = vst [vmem:[#allocation4 + $0x10] sm:$0xff] %v2375
        %2412 = vst [vmem:[#allocation4 + $0x18] sm:$0xff] %v2376
        %2413 = vst [vmem:[#allocation4 + $0x20] sm:$0xff] %v2377
        %2414 = vst [vmem:[#allocation4 + $0x28] sm:$0xff] %v2378
        %2415 = vst [vmem:[#allocation4 + $0x30] sm:$0xff] %v2379
        %2416 = vst [vmem:[#allocation4 + $0x38] sm:$0xff] %v2380
        %2417 = vst [vmem:[#allocation4 + $0x40] sm:$0xff] %v2381
        %2418 = vst [vmem:[#allocation4 + $0x48] sm:$0xff] %v2382
        %2419 = vst [vmem:[#allocation4 + $0x50] sm:$0xff] %v2383
        %2420 = vst [vmem:[#allocation4 + $0x58] sm:$0xff] %v2384
        %2421 = vst [vmem:[#allocation4 + $0x60] sm:$0xff] %v2385
        %2422 = vst [vmem:[#allocation4 + $0x68] sm:$0xff] %v2386
        %2423 = vst [vmem:[#allocation4 + $0x70] sm:$0xff] %v2387
        %2424 = vst [vmem:[#allocation4 + $0x78] sm:$0xff] %v2388
        %2425 = vst [vmem:[#allocation4 + $0x80] sm:$0xff] %v2389
        %2426 = vst [vmem:[#allocation4 + $0x88] sm:$0xff] %v2390
        %2427 = vst [vmem:[#allocation4 + $0x90] sm:$0xff] %v2391
        %2428 = vst [vmem:[#allocation4 + $0x98] sm:$0xff] %v2392
        %2429 = vst [vmem:[#allocation4 + $0xa0] sm:$0xff] %v2393
        %2430 = vst [vmem:[#allocation4 + $0xa8] sm:$0xff] %v2394
        %2431 = vst [vmem:[#allocation4 + $0xb0] sm:$0xff] %v2395
        %2432 = vst [vmem:[#allocation4 + $0xb8] sm:$0xff] %v2396
        %2433 = vst [vmem:[#allocation4 + $0xc0] sm:$0xff] %v2397
        %2434 = vst [vmem:[#allocation4 + $0xc8] sm:$0xff] %v2398
        %2435 = vst [vmem:[#allocation4 + $0xd0] sm:$0xff] %v2399
        %2436 = vst [vmem:[#allocation4 + $0xd8] sm:$0xff] %v2400
        %2437 = vst [vmem:[#allocation4 + $0xe0] sm:$0xff] %v2401
        %2438 = vst [vmem:[#allocation4 + $0xe8] sm:$0xff] %v2402
        %2439 = vst [vmem:[#allocation4 + $0xf0] sm:$0xff] %v2403
        %2440 = vst [vmem:[#allocation4 + $0xf8] sm:$0xff] %v2404
        %2441 = vst [vmem:[#allocation4 + $0x100] sm:$0xff] %v2405
        %2442 = vst [vmem:[#allocation4 + $0x108] sm:$0xff] %v2406
        %2443 = vst [vmem:[#allocation4 + $0x110] sm:$0xff] %v2407
        %2444 = vst [vmem:[#allocation4 + $0x118] sm:$0xff] %v2408
        %v2445 = vld [vmem:[%s2159 + $0x1] sm:$0xff]
        %v2446 = vld [vmem:[%s2159 + $0x9] sm:$0xff]
        %v2447 = vld [vmem:[%s2159 + $0x19] sm:$0xff]
        %v2448 = vld [vmem:[%s2159 + $0x21] sm:$0xff]
        %v2449 = vld [vmem:[%s2159 + $0x31] sm:$0xff]
        %v2450 = vld [vmem:[%s2159 + $0x39] sm:$0xff]
        %v2451 = vld [vmem:[%s2159 + $0x49] sm:$0xff]
        %v2452 = vld [vmem:[%s2159 + $0x51] sm:$0xff]
        %v2453 = vld [vmem:[%s2159 + $0x61] sm:$0xff]
        %v2454 = vld [vmem:[%s2159 + $0x69] sm:$0xff]
        %v2455 = vld [vmem:[%s2159 + $0x79] sm:$0xff]
        %v2456 = vld [vmem:[%s2159 + $0x81] sm:$0xff]
        %v2457 = vld [vmem:[%s2159 + $0x91] sm:$0xff]
        %v2458 = vld [vmem:[%s2159 + $0x99] sm:$0xff]
        %v2459 = vld [vmem:[%s2159 + $0xa9] sm:$0xff]
        %v2460 = vld [vmem:[%s2159 + $0xb1] sm:$0xff]
        %v2461 = vld [vmem:[%s2159 + $0xc1] sm:$0xff]
        %v2462 = vld [vmem:[%s2159 + $0xc9] sm:$0xff]
        %v2463 = vld [vmem:[%s2159 + $0xd9] sm:$0xff]
        %v2464 = vld [vmem:[%s2159 + $0xe1] sm:$0xff]
        %v2465 = vld [vmem:[%s2159 + $0xf1] sm:$0xff]
        %v2466 = vld [vmem:[%s2159 + $0xf9] sm:$0xff]
        %v2467 = vld [vmem:[%s2159 + $0x109] sm:$0xff]
        %v2468 = vld [vmem:[%s2159 + $0x111] sm:$0xff]
        %v2469 = vld [vmem:[%s2159 + $0x121] sm:$0xff]
        %v2470 = vld [vmem:[%s2159 + $0x129] sm:$0xff]
        %v2471 = vld [vmem:[%s2159 + $0x139] sm:$0xff]
        %v2472 = vld [vmem:[%s2159 + $0x141] sm:$0xff]
        %v2473 = vld [vmem:[%s2159 + $0x151] sm:$0xff]
        %v2474 = vld [vmem:[%s2159 + $0x159] sm:$0xff]
        %v2475 = vld [vmem:[%s2159 + $0x169] sm:$0xff]
        %v2476 = vld [vmem:[%s2159 + $0x171] sm:$0xff]
        %v2477 = vld [vmem:[%s2159 + $0x181] sm:$0xff]
        %v2478 = vld [vmem:[%s2159 + $0x189] sm:$0xff]
        %v2479 = vld [vmem:[%s2159 + $0x199] sm:$0xff]
        %v2480 = vld [vmem:[%s2159 + $0x1a1] sm:$0xff]
        %v2481 = vld [vmem:[#allocation4] sm:$0xff]
        %v2482 = vld [vmem:[#allocation4 + $0x8] sm:$0xff]
        %v2483 = vld [vmem:[#allocation4 + $0x10] sm:$0xff]
        %v2484 = vld [vmem:[#allocation4 + $0x18] sm:$0xff]
        %v2485 = vld [vmem:[#allocation4 + $0x20] sm:$0xff]
        %v2486 = vld [vmem:[#allocation4 + $0x28] sm:$0xff]
        %v2487 = vld [vmem:[#allocation4 + $0x30] sm:$0xff]
        %v2488 = vld [vmem:[#allocation4 + $0x38] sm:$0xff]
        %v2489 = vld [vmem:[#allocation4 + $0x40] sm:$0xff]
        %v2490 = vld [vmem:[#allocation4 + $0x48] sm:$0xff]
        %v2491 = vld [vmem:[#allocation4 + $0x50] sm:$0xff]
        %v2492 = vld [vmem:[#allocation4 + $0x58] sm:$0xff]
        %v2493 = vld [vmem:[#allocation4 + $0x60] sm:$0xff]
        %v2494 = vld [vmem:[#allocation4 + $0x68] sm:$0xff]
        %v2495 = vld [vmem:[#allocation4 + $0x70] sm:$0xff]
        %v2496 = vld [vmem:[#allocation4 + $0x78] sm:$0xff]
        %v2497 = vld [vmem:[#allocation4 + $0x80] sm:$0xff]
        %v2498 = vld [vmem:[#allocation4 + $0x88] sm:$0xff]
        %v2499 = vld [vmem:[#allocation4 + $0x90] sm:$0xff]
        %v2500 = vld [vmem:[#allocation4 + $0x98] sm:$0xff]
        %v2501 = vld [vmem:[#allocation4 + $0xa0] sm:$0xff]
        %v2502 = vld [vmem:[#allocation4 + $0xa8] sm:$0xff]
        %v2503 = vld [vmem:[#allocation4 + $0xb0] sm:$0xff]
        %v2504 = vld [vmem:[#allocation4 + $0xb8] sm:$0xff]
        %v2505 = vld [vmem:[#allocation4 + $0xc0] sm:$0xff]
        %v2506 = vld [vmem:[#allocation4 + $0xc8] sm:$0xff]
        %v2507 = vld [vmem:[#allocation4 + $0xd0] sm:$0xff]
        %v2508 = vld [vmem:[#allocation4 + $0xd8] sm:$0xff]
        %v2509 = vld [vmem:[#allocation4 + $0xe0] sm:$0xff]
        %v2510 = vld [vmem:[#allocation4 + $0xe8] sm:$0xff]
        %v2511 = vld [vmem:[#allocation4 + $0xf0] sm:$0xff]
        %v2512 = vld [vmem:[#allocation4 + $0xf8] sm:$0xff]
        %v2513 = vld [vmem:[#allocation4 + $0x100] sm:$0xff]
        %v2514 = vld [vmem:[#allocation4 + $0x108] sm:$0xff]
        %v2515 = vld [vmem:[#allocation4 + $0x110] sm:$0xff]
        %v2516 = vld [vmem:[#allocation4 + $0x118] sm:$0xff]
        %v2517 = vld [vmem:[%s1 + $0x380] sm:$0xff]
        %v2518 = vld [vmem:[%s1 + $0x388] sm:$0xff]
        %v2519 = vld [vmem:[%s1 + $0x390] sm:$0xff]
        %v2520 = vld [vmem:[%s1 + $0x398] sm:$0xff]
        %v2521 = vld [vmem:[%s1 + $0x3a0] sm:$0xff]
        %v2522 = vld [vmem:[%s1 + $0x3a8] sm:$0xff]
        %v2523 = vld [vmem:[%s1 + $0x3b0] sm:$0xff]
        %v2524 = vld [vmem:[%s1 + $0x3b8] sm:$0xff]
        %v2525 = vld [vmem:[%s1 + $0x3c0] sm:$0xff]
        %v2526 = vld [vmem:[%s1 + $0x3c8] sm:$0xff]
        %v2527 = vld [vmem:[%s1 + $0x3d0] sm:$0xff]
        %v2528 = vld [vmem:[%s1 + $0x3d8] sm:$0xff]
        %v2529 = vld [vmem:[%s1 + $0x3e0] sm:$0xff]
        %v2530 = vld [vmem:[%s1 + $0x3e8] sm:$0xff]
        %v2531 = vld [vmem:[%s1 + $0x3f0] sm:$0xff]
        %v2532 = vld [vmem:[%s1 + $0x3f8] sm:$0xff]
        %2533 = vmatpush.msra.mxu0 %v2532
        %2534 = vmatpush.msra.mxu0 %v2531
        %2535 = vmatpush.msra.mxu0 %v2530
        %2536 = vmatpush.msra.mxu0 %v2529
        %2537 = vmatpush.msra.mxu0 %v2528
        %2538 = vmatpush.msra.mxu0 %v2527
        %2539 = vmatpush.msra.mxu0 %v2526
        %2540 = vmatpush.msra.mxu0 %v2525
        %2541 = vmatpush.msra.mxu0 %v2524
        %2542 = vmatpush.msra.mxu0 %v2523
        %2543 = vmatpush.msra.mxu0 %v2522
        %2544 = vmatpush.msra.mxu0 %v2521
        %2545 = vmatpush.msra.mxu0 %v2520
        %2546 = vmatpush.msra.mxu0 %v2519
        %2547 = vmatpush.msra.mxu0 %v2518
        %2548 = vmatpush.msra.mxu0 %v2517
        %2549 = vmatmul.f32.gmra.mxu0 %v2445
        %v2550 = vpop.f32.mrf.mxu0
        %v2551 = vadd.f32 0.0, %v2550
        %2552 = vmatmul.f32.gmra.mxu0 %v2446
        %v2553 = vpop.f32.mrf.mxu0
        %v2554 = vadd.f32 0.0, %v2553
        %2555 = vmatmul.f32.gmra.mxu0 %v2447
        %v2556 = vpop.f32.mrf.mxu0
        %v2557 = vadd.f32 0.0, %v2556
        %2558 = vmatmul.f32.gmra.mxu0 %v2448
        %v2559 = vpop.f32.mrf.mxu0
        %v2560 = vadd.f32 0.0, %v2559
        %2561 = vmatmul.f32.gmra.mxu0 %v2449
        %v2562 = vpop.f32.mrf.mxu0
        %v2563 = vadd.f32 0.0, %v2562
        %2564 = vmatmul.f32.gmra.mxu0 %v2450
        %v2565 = vpop.f32.mrf.mxu0
        %v2566 = vadd.f32 0.0, %v2565
        %2567 = vmatmul.f32.gmra.mxu0 %v2451
        %v2568 = vpop.f32.mrf.mxu0
        %v2569 = vadd.f32 0.0, %v2568
        %2570 = vmatmul.f32.gmra.mxu0 %v2452
        %v2571 = vpop.f32.mrf.mxu0
        %v2572 = vadd.f32 0.0, %v2571
        %2573 = vmatmul.f32.gmra.mxu0 %v2453
        %v2574 = vpop.f32.mrf.mxu0
        %v2575 = vadd.f32 0.0, %v2574
        %2576 = vmatmul.f32.gmra.mxu0 %v2454
        %v2577 = vpop.f32.mrf.mxu0
        %v2578 = vadd.f32 0.0, %v2577
        %2579 = vmatmul.f32.gmra.mxu0 %v2455
        %v2580 = vpop.f32.mrf.mxu0
        %v2581 = vadd.f32 0.0, %v2580
        %2582 = vmatmul.f32.gmra.mxu0 %v2456
        %v2583 = vpop.f32.mrf.mxu0
        %v2584 = vadd.f32 0.0, %v2583
        %2585 = vmatmul.f32.gmra.mxu0 %v2457
        %v2586 = vpop.f32.mrf.mxu0
        %v2587 = vadd.f32 0.0, %v2586
        %2588 = vmatmul.f32.gmra.mxu0 %v2458
        %v2589 = vpop.f32.mrf.mxu0
        %v2590 = vadd.f32 0.0, %v2589
        %2591 = vmatmul.f32.gmra.mxu0 %v2459
        %v2592 = vpop.f32.mrf.mxu0
        %v2593 = vadd.f32 0.0, %v2592
        %2594 = vmatmul.f32.gmra.mxu0 %v2460
        %v2595 = vpop.f32.mrf.mxu0
        %v2596 = vadd.f32 0.0, %v2595
        %2597 = vmatmul.f32.gmra.mxu0 %v2461
        %v2598 = vpop.f32.mrf.mxu0
        %v2599 = vadd.f32 0.0, %v2598
        %2600 = vmatmul.f32.gmra.mxu0 %v2462
        %v2601 = vpop.f32.mrf.mxu0
        %v2602 = vadd.f32 0.0, %v2601
        %2603 = vmatmul.f32.gmra.mxu0 %v2463
        %v2604 = vpop.f32.mrf.mxu0
        %v2605 = vadd.f32 0.0, %v2604
        %2606 = vmatmul.f32.gmra.mxu0 %v2464
        %v2607 = vpop.f32.mrf.mxu0
        %v2608 = vadd.f32 0.0, %v2607
        %2609 = vmatmul.f32.gmra.mxu0 %v2465
        %v2610 = vpop.f32.mrf.mxu0
        %v2611 = vadd.f32 0.0, %v2610
        %2612 = vmatmul.f32.gmra.mxu0 %v2466
        %v2613 = vpop.f32.mrf.mxu0
        %v2614 = vadd.f32 0.0, %v2613
        %2615 = vmatmul.f32.gmra.mxu0 %v2467
        %v2616 = vpop.f32.mrf.mxu0
        %v2617 = vadd.f32 0.0, %v2616
        %2618 = vmatmul.f32.gmra.mxu0 %v2468
        %v2619 = vpop.f32.mrf.mxu0
        %v2620 = vadd.f32 0.0, %v2619
        %2621 = vmatmul.f32.gmra.mxu0 %v2469
        %v2622 = vpop.f32.mrf.mxu0
        %v2623 = vadd.f32 0.0, %v2622
        %2624 = vmatmul.f32.gmra.mxu0 %v2470
        %v2625 = vpop.f32.mrf.mxu0
        %v2626 = vadd.f32 0.0, %v2625
        %2627 = vmatmul.f32.gmra.mxu0 %v2471
        %v2628 = vpop.f32.mrf.mxu0
        %v2629 = vadd.f32 0.0, %v2628
        %2630 = vmatmul.f32.gmra.mxu0 %v2472
        %v2631 = vpop.f32.mrf.mxu0
        %v2632 = vadd.f32 0.0, %v2631
        %2633 = vmatmul.f32.gmra.mxu0 %v2473
        %v2634 = vpop.f32.mrf.mxu0
        %v2635 = vadd.f32 0.0, %v2634
        %2636 = vmatmul.f32.gmra.mxu0 %v2474
        %v2637 = vpop.f32.mrf.mxu0
        %v2638 = vadd.f32 0.0, %v2637
        %2639 = vmatmul.f32.gmra.mxu0 %v2475
        %v2640 = vpop.f32.mrf.mxu0
        %v2641 = vadd.f32 0.0, %v2640
        %2642 = vmatmul.f32.gmra.mxu0 %v2476
        %v2643 = vpop.f32.mrf.mxu0
        %v2644 = vadd.f32 0.0, %v2643
        %2645 = vmatmul.f32.gmra.mxu0 %v2477
        %v2646 = vpop.f32.mrf.mxu0
        %v2647 = vadd.f32 0.0, %v2646
        %2648 = vmatmul.f32.gmra.mxu0 %v2478
        %v2649 = vpop.f32.mrf.mxu0
        %v2650 = vadd.f32 0.0, %v2649
        %2651 = vmatmul.f32.gmra.mxu0 %v2479
        %v2652 = vpop.f32.mrf.mxu0
        %v2653 = vadd.f32 0.0, %v2652
        %2654 = vmatmul.f32.gmra.mxu0 %v2480
        %v2655 = vpop.f32.mrf.mxu0
        %v2656 = vadd.f32 0.0, %v2655
        %2657 = vdwg.mxu0
        %v2658 = vadd.f32 %v2481, %v2551
        %v2659 = vadd.f32 %v2482, %v2554
        %v2660 = vadd.f32 %v2483, %v2557
        %v2661 = vadd.f32 %v2484, %v2560
        %v2662 = vadd.f32 %v2485, %v2563
        %v2663 = vadd.f32 %v2486, %v2566
        %v2664 = vadd.f32 %v2487, %v2569
        %v2665 = vadd.f32 %v2488, %v2572
        %v2666 = vadd.f32 %v2489, %v2575
        %v2667 = vadd.f32 %v2490, %v2578
        %v2668 = vadd.f32 %v2491, %v2581
        %v2669 = vadd.f32 %v2492, %v2584
        %v2670 = vadd.f32 %v2493, %v2587
        %v2671 = vadd.f32 %v2494, %v2590
        %v2672 = vadd.f32 %v2495, %v2593
        %v2673 = vadd.f32 %v2496, %v2596
        %v2674 = vadd.f32 %v2497, %v2599
        %v2675 = vadd.f32 %v2498, %v2602
        %v2676 = vadd.f32 %v2499, %v2605
        %v2677 = vadd.f32 %v2500, %v2608
        %v2678 = vadd.f32 %v2501, %v2611
        %v2679 = vadd.f32 %v2502, %v2614
        %v2680 = vadd.f32 %v2503, %v2617
        %v2681 = vadd.f32 %v2504, %v2620
        %v2682 = vadd.f32 %v2505, %v2623
        %v2683 = vadd.f32 %v2506, %v2626
        %v2684 = vadd.f32 %v2507, %v2629
        %v2685 = vadd.f32 %v2508, %v2632
        %v2686 = vadd.f32 %v2509, %v2635
        %v2687 = vadd.f32 %v2510, %v2638
        %v2688 = vadd.f32 %v2511, %v2641
        %v2689 = vadd.f32 %v2512, %v2644
        %v2690 = vadd.f32 %v2513, %v2647
        %v2691 = vadd.f32 %v2514, %v2650
        %v2692 = vadd.f32 %v2515, %v2653
        %v2693 = vadd.f32 %v2516, %v2656
        %2694 = vst [vmem:[#allocation4] sm:$0xff] %v2658
        %2695 = vst [vmem:[#allocation4 + $0x8] sm:$0xff] %v2659
        %2696 = vst [vmem:[#allocation4 + $0x10] sm:$0xff] %v2660
        %2697 = vst [vmem:[#allocation4 + $0x18] sm:$0xff] %v2661
        %2698 = vst [vmem:[#allocation4 + $0x20] sm:$0xff] %v2662
        %2699 = vst [vmem:[#allocation4 + $0x28] sm:$0xff] %v2663
        %2700 = vst [vmem:[#allocation4 + $0x30] sm:$0xff] %v2664
        %2701 = vst [vmem:[#allocation4 + $0x38] sm:$0xff] %v2665
        %2702 = vst [vmem:[#allocation4 + $0x40] sm:$0xff] %v2666
        %2703 = vst [vmem:[#allocation4 + $0x48] sm:$0xff] %v2667
        %2704 = vst [vmem:[#allocation4 + $0x50] sm:$0xff] %v2668
        %2705 = vst [vmem:[#allocation4 + $0x58] sm:$0xff] %v2669
        %2706 = vst [vmem:[#allocation4 + $0x60] sm:$0xff] %v2670
        %2707 = vst [vmem:[#allocation4 + $0x68] sm:$0xff] %v2671
        %2708 = vst [vmem:[#allocation4 + $0x70] sm:$0xff] %v2672
        %2709 = vst [vmem:[#allocation4 + $0x78] sm:$0xff] %v2673
        %2710 = vst [vmem:[#allocation4 + $0x80] sm:$0xff] %v2674
        %2711 = vst [vmem:[#allocation4 + $0x88] sm:$0xff] %v2675
        %2712 = vst [vmem:[#allocation4 + $0x90] sm:$0xff] %v2676
        %2713 = vst [vmem:[#allocation4 + $0x98] sm:$0xff] %v2677
        %2714 = vst [vmem:[#allocation4 + $0xa0] sm:$0xff] %v2678
        %2715 = vst [vmem:[#allocation4 + $0xa8] sm:$0xff] %v2679
        %2716 = vst [vmem:[#allocation4 + $0xb0] sm:$0xff] %v2680
        %2717 = vst [vmem:[#allocation4 + $0xb8] sm:$0xff] %v2681
        %2718 = vst [vmem:[#allocation4 + $0xc0] sm:$0xff] %v2682
        %2719 = vst [vmem:[#allocation4 + $0xc8] sm:$0xff] %v2683
        %2720 = vst [vmem:[#allocation4 + $0xd0] sm:$0xff] %v2684
        %2721 = vst [vmem:[#allocation4 + $0xd8] sm:$0xff] %v2685
        %2722 = vst [vmem:[#allocation4 + $0xe0] sm:$0xff] %v2686
        %2723 = vst [vmem:[#allocation4 + $0xe8] sm:$0xff] %v2687
        %2724 = vst [vmem:[#allocation4 + $0xf0] sm:$0xff] %v2688
        %2725 = vst [vmem:[#allocation4 + $0xf8] sm:$0xff] %v2689
        %2726 = vst [vmem:[#allocation4 + $0x100] sm:$0xff] %v2690
        %2727 = vst [vmem:[#allocation4 + $0x108] sm:$0xff] %v2691
        %2728 = vst [vmem:[#allocation4 + $0x110] sm:$0xff] %v2692
        %2729 = vst [vmem:[#allocation4 + $0x118] sm:$0xff] %v2693
        %v2730 = vld [vmem:[%s2159 + $0x2] sm:$0xff]
        %v2731 = vld [vmem:[%s2159 + $0xa] sm:$0xff]
        %v2732 = vld [vmem:[%s2159 + $0x1a] sm:$0xff]
        %v2733 = vld [vmem:[%s2159 + $0x22] sm:$0xff]
        %v2734 = vld [vmem:[%s2159 + $0x32] sm:$0xff]
        %v2735 = vld [vmem:[%s2159 + $0x3a] sm:$0xff]
        %v2736 = vld [vmem:[%s2159 + $0x4a] sm:$0xff]
        %v2737 = vld [vmem:[%s2159 + $0x52] sm:$0xff]
        %v2738 = vld [vmem:[%s2159 + $0x62] sm:$0xff]
        %v2739 = vld [vmem:[%s2159 + $0x6a] sm:$0xff]
        %v2740 = vld [vmem:[%s2159 + $0x7a] sm:$0xff]
        %v2741 = vld [vmem:[%s2159 + $0x82] sm:$0xff]
        %v2742 = vld [vmem:[%s2159 + $0x92] sm:$0xff]
        %v2743 = vld [vmem:[%s2159 + $0x9a] sm:$0xff]
        %v2744 = vld [vmem:[%s2159 + $0xaa] sm:$0xff]
        %v2745 = vld [vmem:[%s2159 + $0xb2] sm:$0xff]
        %v2746 = vld [vmem:[%s2159 + $0xc2] sm:$0xff]
        %v2747 = vld [vmem:[%s2159 + $0xca] sm:$0xff]
        %v2748 = vld [vmem:[%s2159 + $0xda] sm:$0xff]
        %v2749 = vld [vmem:[%s2159 + $0xe2] sm:$0xff]
        %v2750 = vld [vmem:[%s2159 + $0xf2] sm:$0xff]
        %v2751 = vld [vmem:[%s2159 + $0xfa] sm:$0xff]
        %v2752 = vld [vmem:[%s2159 + $0x10a] sm:$0xff]
        %v2753 = vld [vmem:[%s2159 + $0x112] sm:$0xff]
        %v2754 = vld [vmem:[%s2159 + $0x122] sm:$0xff]
        %v2755 = vld [vmem:[%s2159 + $0x12a] sm:$0xff]
        %v2756 = vld [vmem:[%s2159 + $0x13a] sm:$0xff]
        %v2757 = vld [vmem:[%s2159 + $0x142] sm:$0xff]
        %v2758 = vld [vmem:[%s2159 + $0x152] sm:$0xff]
        %v2759 = vld [vmem:[%s2159 + $0x15a] sm:$0xff]
        %v2760 = vld [vmem:[%s2159 + $0x16a] sm:$0xff]
        %v2761 = vld [vmem:[%s2159 + $0x172] sm:$0xff]
        %v2762 = vld [vmem:[%s2159 + $0x182] sm:$0xff]
        %v2763 = vld [vmem:[%s2159 + $0x18a] sm:$0xff]
        %v2764 = vld [vmem:[%s2159 + $0x19a] sm:$0xff]
        %v2765 = vld [vmem:[%s2159 + $0x1a2] sm:$0xff]
        %v2766 = vld [vmem:[#allocation4] sm:$0xff]
        %v2767 = vld [vmem:[#allocation4 + $0x8] sm:$0xff]
        %v2768 = vld [vmem:[#allocation4 + $0x10] sm:$0xff]
        %v2769 = vld [vmem:[#allocation4 + $0x18] sm:$0xff]
        %v2770 = vld [vmem:[#allocation4 + $0x20] sm:$0xff]
        %v2771 = vld [vmem:[#allocation4 + $0x28] sm:$0xff]
        %v2772 = vld [vmem:[#allocation4 + $0x30] sm:$0xff]
        %v2773 = vld [vmem:[#allocation4 + $0x38] sm:$0xff]
        %v2774 = vld [vmem:[#allocation4 + $0x40] sm:$0xff]
        %v2775 = vld [vmem:[#allocation4 + $0x48] sm:$0xff]
        %v2776 = vld [vmem:[#allocation4 + $0x50] sm:$0xff]
        %v2777 = vld [vmem:[#allocation4 + $0x58] sm:$0xff]
        %v2778 = vld [vmem:[#allocation4 + $0x60] sm:$0xff]
        %v2779 = vld [vmem:[#allocation4 + $0x68] sm:$0xff]
        %v2780 = vld [vmem:[#allocation4 + $0x70] sm:$0xff]
        %v2781 = vld [vmem:[#allocation4 + $0x78] sm:$0xff]
        %v2782 = vld [vmem:[#allocation4 + $0x80] sm:$0xff]
        %v2783 = vld [vmem:[#allocation4 + $0x88] sm:$0xff]
        %v2784 = vld [vmem:[#allocation4 + $0x90] sm:$0xff]
        %v2785 = vld [vmem:[#allocation4 + $0x98] sm:$0xff]
        %v2786 = vld [vmem:[#allocation4 + $0xa0] sm:$0xff]
        %v2787 = vld [vmem:[#allocation4 + $0xa8] sm:$0xff]
        %v2788 = vld [vmem:[#allocation4 + $0xb0] sm:$0xff]
        %v2789 = vld [vmem:[#allocation4 + $0xb8] sm:$0xff]
        %v2790 = vld [vmem:[#allocation4 + $0xc0] sm:$0xff]
        %v2791 = vld [vmem:[#allocation4 + $0xc8] sm:$0xff]
        %v2792 = vld [vmem:[#allocation4 + $0xd0] sm:$0xff]
        %v2793 = vld [vmem:[#allocation4 + $0xd8] sm:$0xff]
        %v2794 = vld [vmem:[#allocation4 + $0xe0] sm:$0xff]
        %v2795 = vld [vmem:[#allocation4 + $0xe8] sm:$0xff]
        %v2796 = vld [vmem:[#allocation4 + $0xf0] sm:$0xff]
        %v2797 = vld [vmem:[#allocation4 + $0xf8] sm:$0xff]
        %v2798 = vld [vmem:[#allocation4 + $0x100] sm:$0xff]
        %v2799 = vld [vmem:[#allocation4 + $0x108] sm:$0xff]
        %v2800 = vld [vmem:[#allocation4 + $0x110] sm:$0xff]
        %v2801 = vld [vmem:[#allocation4 + $0x118] sm:$0xff]
        %v2802 = vld [vmem:[%s1 + $0x400] sm:$0xff]
        %v2803 = vld [vmem:[%s1 + $0x408] sm:$0xff]
        %v2804 = vld [vmem:[%s1 + $0x410] sm:$0xff]
        %v2805 = vld [vmem:[%s1 + $0x418] sm:$0xff]
        %v2806 = vld [vmem:[%s1 + $0x420] sm:$0xff]
        %v2807 = vld [vmem:[%s1 + $0x428] sm:$0xff]
        %v2808 = vld [vmem:[%s1 + $0x430] sm:$0xff]
        %v2809 = vld [vmem:[%s1 + $0x438] sm:$0xff]
        %v2810 = vld [vmem:[%s1 + $0x440] sm:$0xff]
        %v2811 = vld [vmem:[%s1 + $0x448] sm:$0xff]
        %v2812 = vld [vmem:[%s1 + $0x450] sm:$0xff]
        %v2813 = vld [vmem:[%s1 + $0x458] sm:$0xff]
        %v2814 = vld [vmem:[%s1 + $0x460] sm:$0xff]
        %v2815 = vld [vmem:[%s1 + $0x468] sm:$0xff]
        %v2816 = vld [vmem:[%s1 + $0x470] sm:$0xff]
        %v2817 = vld [vmem:[%s1 + $0x478] sm:$0xff]
        %2818 = vmatpush.msra.mxu0 %v2817
        %2819 = vmatpush.msra.mxu0 %v2816
        %2820 = vmatpush.msra.mxu0 %v2815
        %2821 = vmatpush.msra.mxu0 %v2814
        %2822 = vmatpush.msra.mxu0 %v2813
        %2823 = vmatpush.msra.mxu0 %v2812
        %2824 = vmatpush.msra.mxu0 %v2811
        %2825 = vmatpush.msra.mxu0 %v2810
        %2826 = vmatpush.msra.mxu0 %v2809
        %2827 = vmatpush.msra.mxu0 %v2808
        %2828 = vmatpush.msra.mxu0 %v2807
        %2829 = vmatpush.msra.mxu0 %v2806
        %2830 = vmatpush.msra.mxu0 %v2805
        %2831 = vmatpush.msra.mxu0 %v2804
        %2832 = vmatpush.msra.mxu0 %v2803
        %2833 = vmatpush.msra.mxu0 %v2802
        %2834 = vmatmul.f32.gmra.mxu0 %v2730
        %v2835 = vpop.f32.mrf.mxu0
        %v2836 = vadd.f32 0.0, %v2835
        %2837 = vmatmul.f32.gmra.mxu0 %v2731
        %v2838 = vpop.f32.mrf.mxu0
        %v2839 = vadd.f32 0.0, %v2838
        %2840 = vmatmul.f32.gmra.mxu0 %v2732
        %v2841 = vpop.f32.mrf.mxu0
        %v2842 = vadd.f32 0.0, %v2841
        %2843 = vmatmul.f32.gmra.mxu0 %v2733
        %v2844 = vpop.f32.mrf.mxu0
        %v2845 = vadd.f32 0.0, %v2844
        %2846 = vmatmul.f32.gmra.mxu0 %v2734
        %v2847 = vpop.f32.mrf.mxu0
        %v2848 = vadd.f32 0.0, %v2847
        %2849 = vmatmul.f32.gmra.mxu0 %v2735
        %v2850 = vpop.f32.mrf.mxu0
        %v2851 = vadd.f32 0.0, %v2850
        %2852 = vmatmul.f32.gmra.mxu0 %v2736
        %v2853 = vpop.f32.mrf.mxu0
        %v2854 = vadd.f32 0.0, %v2853
        %2855 = vmatmul.f32.gmra.mxu0 %v2737
        %v2856 = vpop.f32.mrf.mxu0
        %v2857 = vadd.f32 0.0, %v2856
        %2858 = vmatmul.f32.gmra.mxu0 %v2738
        %v2859 = vpop.f32.mrf.mxu0
        %v2860 = vadd.f32 0.0, %v2859
        %2861 = vmatmul.f32.gmra.mxu0 %v2739
        %v2862 = vpop.f32.mrf.mxu0
        %v2863 = vadd.f32 0.0, %v2862
        %2864 = vmatmul.f32.gmra.mxu0 %v2740
        %v2865 = vpop.f32.mrf.mxu0
        %v2866 = vadd.f32 0.0, %v2865
        %2867 = vmatmul.f32.gmra.mxu0 %v2741
        %v2868 = vpop.f32.mrf.mxu0
        %v2869 = vadd.f32 0.0, %v2868
        %2870 = vmatmul.f32.gmra.mxu0 %v2742
        %v2871 = vpop.f32.mrf.mxu0
        %v2872 = vadd.f32 0.0, %v2871
        %2873 = vmatmul.f32.gmra.mxu0 %v2743
        %v2874 = vpop.f32.mrf.mxu0
        %v2875 = vadd.f32 0.0, %v2874
        %2876 = vmatmul.f32.gmra.mxu0 %v2744
        %v2877 = vpop.f32.mrf.mxu0
        %v2878 = vadd.f32 0.0, %v2877
        %2879 = vmatmul.f32.gmra.mxu0 %v2745
        %v2880 = vpop.f32.mrf.mxu0
        %v2881 = vadd.f32 0.0, %v2880
        %2882 = vmatmul.f32.gmra.mxu0 %v2746
        %v2883 = vpop.f32.mrf.mxu0
        %v2884 = vadd.f32 0.0, %v2883
        %2885 = vmatmul.f32.gmra.mxu0 %v2747
        %v2886 = vpop.f32.mrf.mxu0
        %v2887 = vadd.f32 0.0, %v2886
        %2888 = vmatmul.f32.gmra.mxu0 %v2748
        %v2889 = vpop.f32.mrf.mxu0
        %v2890 = vadd.f32 0.0, %v2889
        %2891 = vmatmul.f32.gmra.mxu0 %v2749
        %v2892 = vpop.f32.mrf.mxu0
        %v2893 = vadd.f32 0.0, %v2892
        %2894 = vmatmul.f32.gmra.mxu0 %v2750
        %v2895 = vpop.f32.mrf.mxu0
        %v2896 = vadd.f32 0.0, %v2895
        %2897 = vmatmul.f32.gmra.mxu0 %v2751
        %v2898 = vpop.f32.mrf.mxu0
        %v2899 = vadd.f32 0.0, %v2898
        %2900 = vmatmul.f32.gmra.mxu0 %v2752
        %v2901 = vpop.f32.mrf.mxu0
        %v2902 = vadd.f32 0.0, %v2901
        %2903 = vmatmul.f32.gmra.mxu0 %v2753
        %v2904 = vpop.f32.mrf.mxu0
        %v2905 = vadd.f32 0.0, %v2904
        %2906 = vmatmul.f32.gmra.mxu0 %v2754
        %v2907 = vpop.f32.mrf.mxu0
        %v2908 = vadd.f32 0.0, %v2907
        %2909 = vmatmul.f32.gmra.mxu0 %v2755
        %v2910 = vpop.f32.mrf.mxu0
        %v2911 = vadd.f32 0.0, %v2910
        %2912 = vmatmul.f32.gmra.mxu0 %v2756
        %v2913 = vpop.f32.mrf.mxu0
        %v2914 = vadd.f32 0.0, %v2913
        %2915 = vmatmul.f32.gmra.mxu0 %v2757
        %v2916 = vpop.f32.mrf.mxu0
        %v2917 = vadd.f32 0.0, %v2916
        %2918 = vmatmul.f32.gmra.mxu0 %v2758
        %v2919 = vpop.f32.mrf.mxu0
        %v2920 = vadd.f32 0.0, %v2919
        %2921 = vmatmul.f32.gmra.mxu0 %v2759
        %v2922 = vpop.f32.mrf.mxu0
        %v2923 = vadd.f32 0.0, %v2922
        %2924 = vmatmul.f32.gmra.mxu0 %v2760
        %v2925 = vpop.f32.mrf.mxu0
        %v2926 = vadd.f32 0.0, %v2925
        %2927 = vmatmul.f32.gmra.mxu0 %v2761
        %v2928 = vpop.f32.mrf.mxu0
        %v2929 = vadd.f32 0.0, %v2928
        %2930 = vmatmul.f32.gmra.mxu0 %v2762
        %v2931 = vpop.f32.mrf.mxu0
        %v2932 = vadd.f32 0.0, %v2931
        %2933 = vmatmul.f32.gmra.mxu0 %v2763
        %v2934 = vpop.f32.mrf.mxu0
        %v2935 = vadd.f32 0.0, %v2934
        %2936 = vmatmul.f32.gmra.mxu0 %v2764
        %v2937 = vpop.f32.mrf.mxu0
        %v2938 = vadd.f32 0.0, %v2937
        %2939 = vmatmul.f32.gmra.mxu0 %v2765
        %v2940 = vpop.f32.mrf.mxu0
        %v2941 = vadd.f32 0.0, %v2940
        %2942 = vdwg.mxu0
        %v2943 = vadd.f32 %v2766, %v2836
        %v2944 = vadd.f32 %v2767, %v2839
        %v2945 = vadd.f32 %v2768, %v2842
        %v2946 = vadd.f32 %v2769, %v2845
        %v2947 = vadd.f32 %v2770, %v2848
        %v2948 = vadd.f32 %v2771, %v2851
        %v2949 = vadd.f32 %v2772, %v2854
        %v2950 = vadd.f32 %v2773, %v2857
        %v2951 = vadd.f32 %v2774, %v2860
        %v2952 = vadd.f32 %v2775, %v2863
        %v2953 = vadd.f32 %v2776, %v2866
        %v2954 = vadd.f32 %v2777, %v2869
        %v2955 = vadd.f32 %v2778, %v2872
        %v2956 = vadd.f32 %v2779, %v2875
        %v2957 = vadd.f32 %v2780, %v2878
        %v2958 = vadd.f32 %v2781, %v2881
        %v2959 = vadd.f32 %v2782, %v2884
        %v2960 = vadd.f32 %v2783, %v2887
        %v2961 = vadd.f32 %v2784, %v2890
        %v2962 = vadd.f32 %v2785, %v2893
        %v2963 = vadd.f32 %v2786, %v2896
        %v2964 = vadd.f32 %v2787, %v2899
        %v2965 = vadd.f32 %v2788, %v2902
        %v2966 = vadd.f32 %v2789, %v2905
        %v2967 = vadd.f32 %v2790, %v2908
        %v2968 = vadd.f32 %v2791, %v2911
        %v2969 = vadd.f32 %v2792, %v2914
        %v2970 = vadd.f32 %v2793, %v2917
        %v2971 = vadd.f32 %v2794, %v2920
        %v2972 = vadd.f32 %v2795, %v2923
        %v2973 = vadd.f32 %v2796, %v2926
        %v2974 = vadd.f32 %v2797, %v2929
        %v2975 = vadd.f32 %v2798, %v2932
        %v2976 = vadd.f32 %v2799, %v2935
        %v2977 = vadd.f32 %v2800, %v2938
        %v2978 = vadd.f32 %v2801, %v2941
        %2979 = vst [vmem:[#allocation4] sm:$0xff] %v2943
        %2980 = vst [vmem:[#allocation4 + $0x8] sm:$0xff] %v2944
        %2981 = vst [vmem:[#allocation4 + $0x10] sm:$0xff] %v2945
        %2982 = vst [vmem:[#allocation4 + $0x18] sm:$0xff] %v2946
        %2983 = vst [vmem:[#allocation4 + $0x20] sm:$0xff] %v2947
        %2984 = vst [vmem:[#allocation4 + $0x28] sm:$0xff] %v2948
        %2985 = vst [vmem:[#allocation4 + $0x30] sm:$0xff] %v2949
        %2986 = vst [vmem:[#allocation4 + $0x38] sm:$0xff] %v2950
        %2987 = vst [vmem:[#allocation4 + $0x40] sm:$0xff] %v2951
        %2988 = vst [vmem:[#allocation4 + $0x48] sm:$0xff] %v2952
        %2989 = vst [vmem:[#allocation4 + $0x50] sm:$0xff] %v2953
        %2990 = vst [vmem:[#allocation4 + $0x58] sm:$0xff] %v2954
        %2991 = vst [vmem:[#allocation4 + $0x60] sm:$0xff] %v2955
        %2992 = vst [vmem:[#allocation4 + $0x68] sm:$0xff] %v2956
        %2993 = vst [vmem:[#allocation4 + $0x70] sm:$0xff] %v2957
        %2994 = vst [vmem:[#allocation4 + $0x78] sm:$0xff] %v2958
        %2995 = vst [vmem:[#allocation4 + $0x80] sm:$0xff] %v2959
        %2996 = vst [vmem:[#allocation4 + $0x88] sm:$0xff] %v2960
        %2997 = vst [vmem:[#allocation4 + $0x90] sm:$0xff] %v2961
        %2998 = vst [vmem:[#allocation4 + $0x98] sm:$0xff] %v2962
        %2999 = vst [vmem:[#allocation4 + $0xa0] sm:$0xff] %v2963
        %3000 = vst [vmem:[#allocation4 + $0xa8] sm:$0xff] %v2964
        %3001 = vst [vmem:[#allocation4 + $0xb0] sm:$0xff] %v2965
        %3002 = vst [vmem:[#allocation4 + $0xb8] sm:$0xff] %v2966
        %3003 = vst [vmem:[#allocation4 + $0xc0] sm:$0xff] %v2967
        %3004 = vst [vmem:[#allocation4 + $0xc8] sm:$0xff] %v2968
        %3005 = vst [vmem:[#allocation4 + $0xd0] sm:$0xff] %v2969
        %3006 = vst [vmem:[#allocation4 + $0xd8] sm:$0xff] %v2970
        %3007 = vst [vmem:[#allocation4 + $0xe0] sm:$0xff] %v2971
        %3008 = vst [vmem:[#allocation4 + $0xe8] sm:$0xff] %v2972
        %3009 = vst [vmem:[#allocation4 + $0xf0] sm:$0xff] %v2973
        %3010 = vst [vmem:[#allocation4 + $0xf8] sm:$0xff] %v2974
        %3011 = vst [vmem:[#allocation4 + $0x100] sm:$0xff] %v2975
        %3012 = vst [vmem:[#allocation4 + $0x108] sm:$0xff] %v2976
        %3013 = vst [vmem:[#allocation4 + $0x110] sm:$0xff] %v2977
        %3014 = vst [vmem:[#allocation4 + $0x118] sm:$0xff] %v2978
        %v3015 = vld [vmem:[#allocation4] sm:$0xff]
        %v3016 = vld [vmem:[#allocation4 + $0x8] sm:$0xff]
        %v3017 = vld [vmem:[#allocation4 + $0x10] sm:$0xff]
        %v3018 = vld [vmem:[#allocation4 + $0x18] sm:$0xff]
        %v3019 = vld [vmem:[#allocation4 + $0x20] sm:$0xff]
        %v3020 = vld [vmem:[#allocation4 + $0x28] sm:$0xff]
        %v3021 = vld [vmem:[#allocation4 + $0x30] sm:$0xff]
        %v3022 = vld [vmem:[#allocation4 + $0x38] sm:$0xff]
        %v3023 = vld [vmem:[#allocation4 + $0x40] sm:$0xff]
        %v3024 = vld [vmem:[#allocation4 + $0x48] sm:$0xff]
        %v3025 = vld [vmem:[#allocation4 + $0x50] sm:$0xff]
        %v3026 = vld [vmem:[#allocation4 + $0x58] sm:$0xff]
        %v3027 = vld [vmem:[#allocation4 + $0x60] sm:$0xff]
        %v3028 = vld [vmem:[#allocation4 + $0x68] sm:$0xff]
        %v3029 = vld [vmem:[#allocation4 + $0x70] sm:$0xff]
        %v3030 = vld [vmem:[#allocation4 + $0x78] sm:$0xff]
        %v3031 = vld [vmem:[#allocation4 + $0x80] sm:$0xff]
        %v3032 = vld [vmem:[#allocation4 + $0x88] sm:$0xff]
        %v3033 = vld [vmem:[#allocation4 + $0x90] sm:$0xff]
        %v3034 = vld [vmem:[#allocation4 + $0x98] sm:$0xff]
        %v3035 = vld [vmem:[#allocation4 + $0xa0] sm:$0xff]
        %v3036 = vld [vmem:[#allocation4 + $0xa8] sm:$0xff]
        %v3037 = vld [vmem:[#allocation4 + $0xb0] sm:$0xff]
        %v3038 = vld [vmem:[#allocation4 + $0xb8] sm:$0xff]
        %v3039 = vld [vmem:[#allocation4 + $0xc0] sm:$0xff]
        %v3040 = vld [vmem:[#allocation4 + $0xc8] sm:$0xff]
        %v3041 = vld [vmem:[#allocation4 + $0xd0] sm:$0xff]
        %v3042 = vld [vmem:[#allocation4 + $0xd8] sm:$0xff]
        %v3043 = vld [vmem:[#allocation4 + $0xe0] sm:$0xff]
        %v3044 = vld [vmem:[#allocation4 + $0xe8] sm:$0xff]
        %v3045 = vld [vmem:[#allocation4 + $0xf0] sm:$0xff]
        %v3046 = vld [vmem:[#allocation4 + $0xf8] sm:$0xff]
        %v3047 = vld [vmem:[#allocation4 + $0x100] sm:$0xff]
        %v3048 = vld [vmem:[#allocation4 + $0x108] sm:$0xff]
        %v3049 = vld [vmem:[#allocation4 + $0x110] sm:$0xff]
        %v3050 = vld [vmem:[#allocation4 + $0x118] sm:$0xff]
        %v3051 = vld [vmem:[%s2] sm:$0x1]
        %v3053 = vperm.slane %v3051, 0
        %v3055 = vadd.f32 %v3015, %v3053
        %v3056 = vadd.f32 %v3016, %v3053
        %v3057 = vadd.f32 %v3017, %v3053
        %v3058 = vadd.f32 %v3018, %v3053
        %v3059 = vadd.f32 %v3019, %v3053
        %v3060 = vadd.f32 %v3020, %v3053
        %v3061 = vadd.f32 %v3021, %v3053
        %v3062 = vadd.f32 %v3022, %v3053
        %v3063 = vadd.f32 %v3023, %v3053
        %v3064 = vadd.f32 %v3024, %v3053
        %v3065 = vadd.f32 %v3025, %v3053
        %v3066 = vadd.f32 %v3026, %v3053
        %v3067 = vadd.f32 %v3027, %v3053
        %v3068 = vadd.f32 %v3028, %v3053
        %v3069 = vadd.f32 %v3029, %v3053
        %v3070 = vadd.f32 %v3030, %v3053
        %v3071 = vadd.f32 %v3031, %v3053
        %v3072 = vadd.f32 %v3032, %v3053
        %v3073 = vadd.f32 %v3033, %v3053
        %v3074 = vadd.f32 %v3034, %v3053
        %v3075 = vadd.f32 %v3035, %v3053
        %v3076 = vadd.f32 %v3036, %v3053
        %v3077 = vadd.f32 %v3037, %v3053
        %v3078 = vadd.f32 %v3038, %v3053
        %v3079 = vadd.f32 %v3039, %v3053
        %v3080 = vadd.f32 %v3040, %v3053
        %v3081 = vadd.f32 %v3041, %v3053
        %v3082 = vadd.f32 %v3042, %v3053
        %v3083 = vadd.f32 %v3043, %v3053
        %v3084 = vadd.f32 %v3044, %v3053
        %v3085 = vadd.f32 %v3045, %v3053
        %v3086 = vadd.f32 %v3046, %v3053
        %v3087 = vadd.f32 %v3047, %v3053
        %v3088 = vadd.f32 %v3048, %v3053
        %v3089 = vadd.f32 %v3049, %v3053
        %v3090 = vadd.f32 %v3050, %v3053
        %v3091 = vmax.f32 %v3055, 0.0
        %v3092 = vmax.f32 %v3056, 0.0
        %v3093 = vmax.f32 %v3057, 0.0
        %v3094 = vmax.f32 %v3058, 0.0
        %v3095 = vmax.f32 %v3059, 0.0
        %v3096 = vmax.f32 %v3060, 0.0
        %v3097 = vmax.f32 %v3061, 0.0
        %v3098 = vmax.f32 %v3062, 0.0
        %v3099 = vmax.f32 %v3063, 0.0
        %v3100 = vmax.f32 %v3064, 0.0
        %v3101 = vmax.f32 %v3065, 0.0
        %v3102 = vmax.f32 %v3066, 0.0
        %v3103 = vmax.f32 %v3067, 0.0
        %v3104 = vmax.f32 %v3068, 0.0
        %v3105 = vmax.f32 %v3069, 0.0
        %v3106 = vmax.f32 %v3070, 0.0
        %v3107 = vmax.f32 %v3071, 0.0
        %v3108 = vmax.f32 %v3072, 0.0
        %v3109 = vmax.f32 %v3073, 0.0
        %v3110 = vmax.f32 %v3074, 0.0
        %v3111 = vmax.f32 %v3075, 0.0
        %v3112 = vmax.f32 %v3076, 0.0
        %v3113 = vmax.f32 %v3077, 0.0
        %v3114 = vmax.f32 %v3078, 0.0
        %v3115 = vmax.f32 %v3079, 0.0
        %v3116 = vmax.f32 %v3080, 0.0
        %v3117 = vmax.f32 %v3081, 0.0
        %v3118 = vmax.f32 %v3082, 0.0
        %v3119 = vmax.f32 %v3083, 0.0
        %v3120 = vmax.f32 %v3084, 0.0
        %v3121 = vmax.f32 %v3085, 0.0
        %v3122 = vmax.f32 %v3086, 0.0
        %v3123 = vmax.f32 %v3087, 0.0
        %v3124 = vmax.f32 %v3088, 0.0
        %v3125 = vmax.f32 %v3089, 0.0
        %v3126 = vmax.f32 %v3090, 0.0
        %s3127 = ssub.s32 1, %s221
        %v3128 = vstv %s3127
        %vm3129 = vcmp.le.s32.totalorder %v3128, 0
        %vm3130 = vcmp.le.s32.totalorder %v3128, 1
        %vm3131 = vcmp.le.s32.totalorder %v3128, 2
        %vm3132 = vcmp.le.s32.totalorder %v3128, 3
        %vm3133 = vcmp.le.s32.totalorder %v3128, 4
        %vm3134 = vcmp.le.s32.totalorder %v3128, 5
        %vm3135 = vcmp.le.s32.totalorder %v3128, 6
        %vm3136 = vcmp.le.s32.totalorder %v3128, 7
        %vm3137 = vcmp.le.s32.totalorder %v3128, 8
        %vm3138 = vcmp.le.s32.totalorder %v3128, 9
        %vm3139 = vcmp.le.s32.totalorder %v3128, 10
        %vm3140 = vcmp.le.s32.totalorder %v3128, 11
        %vm3141 = vcmp.le.s32.totalorder %v3128, 12
        %vm3142 = vcmp.le.s32.totalorder %v3128, 13
        %vm3143 = vcmp.le.s32.totalorder %v3128, 14
        %vm3144 = vcmp.le.s32.totalorder %v3128, 15
        %vm3145 = vcmp.le.s32.totalorder %v3128, 16
        %vm3146 = vcmp.le.s32.totalorder %v3128, 17
        %s3147 = ssub.s32 17, %s221
        %v3148 = vstv %s3147
        %vm3149 = vcmp.gt.s32.totalorder %v3148, 0
        %vm3150 = vcmp.gt.s32.totalorder %v3148, 1
        %vm3151 = vcmp.gt.s32.totalorder %v3148, 2
        %vm3152 = vcmp.gt.s32.totalorder %v3148, 3
        %vm3153 = vcmp.gt.s32.totalorder %v3148, 4
        %vm3154 = vcmp.gt.s32.totalorder %v3148, 5
        %vm3155 = vcmp.gt.s32.totalorder %v3148, 6
        %vm3156 = vcmp.gt.s32.totalorder %v3148, 7
        %vm3157 = vcmp.gt.s32.totalorder %v3148, 8
        %vm3158 = vcmp.gt.s32.totalorder %v3148, 9
        %vm3159 = vcmp.gt.s32.totalorder %v3148, 10
        %vm3160 = vcmp.gt.s32.totalorder %v3148, 11
        %vm3161 = vcmp.gt.s32.totalorder %v3148, 12
        %vm3162 = vcmp.gt.s32.totalorder %v3148, 13
        %vm3163 = vcmp.gt.s32.totalorder %v3148, 14
        %vm3164 = vcmp.gt.s32.totalorder %v3148, 15
        %vm3165 = vcmp.gt.s32.totalorder %v3148, 16
        %vm3166 = vcmp.gt.s32.totalorder %v3148, 17
        %vm3167 = vmand %vm3129, %vm3149
        %vm3168 = vmand %vm3130, %vm3150
        %vm3169 = vmand %vm3131, %vm3151
        %vm3170 = vmand %vm3132, %vm3152
        %vm3171 = vmand %vm3133, %vm3153
        %vm3172 = vmand %vm3134, %vm3154
        %vm3173 = vmand %vm3135, %vm3155
        %vm3174 = vmand %vm3136, %vm3156
        %vm3175 = vmand %vm3137, %vm3157
        %vm3176 = vmand %vm3138, %vm3158
        %vm3177 = vmand %vm3139, %vm3159
        %vm3178 = vmand %vm3140, %vm3160
        %vm3179 = vmand %vm3141, %vm3161
        %vm3180 = vmand %vm3142, %vm3162
        %vm3181 = vmand %vm3143, %vm3163
        %vm3182 = vmand %vm3144, %vm3164
        %vm3183 = vmand %vm3145, %vm3165
        %vm3184 = vmand %vm3146, %vm3166
        %v3185 = vsel %vm3167, %v3091, 0.0
        %v3186 = vsel %vm3167, %v3092, 0.0
        %v3187 = vsel %vm3168, %v3093, 0.0
        %v3188 = vsel %vm3168, %v3094, 0.0
        %v3189 = vsel %vm3169, %v3095, 0.0
        %v3190 = vsel %vm3169, %v3096, 0.0
        %v3191 = vsel %vm3170, %v3097, 0.0
        %v3192 = vsel %vm3170, %v3098, 0.0
        %v3193 = vsel %vm3171, %v3099, 0.0
        %v3194 = vsel %vm3171, %v3100, 0.0
        %v3195 = vsel %vm3172, %v3101, 0.0
        %v3196 = vsel %vm3172, %v3102, 0.0
        %v3197 = vsel %vm3173, %v3103, 0.0
        %v3198 = vsel %vm3173, %v3104, 0.0
        %v3199 = vsel %vm3174, %v3105, 0.0
        %v3200 = vsel %vm3174, %v3106, 0.0
        %v3201 = vsel %vm3175, %v3107, 0.0
        %v3202 = vsel %vm3175, %v3108, 0.0
        %v3203 = vsel %vm3176, %v3109, 0.0
        %v3204 = vsel %vm3176, %v3110, 0.0
        %v3205 = vsel %vm3177, %v3111, 0.0
        %v3206 = vsel %vm3177, %v3112, 0.0
        %v3207 = vsel %vm3178, %v3113, 0.0
        %v3208 = vsel %vm3178, %v3114, 0.0
        %v3209 = vsel %vm3179, %v3115, 0.0
        %v3210 = vsel %vm3179, %v3116, 0.0
        %v3211 = vsel %vm3180, %v3117, 0.0
        %v3212 = vsel %vm3180, %v3118, 0.0
        %v3213 = vsel %vm3181, %v3119, 0.0
        %v3214 = vsel %vm3181, %v3120, 0.0
        %v3215 = vsel %vm3182, %v3121, 0.0
        %v3216 = vsel %vm3182, %v3122, 0.0
        %v3217 = vsel %vm3183, %v3123, 0.0
        %v3218 = vsel %vm3183, %v3124, 0.0
        %v3219 = vsel %vm3184, %v3125, 0.0
        %v3220 = vsel %vm3184, %v3126, 0.0
        %3221 = vst [vmem:[#allocation3 + $0x1] sm:$0xff] %v3185
        %3222 = vst [vmem:[#allocation3 + $0x9] sm:$0xff] %v3186
        %3223 = vst [vmem:[#allocation3 + $0x19] sm:$0xff] %v3187
        %3224 = vst [vmem:[#allocation3 + $0x21] sm:$0xff] %v3188
        %3225 = vst [vmem:[#allocation3 + $0x31] sm:$0xff] %v3189
        %3226 = vst [vmem:[#allocation3 + $0x39] sm:$0xff] %v3190
        %3227 = vst [vmem:[#allocation3 + $0x49] sm:$0xff] %v3191
        %3228 = vst [vmem:[#allocation3 + $0x51] sm:$0xff] %v3192
        %3229 = vst [vmem:[#allocation3 + $0x61] sm:$0xff] %v3193
        %3230 = vst [vmem:[#allocation3 + $0x69] sm:$0xff] %v3194
        %3231 = vst [vmem:[#allocation3 + $0x79] sm:$0xff] %v3195
        %3232 = vst [vmem:[#allocation3 + $0x81] sm:$0xff] %v3196
        %3233 = vst [vmem:[#allocation3 + $0x91] sm:$0xff] %v3197
        %3234 = vst [vmem:[#allocation3 + $0x99] sm:$0xff] %v3198
        %3235 = vst [vmem:[#allocation3 + $0xa9] sm:$0xff] %v3199
        %3236 = vst [vmem:[#allocation3 + $0xb1] sm:$0xff] %v3200
        %3237 = vst [vmem:[#allocation3 + $0xc1] sm:$0xff] %v3201
        %3238 = vst [vmem:[#allocation3 + $0xc9] sm:$0xff] %v3202
        %3239 = vst [vmem:[#allocation3 + $0xd9] sm:$0xff] %v3203
        %3240 = vst [vmem:[#allocation3 + $0xe1] sm:$0xff] %v3204
        %3241 = vst [vmem:[#allocation3 + $0xf1] sm:$0xff] %v3205
        %3242 = vst [vmem:[#allocation3 + $0xf9] sm:$0xff] %v3206
        %3243 = vst [vmem:[#allocation3 + $0x109] sm:$0xff] %v3207
        %3244 = vst [vmem:[#allocation3 + $0x111] sm:$0xff] %v3208
        %3245 = vst [vmem:[#allocation3 + $0x121] sm:$0xff] %v3209
        %3246 = vst [vmem:[#allocation3 + $0x129] sm:$0xff] %v3210
        %3247 = vst [vmem:[#allocation3 + $0x139] sm:$0xff] %v3211
        %3248 = vst [vmem:[#allocation3 + $0x141] sm:$0xff] %v3212
        %3249 = vst [vmem:[#allocation3 + $0x151] sm:$0xff] %v3213
        %3250 = vst [vmem:[#allocation3 + $0x159] sm:$0xff] %v3214
        %3251 = vst [vmem:[#allocation3 + $0x169] sm:$0xff] %v3215
        %3252 = vst [vmem:[#allocation3 + $0x171] sm:$0xff] %v3216
        %3253 = vst [vmem:[#allocation3 + $0x181] sm:$0xff] %v3217
        %3254 = vst [vmem:[#allocation3 + $0x189] sm:$0xff] %v3218
        %3255 = vst [vmem:[#allocation3 + $0x199] sm:$0xff] %v3219
        %3256 = vst [vmem:[#allocation3 + $0x1a1] sm:$0xff] %v3220
        %3257 = vst [vmem:[#allocation4] sm:$0xff] 0.0
        %3258 = vst [vmem:[#allocation4 + $0x8] sm:$0xff] 0.0
        %3259 = vst [vmem:[#allocation4 + $0x10] sm:$0xff] 0.0
        %3260 = vst [vmem:[#allocation4 + $0x18] sm:$0xff] 0.0
        %3261 = vst [vmem:[#allocation4 + $0x20] sm:$0xff] 0.0
        %3262 = vst [vmem:[#allocation4 + $0x28] sm:$0xff] 0.0
        %3263 = vst [vmem:[#allocation4 + $0x30] sm:$0xff] 0.0
        %3264 = vst [vmem:[#allocation4 + $0x38] sm:$0xff] 0.0
        %3265 = vst [vmem:[#allocation4 + $0x40] sm:$0xff] 0.0
        %3266 = vst [vmem:[#allocation4 + $0x48] sm:$0xff] 0.0
        %3267 = vst [vmem:[#allocation4 + $0x50] sm:$0xff] 0.0
        %3268 = vst [vmem:[#allocation4 + $0x58] sm:$0xff] 0.0
        %3269 = vst [vmem:[#allocation4 + $0x60] sm:$0xff] 0.0
        %3270 = vst [vmem:[#allocation4 + $0x68] sm:$0xff] 0.0
        %3271 = vst [vmem:[#allocation4 + $0x70] sm:$0xff] 0.0
        %3272 = vst [vmem:[#allocation4 + $0x78] sm:$0xff] 0.0
        %3273 = vst [vmem:[#allocation4 + $0x80] sm:$0xff] 0.0
        %3274 = vst [vmem:[#allocation4 + $0x88] sm:$0xff] 0.0
        %3275 = vst [vmem:[#allocation4 + $0x90] sm:$0xff] 0.0
        %3276 = vst [vmem:[#allocation4 + $0x98] sm:$0xff] 0.0
        %3277 = vst [vmem:[#allocation4 + $0xa0] sm:$0xff] 0.0
        %3278 = vst [vmem:[#allocation4 + $0xa8] sm:$0xff] 0.0
        %3279 = vst [vmem:[#allocation4 + $0xb0] sm:$0xff] 0.0
        %3280 = vst [vmem:[#allocation4 + $0xb8] sm:$0xff] 0.0
        %3281 = vst [vmem:[#allocation4 + $0xc0] sm:$0xff] 0.0
        %3282 = vst [vmem:[#allocation4 + $0xc8] sm:$0xff] 0.0
        %3283 = vst [vmem:[#allocation4 + $0xd0] sm:$0xff] 0.0
        %3284 = vst [vmem:[#allocation4 + $0xd8] sm:$0xff] 0.0
        %3285 = vst [vmem:[#allocation4 + $0xe0] sm:$0xff] 0.0
        %3286 = vst [vmem:[#allocation4 + $0xe8] sm:$0xff] 0.0
        %3287 = vst [vmem:[#allocation4 + $0xf0] sm:$0xff] 0.0
        %3288 = vst [vmem:[#allocation4 + $0xf8] sm:$0xff] 0.0
        %v3289 = vld [vmem:[#allocation3] sm:$0xff]
        %v3290 = vld [vmem:[#allocation3 + $0x8] sm:$0xff]
        %v3291 = vld [vmem:[#allocation3 + $0x18] sm:$0xff]
        %v3292 = vld [vmem:[#allocation3 + $0x20] sm:$0xff]
        %v3293 = vld [vmem:[#allocation3 + $0x30] sm:$0xff]
        %v3294 = vld [vmem:[#allocation3 + $0x38] sm:$0xff]
        %v3295 = vld [vmem:[#allocation3 + $0x48] sm:$0xff]
        %v3296 = vld [vmem:[#allocation3 + $0x50] sm:$0xff]
        %v3297 = vld [vmem:[#allocation3 + $0x60] sm:$0xff]
        %v3298 = vld [vmem:[#allocation3 + $0x68] sm:$0xff]
        %v3299 = vld [vmem:[#allocation3 + $0x78] sm:$0xff]
        %v3300 = vld [vmem:[#allocation3 + $0x80] sm:$0xff]
        %v3301 = vld [vmem:[#allocation3 + $0x90] sm:$0xff]
        %v3302 = vld [vmem:[#allocation3 + $0x98] sm:$0xff]
        %v3303 = vld [vmem:[#allocation3 + $0xa8] sm:$0xff]
        %v3304 = vld [vmem:[#allocation3 + $0xb0] sm:$0xff]
        %v3305 = vld [vmem:[#allocation3 + $0xc0] sm:$0xff]
        %v3306 = vld [vmem:[#allocation3 + $0xc8] sm:$0xff]
        %v3307 = vld [vmem:[#allocation3 + $0xd8] sm:$0xff]
        %v3308 = vld [vmem:[#allocation3 + $0xe0] sm:$0xff]
        %v3309 = vld [vmem:[#allocation3 + $0xf0] sm:$0xff]
        %v3310 = vld [vmem:[#allocation3 + $0xf8] sm:$0xff]
        %v3311 = vld [vmem:[#allocation3 + $0x108] sm:$0xff]
        %v3312 = vld [vmem:[#allocation3 + $0x110] sm:$0xff]
        %v3313 = vld [vmem:[#allocation3 + $0x120] sm:$0xff]
        %v3314 = vld [vmem:[#allocation3 + $0x128] sm:$0xff]
        %v3315 = vld [vmem:[#allocation3 + $0x138] sm:$0xff]
        %v3316 = vld [vmem:[#allocation3 + $0x140] sm:$0xff]
        %v3317 = vld [vmem:[#allocation3 + $0x150] sm:$0xff]
        %v3318 = vld [vmem:[#allocation3 + $0x158] sm:$0xff]
        %v3319 = vld [vmem:[#allocation3 + $0x168] sm:$0xff]
        %v3320 = vld [vmem:[#allocation3 + $0x170] sm:$0xff]
        %v3321 = vld [vmem:[#allocation4] sm:$0xff]
        %v3322 = vld [vmem:[#allocation4 + $0x8] sm:$0xff]
        %v3323 = vld [vmem:[#allocation4 + $0x10] sm:$0xff]
        %v3324 = vld [vmem:[#allocation4 + $0x18] sm:$0xff]
        %v3325 = vld [vmem:[#allocation4 + $0x20] sm:$0xff]
        %v3326 = vld [vmem:[#allocation4 + $0x28] sm:$0xff]
        %v3327 = vld [vmem:[#allocation4 + $0x30] sm:$0xff]
        %v3328 = vld [vmem:[#allocation4 + $0x38] sm:$0xff]
        %v3329 = vld [vmem:[#allocation4 + $0x40] sm:$0xff]
        %v3330 = vld [vmem:[#allocation4 + $0x48] sm:$0xff]
        %v3331 = vld [vmem:[#allocation4 + $0x50] sm:$0xff]
        %v3332 = vld [vmem:[#allocation4 + $0x58] sm:$0xff]
        %v3333 = vld [vmem:[#allocation4 + $0x60] sm:$0xff]
        %v3334 = vld [vmem:[#allocation4 + $0x68] sm:$0xff]
        %v3335 = vld [vmem:[#allocation4 + $0x70] sm:$0xff]
        %v3336 = vld [vmem:[#allocation4 + $0x78] sm:$0xff]
        %v3337 = vld [vmem:[#allocation4 + $0x80] sm:$0xff]
        %v3338 = vld [vmem:[#allocation4 + $0x88] sm:$0xff]
        %v3339 = vld [vmem:[#allocation4 + $0x90] sm:$0xff]
        %v3340 = vld [vmem:[#allocation4 + $0x98] sm:$0xff]
        %v3341 = vld [vmem:[#allocation4 + $0xa0] sm:$0xff]
        %v3342 = vld [vmem:[#allocation4 + $0xa8] sm:$0xff]
        %v3343 = vld [vmem:[#allocation4 + $0xb0] sm:$0xff]
        %v3344 = vld [vmem:[#allocation4 + $0xb8] sm:$0xff]
        %v3345 = vld [vmem:[#allocation4 + $0xc0] sm:$0xff]
        %v3346 = vld [vmem:[#allocation4 + $0xc8] sm:$0xff]
        %v3347 = vld [vmem:[#allocation4 + $0xd0] sm:$0xff]
        %v3348 = vld [vmem:[#allocation4 + $0xd8] sm:$0xff]
        %v3349 = vld [vmem:[#allocation4 + $0xe0] sm:$0xff]
        %v3350 = vld [vmem:[#allocation4 + $0xe8] sm:$0xff]
        %v3351 = vld [vmem:[#allocation4 + $0xf0] sm:$0xff]
        %v3352 = vld [vmem:[#allocation4 + $0xf8] sm:$0xff]
        %v3353 = vld [vmem:[#allocation6] sm:$0xff]
        %v3354 = vld [vmem:[#allocation6 + $0x8] sm:$0xff]
        %v3355 = vld [vmem:[#allocation6 + $0x10] sm:$0xff]
        %v3356 = vld [vmem:[#allocation6 + $0x18] sm:$0xff]
        %v3357 = vld [vmem:[#allocation6 + $0x20] sm:$0xff]
        %v3358 = vld [vmem:[#allocation6 + $0x28] sm:$0xff]
        %v3359 = vld [vmem:[#allocation6 + $0x30] sm:$0xff]
        %v3360 = vld [vmem:[#allocation6 + $0x38] sm:$0xff]
        %v3361 = vld [vmem:[#allocation6 + $0x40] sm:$0xff]
        %v3362 = vld [vmem:[#allocation6 + $0x48] sm:$0xff]
        %v3363 = vld [vmem:[#allocation6 + $0x50] sm:$0xff]
        %v3364 = vld [vmem:[#allocation6 + $0x58] sm:$0xff]
        %v3365 = vld [vmem:[#allocation6 + $0x60] sm:$0xff]
        %v3366 = vld [vmem:[#allocation6 + $0x68] sm:$0xff]
        %v3367 = vld [vmem:[#allocation6 + $0x70] sm:$0xff]
        %v3368 = vld [vmem:[#allocation6 + $0x78] sm:$0xff]
        %3369 = vmatpush.msra.mxu0 %v3368
        %3370 = vmatpush.msra.mxu0 %v3367
        %3371 = vmatpush.msra.mxu0 %v3366
        %3372 = vmatpush.msra.mxu0 %v3365
        %3373 = vmatpush.msra.mxu0 %v3364
        %3374 = vmatpush.msra.mxu0 %v3363
        %3375 = vmatpush.msra.mxu0 %v3362
        %3376 = vmatpush.msra.mxu0 %v3361
        %3377 = vmatpush.msra.mxu0 %v3360
        %3378 = vmatpush.msra.mxu0 %v3359
        %3379 = vmatpush.msra.mxu0 %v3358
        %3380 = vmatpush.msra.mxu0 %v3357
        %3381 = vmatpush.msra.mxu0 %v3356
        %3382 = vmatpush.msra.mxu0 %v3355
        %3383 = vmatpush.msra.mxu0 %v3354
        %3384 = vmatpush.msra.mxu0 %v3353
        %3385 = vmatmul.f32.gmra.mxu0 %v3289
        %v3386 = vpop.f32.mrf.mxu0
        %v3387 = vadd.f32 0.0, %v3386
        %3388 = vmatmul.f32.gmra.mxu0 %v3290
        %v3389 = vpop.f32.mrf.mxu0
        %v3390 = vadd.f32 0.0, %v3389
        %3391 = vmatmul.f32.gmra.mxu0 %v3291
        %v3392 = vpop.f32.mrf.mxu0
        %v3393 = vadd.f32 0.0, %v3392
        %3394 = vmatmul.f32.gmra.mxu0 %v3292
        %v3395 = vpop.f32.mrf.mxu0
        %v3396 = vadd.f32 0.0, %v3395
        %3397 = vmatmul.f32.gmra.mxu0 %v3293
        %v3398 = vpop.f32.mrf.mxu0
        %v3399 = vadd.f32 0.0, %v3398
        %3400 = vmatmul.f32.gmra.mxu0 %v3294
        %v3401 = vpop.f32.mrf.mxu0
        %v3402 = vadd.f32 0.0, %v3401
        %3403 = vmatmul.f32.gmra.mxu0 %v3295
        %v3404 = vpop.f32.mrf.mxu0
        %v3405 = vadd.f32 0.0, %v3404
        %3406 = vmatmul.f32.gmra.mxu0 %v3296
        %v3407 = vpop.f32.mrf.mxu0
        %v3408 = vadd.f32 0.0, %v3407
        %3409 = vmatmul.f32.gmra.mxu0 %v3297
        %v3410 = vpop.f32.mrf.mxu0
        %v3411 = vadd.f32 0.0, %v3410
        %3412 = vmatmul.f32.gmra.mxu0 %v3298
        %v3413 = vpop.f32.mrf.mxu0
        %v3414 = vadd.f32 0.0, %v3413
        %3415 = vmatmul.f32.gmra.mxu0 %v3299
        %v3416 = vpop.f32.mrf.mxu0
        %v3417 = vadd.f32 0.0, %v3416
        %3418 = vmatmul.f32.gmra.mxu0 %v3300
        %v3419 = vpop.f32.mrf.mxu0
        %v3420 = vadd.f32 0.0, %v3419
        %3421 = vmatmul.f32.gmra.mxu0 %v3301
        %v3422 = vpop.f32.mrf.mxu0
        %v3423 = vadd.f32 0.0, %v3422
        %3424 = vmatmul.f32.gmra.mxu0 %v3302
        %v3425 = vpop.f32.mrf.mxu0
        %v3426 = vadd.f32 0.0, %v3425
        %3427 = vmatmul.f32.gmra.mxu0 %v3303
        %v3428 = vpop.f32.mrf.mxu0
        %v3429 = vadd.f32 0.0, %v3428
        %3430 = vmatmul.f32.gmra.mxu0 %v3304
        %v3431 = vpop.f32.mrf.mxu0
        %v3432 = vadd.f32 0.0, %v3431
        %3433 = vmatmul.f32.gmra.mxu0 %v3305
        %v3434 = vpop.f32.mrf.mxu0
        %v3435 = vadd.f32 0.0, %v3434
        %3436 = vmatmul.f32.gmra.mxu0 %v3306
        %v3437 = vpop.f32.mrf.mxu0
        %v3438 = vadd.f32 0.0, %v3437
        %3439 = vmatmul.f32.gmra.mxu0 %v3307
        %v3440 = vpop.f32.mrf.mxu0
        %v3441 = vadd.f32 0.0, %v3440
        %3442 = vmatmul.f32.gmra.mxu0 %v3308
        %v3443 = vpop.f32.mrf.mxu0
        %v3444 = vadd.f32 0.0, %v3443
        %3445 = vmatmul.f32.gmra.mxu0 %v3309
        %v3446 = vpop.f32.mrf.mxu0
        %v3447 = vadd.f32 0.0, %v3446
        %3448 = vmatmul.f32.gmra.mxu0 %v3310
        %v3449 = vpop.f32.mrf.mxu0
        %v3450 = vadd.f32 0.0, %v3449
        %3451 = vmatmul.f32.gmra.mxu0 %v3311
        %v3452 = vpop.f32.mrf.mxu0
        %v3453 = vadd.f32 0.0, %v3452
        %3454 = vmatmul.f32.gmra.mxu0 %v3312
        %v3455 = vpop.f32.mrf.mxu0
        %v3456 = vadd.f32 0.0, %v3455
        %3457 = vmatmul.f32.gmra.mxu0 %v3313
        %v3458 = vpop.f32.mrf.mxu0
        %v3459 = vadd.f32 0.0, %v3458
        %3460 = vmatmul.f32.gmra.mxu0 %v3314
        %v3461 = vpop.f32.mrf.mxu0
        %v3462 = vadd.f32 0.0, %v3461
        %3463 = vmatmul.f32.gmra.mxu0 %v3315
        %v3464 = vpop.f32.mrf.mxu0
        %v3465 = vadd.f32 0.0, %v3464
        %3466 = vmatmul.f32.gmra.mxu0 %v3316
        %v3467 = vpop.f32.mrf.mxu0
        %v3468 = vadd.f32 0.0, %v3467
        %3469 = vmatmul.f32.gmra.mxu0 %v3317
        %v3470 = vpop.f32.mrf.mxu0
        %v3471 = vadd.f32 0.0, %v3470
        %3472 = vmatmul.f32.gmra.mxu0 %v3318
        %v3473 = vpop.f32.mrf.mxu0
        %v3474 = vadd.f32 0.0, %v3473
        %3475 = vmatmul.f32.gmra.mxu0 %v3319
        %v3476 = vpop.f32.mrf.mxu0
        %v3477 = vadd.f32 0.0, %v3476
        %3478 = vmatmul.f32.gmra.mxu0 %v3320
        %v3479 = vpop.f32.mrf.mxu0
        %v3480 = vadd.f32 0.0, %v3479
        %3481 = vdwg.mxu0
        %v3482 = vadd.f32 %v3321, %v3387
        %v3483 = vadd.f32 %v3322, %v3390
        %v3484 = vadd.f32 %v3323, %v3393
        %v3485 = vadd.f32 %v3324, %v3396
        %v3486 = vadd.f32 %v3325, %v3399
        %v3487 = vadd.f32 %v3326, %v3402
        %v3488 = vadd.f32 %v3327, %v3405
        %v3489 = vadd.f32 %v3328, %v3408
        %v3490 = vadd.f32 %v3329, %v3411
        %v3491 = vadd.f32 %v3330, %v3414
        %v3492 = vadd.f32 %v3331, %v3417
        %v3493 = vadd.f32 %v3332, %v3420
        %v3494 = vadd.f32 %v3333, %v3423
        %v3495 = vadd.f32 %v3334, %v3426
        %v3496 = vadd.f32 %v3335, %v3429
        %v3497 = vadd.f32 %v3336, %v3432
        %v3498 = vadd.f32 %v3337, %v3435
        %v3499 = vadd.f32 %v3338, %v3438
        %v3500 = vadd.f32 %v3339, %v3441
        %v3501 = vadd.f32 %v3340, %v3444
        %v3502 = vadd.f32 %v3341, %v3447
        %v3503 = vadd.f32 %v3342, %v3450
        %v3504 = vadd.f32 %v3343, %v3453
        %v3505 = vadd.f32 %v3344, %v3456
        %v3506 = vadd.f32 %v3345, %v3459
        %v3507 = vadd.f32 %v3346, %v3462
        %v3508 = vadd.f32 %v3347, %v3465
        %v3509 = vadd.f32 %v3348, %v3468
        %v3510 = vadd.f32 %v3349, %v3471
        %v3511 = vadd.f32 %v3350, %v3474
        %v3512 = vadd.f32 %v3351, %v3477
        %v3513 = vadd.f32 %v3352, %v3480
        %3514 = vst [vmem:[#allocation4] sm:$0xff] %v3482
        %3515 = vst [vmem:[#allocation4 + $0x8] sm:$0xff] %v3483
        %3516 = vst [vmem:[#allocation4 + $0x10] sm:$0xff] %v3484
        %3517 = vst [vmem:[#allocation4 + $0x18] sm:$0xff] %v3485
        %3518 = vst [vmem:[#allocation4 + $0x20] sm:$0xff] %v3486
        %3519 = vst [vmem:[#allocation4 + $0x28] sm:$0xff] %v3487
        %3520 = vst [vmem:[#allocation4 + $0x30] sm:$0xff] %v3488
        %3521 = vst [vmem:[#allocation4 + $0x38] sm:$0xff] %v3489
        %3522 = vst [vmem:[#allocation4 + $0x40] sm:$0xff] %v3490
        %3523 = vst [vmem:[#allocation4 + $0x48] sm:$0xff] %v3491
        %3524 = vst [vmem:[#allocation4 + $0x50] sm:$0xff] %v3492
        %3525 = vst [vmem:[#allocation4 + $0x58] sm:$0xff] %v3493
        %3526 = vst [vmem:[#allocation4 + $0x60] sm:$0xff] %v3494
        %3527 = vst [vmem:[#allocation4 + $0x68] sm:$0xff] %v3495
        %3528 = vst [vmem:[#allocation4 + $0x70] sm:$0xff] %v3496
        %3529 = vst [vmem:[#allocation4 + $0x78] sm:$0xff] %v3497
        %3530 = vst [vmem:[#allocation4 + $0x80] sm:$0xff] %v3498
        %3531 = vst [vmem:[#allocation4 + $0x88] sm:$0xff] %v3499
        %3532 = vst [vmem:[#allocation4 + $0x90] sm:$0xff] %v3500
        %3533 = vst [vmem:[#allocation4 + $0x98] sm:$0xff] %v3501
        %3534 = vst [vmem:[#allocation4 + $0xa0] sm:$0xff] %v3502
        %3535 = vst [vmem:[#allocation4 + $0xa8] sm:$0xff] %v3503
        %3536 = vst [vmem:[#allocation4 + $0xb0] sm:$0xff] %v3504
        %3537 = vst [vmem:[#allocation4 + $0xb8] sm:$0xff] %v3505
        %3538 = vst [vmem:[#allocation4 + $0xc0] sm:$0xff] %v3506
        %3539 = vst [vmem:[#allocation4 + $0xc8] sm:$0xff] %v3507
        %3540 = vst [vmem:[#allocation4 + $0xd0] sm:$0xff] %v3508
        %3541 = vst [vmem:[#allocation4 + $0xd8] sm:$0xff] %v3509
        %3542 = vst [vmem:[#allocation4 + $0xe0] sm:$0xff] %v3510
        %3543 = vst [vmem:[#allocation4 + $0xe8] sm:$0xff] %v3511
        %3544 = vst [vmem:[#allocation4 + $0xf0] sm:$0xff] %v3512
        %3545 = vst [vmem:[#allocation4 + $0xf8] sm:$0xff] %v3513
        %v3546 = vld [vmem:[#allocation3 + $0x1] sm:$0xff]
        %v3547 = vld [vmem:[#allocation3 + $0x9] sm:$0xff]
        %v3548 = vld [vmem:[#allocation3 + $0x19] sm:$0xff]
        %v3549 = vld [vmem:[#allocation3 + $0x21] sm:$0xff]
        %v3550 = vld [vmem:[#allocation3 + $0x31] sm:$0xff]
        %v3551 = vld [vmem:[#allocation3 + $0x39] sm:$0xff]
        %v3552 = vld [vmem:[#allocation3 + $0x49] sm:$0xff]
        %v3553 = vld [vmem:[#allocation3 + $0x51] sm:$0xff]
        %v3554 = vld [vmem:[#allocation3 + $0x61] sm:$0xff]
        %v3555 = vld [vmem:[#allocation3 + $0x69] sm:$0xff]
        %v3556 = vld [vmem:[#allocation3 + $0x79] sm:$0xff]
        %v3557 = vld [vmem:[#allocation3 + $0x81] sm:$0xff]
        %v3558 = vld [vmem:[#allocation3 + $0x91] sm:$0xff]
        %v3559 = vld [vmem:[#allocation3 + $0x99] sm:$0xff]
        %v3560 = vld [vmem:[#allocation3 + $0xa9] sm:$0xff]
        %v3561 = vld [vmem:[#allocation3 + $0xb1] sm:$0xff]
        %v3562 = vld [vmem:[#allocation3 + $0xc1] sm:$0xff]
        %v3563 = vld [vmem:[#allocation3 + $0xc9] sm:$0xff]
        %v3564 = vld [vmem:[#allocation3 + $0xd9] sm:$0xff]
        %v3565 = vld [vmem:[#allocation3 + $0xe1] sm:$0xff]
        %v3566 = vld [vmem:[#allocation3 + $0xf1] sm:$0xff]
        %v3567 = vld [vmem:[#allocation3 + $0xf9] sm:$0xff]
        %v3568 = vld [vmem:[#allocation3 + $0x109] sm:$0xff]
        %v3569 = vld [vmem:[#allocation3 + $0x111] sm:$0xff]
        %v3570 = vld [vmem:[#allocation3 + $0x121] sm:$0xff]
        %v3571 = vld [vmem:[#allocation3 + $0x129] sm:$0xff]
        %v3572 = vld [vmem:[#allocation3 + $0x139] sm:$0xff]
        %v3573 = vld [vmem:[#allocation3 + $0x141] sm:$0xff]
        %v3574 = vld [vmem:[#allocation3 + $0x151] sm:$0xff]
        %v3575 = vld [vmem:[#allocation3 + $0x159] sm:$0xff]
        %v3576 = vld [vmem:[#allocation3 + $0x169] sm:$0xff]
        %v3577 = vld [vmem:[#allocation3 + $0x171] sm:$0xff]
        %v3578 = vld [vmem:[#allocation4] sm:$0xff]
        %v3579 = vld [vmem:[#allocation4 + $0x8] sm:$0xff]
        %v3580 = vld [vmem:[#allocation4 + $0x10] sm:$0xff]
        %v3581 = vld [vmem:[#allocation4 + $0x18] sm:$0xff]
        %v3582 = vld [vmem:[#allocation4 + $0x20] sm:$0xff]
        %v3583 = vld [vmem:[#allocation4 + $0x28] sm:$0xff]
        %v3584 = vld [vmem:[#allocation4 + $0x30] sm:$0xff]
        %v3585 = vld [vmem:[#allocation4 + $0x38] sm:$0xff]
        %v3586 = vld [vmem:[#allocation4 + $0x40] sm:$0xff]
        %v3587 = vld [vmem:[#allocation4 + $0x48] sm:$0xff]
        %v3588 = vld [vmem:[#allocation4 + $0x50] sm:$0xff]
        %v3589 = vld [vmem:[#allocation4 + $0x58] sm:$0xff]
        %v3590 = vld [vmem:[#allocation4 + $0x60] sm:$0xff]
        %v3591 = vld [vmem:[#allocation4 + $0x68] sm:$0xff]
        %v3592 = vld [vmem:[#allocation4 + $0x70] sm:$0xff]
        %v3593 = vld [vmem:[#allocation4 + $0x78] sm:$0xff]
        %v3594 = vld [vmem:[#allocation4 + $0x80] sm:$0xff]
        %v3595 = vld [vmem:[#allocation4 + $0x88] sm:$0xff]
        %v3596 = vld [vmem:[#allocation4 + $0x90] sm:$0xff]
        %v3597 = vld [vmem:[#allocation4 + $0x98] sm:$0xff]
        %v3598 = vld [vmem:[#allocation4 + $0xa0] sm:$0xff]
        %v3599 = vld [vmem:[#allocation4 + $0xa8] sm:$0xff]
        %v3600 = vld [vmem:[#allocation4 + $0xb0] sm:$0xff]
        %v3601 = vld [vmem:[#allocation4 + $0xb8] sm:$0xff]
        %v3602 = vld [vmem:[#allocation4 + $0xc0] sm:$0xff]
        %v3603 = vld [vmem:[#allocation4 + $0xc8] sm:$0xff]
        %v3604 = vld [vmem:[#allocation4 + $0xd0] sm:$0xff]
        %v3605 = vld [vmem:[#allocation4 + $0xd8] sm:$0xff]
        %v3606 = vld [vmem:[#allocation4 + $0xe0] sm:$0xff]
        %v3607 = vld [vmem:[#allocation4 + $0xe8] sm:$0xff]
        %v3608 = vld [vmem:[#allocation4 + $0xf0] sm:$0xff]
        %v3609 = vld [vmem:[#allocation4 + $0xf8] sm:$0xff]
        %v3610 = vld [vmem:[#allocation6 + $0x80] sm:$0xff]
        %v3611 = vld [vmem:[#allocation6 + $0x88] sm:$0xff]
        %v3612 = vld [vmem:[#allocation6 + $0x90] sm:$0xff]
        %v3613 = vld [vmem:[#allocation6 + $0x98] sm:$0xff]
        %v3614 = vld [vmem:[#allocation6 + $0xa0] sm:$0xff]
        %v3615 = vld [vmem:[#allocation6 + $0xa8] sm:$0xff]
        %v3616 = vld [vmem:[#allocation6 + $0xb0] sm:$0xff]
        %v3617 = vld [vmem:[#allocation6 + $0xb8] sm:$0xff]
        %v3618 = vld [vmem:[#allocation6 + $0xc0] sm:$0xff]
        %v3619 = vld [vmem:[#allocation6 + $0xc8] sm:$0xff]
        %v3620 = vld [vmem:[#allocation6 + $0xd0] sm:$0xff]
        %v3621 = vld [vmem:[#allocation6 + $0xd8] sm:$0xff]
        %v3622 = vld [vmem:[#allocation6 + $0xe0] sm:$0xff]
        %v3623 = vld [vmem:[#allocation6 + $0xe8] sm:$0xff]
        %v3624 = vld [vmem:[#allocation6 + $0xf0] sm:$0xff]
        %v3625 = vld [vmem:[#allocation6 + $0xf8] sm:$0xff]
        %3626 = vmatpush.msra.mxu0 %v3625
        %3627 = vmatpush.msra.mxu0 %v3624
        %3628 = vmatpush.msra.mxu0 %v3623
        %3629 = vmatpush.msra.mxu0 %v3622
        %3630 = vmatpush.msra.mxu0 %v3621
        %3631 = vmatpush.msra.mxu0 %v3620
        %3632 = vmatpush.msra.mxu0 %v3619
        %3633 = vmatpush.msra.mxu0 %v3618
        %3634 = vmatpush.msra.mxu0 %v3617
        %3635 = vmatpush.msra.mxu0 %v3616
        %3636 = vmatpush.msra.mxu0 %v3615
        %3637 = vmatpush.msra.mxu0 %v3614
        %3638 = vmatpush.msra.mxu0 %v3613
        %3639 = vmatpush.msra.mxu0 %v3612
        %3640 = vmatpush.msra.mxu0 %v3611
        %3641 = vmatpush.msra.mxu0 %v3610
        %3642 = vmatmul.f32.gmra.mxu0 %v3546
        %v3643 = vpop.f32.mrf.mxu0
        %v3644 = vadd.f32 0.0, %v3643
        %3645 = vmatmul.f32.gmra.mxu0 %v3547
        %v3646 = vpop.f32.mrf.mxu0
        %v3647 = vadd.f32 0.0, %v3646
        %3648 = vmatmul.f32.gmra.mxu0 %v3548
        %v3649 = vpop.f32.mrf.mxu0
        %v3650 = vadd.f32 0.0, %v3649
        %3651 = vmatmul.f32.gmra.mxu0 %v3549
        %v3652 = vpop.f32.mrf.mxu0
        %v3653 = vadd.f32 0.0, %v3652
        %3654 = vmatmul.f32.gmra.mxu0 %v3550
        %v3655 = vpop.f32.mrf.mxu0
        %v3656 = vadd.f32 0.0, %v3655
        %3657 = vmatmul.f32.gmra.mxu0 %v3551
        %v3658 = vpop.f32.mrf.mxu0
        %v3659 = vadd.f32 0.0, %v3658
        %3660 = vmatmul.f32.gmra.mxu0 %v3552
        %v3661 = vpop.f32.mrf.mxu0
        %v3662 = vadd.f32 0.0, %v3661
        %3663 = vmatmul.f32.gmra.mxu0 %v3553
        %v3664 = vpop.f32.mrf.mxu0
        %v3665 = vadd.f32 0.0, %v3664
        %3666 = vmatmul.f32.gmra.mxu0 %v3554
        %v3667 = vpop.f32.mrf.mxu0
        %v3668 = vadd.f32 0.0, %v3667
        %3669 = vmatmul.f32.gmra.mxu0 %v3555
        %v3670 = vpop.f32.mrf.mxu0
        %v3671 = vadd.f32 0.0, %v3670
        %3672 = vmatmul.f32.gmra.mxu0 %v3556
        %v3673 = vpop.f32.mrf.mxu0
        %v3674 = vadd.f32 0.0, %v3673
        %3675 = vmatmul.f32.gmra.mxu0 %v3557
        %v3676 = vpop.f32.mrf.mxu0
        %v3677 = vadd.f32 0.0, %v3676
        %3678 = vmatmul.f32.gmra.mxu0 %v3558
        %v3679 = vpop.f32.mrf.mxu0
        %v3680 = vadd.f32 0.0, %v3679
        %3681 = vmatmul.f32.gmra.mxu0 %v3559
        %v3682 = vpop.f32.mrf.mxu0
        %v3683 = vadd.f32 0.0, %v3682
        %3684 = vmatmul.f32.gmra.mxu0 %v3560
        %v3685 = vpop.f32.mrf.mxu0
        %v3686 = vadd.f32 0.0, %v3685
        %3687 = vmatmul.f32.gmra.mxu0 %v3561
        %v3688 = vpop.f32.mrf.mxu0
        %v3689 = vadd.f32 0.0, %v3688
        %3690 = vmatmul.f32.gmra.mxu0 %v3562
        %v3691 = vpop.f32.mrf.mxu0
        %v3692 = vadd.f32 0.0, %v3691
        %3693 = vmatmul.f32.gmra.mxu0 %v3563
        %v3694 = vpop.f32.mrf.mxu0
        %v3695 = vadd.f32 0.0, %v3694
        %3696 = vmatmul.f32.gmra.mxu0 %v3564
        %v3697 = vpop.f32.mrf.mxu0
        %v3698 = vadd.f32 0.0, %v3697
        %3699 = vmatmul.f32.gmra.mxu0 %v3565
        %v3700 = vpop.f32.mrf.mxu0
        %v3701 = vadd.f32 0.0, %v3700
        %3702 = vmatmul.f32.gmra.mxu0 %v3566
        %v3703 = vpop.f32.mrf.mxu0
        %v3704 = vadd.f32 0.0, %v3703
        %3705 = vmatmul.f32.gmra.mxu0 %v3567
        %v3706 = vpop.f32.mrf.mxu0
        %v3707 = vadd.f32 0.0, %v3706
        %3708 = vmatmul.f32.gmra.mxu0 %v3568
        %v3709 = vpop.f32.mrf.mxu0
        %v3710 = vadd.f32 0.0, %v3709
        %3711 = vmatmul.f32.gmra.mxu0 %v3569
        %v3712 = vpop.f32.mrf.mxu0
        %v3713 = vadd.f32 0.0, %v3712
        %3714 = vmatmul.f32.gmra.mxu0 %v3570
        %v3715 = vpop.f32.mrf.mxu0
        %v3716 = vadd.f32 0.0, %v3715
        %3717 = vmatmul.f32.gmra.mxu0 %v3571
        %v3718 = vpop.f32.mrf.mxu0
        %v3719 = vadd.f32 0.0, %v3718
        %3720 = vmatmul.f32.gmra.mxu0 %v3572
        %v3721 = vpop.f32.mrf.mxu0
        %v3722 = vadd.f32 0.0, %v3721
        %3723 = vmatmul.f32.gmra.mxu0 %v3573
        %v3724 = vpop.f32.mrf.mxu0
        %v3725 = vadd.f32 0.0, %v3724
        %3726 = vmatmul.f32.gmra.mxu0 %v3574
        %v3727 = vpop.f32.mrf.mxu0
        %v3728 = vadd.f32 0.0, %v3727
        %3729 = vmatmul.f32.gmra.mxu0 %v3575
        %v3730 = vpop.f32.mrf.mxu0
        %v3731 = vadd.f32 0.0, %v3730
        %3732 = vmatmul.f32.gmra.mxu0 %v3576
        %v3733 = vpop.f32.mrf.mxu0
        %v3734 = vadd.f32 0.0, %v3733
        %3735 = vmatmul.f32.gmra.mxu0 %v3577
        %v3736 = vpop.f32.mrf.mxu0
        %v3737 = vadd.f32 0.0, %v3736
        %3738 = vdwg.mxu0
        %v3739 = vadd.f32 %v3578, %v3644
        %v3740 = vadd.f32 %v3579, %v3647
        %v3741 = vadd.f32 %v3580, %v3650
        %v3742 = vadd.f32 %v3581, %v3653
        %v3743 = vadd.f32 %v3582, %v3656
        %v3744 = vadd.f32 %v3583, %v3659
        %v3745 = vadd.f32 %v3584, %v3662
        %v3746 = vadd.f32 %v3585, %v3665
        %v3747 = vadd.f32 %v3586, %v3668
        %v3748 = vadd.f32 %v3587, %v3671
        %v3749 = vadd.f32 %v3588, %v3674
        %v3750 = vadd.f32 %v3589, %v3677
        %v3751 = vadd.f32 %v3590, %v3680
        %v3752 = vadd.f32 %v3591, %v3683
        %v3753 = vadd.f32 %v3592, %v3686
        %v3754 = vadd.f32 %v3593, %v3689
        %v3755 = vadd.f32 %v3594, %v3692
        %v3756 = vadd.f32 %v3595, %v3695
        %v3757 = vadd.f32 %v3596, %v3698
        %v3758 = vadd.f32 %v3597, %v3701
        %v3759 = vadd.f32 %v3598, %v3704
        %v3760 = vadd.f32 %v3599, %v3707
        %v3761 = vadd.f32 %v3600, %v3710
        %v3762 = vadd.f32 %v3601, %v3713
        %v3763 = vadd.f32 %v3602, %v3716
        %v3764 = vadd.f32 %v3603, %v3719
        %v3765 = vadd.f32 %v3604, %v3722
        %v3766 = vadd.f32 %v3605, %v3725
        %v3767 = vadd.f32 %v3606, %v3728
        %v3768 = vadd.f32 %v3607, %v3731
        %v3769 = vadd.f32 %v3608, %v3734
        %v3770 = vadd.f32 %v3609, %v3737
        %3771 = vst [vmem:[#allocation4] sm:$0xff] %v3739
        %3772 = vst [vmem:[#allocation4 + $0x8] sm:$0xff] %v3740
        %3773 = vst [vmem:[#allocation4 + $0x10] sm:$0xff] %v3741
        %3774 = vst [vmem:[#allocation4 + $0x18] sm:$0xff] %v3742
        %3775 = vst [vmem:[#allocation4 + $0x20] sm:$0xff] %v3743
        %3776 = vst [vmem:[#allocation4 + $0x28] sm:$0xff] %v3744
        %3777 = vst [vmem:[#allocation4 + $0x30] sm:$0xff] %v3745
        %3778 = vst [vmem:[#allocation4 + $0x38] sm:$0xff] %v3746
        %3779 = vst [vmem:[#allocation4 + $0x40] sm:$0xff] %v3747
        %3780 = vst [vmem:[#allocation4 + $0x48] sm:$0xff] %v3748
        %3781 = vst [vmem:[#allocation4 + $0x50] sm:$0xff] %v3749
        %3782 = vst [vmem:[#allocation4 + $0x58] sm:$0xff] %v3750
        %3783 = vst [vmem:[#allocation4 + $0x60] sm:$0xff] %v3751
        %3784 = vst [vmem:[#allocation4 + $0x68] sm:$0xff] %v3752
        %3785 = vst [vmem:[#allocation4 + $0x70] sm:$0xff] %v3753
        %3786 = vst [vmem:[#allocation4 + $0x78] sm:$0xff] %v3754
        %3787 = vst [vmem:[#allocation4 + $0x80] sm:$0xff] %v3755
        %3788 = vst [vmem:[#allocation4 + $0x88] sm:$0xff] %v3756
        %3789 = vst [vmem:[#allocation4 + $0x90] sm:$0xff] %v3757
        %3790 = vst [vmem:[#allocation4 + $0x98] sm:$0xff] %v3758
        %3791 = vst [vmem:[#allocation4 + $0xa0] sm:$0xff] %v3759
        %3792 = vst [vmem:[#allocation4 + $0xa8] sm:$0xff] %v3760
        %3793 = vst [vmem:[#allocation4 + $0xb0] sm:$0xff] %v3761
        %3794 = vst [vmem:[#allocation4 + $0xb8] sm:$0xff] %v3762
        %3795 = vst [vmem:[#allocation4 + $0xc0] sm:$0xff] %v3763
        %3796 = vst [vmem:[#allocation4 + $0xc8] sm:$0xff] %v3764
        %3797 = vst [vmem:[#allocation4 + $0xd0] sm:$0xff] %v3765
        %3798 = vst [vmem:[#allocation4 + $0xd8] sm:$0xff] %v3766
        %3799 = vst [vmem:[#allocation4 + $0xe0] sm:$0xff] %v3767
        %3800 = vst [vmem:[#allocation4 + $0xe8] sm:$0xff] %v3768
        %3801 = vst [vmem:[#allocation4 + $0xf0] sm:$0xff] %v3769
        %3802 = vst [vmem:[#allocation4 + $0xf8] sm:$0xff] %v3770
        %v3803 = vld [vmem:[#allocation3 + $0x2] sm:$0xff]
        %v3804 = vld [vmem:[#allocation3 + $0xa] sm:$0xff]
        %v3805 = vld [vmem:[#allocation3 + $0x1a] sm:$0xff]
        %v3806 = vld [vmem:[#allocation3 + $0x22] sm:$0xff]
        %v3807 = vld [vmem:[#allocation3 + $0x32] sm:$0xff]
        %v3808 = vld [vmem:[#allocation3 + $0x3a] sm:$0xff]
        %v3809 = vld [vmem:[#allocation3 + $0x4a] sm:$0xff]
        %v3810 = vld [vmem:[#allocation3 + $0x52] sm:$0xff]
        %v3811 = vld [vmem:[#allocation3 + $0x62] sm:$0xff]
        %v3812 = vld [vmem:[#allocation3 + $0x6a] sm:$0xff]
        %v3813 = vld [vmem:[#allocation3 + $0x7a] sm:$0xff]
        %v3814 = vld [vmem:[#allocation3 + $0x82] sm:$0xff]
        %v3815 = vld [vmem:[#allocation3 + $0x92] sm:$0xff]
        %v3816 = vld [vmem:[#allocation3 + $0x9a] sm:$0xff]
        %v3817 = vld [vmem:[#allocation3 + $0xaa] sm:$0xff]
        %v3818 = vld [vmem:[#allocation3 + $0xb2] sm:$0xff]
        %v3819 = vld [vmem:[#allocation3 + $0xc2] sm:$0xff]
        %v3820 = vld [vmem:[#allocation3 + $0xca] sm:$0xff]
        %v3821 = vld [vmem:[#allocation3 + $0xda] sm:$0xff]
        %v3822 = vld [vmem:[#allocation3 + $0xe2] sm:$0xff]
        %v3823 = vld [vmem:[#allocation3 + $0xf2] sm:$0xff]
        %v3824 = vld [vmem:[#allocation3 + $0xfa] sm:$0xff]
        %v3825 = vld [vmem:[#allocation3 + $0x10a] sm:$0xff]
        %v3826 = vld [vmem:[#allocation3 + $0x112] sm:$0xff]
        %v3827 = vld [vmem:[#allocation3 + $0x122] sm:$0xff]
        %v3828 = vld [vmem:[#allocation3 + $0x12a] sm:$0xff]
        %v3829 = vld [vmem:[#allocation3 + $0x13a] sm:$0xff]
        %v3830 = vld [vmem:[#allocation3 + $0x142] sm:$0xff]
        %v3831 = vld [vmem:[#allocation3 + $0x152] sm:$0xff]
        %v3832 = vld [vmem:[#allocation3 + $0x15a] sm:$0xff]
        %v3833 = vld [vmem:[#allocation3 + $0x16a] sm:$0xff]
        %v3834 = vld [vmem:[#allocation3 + $0x172] sm:$0xff]
        %v3835 = vld [vmem:[#allocation4] sm:$0xff]
        %v3836 = vld [vmem:[#allocation4 + $0x8] sm:$0xff]
        %v3837 = vld [vmem:[#allocation4 + $0x10] sm:$0xff]
        %v3838 = vld [vmem:[#allocation4 + $0x18] sm:$0xff]
        %v3839 = vld [vmem:[#allocation4 + $0x20] sm:$0xff]
        %v3840 = vld [vmem:[#allocation4 + $0x28] sm:$0xff]
        %v3841 = vld [vmem:[#allocation4 + $0x30] sm:$0xff]
        %v3842 = vld [vmem:[#allocation4 + $0x38] sm:$0xff]
        %v3843 = vld [vmem:[#allocation4 + $0x40] sm:$0xff]
        %v3844 = vld [vmem:[#allocation4 + $0x48] sm:$0xff]
        %v3845 = vld [vmem:[#allocation4 + $0x50] sm:$0xff]
        %v3846 = vld [vmem:[#allocation4 + $0x58] sm:$0xff]
        %v3847 = vld [vmem:[#allocation4 + $0x60] sm:$0xff]
        %v3848 = vld [vmem:[#allocation4 + $0x68] sm:$0xff]
        %v3849 = vld [vmem:[#allocation4 + $0x70] sm:$0xff]
        %v3850 = vld [vmem:[#allocation4 + $0x78] sm:$0xff]
        %v3851 = vld [vmem:[#allocation4 + $0x80] sm:$0xff]
        %v3852 = vld [vmem:[#allocation4 + $0x88] sm:$0xff]
        %v3853 = vld [vmem:[#allocation4 + $0x90] sm:$0xff]
        %v3854 = vld [vmem:[#allocation4 + $0x98] sm:$0xff]
        %v3855 = vld [vmem:[#allocation4 + $0xa0] sm:$0xff]
        %v3856 = vld [vmem:[#allocation4 + $0xa8] sm:$0xff]
        %v3857 = vld [vmem:[#allocation4 + $0xb0] sm:$0xff]
        %v3858 = vld [vmem:[#allocation4 + $0xb8] sm:$0xff]
        %v3859 = vld [vmem:[#allocation4 + $0xc0] sm:$0xff]
        %v3860 = vld [vmem:[#allocation4 + $0xc8] sm:$0xff]
        %v3861 = vld [vmem:[#allocation4 + $0xd0] sm:$0xff]
        %v3862 = vld [vmem:[#allocation4 + $0xd8] sm:$0xff]
        %v3863 = vld [vmem:[#allocation4 + $0xe0] sm:$0xff]
        %v3864 = vld [vmem:[#allocation4 + $0xe8] sm:$0xff]
        %v3865 = vld [vmem:[#allocation4 + $0xf0] sm:$0xff]
        %v3866 = vld [vmem:[#allocation4 + $0xf8] sm:$0xff]
        %v3867 = vld [vmem:[#allocation6 + $0x100] sm:$0xff]
        %v3868 = vld [vmem:[#allocation6 + $0x108] sm:$0xff]
        %v3869 = vld [vmem:[#allocation6 + $0x110] sm:$0xff]
        %v3870 = vld [vmem:[#allocation6 + $0x118] sm:$0xff]
        %v3871 = vld [vmem:[#allocation6 + $0x120] sm:$0xff]
        %v3872 = vld [vmem:[#allocation6 + $0x128] sm:$0xff]
        %v3873 = vld [vmem:[#allocation6 + $0x130] sm:$0xff]
        %v3874 = vld [vmem:[#allocation6 + $0x138] sm:$0xff]
        %v3875 = vld [vmem:[#allocation6 + $0x140] sm:$0xff]
        %v3876 = vld [vmem:[#allocation6 + $0x148] sm:$0xff]
        %v3877 = vld [vmem:[#allocation6 + $0x150] sm:$0xff]
        %v3878 = vld [vmem:[#allocation6 + $0x158] sm:$0xff]
        %v3879 = vld [vmem:[#allocation6 + $0x160] sm:$0xff]
        %v3880 = vld [vmem:[#allocation6 + $0x168] sm:$0xff]
        %v3881 = vld [vmem:[#allocation6 + $0x170] sm:$0xff]
        %v3882 = vld [vmem:[#allocation6 + $0x178] sm:$0xff]
        %3883 = vmatpush.msra.mxu0 %v3882
        %3884 = vmatpush.msra.mxu0 %v3881
        %3885 = vmatpush.msra.mxu0 %v3880
        %3886 = vmatpush.msra.mxu0 %v3879
        %3887 = vmatpush.msra.mxu0 %v3878
        %3888 = vmatpush.msra.mxu0 %v3877
        %3889 = vmatpush.msra.mxu0 %v3876
        %3890 = vmatpush.msra.mxu0 %v3875
        %3891 = vmatpush.msra.mxu0 %v3874
        %3892 = vmatpush.msra.mxu0 %v3873
        %3893 = vmatpush.msra.mxu0 %v3872
        %3894 = vmatpush.msra.mxu0 %v3871
        %3895 = vmatpush.msra.mxu0 %v3870
        %3896 = vmatpush.msra.mxu0 %v3869
        %3897 = vmatpush.msra.mxu0 %v3868
        %3898 = vmatpush.msra.mxu0 %v3867
        %3899 = vmatmul.f32.gmra.mxu0 %v3803
        %v3900 = vpop.f32.mrf.mxu0
        %v3901 = vadd.f32 0.0, %v3900
        %3902 = vmatmul.f32.gmra.mxu0 %v3804
        %v3903 = vpop.f32.mrf.mxu0
        %v3904 = vadd.f32 0.0, %v3903
        %3905 = vmatmul.f32.gmra.mxu0 %v3805
        %v3906 = vpop.f32.mrf.mxu0
        %v3907 = vadd.f32 0.0, %v3906
        %3908 = vmatmul.f32.gmra.mxu0 %v3806
        %v3909 = vpop.f32.mrf.mxu0
        %v3910 = vadd.f32 0.0, %v3909
        %3911 = vmatmul.f32.gmra.mxu0 %v3807
        %v3912 = vpop.f32.mrf.mxu0
        %v3913 = vadd.f32 0.0, %v3912
        %3914 = vmatmul.f32.gmra.mxu0 %v3808
        %v3915 = vpop.f32.mrf.mxu0
        %v3916 = vadd.f32 0.0, %v3915
        %3917 = vmatmul.f32.gmra.mxu0 %v3809
        %v3918 = vpop.f32.mrf.mxu0
        %v3919 = vadd.f32 0.0, %v3918
        %3920 = vmatmul.f32.gmra.mxu0 %v3810
        %v3921 = vpop.f32.mrf.mxu0
        %v3922 = vadd.f32 0.0, %v3921
        %3923 = vmatmul.f32.gmra.mxu0 %v3811
        %v3924 = vpop.f32.mrf.mxu0
        %v3925 = vadd.f32 0.0, %v3924
        %3926 = vmatmul.f32.gmra.mxu0 %v3812
        %v3927 = vpop.f32.mrf.mxu0
        %v3928 = vadd.f32 0.0, %v3927
        %3929 = vmatmul.f32.gmra.mxu0 %v3813
        %v3930 = vpop.f32.mrf.mxu0
        %v3931 = vadd.f32 0.0, %v3930
        %3932 = vmatmul.f32.gmra.mxu0 %v3814
        %v3933 = vpop.f32.mrf.mxu0
        %v3934 = vadd.f32 0.0, %v3933
        %3935 = vmatmul.f32.gmra.mxu0 %v3815
        %v3936 = vpop.f32.mrf.mxu0
        %v3937 = vadd.f32 0.0, %v3936
        %3938 = vmatmul.f32.gmra.mxu0 %v3816
        %v3939 = vpop.f32.mrf.mxu0
        %v3940 = vadd.f32 0.0, %v3939
        %3941 = vmatmul.f32.gmra.mxu0 %v3817
        %v3942 = vpop.f32.mrf.mxu0
        %v3943 = vadd.f32 0.0, %v3942
        %3944 = vmatmul.f32.gmra.mxu0 %v3818
        %v3945 = vpop.f32.mrf.mxu0
        %v3946 = vadd.f32 0.0, %v3945
        %3947 = vmatmul.f32.gmra.mxu0 %v3819
        %v3948 = vpop.f32.mrf.mxu0
        %v3949 = vadd.f32 0.0, %v3948
        %3950 = vmatmul.f32.gmra.mxu0 %v3820
        %v3951 = vpop.f32.mrf.mxu0
        %v3952 = vadd.f32 0.0, %v3951
        %3953 = vmatmul.f32.gmra.mxu0 %v3821
        %v3954 = vpop.f32.mrf.mxu0
        %v3955 = vadd.f32 0.0, %v3954
        %3956 = vmatmul.f32.gmra.mxu0 %v3822
        %v3957 = vpop.f32.mrf.mxu0
        %v3958 = vadd.f32 0.0, %v3957
        %3959 = vmatmul.f32.gmra.mxu0 %v3823
        %v3960 = vpop.f32.mrf.mxu0
        %v3961 = vadd.f32 0.0, %v3960
        %3962 = vmatmul.f32.gmra.mxu0 %v3824
        %v3963 = vpop.f32.mrf.mxu0
        %v3964 = vadd.f32 0.0, %v3963
        %3965 = vmatmul.f32.gmra.mxu0 %v3825
        %v3966 = vpop.f32.mrf.mxu0
        %v3967 = vadd.f32 0.0, %v3966
        %3968 = vmatmul.f32.gmra.mxu0 %v3826
        %v3969 = vpop.f32.mrf.mxu0
        %v3970 = vadd.f32 0.0, %v3969
        %3971 = vmatmul.f32.gmra.mxu0 %v3827
        %v3972 = vpop.f32.mrf.mxu0
        %v3973 = vadd.f32 0.0, %v3972
        %3974 = vmatmul.f32.gmra.mxu0 %v3828
        %v3975 = vpop.f32.mrf.mxu0
        %v3976 = vadd.f32 0.0, %v3975
        %3977 = vmatmul.f32.gmra.mxu0 %v3829
        %v3978 = vpop.f32.mrf.mxu0
        %v3979 = vadd.f32 0.0, %v3978
        %3980 = vmatmul.f32.gmra.mxu0 %v3830
        %v3981 = vpop.f32.mrf.mxu0
        %v3982 = vadd.f32 0.0, %v3981
        %3983 = vmatmul.f32.gmra.mxu0 %v3831
        %v3984 = vpop.f32.mrf.mxu0
        %v3985 = vadd.f32 0.0, %v3984
        %3986 = vmatmul.f32.gmra.mxu0 %v3832
        %v3987 = vpop.f32.mrf.mxu0
        %v3988 = vadd.f32 0.0, %v3987
        %3989 = vmatmul.f32.gmra.mxu0 %v3833
        %v3990 = vpop.f32.mrf.mxu0
        %v3991 = vadd.f32 0.0, %v3990
        %3992 = vmatmul.f32.gmra.mxu0 %v3834
        %v3993 = vpop.f32.mrf.mxu0
        %v3994 = vadd.f32 0.0, %v3993
        %3995 = vdwg.mxu0
        %v3996 = vadd.f32 %v3835, %v3901
        %v3997 = vadd.f32 %v3836, %v3904
        %v3998 = vadd.f32 %v3837, %v3907
        %v3999 = vadd.f32 %v3838, %v3910
        %v4000 = vadd.f32 %v3839, %v3913
        %v4001 = vadd.f32 %v3840, %v3916
        %v4002 = vadd.f32 %v3841, %v3919
        %v4003 = vadd.f32 %v3842, %v3922
        %v4004 = vadd.f32 %v3843, %v3925
        %v4005 = vadd.f32 %v3844, %v3928
        %v4006 = vadd.f32 %v3845, %v3931
        %v4007 = vadd.f32 %v3846, %v3934
        %v4008 = vadd.f32 %v3847, %v3937
        %v4009 = vadd.f32 %v3848, %v3940
        %v4010 = vadd.f32 %v3849, %v3943
        %v4011 = vadd.f32 %v3850, %v3946
        %v4012 = vadd.f32 %v3851, %v3949
        %v4013 = vadd.f32 %v3852, %v3952
        %v4014 = vadd.f32 %v3853, %v3955
        %v4015 = vadd.f32 %v3854, %v3958
        %v4016 = vadd.f32 %v3855, %v3961
        %v4017 = vadd.f32 %v3856, %v3964
        %v4018 = vadd.f32 %v3857, %v3967
        %v4019 = vadd.f32 %v3858, %v3970
        %v4020 = vadd.f32 %v3859, %v3973
        %v4021 = vadd.f32 %v3860, %v3976
        %v4022 = vadd.f32 %v3861, %v3979
        %v4023 = vadd.f32 %v3862, %v3982
        %v4024 = vadd.f32 %v3863, %v3985
        %v4025 = vadd.f32 %v3864, %v3988
        %v4026 = vadd.f32 %v3865, %v3991
        %v4027 = vadd.f32 %v3866, %v3994
        %4028 = vst [vmem:[#allocation4] sm:$0xff] %v3996
        %4029 = vst [vmem:[#allocation4 + $0x8] sm:$0xff] %v3997
        %4030 = vst [vmem:[#allocation4 + $0x10] sm:$0xff] %v3998
        %4031 = vst [vmem:[#allocation4 + $0x18] sm:$0xff] %v3999
        %4032 = vst [vmem:[#allocation4 + $0x20] sm:$0xff] %v4000
        %4033 = vst [vmem:[#allocation4 + $0x28] sm:$0xff] %v4001
        %4034 = vst [vmem:[#allocation4 + $0x30] sm:$0xff] %v4002
        %4035 = vst [vmem:[#allocation4 + $0x38] sm:$0xff] %v4003
        %4036 = vst [vmem:[#allocation4 + $0x40] sm:$0xff] %v4004
        %4037 = vst [vmem:[#allocation4 + $0x48] sm:$0xff] %v4005
        %4038 = vst [vmem:[#allocation4 + $0x50] sm:$0xff] %v4006
        %4039 = vst [vmem:[#allocation4 + $0x58] sm:$0xff] %v4007
        %4040 = vst [vmem:[#allocation4 + $0x60] sm:$0xff] %v4008
        %4041 = vst [vmem:[#allocation4 + $0x68] sm:$0xff] %v4009
        %4042 = vst [vmem:[#allocation4 + $0x70] sm:$0xff] %v4010
        %4043 = vst [vmem:[#allocation4 + $0x78] sm:$0xff] %v4011
        %4044 = vst [vmem:[#allocation4 + $0x80] sm:$0xff] %v4012
        %4045 = vst [vmem:[#allocation4 + $0x88] sm:$0xff] %v4013
        %4046 = vst [vmem:[#allocation4 + $0x90] sm:$0xff] %v4014
        %4047 = vst [vmem:[#allocation4 + $0x98] sm:$0xff] %v4015
        %4048 = vst [vmem:[#allocation4 + $0xa0] sm:$0xff] %v4016
        %4049 = vst [vmem:[#allocation4 + $0xa8] sm:$0xff] %v4017
        %4050 = vst [vmem:[#allocation4 + $0xb0] sm:$0xff] %v4018
        %4051 = vst [vmem:[#allocation4 + $0xb8] sm:$0xff] %v4019
        %4052 = vst [vmem:[#allocation4 + $0xc0] sm:$0xff] %v4020
        %4053 = vst [vmem:[#allocation4 + $0xc8] sm:$0xff] %v4021
        %4054 = vst [vmem:[#allocation4 + $0xd0] sm:$0xff] %v4022
        %4055 = vst [vmem:[#allocation4 + $0xd8] sm:$0xff] %v4023
        %4056 = vst [vmem:[#allocation4 + $0xe0] sm:$0xff] %v4024
        %4057 = vst [vmem:[#allocation4 + $0xe8] sm:$0xff] %v4025
        %4058 = vst [vmem:[#allocation4 + $0xf0] sm:$0xff] %v4026
        %4059 = vst [vmem:[#allocation4 + $0xf8] sm:$0xff] %v4027
        %s4060 = scalar_lea.vmem [#allocation3], 24
        %v4061 = vld [vmem:[%s4060] sm:$0xff]
        %v4062 = vld [vmem:[%s4060 + $0x8] sm:$0xff]
        %v4063 = vld [vmem:[%s4060 + $0x18] sm:$0xff]
        %v4064 = vld [vmem:[%s4060 + $0x20] sm:$0xff]
        %v4065 = vld [vmem:[%s4060 + $0x30] sm:$0xff]
        %v4066 = vld [vmem:[%s4060 + $0x38] sm:$0xff]
        %v4067 = vld [vmem:[%s4060 + $0x48] sm:$0xff]
        %v4068 = vld [vmem:[%s4060 + $0x50] sm:$0xff]
        %v4069 = vld [vmem:[%s4060 + $0x60] sm:$0xff]
        %v4070 = vld [vmem:[%s4060 + $0x68] sm:$0xff]
        %v4071 = vld [vmem:[%s4060 + $0x78] sm:$0xff]
        %v4072 = vld [vmem:[%s4060 + $0x80] sm:$0xff]
        %v4073 = vld [vmem:[%s4060 + $0x90] sm:$0xff]
        %v4074 = vld [vmem:[%s4060 + $0x98] sm:$0xff]
        %v4075 = vld [vmem:[%s4060 + $0xa8] sm:$0xff]
        %v4076 = vld [vmem:[%s4060 + $0xb0] sm:$0xff]
        %v4077 = vld [vmem:[%s4060 + $0xc0] sm:$0xff]
        %v4078 = vld [vmem:[%s4060 + $0xc8] sm:$0xff]
        %v4079 = vld [vmem:[%s4060 + $0xd8] sm:$0xff]
        %v4080 = vld [vmem:[%s4060 + $0xe0] sm:$0xff]
        %v4081 = vld [vmem:[%s4060 + $0xf0] sm:$0xff]
        %v4082 = vld [vmem:[%s4060 + $0xf8] sm:$0xff]
        %v4083 = vld [vmem:[%s4060 + $0x108] sm:$0xff]
        %v4084 = vld [vmem:[%s4060 + $0x110] sm:$0xff]
        %v4085 = vld [vmem:[%s4060 + $0x120] sm:$0xff]
        %v4086 = vld [vmem:[%s4060 + $0x128] sm:$0xff]
        %v4087 = vld [vmem:[%s4060 + $0x138] sm:$0xff]
        %v4088 = vld [vmem:[%s4060 + $0x140] sm:$0xff]
        %v4089 = vld [vmem:[%s4060 + $0x150] sm:$0xff]
        %v4090 = vld [vmem:[%s4060 + $0x158] sm:$0xff]
        %v4091 = vld [vmem:[%s4060 + $0x168] sm:$0xff]
        %v4092 = vld [vmem:[%s4060 + $0x170] sm:$0xff]
        %v4093 = vld [vmem:[#allocation4] sm:$0xff]
        %v4094 = vld [vmem:[#allocation4 + $0x8] sm:$0xff]
        %v4095 = vld [vmem:[#allocation4 + $0x10] sm:$0xff]
        %v4096 = vld [vmem:[#allocation4 + $0x18] sm:$0xff]
        %v4097 = vld [vmem:[#allocation4 + $0x20] sm:$0xff]
        %v4098 = vld [vmem:[#allocation4 + $0x28] sm:$0xff]
        %v4099 = vld [vmem:[#allocation4 + $0x30] sm:$0xff]
        %v4100 = vld [vmem:[#allocation4 + $0x38] sm:$0xff]
        %v4101 = vld [vmem:[#allocation4 + $0x40] sm:$0xff]
        %v4102 = vld [vmem:[#allocation4 + $0x48] sm:$0xff]
        %v4103 = vld [vmem:[#allocation4 + $0x50] sm:$0xff]
        %v4104 = vld [vmem:[#allocation4 + $0x58] sm:$0xff]
        %v4105 = vld [vmem:[#allocation4 + $0x60] sm:$0xff]
        %v4106 = vld [vmem:[#allocation4 + $0x68] sm:$0xff]
        %v4107 = vld [vmem:[#allocation4 + $0x70] sm:$0xff]
        %v4108 = vld [vmem:[#allocation4 + $0x78] sm:$0xff]
        %v4109 = vld [vmem:[#allocation4 + $0x80] sm:$0xff]
        %v4110 = vld [vmem:[#allocation4 + $0x88] sm:$0xff]
        %v4111 = vld [vmem:[#allocation4 + $0x90] sm:$0xff]
        %v4112 = vld [vmem:[#allocation4 + $0x98] sm:$0xff]
        %v4113 = vld [vmem:[#allocation4 + $0xa0] sm:$0xff]
        %v4114 = vld [vmem:[#allocation4 + $0xa8] sm:$0xff]
        %v4115 = vld [vmem:[#allocation4 + $0xb0] sm:$0xff]
        %v4116 = vld [vmem:[#allocation4 + $0xb8] sm:$0xff]
        %v4117 = vld [vmem:[#allocation4 + $0xc0] sm:$0xff]
        %v4118 = vld [vmem:[#allocation4 + $0xc8] sm:$0xff]
        %v4119 = vld [vmem:[#allocation4 + $0xd0] sm:$0xff]
        %v4120 = vld [vmem:[#allocation4 + $0xd8] sm:$0xff]
        %v4121 = vld [vmem:[#allocation4 + $0xe0] sm:$0xff]
        %v4122 = vld [vmem:[#allocation4 + $0xe8] sm:$0xff]
        %v4123 = vld [vmem:[#allocation4 + $0xf0] sm:$0xff]
        %v4124 = vld [vmem:[#allocation4 + $0xf8] sm:$0xff]
        %v4125 = vld [vmem:[#allocation6 + $0x180] sm:$0xff]
        %v4126 = vld [vmem:[#allocation6 + $0x188] sm:$0xff]
        %v4127 = vld [vmem:[#allocation6 + $0x190] sm:$0xff]
        %v4128 = vld [vmem:[#allocation6 + $0x198] sm:$0xff]
        %v4129 = vld [vmem:[#allocation6 + $0x1a0] sm:$0xff]
        %v4130 = vld [vmem:[#allocation6 + $0x1a8] sm:$0xff]
        %v4131 = vld [vmem:[#allocation6 + $0x1b0] sm:$0xff]
        %v4132 = vld [vmem:[#allocation6 + $0x1b8] sm:$0xff]
        %v4133 = vld [vmem:[#allocation6 + $0x1c0] sm:$0xff]
        %v4134 = vld [vmem:[#allocation6 + $0x1c8] sm:$0xff]
        %v4135 = vld [vmem:[#allocation6 + $0x1d0] sm:$0xff]
        %v4136 = vld [vmem:[#allocation6 + $0x1d8] sm:$0xff]
        %v4137 = vld [vmem:[#allocation6 + $0x1e0] sm:$0xff]
        %v4138 = vld [vmem:[#allocation6 + $0x1e8] sm:$0xff]
        %v4139 = vld [vmem:[#allocation6 + $0x1f0] sm:$0xff]
        %v4140 = vld [vmem:[#allocation6 + $0x1f8] sm:$0xff]
        %4141 = vmatpush.msra.mxu0 %v4140
        %4142 = vmatpush.msra.mxu0 %v4139
        %4143 = vmatpush.msra.mxu0 %v4138
        %4144 = vmatpush.msra.mxu0 %v4137
        %4145 = vmatpush.msra.mxu0 %v4136
        %4146 = vmatpush.msra.mxu0 %v4135
        %4147 = vmatpush.msra.mxu0 %v4134
        %4148 = vmatpush.msra.mxu0 %v4133
        %4149 = vmatpush.msra.mxu0 %v4132
        %4150 = vmatpush.msra.mxu0 %v4131
        %4151 = vmatpush.msra.mxu0 %v4130
        %4152 = vmatpush.msra.mxu0 %v4129
        %4153 = vmatpush.msra.mxu0 %v4128
        %4154 = vmatpush.msra.mxu0 %v4127
        %4155 = vmatpush.msra.mxu0 %v4126
        %4156 = vmatpush.msra.mxu0 %v4125
        %4157 = vmatmul.f32.gmra.mxu0 %v4061
        %v4158 = vpop.f32.mrf.mxu0
        %v4159 = vadd.f32 0.0, %v4158
        %4160 = vmatmul.f32.gmra.mxu0 %v4062
        %v4161 = vpop.f32.mrf.mxu0
        %v4162 = vadd.f32 0.0, %v4161
        %4163 = vmatmul.f32.gmra.mxu0 %v4063
        %v4164 = vpop.f32.mrf.mxu0
        %v4165 = vadd.f32 0.0, %v4164
        %4166 = vmatmul.f32.gmra.mxu0 %v4064
        %v4167 = vpop.f32.mrf.mxu0
        %v4168 = vadd.f32 0.0, %v4167
        %4169 = vmatmul.f32.gmra.mxu0 %v4065
        %v4170 = vpop.f32.mrf.mxu0
        %v4171 = vadd.f32 0.0, %v4170
        %4172 = vmatmul.f32.gmra.mxu0 %v4066
        %v4173 = vpop.f32.mrf.mxu0
        %v4174 = vadd.f32 0.0, %v4173
        %4175 = vmatmul.f32.gmra.mxu0 %v4067
        %v4176 = vpop.f32.mrf.mxu0
        %v4177 = vadd.f32 0.0, %v4176
        %4178 = vmatmul.f32.gmra.mxu0 %v4068
        %v4179 = vpop.f32.mrf.mxu0
        %v4180 = vadd.f32 0.0, %v4179
        %4181 = vmatmul.f32.gmra.mxu0 %v4069
        %v4182 = vpop.f32.mrf.mxu0
        %v4183 = vadd.f32 0.0, %v4182
        %4184 = vmatmul.f32.gmra.mxu0 %v4070
        %v4185 = vpop.f32.mrf.mxu0
        %v4186 = vadd.f32 0.0, %v4185
        %4187 = vmatmul.f32.gmra.mxu0 %v4071
        %v4188 = vpop.f32.mrf.mxu0
        %v4189 = vadd.f32 0.0, %v4188
        %4190 = vmatmul.f32.gmra.mxu0 %v4072
        %v4191 = vpop.f32.mrf.mxu0
        %v4192 = vadd.f32 0.0, %v4191
        %4193 = vmatmul.f32.gmra.mxu0 %v4073
        %v4194 = vpop.f32.mrf.mxu0
        %v4195 = vadd.f32 0.0, %v4194
        %4196 = vmatmul.f32.gmra.mxu0 %v4074
        %v4197 = vpop.f32.mrf.mxu0
        %v4198 = vadd.f32 0.0, %v4197
        %4199 = vmatmul.f32.gmra.mxu0 %v4075
        %v4200 = vpop.f32.mrf.mxu0
        %v4201 = vadd.f32 0.0, %v4200
        %4202 = vmatmul.f32.gmra.mxu0 %v4076
        %v4203 = vpop.f32.mrf.mxu0
        %v4204 = vadd.f32 0.0, %v4203
        %4205 = vmatmul.f32.gmra.mxu0 %v4077
        %v4206 = vpop.f32.mrf.mxu0
        %v4207 = vadd.f32 0.0, %v4206
        %4208 = vmatmul.f32.gmra.mxu0 %v4078
        %v4209 = vpop.f32.mrf.mxu0
        %v4210 = vadd.f32 0.0, %v4209
        %4211 = vmatmul.f32.gmra.mxu0 %v4079
        %v4212 = vpop.f32.mrf.mxu0
        %v4213 = vadd.f32 0.0, %v4212
        %4214 = vmatmul.f32.gmra.mxu0 %v4080
        %v4215 = vpop.f32.mrf.mxu0
        %v4216 = vadd.f32 0.0, %v4215
        %4217 = vmatmul.f32.gmra.mxu0 %v4081
        %v4218 = vpop.f32.mrf.mxu0
        %v4219 = vadd.f32 0.0, %v4218
        %4220 = vmatmul.f32.gmra.mxu0 %v4082
        %v4221 = vpop.f32.mrf.mxu0
        %v4222 = vadd.f32 0.0, %v4221
        %4223 = vmatmul.f32.gmra.mxu0 %v4083
        %v4224 = vpop.f32.mrf.mxu0
        %v4225 = vadd.f32 0.0, %v4224
        %4226 = vmatmul.f32.gmra.mxu0 %v4084
        %v4227 = vpop.f32.mrf.mxu0
        %v4228 = vadd.f32 0.0, %v4227
        %4229 = vmatmul.f32.gmra.mxu0 %v4085
        %v4230 = vpop.f32.mrf.mxu0
        %v4231 = vadd.f32 0.0, %v4230
        %4232 = vmatmul.f32.gmra.mxu0 %v4086
        %v4233 = vpop.f32.mrf.mxu0
        %v4234 = vadd.f32 0.0, %v4233
        %4235 = vmatmul.f32.gmra.mxu0 %v4087
        %v4236 = vpop.f32.mrf.mxu0
        %v4237 = vadd.f32 0.0, %v4236
        %4238 = vmatmul.f32.gmra.mxu0 %v4088
        %v4239 = vpop.f32.mrf.mxu0
        %v4240 = vadd.f32 0.0, %v4239
        %4241 = vmatmul.f32.gmra.mxu0 %v4089
        %v4242 = vpop.f32.mrf.mxu0
        %v4243 = vadd.f32 0.0, %v4242
        %4244 = vmatmul.f32.gmra.mxu0 %v4090
        %v4245 = vpop.f32.mrf.mxu0
        %v4246 = vadd.f32 0.0, %v4245
        %4247 = vmatmul.f32.gmra.mxu0 %v4091
        %v4248 = vpop.f32.mrf.mxu0
        %v4249 = vadd.f32 0.0, %v4248
        %4250 = vmatmul.f32.gmra.mxu0 %v4092
        %v4251 = vpop.f32.mrf.mxu0
        %v4252 = vadd.f32 0.0, %v4251
        %4253 = vdwg.mxu0
        %v4254 = vadd.f32 %v4093, %v4159
        %v4255 = vadd.f32 %v4094, %v4162
        %v4256 = vadd.f32 %v4095, %v4165
        %v4257 = vadd.f32 %v4096, %v4168
        %v4258 = vadd.f32 %v4097, %v4171
        %v4259 = vadd.f32 %v4098, %v4174
        %v4260 = vadd.f32 %v4099, %v4177
        %v4261 = vadd.f32 %v4100, %v4180
        %v4262 = vadd.f32 %v4101, %v4183
        %v4263 = vadd.f32 %v4102, %v4186
        %v4264 = vadd.f32 %v4103, %v4189
        %v4265 = vadd.f32 %v4104, %v4192
        %v4266 = vadd.f32 %v4105, %v4195
        %v4267 = vadd.f32 %v4106, %v4198
        %v4268 = vadd.f32 %v4107, %v4201
        %v4269 = vadd.f32 %v4108, %v4204
        %v4270 = vadd.f32 %v4109, %v4207
        %v4271 = vadd.f32 %v4110, %v4210
        %v4272 = vadd.f32 %v4111, %v4213
        %v4273 = vadd.f32 %v4112, %v4216
        %v4274 = vadd.f32 %v4113, %v4219
        %v4275 = vadd.f32 %v4114, %v4222
        %v4276 = vadd.f32 %v4115, %v4225
        %v4277 = vadd.f32 %v4116, %v4228
        %v4278 = vadd.f32 %v4117, %v4231
        %v4279 = vadd.f32 %v4118, %v4234
        %v4280 = vadd.f32 %v4119, %v4237
        %v4281 = vadd.f32 %v4120, %v4240
        %v4282 = vadd.f32 %v4121, %v4243
        %v4283 = vadd.f32 %v4122, %v4246
        %v4284 = vadd.f32 %v4123, %v4249
        %v4285 = vadd.f32 %v4124, %v4252
        %4286 = vst [vmem:[#allocation4] sm:$0xff] %v4254
        %4287 = vst [vmem:[#allocation4 + $0x8] sm:$0xff] %v4255
        %4288 = vst [vmem:[#allocation4 + $0x10] sm:$0xff] %v4256
        %4289 = vst [vmem:[#allocation4 + $0x18] sm:$0xff] %v4257
        %4290 = vst [vmem:[#allocation4 + $0x20] sm:$0xff] %v4258
        %4291 = vst [vmem:[#allocation4 + $0x28] sm:$0xff] %v4259
        %4292 = vst [vmem:[#allocation4 + $0x30] sm:$0xff] %v4260
        %4293 = vst [vmem:[#allocation4 + $0x38] sm:$0xff] %v4261
        %4294 = vst [vmem:[#allocation4 + $0x40] sm:$0xff] %v4262
        %4295 = vst [vmem:[#allocation4 + $0x48] sm:$0xff] %v4263
        %4296 = vst [vmem:[#allocation4 + $0x50] sm:$0xff] %v4264
        %4297 = vst [vmem:[#allocation4 + $0x58] sm:$0xff] %v4265
        %4298 = vst [vmem:[#allocation4 + $0x60] sm:$0xff] %v4266
        %4299 = vst [vmem:[#allocation4 + $0x68] sm:$0xff] %v4267
        %4300 = vst [vmem:[#allocation4 + $0x70] sm:$0xff] %v4268
        %4301 = vst [vmem:[#allocation4 + $0x78] sm:$0xff] %v4269
        %4302 = vst [vmem:[#allocation4 + $0x80] sm:$0xff] %v4270
        %4303 = vst [vmem:[#allocation4 + $0x88] sm:$0xff] %v4271
        %4304 = vst [vmem:[#allocation4 + $0x90] sm:$0xff] %v4272
        %4305 = vst [vmem:[#allocation4 + $0x98] sm:$0xff] %v4273
        %4306 = vst [vmem:[#allocation4 + $0xa0] sm:$0xff] %v4274
        %4307 = vst [vmem:[#allocation4 + $0xa8] sm:$0xff] %v4275
        %4308 = vst [vmem:[#allocation4 + $0xb0] sm:$0xff] %v4276
        %4309 = vst [vmem:[#allocation4 + $0xb8] sm:$0xff] %v4277
        %4310 = vst [vmem:[#allocation4 + $0xc0] sm:$0xff] %v4278
        %4311 = vst [vmem:[#allocation4 + $0xc8] sm:$0xff] %v4279
        %4312 = vst [vmem:[#allocation4 + $0xd0] sm:$0xff] %v4280
        %4313 = vst [vmem:[#allocation4 + $0xd8] sm:$0xff] %v4281
        %4314 = vst [vmem:[#allocation4 + $0xe0] sm:$0xff] %v4282
        %4315 = vst [vmem:[#allocation4 + $0xe8] sm:$0xff] %v4283
        %4316 = vst [vmem:[#allocation4 + $0xf0] sm:$0xff] %v4284
        %4317 = vst [vmem:[#allocation4 + $0xf8] sm:$0xff] %v4285
        %v4318 = vld [vmem:[%s4060 + $0x1] sm:$0xff]
        %v4319 = vld [vmem:[%s4060 + $0x9] sm:$0xff]
        %v4320 = vld [vmem:[%s4060 + $0x19] sm:$0xff]
        %v4321 = vld [vmem:[%s4060 + $0x21] sm:$0xff]
        %v4322 = vld [vmem:[%s4060 + $0x31] sm:$0xff]
        %v4323 = vld [vmem:[%s4060 + $0x39] sm:$0xff]
        %v4324 = vld [vmem:[%s4060 + $0x49] sm:$0xff]
        %v4325 = vld [vmem:[%s4060 + $0x51] sm:$0xff]
        %v4326 = vld [vmem:[%s4060 + $0x61] sm:$0xff]
        %v4327 = vld [vmem:[%s4060 + $0x69] sm:$0xff]
        %v4328 = vld [vmem:[%s4060 + $0x79] sm:$0xff]
        %v4329 = vld [vmem:[%s4060 + $0x81] sm:$0xff]
        %v4330 = vld [vmem:[%s4060 + $0x91] sm:$0xff]
        %v4331 = vld [vmem:[%s4060 + $0x99] sm:$0xff]
        %v4332 = vld [vmem:[%s4060 + $0xa9] sm:$0xff]
        %v4333 = vld [vmem:[%s4060 + $0xb1] sm:$0xff]
        %v4334 = vld [vmem:[%s4060 + $0xc1] sm:$0xff]
        %v4335 = vld [vmem:[%s4060 + $0xc9] sm:$0xff]
        %v4336 = vld [vmem:[%s4060 + $0xd9] sm:$0xff]
        %v4337 = vld [vmem:[%s4060 + $0xe1] sm:$0xff]
        %v4338 = vld [vmem:[%s4060 + $0xf1] sm:$0xff]
        %v4339 = vld [vmem:[%s4060 + $0xf9] sm:$0xff]
        %v4340 = vld [vmem:[%s4060 + $0x109] sm:$0xff]
        %v4341 = vld [vmem:[%s4060 + $0x111] sm:$0xff]
        %v4342 = vld [vmem:[%s4060 + $0x121] sm:$0xff]
        %v4343 = vld [vmem:[%s4060 + $0x129] sm:$0xff]
        %v4344 = vld [vmem:[%s4060 + $0x139] sm:$0xff]
        %v4345 = vld [vmem:[%s4060 + $0x141] sm:$0xff]
        %v4346 = vld [vmem:[%s4060 + $0x151] sm:$0xff]
        %v4347 = vld [vmem:[%s4060 + $0x159] sm:$0xff]
        %v4348 = vld [vmem:[%s4060 + $0x169] sm:$0xff]
        %v4349 = vld [vmem:[%s4060 + $0x171] sm:$0xff]
        %v4350 = vld [vmem:[#allocation4] sm:$0xff]
        %v4351 = vld [vmem:[#allocation4 + $0x8] sm:$0xff]
        %v4352 = vld [vmem:[#allocation4 + $0x10] sm:$0xff]
        %v4353 = vld [vmem:[#allocation4 + $0x18] sm:$0xff]
        %v4354 = vld [vmem:[#allocation4 + $0x20] sm:$0xff]
        %v4355 = vld [vmem:[#allocation4 + $0x28] sm:$0xff]
        %v4356 = vld [vmem:[#allocation4 + $0x30] sm:$0xff]
        %v4357 = vld [vmem:[#allocation4 + $0x38] sm:$0xff]
        %v4358 = vld [vmem:[#allocation4 + $0x40] sm:$0xff]
        %v4359 = vld [vmem:[#allocation4 + $0x48] sm:$0xff]
        %v4360 = vld [vmem:[#allocation4 + $0x50] sm:$0xff]
        %v4361 = vld [vmem:[#allocation4 + $0x58] sm:$0xff]
        %v4362 = vld [vmem:[#allocation4 + $0x60] sm:$0xff]
        %v4363 = vld [vmem:[#allocation4 + $0x68] sm:$0xff]
        %v4364 = vld [vmem:[#allocation4 + $0x70] sm:$0xff]
        %v4365 = vld [vmem:[#allocation4 + $0x78] sm:$0xff]
        %v4366 = vld [vmem:[#allocation4 + $0x80] sm:$0xff]
        %v4367 = vld [vmem:[#allocation4 + $0x88] sm:$0xff]
        %v4368 = vld [vmem:[#allocation4 + $0x90] sm:$0xff]
        %v4369 = vld [vmem:[#allocation4 + $0x98] sm:$0xff]
        %v4370 = vld [vmem:[#allocation4 + $0xa0] sm:$0xff]
        %v4371 = vld [vmem:[#allocation4 + $0xa8] sm:$0xff]
        %v4372 = vld [vmem:[#allocation4 + $0xb0] sm:$0xff]
        %v4373 = vld [vmem:[#allocation4 + $0xb8] sm:$0xff]
        %v4374 = vld [vmem:[#allocation4 + $0xc0] sm:$0xff]
        %v4375 = vld [vmem:[#allocation4 + $0xc8] sm:$0xff]
        %v4376 = vld [vmem:[#allocation4 + $0xd0] sm:$0xff]
        %v4377 = vld [vmem:[#allocation4 + $0xd8] sm:$0xff]
        %v4378 = vld [vmem:[#allocation4 + $0xe0] sm:$0xff]
        %v4379 = vld [vmem:[#allocation4 + $0xe8] sm:$0xff]
        %v4380 = vld [vmem:[#allocation4 + $0xf0] sm:$0xff]
        %v4381 = vld [vmem:[#allocation4 + $0xf8] sm:$0xff]
        %v4382 = vld [vmem:[#allocation6 + $0x200] sm:$0xff]
        %v4383 = vld [vmem:[#allocation6 + $0x208] sm:$0xff]
        %v4384 = vld [vmem:[#allocation6 + $0x210] sm:$0xff]
        %v4385 = vld [vmem:[#allocation6 + $0x218] sm:$0xff]
        %v4386 = vld [vmem:[#allocation6 + $0x220] sm:$0xff]
        %v4387 = vld [vmem:[#allocation6 + $0x228] sm:$0xff]
        %v4388 = vld [vmem:[#allocation6 + $0x230] sm:$0xff]
        %v4389 = vld [vmem:[#allocation6 + $0x238] sm:$0xff]
        %v4390 = vld [vmem:[#allocation6 + $0x240] sm:$0xff]
        %v4391 = vld [vmem:[#allocation6 + $0x248] sm:$0xff]
        %v4392 = vld [vmem:[#allocation6 + $0x250] sm:$0xff]
        %v4393 = vld [vmem:[#allocation6 + $0x258] sm:$0xff]
        %v4394 = vld [vmem:[#allocation6 + $0x260] sm:$0xff]
        %v4395 = vld [vmem:[#allocation6 + $0x268] sm:$0xff]
        %v4396 = vld [vmem:[#allocation6 + $0x270] sm:$0xff]
        %v4397 = vld [vmem:[#allocation6 + $0x278] sm:$0xff]
        %4398 = vmatpush.msra.mxu0 %v4397
        %4399 = vmatpush.msra.mxu0 %v4396
        %4400 = vmatpush.msra.mxu0 %v4395
        %4401 = vmatpush.msra.mxu0 %v4394
        %4402 = vmatpush.msra.mxu0 %v4393
        %4403 = vmatpush.msra.mxu0 %v4392
        %4404 = vmatpush.msra.mxu0 %v4391
        %4405 = vmatpush.msra.mxu0 %v4390
        %4406 = vmatpush.msra.mxu0 %v4389
        %4407 = vmatpush.msra.mxu0 %v4388
        %4408 = vmatpush.msra.mxu0 %v4387
        %4409 = vmatpush.msra.mxu0 %v4386
        %4410 = vmatpush.msra.mxu0 %v4385
        %4411 = vmatpush.msra.mxu0 %v4384
        %4412 = vmatpush.msra.mxu0 %v4383
        %4413 = vmatpush.msra.mxu0 %v4382
        %4414 = vmatmul.f32.gmra.mxu0 %v4318
        %v4415 = vpop.f32.mrf.mxu0
        %v4416 = vadd.f32 0.0, %v4415
        %4417 = vmatmul.f32.gmra.mxu0 %v4319
        %v4418 = vpop.f32.mrf.mxu0
        %v4419 = vadd.f32 0.0, %v4418
        %4420 = vmatmul.f32.gmra.mxu0 %v4320
        %v4421 = vpop.f32.mrf.mxu0
        %v4422 = vadd.f32 0.0, %v4421
        %4423 = vmatmul.f32.gmra.mxu0 %v4321
        %v4424 = vpop.f32.mrf.mxu0
        %v4425 = vadd.f32 0.0, %v4424
        %4426 = vmatmul.f32.gmra.mxu0 %v4322
        %v4427 = vpop.f32.mrf.mxu0
        %v4428 = vadd.f32 0.0, %v4427
        %4429 = vmatmul.f32.gmra.mxu0 %v4323
        %v4430 = vpop.f32.mrf.mxu0
        %v4431 = vadd.f32 0.0, %v4430
        %4432 = vmatmul.f32.gmra.mxu0 %v4324
        %v4433 = vpop.f32.mrf.mxu0
        %v4434 = vadd.f32 0.0, %v4433
        %4435 = vmatmul.f32.gmra.mxu0 %v4325
        %v4436 = vpop.f32.mrf.mxu0
        %v4437 = vadd.f32 0.0, %v4436
        %4438 = vmatmul.f32.gmra.mxu0 %v4326
        %v4439 = vpop.f32.mrf.mxu0
        %v4440 = vadd.f32 0.0, %v4439
        %4441 = vmatmul.f32.gmra.mxu0 %v4327
        %v4442 = vpop.f32.mrf.mxu0
        %v4443 = vadd.f32 0.0, %v4442
        %4444 = vmatmul.f32.gmra.mxu0 %v4328
        %v4445 = vpop.f32.mrf.mxu0
        %v4446 = vadd.f32 0.0, %v4445
        %4447 = vmatmul.f32.gmra.mxu0 %v4329
        %v4448 = vpop.f32.mrf.mxu0
        %v4449 = vadd.f32 0.0, %v4448
        %4450 = vmatmul.f32.gmra.mxu0 %v4330
        %v4451 = vpop.f32.mrf.mxu0
        %v4452 = vadd.f32 0.0, %v4451
        %4453 = vmatmul.f32.gmra.mxu0 %v4331
        %v4454 = vpop.f32.mrf.mxu0
        %v4455 = vadd.f32 0.0, %v4454
        %4456 = vmatmul.f32.gmra.mxu0 %v4332
        %v4457 = vpop.f32.mrf.mxu0
        %v4458 = vadd.f32 0.0, %v4457
        %4459 = vmatmul.f32.gmra.mxu0 %v4333
        %v4460 = vpop.f32.mrf.mxu0
        %v4461 = vadd.f32 0.0, %v4460
        %4462 = vmatmul.f32.gmra.mxu0 %v4334
        %v4463 = vpop.f32.mrf.mxu0
        %v4464 = vadd.f32 0.0, %v4463
        %4465 = vmatmul.f32.gmra.mxu0 %v4335
        %v4466 = vpop.f32.mrf.mxu0
        %v4467 = vadd.f32 0.0, %v4466
        %4468 = vmatmul.f32.gmra.mxu0 %v4336
        %v4469 = vpop.f32.mrf.mxu0
        %v4470 = vadd.f32 0.0, %v4469
        %4471 = vmatmul.f32.gmra.mxu0 %v4337
        %v4472 = vpop.f32.mrf.mxu0
        %v4473 = vadd.f32 0.0, %v4472
        %4474 = vmatmul.f32.gmra.mxu0 %v4338
        %v4475 = vpop.f32.mrf.mxu0
        %v4476 = vadd.f32 0.0, %v4475
        %4477 = vmatmul.f32.gmra.mxu0 %v4339
        %v4478 = vpop.f32.mrf.mxu0
        %v4479 = vadd.f32 0.0, %v4478
        %4480 = vmatmul.f32.gmra.mxu0 %v4340
        %v4481 = vpop.f32.mrf.mxu0
        %v4482 = vadd.f32 0.0, %v4481
        %4483 = vmatmul.f32.gmra.mxu0 %v4341
        %v4484 = vpop.f32.mrf.mxu0
        %v4485 = vadd.f32 0.0, %v4484
        %4486 = vmatmul.f32.gmra.mxu0 %v4342
        %v4487 = vpop.f32.mrf.mxu0
        %v4488 = vadd.f32 0.0, %v4487
        %4489 = vmatmul.f32.gmra.mxu0 %v4343
        %v4490 = vpop.f32.mrf.mxu0
        %v4491 = vadd.f32 0.0, %v4490
        %4492 = vmatmul.f32.gmra.mxu0 %v4344
        %v4493 = vpop.f32.mrf.mxu0
        %v4494 = vadd.f32 0.0, %v4493
        %4495 = vmatmul.f32.gmra.mxu0 %v4345
        %v4496 = vpop.f32.mrf.mxu0
        %v4497 = vadd.f32 0.0, %v4496
        %4498 = vmatmul.f32.gmra.mxu0 %v4346
        %v4499 = vpop.f32.mrf.mxu0
        %v4500 = vadd.f32 0.0, %v4499
        %4501 = vmatmul.f32.gmra.mxu0 %v4347
        %v4502 = vpop.f32.mrf.mxu0
        %v4503 = vadd.f32 0.0, %v4502
        %4504 = vmatmul.f32.gmra.mxu0 %v4348
        %v4505 = vpop.f32.mrf.mxu0
        %v4506 = vadd.f32 0.0, %v4505
        %4507 = vmatmul.f32.gmra.mxu0 %v4349
        %v4508 = vpop.f32.mrf.mxu0
        %v4509 = vadd.f32 0.0, %v4508
        %4510 = vdwg.mxu0
        %v4511 = vadd.f32 %v4350, %v4416
        %v4512 = vadd.f32 %v4351, %v4419
        %v4513 = vadd.f32 %v4352, %v4422
        %v4514 = vadd.f32 %v4353, %v4425
        %v4515 = vadd.f32 %v4354, %v4428
        %v4516 = vadd.f32 %v4355, %v4431
        %v4517 = vadd.f32 %v4356, %v4434
        %v4518 = vadd.f32 %v4357, %v4437
        %v4519 = vadd.f32 %v4358, %v4440
        %v4520 = vadd.f32 %v4359, %v4443
        %v4521 = vadd.f32 %v4360, %v4446
        %v4522 = vadd.f32 %v4361, %v4449
        %v4523 = vadd.f32 %v4362, %v4452
        %v4524 = vadd.f32 %v4363, %v4455
        %v4525 = vadd.f32 %v4364, %v4458
        %v4526 = vadd.f32 %v4365, %v4461
        %v4527 = vadd.f32 %v4366, %v4464
        %v4528 = vadd.f32 %v4367, %v4467
        %v4529 = vadd.f32 %v4368, %v4470
        %v4530 = vadd.f32 %v4369, %v4473
        %v4531 = vadd.f32 %v4370, %v4476
        %v4532 = vadd.f32 %v4371, %v4479
        %v4533 = vadd.f32 %v4372, %v4482
        %v4534 = vadd.f32 %v4373, %v4485
        %v4535 = vadd.f32 %v4374, %v4488
        %v4536 = vadd.f32 %v4375, %v4491
        %v4537 = vadd.f32 %v4376, %v4494
        %v4538 = vadd.f32 %v4377, %v4497
        %v4539 = vadd.f32 %v4378, %v4500
        %v4540 = vadd.f32 %v4379, %v4503
        %v4541 = vadd.f32 %v4380, %v4506
        %v4542 = vadd.f32 %v4381, %v4509
        %4543 = vst [vmem:[#allocation4] sm:$0xff] %v4511
        %4544 = vst [vmem:[#allocation4 + $0x8] sm:$0xff] %v4512
        %4545 = vst [vmem:[#allocation4 + $0x10] sm:$0xff] %v4513
        %4546 = vst [vmem:[#allocation4 + $0x18] sm:$0xff] %v4514
        %4547 = vst [vmem:[#allocation4 + $0x20] sm:$0xff] %v4515
        %4548 = vst [vmem:[#allocation4 + $0x28] sm:$0xff] %v4516
        %4549 = vst [vmem:[#allocation4 + $0x30] sm:$0xff] %v4517
        %4550 = vst [vmem:[#allocation4 + $0x38] sm:$0xff] %v4518
        %4551 = vst [vmem:[#allocation4 + $0x40] sm:$0xff] %v4519
        %4552 = vst [vmem:[#allocation4 + $0x48] sm:$0xff] %v4520
        %4553 = vst [vmem:[#allocation4 + $0x50] sm:$0xff] %v4521
        %4554 = vst [vmem:[#allocation4 + $0x58] sm:$0xff] %v4522
        %4555 = vst [vmem:[#allocation4 + $0x60] sm:$0xff] %v4523
        %4556 = vst [vmem:[#allocation4 + $0x68] sm:$0xff] %v4524
        %4557 = vst [vmem:[#allocation4 + $0x70] sm:$0xff] %v4525
        %4558 = vst [vmem:[#allocation4 + $0x78] sm:$0xff] %v4526
        %4559 = vst [vmem:[#allocation4 + $0x80] sm:$0xff] %v4527
        %4560 = vst [vmem:[#allocation4 + $0x88] sm:$0xff] %v4528
        %4561 = vst [vmem:[#allocation4 + $0x90] sm:$0xff] %v4529
        %4562 = vst [vmem:[#allocation4 + $0x98] sm:$0xff] %v4530
        %4563 = vst [vmem:[#allocation4 + $0xa0] sm:$0xff] %v4531
        %4564 = vst [vmem:[#allocation4 + $0xa8] sm:$0xff] %v4532
        %4565 = vst [vmem:[#allocation4 + $0xb0] sm:$0xff] %v4533
        %4566 = vst [vmem:[#allocation4 + $0xb8] sm:$0xff] %v4534
        %4567 = vst [vmem:[#allocation4 + $0xc0] sm:$0xff] %v4535
        %4568 = vst [vmem:[#allocation4 + $0xc8] sm:$0xff] %v4536
        %4569 = vst [vmem:[#allocation4 + $0xd0] sm:$0xff] %v4537
        %4570 = vst [vmem:[#allocation4 + $0xd8] sm:$0xff] %v4538
        %4571 = vst [vmem:[#allocation4 + $0xe0] sm:$0xff] %v4539
        %4572 = vst [vmem:[#allocation4 + $0xe8] sm:$0xff] %v4540
        %4573 = vst [vmem:[#allocation4 + $0xf0] sm:$0xff] %v4541
        %4574 = vst [vmem:[#allocation4 + $0xf8] sm:$0xff] %v4542
        %v4575 = vld [vmem:[%s4060 + $0x2] sm:$0xff]
        %v4576 = vld [vmem:[%s4060 + $0xa] sm:$0xff]
        %v4577 = vld [vmem:[%s4060 + $0x1a] sm:$0xff]
        %v4578 = vld [vmem:[%s4060 + $0x22] sm:$0xff]
        %v4579 = vld [vmem:[%s4060 + $0x32] sm:$0xff]
        %v4580 = vld [vmem:[%s4060 + $0x3a] sm:$0xff]
        %v4581 = vld [vmem:[%s4060 + $0x4a] sm:$0xff]
        %v4582 = vld [vmem:[%s4060 + $0x52] sm:$0xff]
        %v4583 = vld [vmem:[%s4060 + $0x62] sm:$0xff]
        %v4584 = vld [vmem:[%s4060 + $0x6a] sm:$0xff]
        %v4585 = vld [vmem:[%s4060 + $0x7a] sm:$0xff]
        %v4586 = vld [vmem:[%s4060 + $0x82] sm:$0xff]
        %v4587 = vld [vmem:[%s4060 + $0x92] sm:$0xff]
        %v4588 = vld [vmem:[%s4060 + $0x9a] sm:$0xff]
        %v4589 = vld [vmem:[%s4060 + $0xaa] sm:$0xff]
        %v4590 = vld [vmem:[%s4060 + $0xb2] sm:$0xff]
        %v4591 = vld [vmem:[%s4060 + $0xc2] sm:$0xff]
        %v4592 = vld [vmem:[%s4060 + $0xca] sm:$0xff]
        %v4593 = vld [vmem:[%s4060 + $0xda] sm:$0xff]
        %v4594 = vld [vmem:[%s4060 + $0xe2] sm:$0xff]
        %v4595 = vld [vmem:[%s4060 + $0xf2] sm:$0xff]
        %v4596 = vld [vmem:[%s4060 + $0xfa] sm:$0xff]
        %v4597 = vld [vmem:[%s4060 + $0x10a] sm:$0xff]
        %v4598 = vld [vmem:[%s4060 + $0x112] sm:$0xff]
        %v4599 = vld [vmem:[%s4060 + $0x122] sm:$0xff]
        %v4600 = vld [vmem:[%s4060 + $0x12a] sm:$0xff]
        %v4601 = vld [vmem:[%s4060 + $0x13a] sm:$0xff]
        %v4602 = vld [vmem:[%s4060 + $0x142] sm:$0xff]
        %v4603 = vld [vmem:[%s4060 + $0x152] sm:$0xff]
        %v4604 = vld [vmem:[%s4060 + $0x15a] sm:$0xff]
        %v4605 = vld [vmem:[%s4060 + $0x16a] sm:$0xff]
        %v4606 = vld [vmem:[%s4060 + $0x172] sm:$0xff]
        %v4607 = vld [vmem:[#allocation4] sm:$0xff]
        %v4608 = vld [vmem:[#allocation4 + $0x8] sm:$0xff]
        %v4609 = vld [vmem:[#allocation4 + $0x10] sm:$0xff]
        %v4610 = vld [vmem:[#allocation4 + $0x18] sm:$0xff]
        %v4611 = vld [vmem:[#allocation4 + $0x20] sm:$0xff]
        %v4612 = vld [vmem:[#allocation4 + $0x28] sm:$0xff]
        %v4613 = vld [vmem:[#allocation4 + $0x30] sm:$0xff]
        %v4614 = vld [vmem:[#allocation4 + $0x38] sm:$0xff]
        %v4615 = vld [vmem:[#allocation4 + $0x40] sm:$0xff]
        %v4616 = vld [vmem:[#allocation4 + $0x48] sm:$0xff]
        %v4617 = vld [vmem:[#allocation4 + $0x50] sm:$0xff]
        %v4618 = vld [vmem:[#allocation4 + $0x58] sm:$0xff]
        %v4619 = vld [vmem:[#allocation4 + $0x60] sm:$0xff]
        %v4620 = vld [vmem:[#allocation4 + $0x68] sm:$0xff]
        %v4621 = vld [vmem:[#allocation4 + $0x70] sm:$0xff]
        %v4622 = vld [vmem:[#allocation4 + $0x78] sm:$0xff]
        %v4623 = vld [vmem:[#allocation4 + $0x80] sm:$0xff]
        %v4624 = vld [vmem:[#allocation4 + $0x88] sm:$0xff]
        %v4625 = vld [vmem:[#allocation4 + $0x90] sm:$0xff]
        %v4626 = vld [vmem:[#allocation4 + $0x98] sm:$0xff]
        %v4627 = vld [vmem:[#allocation4 + $0xa0] sm:$0xff]
        %v4628 = vld [vmem:[#allocation4 + $0xa8] sm:$0xff]
        %v4629 = vld [vmem:[#allocation4 + $0xb0] sm:$0xff]
        %v4630 = vld [vmem:[#allocation4 + $0xb8] sm:$0xff]
        %v4631 = vld [vmem:[#allocation4 + $0xc0] sm:$0xff]
        %v4632 = vld [vmem:[#allocation4 + $0xc8] sm:$0xff]
        %v4633 = vld [vmem:[#allocation4 + $0xd0] sm:$0xff]
        %v4634 = vld [vmem:[#allocation4 + $0xd8] sm:$0xff]
        %v4635 = vld [vmem:[#allocation4 + $0xe0] sm:$0xff]
        %v4636 = vld [vmem:[#allocation4 + $0xe8] sm:$0xff]
        %v4637 = vld [vmem:[#allocation4 + $0xf0] sm:$0xff]
        %v4638 = vld [vmem:[#allocation4 + $0xf8] sm:$0xff]
        %v4639 = vld [vmem:[#allocation6 + $0x280] sm:$0xff]
        %v4640 = vld [vmem:[#allocation6 + $0x288] sm:$0xff]
        %v4641 = vld [vmem:[#allocation6 + $0x290] sm:$0xff]
        %v4642 = vld [vmem:[#allocation6 + $0x298] sm:$0xff]
        %v4643 = vld [vmem:[#allocation6 + $0x2a0] sm:$0xff]
        %v4644 = vld [vmem:[#allocation6 + $0x2a8] sm:$0xff]
        %v4645 = vld [vmem:[#allocation6 + $0x2b0] sm:$0xff]
        %v4646 = vld [vmem:[#allocation6 + $0x2b8] sm:$0xff]
        %v4647 = vld [vmem:[#allocation6 + $0x2c0] sm:$0xff]
        %v4648 = vld [vmem:[#allocation6 + $0x2c8] sm:$0xff]
        %v4649 = vld [vmem:[#allocation6 + $0x2d0] sm:$0xff]
        %v4650 = vld [vmem:[#allocation6 + $0x2d8] sm:$0xff]
        %v4651 = vld [vmem:[#allocation6 + $0x2e0] sm:$0xff]
        %v4652 = vld [vmem:[#allocation6 + $0x2e8] sm:$0xff]
        %v4653 = vld [vmem:[#allocation6 + $0x2f0] sm:$0xff]
        %v4654 = vld [vmem:[#allocation6 + $0x2f8] sm:$0xff]
        %4655 = vmatpush.msra.mxu0 %v4654
        %4656 = vmatpush.msra.mxu0 %v4653
        %4657 = vmatpush.msra.mxu0 %v4652
        %4658 = vmatpush.msra.mxu0 %v4651
        %4659 = vmatpush.msra.mxu0 %v4650
        %4660 = vmatpush.msra.mxu0 %v4649
        %4661 = vmatpush.msra.mxu0 %v4648
        %4662 = vmatpush.msra.mxu0 %v4647
        %4663 = vmatpush.msra.mxu0 %v4646
        %4664 = vmatpush.msra.mxu0 %v4645
        %4665 = vmatpush.msra.mxu0 %v4644
        %4666 = vmatpush.msra.mxu0 %v4643
        %4667 = vmatpush.msra.mxu0 %v4642
        %4668 = vmatpush.msra.mxu0 %v4641
        %4669 = vmatpush.msra.mxu0 %v4640
        %4670 = vmatpush.msra.mxu0 %v4639
        %4671 = vmatmul.f32.gmra.mxu0 %v4575
        %v4672 = vpop.f32.mrf.mxu0
        %v4673 = vadd.f32 0.0, %v4672
        %4674 = vmatmul.f32.gmra.mxu0 %v4576
        %v4675 = vpop.f32.mrf.mxu0
        %v4676 = vadd.f32 0.0, %v4675
        %4677 = vmatmul.f32.gmra.mxu0 %v4577
        %v4678 = vpop.f32.mrf.mxu0
        %v4679 = vadd.f32 0.0, %v4678
        %4680 = vmatmul.f32.gmra.mxu0 %v4578
        %v4681 = vpop.f32.mrf.mxu0
        %v4682 = vadd.f32 0.0, %v4681
        %4683 = vmatmul.f32.gmra.mxu0 %v4579
        %v4684 = vpop.f32.mrf.mxu0
        %v4685 = vadd.f32 0.0, %v4684
        %4686 = vmatmul.f32.gmra.mxu0 %v4580
        %v4687 = vpop.f32.mrf.mxu0
        %v4688 = vadd.f32 0.0, %v4687
        %4689 = vmatmul.f32.gmra.mxu0 %v4581
        %v4690 = vpop.f32.mrf.mxu0
        %v4691 = vadd.f32 0.0, %v4690
        %4692 = vmatmul.f32.gmra.mxu0 %v4582
        %v4693 = vpop.f32.mrf.mxu0
        %v4694 = vadd.f32 0.0, %v4693
        %4695 = vmatmul.f32.gmra.mxu0 %v4583
        %v4696 = vpop.f32.mrf.mxu0
        %v4697 = vadd.f32 0.0, %v4696
        %4698 = vmatmul.f32.gmra.mxu0 %v4584
        %v4699 = vpop.f32.mrf.mxu0
        %v4700 = vadd.f32 0.0, %v4699
        %4701 = vmatmul.f32.gmra.mxu0 %v4585
        %v4702 = vpop.f32.mrf.mxu0
        %v4703 = vadd.f32 0.0, %v4702
        %4704 = vmatmul.f32.gmra.mxu0 %v4586
        %v4705 = vpop.f32.mrf.mxu0
        %v4706 = vadd.f32 0.0, %v4705
        %4707 = vmatmul.f32.gmra.mxu0 %v4587
        %v4708 = vpop.f32.mrf.mxu0
        %v4709 = vadd.f32 0.0, %v4708
        %4710 = vmatmul.f32.gmra.mxu0 %v4588
        %v4711 = vpop.f32.mrf.mxu0
        %v4712 = vadd.f32 0.0, %v4711
        %4713 = vmatmul.f32.gmra.mxu0 %v4589
        %v4714 = vpop.f32.mrf.mxu0
        %v4715 = vadd.f32 0.0, %v4714
        %4716 = vmatmul.f32.gmra.mxu0 %v4590
        %v4717 = vpop.f32.mrf.mxu0
        %v4718 = vadd.f32 0.0, %v4717
        %4719 = vmatmul.f32.gmra.mxu0 %v4591
        %v4720 = vpop.f32.mrf.mxu0
        %v4721 = vadd.f32 0.0, %v4720
        %4722 = vmatmul.f32.gmra.mxu0 %v4592
        %v4723 = vpop.f32.mrf.mxu0
        %v4724 = vadd.f32 0.0, %v4723
        %4725 = vmatmul.f32.gmra.mxu0 %v4593
        %v4726 = vpop.f32.mrf.mxu0
        %v4727 = vadd.f32 0.0, %v4726
        %4728 = vmatmul.f32.gmra.mxu0 %v4594
        %v4729 = vpop.f32.mrf.mxu0
        %v4730 = vadd.f32 0.0, %v4729
        %4731 = vmatmul.f32.gmra.mxu0 %v4595
        %v4732 = vpop.f32.mrf.mxu0
        %v4733 = vadd.f32 0.0, %v4732
        %4734 = vmatmul.f32.gmra.mxu0 %v4596
        %v4735 = vpop.f32.mrf.mxu0
        %v4736 = vadd.f32 0.0, %v4735
        %4737 = vmatmul.f32.gmra.mxu0 %v4597
        %v4738 = vpop.f32.mrf.mxu0
        %v4739 = vadd.f32 0.0, %v4738
        %4740 = vmatmul.f32.gmra.mxu0 %v4598
        %v4741 = vpop.f32.mrf.mxu0
        %v4742 = vadd.f32 0.0, %v4741
        %4743 = vmatmul.f32.gmra.mxu0 %v4599
        %v4744 = vpop.f32.mrf.mxu0
        %v4745 = vadd.f32 0.0, %v4744
        %4746 = vmatmul.f32.gmra.mxu0 %v4600
        %v4747 = vpop.f32.mrf.mxu0
        %v4748 = vadd.f32 0.0, %v4747
        %4749 = vmatmul.f32.gmra.mxu0 %v4601
        %v4750 = vpop.f32.mrf.mxu0
        %v4751 = vadd.f32 0.0, %v4750
        %4752 = vmatmul.f32.gmra.mxu0 %v4602
        %v4753 = vpop.f32.mrf.mxu0
        %v4754 = vadd.f32 0.0, %v4753
        %4755 = vmatmul.f32.gmra.mxu0 %v4603
        %v4756 = vpop.f32.mrf.mxu0
        %v4757 = vadd.f32 0.0, %v4756
        %4758 = vmatmul.f32.gmra.mxu0 %v4604
        %v4759 = vpop.f32.mrf.mxu0
        %v4760 = vadd.f32 0.0, %v4759
        %4761 = vmatmul.f32.gmra.mxu0 %v4605
        %v4762 = vpop.f32.mrf.mxu0
        %v4763 = vadd.f32 0.0, %v4762
        %4764 = vmatmul.f32.gmra.mxu0 %v4606
        %v4765 = vpop.f32.mrf.mxu0
        %v4766 = vadd.f32 0.0, %v4765
        %4767 = vdwg.mxu0
        %v4768 = vadd.f32 %v4607, %v4673
        %v4769 = vadd.f32 %v4608, %v4676
        %v4770 = vadd.f32 %v4609, %v4679
        %v4771 = vadd.f32 %v4610, %v4682
        %v4772 = vadd.f32 %v4611, %v4685
        %v4773 = vadd.f32 %v4612, %v4688
        %v4774 = vadd.f32 %v4613, %v4691
        %v4775 = vadd.f32 %v4614, %v4694
        %v4776 = vadd.f32 %v4615, %v4697
        %v4777 = vadd.f32 %v4616, %v4700
        %v4778 = vadd.f32 %v4617, %v4703
        %v4779 = vadd.f32 %v4618, %v4706
        %v4780 = vadd.f32 %v4619, %v4709
        %v4781 = vadd.f32 %v4620, %v4712
        %v4782 = vadd.f32 %v4621, %v4715
        %v4783 = vadd.f32 %v4622, %v4718
        %v4784 = vadd.f32 %v4623, %v4721
        %v4785 = vadd.f32 %v4624, %v4724
        %v4786 = vadd.f32 %v4625, %v4727
        %v4787 = vadd.f32 %v4626, %v4730
        %v4788 = vadd.f32 %v4627, %v4733
        %v4789 = vadd.f32 %v4628, %v4736
        %v4790 = vadd.f32 %v4629, %v4739
        %v4791 = vadd.f32 %v4630, %v4742
        %v4792 = vadd.f32 %v4631, %v4745
        %v4793 = vadd.f32 %v4632, %v4748
        %v4794 = vadd.f32 %v4633, %v4751
        %v4795 = vadd.f32 %v4634, %v4754
        %v4796 = vadd.f32 %v4635, %v4757
        %v4797 = vadd.f32 %v4636, %v4760
        %v4798 = vadd.f32 %v4637, %v4763
        %v4799 = vadd.f32 %v4638, %v4766
        %4800 = vst [vmem:[#allocation4] sm:$0xff] %v4768
        %4801 = vst [vmem:[#allocation4 + $0x8] sm:$0xff] %v4769
        %4802 = vst [vmem:[#allocation4 + $0x10] sm:$0xff] %v4770
        %4803 = vst [vmem:[#allocation4 + $0x18] sm:$0xff] %v4771
        %4804 = vst [vmem:[#allocation4 + $0x20] sm:$0xff] %v4772
        %4805 = vst [vmem:[#allocation4 + $0x28] sm:$0xff] %v4773
        %4806 = vst [vmem:[#allocation4 + $0x30] sm:$0xff] %v4774
        %4807 = vst [vmem:[#allocation4 + $0x38] sm:$0xff] %v4775
        %4808 = vst [vmem:[#allocation4 + $0x40] sm:$0xff] %v4776
        %4809 = vst [vmem:[#allocation4 + $0x48] sm:$0xff] %v4777
        %4810 = vst [vmem:[#allocation4 + $0x50] sm:$0xff] %v4778
        %4811 = vst [vmem:[#allocation4 + $0x58] sm:$0xff] %v4779
        %4812 = vst [vmem:[#allocation4 + $0x60] sm:$0xff] %v4780
        %4813 = vst [vmem:[#allocation4 + $0x68] sm:$0xff] %v4781
        %4814 = vst [vmem:[#allocation4 + $0x70] sm:$0xff] %v4782
        %4815 = vst [vmem:[#allocation4 + $0x78] sm:$0xff] %v4783
        %4816 = vst [vmem:[#allocation4 + $0x80] sm:$0xff] %v4784
        %4817 = vst [vmem:[#allocation4 + $0x88] sm:$0xff] %v4785
        %4818 = vst [vmem:[#allocation4 + $0x90] sm:$0xff] %v4786
        %4819 = vst [vmem:[#allocation4 + $0x98] sm:$0xff] %v4787
        %4820 = vst [vmem:[#allocation4 + $0xa0] sm:$0xff] %v4788
        %4821 = vst [vmem:[#allocation4 + $0xa8] sm:$0xff] %v4789
        %4822 = vst [vmem:[#allocation4 + $0xb0] sm:$0xff] %v4790
        %4823 = vst [vmem:[#allocation4 + $0xb8] sm:$0xff] %v4791
        %4824 = vst [vmem:[#allocation4 + $0xc0] sm:$0xff] %v4792
        %4825 = vst [vmem:[#allocation4 + $0xc8] sm:$0xff] %v4793
        %4826 = vst [vmem:[#allocation4 + $0xd0] sm:$0xff] %v4794
        %4827 = vst [vmem:[#allocation4 + $0xd8] sm:$0xff] %v4795
        %4828 = vst [vmem:[#allocation4 + $0xe0] sm:$0xff] %v4796
        %4829 = vst [vmem:[#allocation4 + $0xe8] sm:$0xff] %v4797
        %4830 = vst [vmem:[#allocation4 + $0xf0] sm:$0xff] %v4798
        %4831 = vst [vmem:[#allocation4 + $0xf8] sm:$0xff] %v4799
        %s4832 = scalar_lea.vmem [#allocation3], 48
        %v4833 = vld [vmem:[%s4832] sm:$0xff]
        %v4834 = vld [vmem:[%s4832 + $0x8] sm:$0xff]
        %v4835 = vld [vmem:[%s4832 + $0x18] sm:$0xff]
        %v4836 = vld [vmem:[%s4832 + $0x20] sm:$0xff]
        %v4837 = vld [vmem:[%s4832 + $0x30] sm:$0xff]
        %v4838 = vld [vmem:[%s4832 + $0x38] sm:$0xff]
        %v4839 = vld [vmem:[%s4832 + $0x48] sm:$0xff]
        %v4840 = vld [vmem:[%s4832 + $0x50] sm:$0xff]
        %v4841 = vld [vmem:[%s4832 + $0x60] sm:$0xff]
        %v4842 = vld [vmem:[%s4832 + $0x68] sm:$0xff]
        %v4843 = vld [vmem:[%s4832 + $0x78] sm:$0xff]
        %v4844 = vld [vmem:[%s4832 + $0x80] sm:$0xff]
        %v4845 = vld [vmem:[%s4832 + $0x90] sm:$0xff]
        %v4846 = vld [vmem:[%s4832 + $0x98] sm:$0xff]
        %v4847 = vld [vmem:[%s4832 + $0xa8] sm:$0xff]
        %v4848 = vld [vmem:[%s4832 + $0xb0] sm:$0xff]
        %v4849 = vld [vmem:[%s4832 + $0xc0] sm:$0xff]
        %v4850 = vld [vmem:[%s4832 + $0xc8] sm:$0xff]
        %v4851 = vld [vmem:[%s4832 + $0xd8] sm:$0xff]
        %v4852 = vld [vmem:[%s4832 + $0xe0] sm:$0xff]
        %v4853 = vld [vmem:[%s4832 + $0xf0] sm:$0xff]
        %v4854 = vld [vmem:[%s4832 + $0xf8] sm:$0xff]
        %v4855 = vld [vmem:[%s4832 + $0x108] sm:$0xff]
        %v4856 = vld [vmem:[%s4832 + $0x110] sm:$0xff]
        %v4857 = vld [vmem:[%s4832 + $0x120] sm:$0xff]
        %v4858 = vld [vmem:[%s4832 + $0x128] sm:$0xff]
        %v4859 = vld [vmem:[%s4832 + $0x138] sm:$0xff]
        %v4860 = vld [vmem:[%s4832 + $0x140] sm:$0xff]
        %v4861 = vld [vmem:[%s4832 + $0x150] sm:$0xff]
        %v4862 = vld [vmem:[%s4832 + $0x158] sm:$0xff]
        %v4863 = vld [vmem:[%s4832 + $0x168] sm:$0xff]
        %v4864 = vld [vmem:[%s4832 + $0x170] sm:$0xff]
        %v4865 = vld [vmem:[#allocation4] sm:$0xff]
        %v4866 = vld [vmem:[#allocation4 + $0x8] sm:$0xff]
        %v4867 = vld [vmem:[#allocation4 + $0x10] sm:$0xff]
        %v4868 = vld [vmem:[#allocation4 + $0x18] sm:$0xff]
        %v4869 = vld [vmem:[#allocation4 + $0x20] sm:$0xff]
        %v4870 = vld [vmem:[#allocation4 + $0x28] sm:$0xff]
        %v4871 = vld [vmem:[#allocation4 + $0x30] sm:$0xff]
        %v4872 = vld [vmem:[#allocation4 + $0x38] sm:$0xff]
        %v4873 = vld [vmem:[#allocation4 + $0x40] sm:$0xff]
        %v4874 = vld [vmem:[#allocation4 + $0x48] sm:$0xff]
        %v4875 = vld [vmem:[#allocation4 + $0x50] sm:$0xff]
        %v4876 = vld [vmem:[#allocation4 + $0x58] sm:$0xff]
        %v4877 = vld [vmem:[#allocation4 + $0x60] sm:$0xff]
        %v4878 = vld [vmem:[#allocation4 + $0x68] sm:$0xff]
        %v4879 = vld [vmem:[#allocation4 + $0x70] sm:$0xff]
        %v4880 = vld [vmem:[#allocation4 + $0x78] sm:$0xff]
        %v4881 = vld [vmem:[#allocation4 + $0x80] sm:$0xff]
        %v4882 = vld [vmem:[#allocation4 + $0x88] sm:$0xff]
        %v4883 = vld [vmem:[#allocation4 + $0x90] sm:$0xff]
        %v4884 = vld [vmem:[#allocation4 + $0x98] sm:$0xff]
        %v4885 = vld [vmem:[#allocation4 + $0xa0] sm:$0xff]
        %v4886 = vld [vmem:[#allocation4 + $0xa8] sm:$0xff]
        %v4887 = vld [vmem:[#allocation4 + $0xb0] sm:$0xff]
        %v4888 = vld [vmem:[#allocation4 + $0xb8] sm:$0xff]
        %v4889 = vld [vmem:[#allocation4 + $0xc0] sm:$0xff]
        %v4890 = vld [vmem:[#allocation4 + $0xc8] sm:$0xff]
        %v4891 = vld [vmem:[#allocation4 + $0xd0] sm:$0xff]
        %v4892 = vld [vmem:[#allocation4 + $0xd8] sm:$0xff]
        %v4893 = vld [vmem:[#allocation4 + $0xe0] sm:$0xff]
        %v4894 = vld [vmem:[#allocation4 + $0xe8] sm:$0xff]
        %v4895 = vld [vmem:[#allocation4 + $0xf0] sm:$0xff]
        %v4896 = vld [vmem:[#allocation4 + $0xf8] sm:$0xff]
        %v4897 = vld [vmem:[#allocation6 + $0x300] sm:$0xff]
        %v4898 = vld [vmem:[#allocation6 + $0x308] sm:$0xff]
        %v4899 = vld [vmem:[#allocation6 + $0x310] sm:$0xff]
        %v4900 = vld [vmem:[#allocation6 + $0x318] sm:$0xff]
        %v4901 = vld [vmem:[#allocation6 + $0x320] sm:$0xff]
        %v4902 = vld [vmem:[#allocation6 + $0x328] sm:$0xff]
        %v4903 = vld [vmem:[#allocation6 + $0x330] sm:$0xff]
        %v4904 = vld [vmem:[#allocation6 + $0x338] sm:$0xff]
        %v4905 = vld [vmem:[#allocation6 + $0x340] sm:$0xff]
        %v4906 = vld [vmem:[#allocation6 + $0x348] sm:$0xff]
        %v4907 = vld [vmem:[#allocation6 + $0x350] sm:$0xff]
        %v4908 = vld [vmem:[#allocation6 + $0x358] sm:$0xff]
        %v4909 = vld [vmem:[#allocation6 + $0x360] sm:$0xff]
        %v4910 = vld [vmem:[#allocation6 + $0x368] sm:$0xff]
        %v4911 = vld [vmem:[#allocation6 + $0x370] sm:$0xff]
        %v4912 = vld [vmem:[#allocation6 + $0x378] sm:$0xff]
        %4913 = vmatpush.msra.mxu0 %v4912
        %4914 = vmatpush.msra.mxu0 %v4911
        %4915 = vmatpush.msra.mxu0 %v4910
        %4916 = vmatpush.msra.mxu0 %v4909
        %4917 = vmatpush.msra.mxu0 %v4908
        %4918 = vmatpush.msra.mxu0 %v4907
        %4919 = vmatpush.msra.mxu0 %v4906
        %4920 = vmatpush.msra.mxu0 %v4905
        %4921 = vmatpush.msra.mxu0 %v4904
        %4922 = vmatpush.msra.mxu0 %v4903
        %4923 = vmatpush.msra.mxu0 %v4902
        %4924 = vmatpush.msra.mxu0 %v4901
        %4925 = vmatpush.msra.mxu0 %v4900
        %4926 = vmatpush.msra.mxu0 %v4899
        %4927 = vmatpush.msra.mxu0 %v4898
        %4928 = vmatpush.msra.mxu0 %v4897
        %4929 = vmatmul.f32.gmra.mxu0 %v4833
        %v4930 = vpop.f32.mrf.mxu0
        %v4931 = vadd.f32 0.0, %v4930
        %4932 = vmatmul.f32.gmra.mxu0 %v4834
        %v4933 = vpop.f32.mrf.mxu0
        %v4934 = vadd.f32 0.0, %v4933
        %4935 = vmatmul.f32.gmra.mxu0 %v4835
        %v4936 = vpop.f32.mrf.mxu0
        %v4937 = vadd.f32 0.0, %v4936
        %4938 = vmatmul.f32.gmra.mxu0 %v4836
        %v4939 = vpop.f32.mrf.mxu0
        %v4940 = vadd.f32 0.0, %v4939
        %4941 = vmatmul.f32.gmra.mxu0 %v4837
        %v4942 = vpop.f32.mrf.mxu0
        %v4943 = vadd.f32 0.0, %v4942
        %4944 = vmatmul.f32.gmra.mxu0 %v4838
        %v4945 = vpop.f32.mrf.mxu0
        %v4946 = vadd.f32 0.0, %v4945
        %4947 = vmatmul.f32.gmra.mxu0 %v4839
        %v4948 = vpop.f32.mrf.mxu0
        %v4949 = vadd.f32 0.0, %v4948
        %4950 = vmatmul.f32.gmra.mxu0 %v4840
        %v4951 = vpop.f32.mrf.mxu0
        %v4952 = vadd.f32 0.0, %v4951
        %4953 = vmatmul.f32.gmra.mxu0 %v4841
        %v4954 = vpop.f32.mrf.mxu0
        %v4955 = vadd.f32 0.0, %v4954
        %4956 = vmatmul.f32.gmra.mxu0 %v4842
        %v4957 = vpop.f32.mrf.mxu0
        %v4958 = vadd.f32 0.0, %v4957
        %4959 = vmatmul.f32.gmra.mxu0 %v4843
        %v4960 = vpop.f32.mrf.mxu0
        %v4961 = vadd.f32 0.0, %v4960
        %4962 = vmatmul.f32.gmra.mxu0 %v4844
        %v4963 = vpop.f32.mrf.mxu0
        %v4964 = vadd.f32 0.0, %v4963
        %4965 = vmatmul.f32.gmra.mxu0 %v4845
        %v4966 = vpop.f32.mrf.mxu0
        %v4967 = vadd.f32 0.0, %v4966
        %4968 = vmatmul.f32.gmra.mxu0 %v4846
        %v4969 = vpop.f32.mrf.mxu0
        %v4970 = vadd.f32 0.0, %v4969
        %4971 = vmatmul.f32.gmra.mxu0 %v4847
        %v4972 = vpop.f32.mrf.mxu0
        %v4973 = vadd.f32 0.0, %v4972
        %4974 = vmatmul.f32.gmra.mxu0 %v4848
        %v4975 = vpop.f32.mrf.mxu0
        %v4976 = vadd.f32 0.0, %v4975
        %4977 = vmatmul.f32.gmra.mxu0 %v4849
        %v4978 = vpop.f32.mrf.mxu0
        %v4979 = vadd.f32 0.0, %v4978
        %4980 = vmatmul.f32.gmra.mxu0 %v4850
        %v4981 = vpop.f32.mrf.mxu0
        %v4982 = vadd.f32 0.0, %v4981
        %4983 = vmatmul.f32.gmra.mxu0 %v4851
        %v4984 = vpop.f32.mrf.mxu0
        %v4985 = vadd.f32 0.0, %v4984
        %4986 = vmatmul.f32.gmra.mxu0 %v4852
        %v4987 = vpop.f32.mrf.mxu0
        %v4988 = vadd.f32 0.0, %v4987
        %4989 = vmatmul.f32.gmra.mxu0 %v4853
        %v4990 = vpop.f32.mrf.mxu0
        %v4991 = vadd.f32 0.0, %v4990
        %4992 = vmatmul.f32.gmra.mxu0 %v4854
        %v4993 = vpop.f32.mrf.mxu0
        %v4994 = vadd.f32 0.0, %v4993
        %4995 = vmatmul.f32.gmra.mxu0 %v4855
        %v4996 = vpop.f32.mrf.mxu0
        %v4997 = vadd.f32 0.0, %v4996
        %4998 = vmatmul.f32.gmra.mxu0 %v4856
        %v4999 = vpop.f32.mrf.mxu0
        %v5000 = vadd.f32 0.0, %v4999
        %5001 = vmatmul.f32.gmra.mxu0 %v4857
        %v5002 = vpop.f32.mrf.mxu0
        %v5003 = vadd.f32 0.0, %v5002
        %5004 = vmatmul.f32.gmra.mxu0 %v4858
        %v5005 = vpop.f32.mrf.mxu0
        %v5006 = vadd.f32 0.0, %v5005
        %5007 = vmatmul.f32.gmra.mxu0 %v4859
        %v5008 = vpop.f32.mrf.mxu0
        %v5009 = vadd.f32 0.0, %v5008
        %5010 = vmatmul.f32.gmra.mxu0 %v4860
        %v5011 = vpop.f32.mrf.mxu0
        %v5012 = vadd.f32 0.0, %v5011
        %5013 = vmatmul.f32.gmra.mxu0 %v4861
        %v5014 = vpop.f32.mrf.mxu0
        %v5015 = vadd.f32 0.0, %v5014
        %5016 = vmatmul.f32.gmra.mxu0 %v4862
        %v5017 = vpop.f32.mrf.mxu0
        %v5018 = vadd.f32 0.0, %v5017
        %5019 = vmatmul.f32.gmra.mxu0 %v4863
        %v5020 = vpop.f32.mrf.mxu0
        %v5021 = vadd.f32 0.0, %v5020
        %5022 = vmatmul.f32.gmra.mxu0 %v4864
        %v5023 = vpop.f32.mrf.mxu0
        %v5024 = vadd.f32 0.0, %v5023
        %5025 = vdwg.mxu0
        %v5026 = vadd.f32 %v4865, %v4931
        %v5027 = vadd.f32 %v4866, %v4934
        %v5028 = vadd.f32 %v4867, %v4937
        %v5029 = vadd.f32 %v4868, %v4940
        %v5030 = vadd.f32 %v4869, %v4943
        %v5031 = vadd.f32 %v4870, %v4946
        %v5032 = vadd.f32 %v4871, %v4949
        %v5033 = vadd.f32 %v4872, %v4952
        %v5034 = vadd.f32 %v4873, %v4955
        %v5035 = vadd.f32 %v4874, %v4958
        %v5036 = vadd.f32 %v4875, %v4961
        %v5037 = vadd.f32 %v4876, %v4964
        %v5038 = vadd.f32 %v4877, %v4967
        %v5039 = vadd.f32 %v4878, %v4970
        %v5040 = vadd.f32 %v4879, %v4973
        %v5041 = vadd.f32 %v4880, %v4976
        %v5042 = vadd.f32 %v4881, %v4979
        %v5043 = vadd.f32 %v4882, %v4982
        %v5044 = vadd.f32 %v4883, %v4985
        %v5045 = vadd.f32 %v4884, %v4988
        %v5046 = vadd.f32 %v4885, %v4991
        %v5047 = vadd.f32 %v4886, %v4994
        %v5048 = vadd.f32 %v4887, %v4997
        %v5049 = vadd.f32 %v4888, %v5000
        %v5050 = vadd.f32 %v4889, %v5003
        %v5051 = vadd.f32 %v4890, %v5006
        %v5052 = vadd.f32 %v4891, %v5009
        %v5053 = vadd.f32 %v4892, %v5012
        %v5054 = vadd.f32 %v4893, %v5015
        %v5055 = vadd.f32 %v4894, %v5018
        %v5056 = vadd.f32 %v4895, %v5021
        %v5057 = vadd.f32 %v4896, %v5024
        %5058 = vst [vmem:[#allocation4] sm:$0xff] %v5026
        %5059 = vst [vmem:[#allocation4 + $0x8] sm:$0xff] %v5027
        %5060 = vst [vmem:[#allocation4 + $0x10] sm:$0xff] %v5028
        %5061 = vst [vmem:[#allocation4 + $0x18] sm:$0xff] %v5029
        %5062 = vst [vmem:[#allocation4 + $0x20] sm:$0xff] %v5030
        %5063 = vst [vmem:[#allocation4 + $0x28] sm:$0xff] %v5031
        %5064 = vst [vmem:[#allocation4 + $0x30] sm:$0xff] %v5032
        %5065 = vst [vmem:[#allocation4 + $0x38] sm:$0xff] %v5033
        %5066 = vst [vmem:[#allocation4 + $0x40] sm:$0xff] %v5034
        %5067 = vst [vmem:[#allocation4 + $0x48] sm:$0xff] %v5035
        %5068 = vst [vmem:[#allocation4 + $0x50] sm:$0xff] %v5036
        %5069 = vst [vmem:[#allocation4 + $0x58] sm:$0xff] %v5037
        %5070 = vst [vmem:[#allocation4 + $0x60] sm:$0xff] %v5038
        %5071 = vst [vmem:[#allocation4 + $0x68] sm:$0xff] %v5039
        %5072 = vst [vmem:[#allocation4 + $0x70] sm:$0xff] %v5040
        %5073 = vst [vmem:[#allocation4 + $0x78] sm:$0xff] %v5041
        %5074 = vst [vmem:[#allocation4 + $0x80] sm:$0xff] %v5042
        %5075 = vst [vmem:[#allocation4 + $0x88] sm:$0xff] %v5043
        %5076 = vst [vmem:[#allocation4 + $0x90] sm:$0xff] %v5044
        %5077 = vst [vmem:[#allocation4 + $0x98] sm:$0xff] %v5045
        %5078 = vst [vmem:[#allocation4 + $0xa0] sm:$0xff] %v5046
        %5079 = vst [vmem:[#allocation4 + $0xa8] sm:$0xff] %v5047
        %5080 = vst [vmem:[#allocation4 + $0xb0] sm:$0xff] %v5048
        %5081 = vst [vmem:[#allocation4 + $0xb8] sm:$0xff] %v5049
        %5082 = vst [vmem:[#allocation4 + $0xc0] sm:$0xff] %v5050
        %5083 = vst [vmem:[#allocation4 + $0xc8] sm:$0xff] %v5051
        %5084 = vst [vmem:[#allocation4 + $0xd0] sm:$0xff] %v5052
        %5085 = vst [vmem:[#allocation4 + $0xd8] sm:$0xff] %v5053
        %5086 = vst [vmem:[#allocation4 + $0xe0] sm:$0xff] %v5054
        %5087 = vst [vmem:[#allocation4 + $0xe8] sm:$0xff] %v5055
        %5088 = vst [vmem:[#allocation4 + $0xf0] sm:$0xff] %v5056
        %5089 = vst [vmem:[#allocation4 + $0xf8] sm:$0xff] %v5057
        %v5090 = vld [vmem:[%s4832 + $0x1] sm:$0xff]
        %v5091 = vld [vmem:[%s4832 + $0x9] sm:$0xff]
        %v5092 = vld [vmem:[%s4832 + $0x19] sm:$0xff]
        %v5093 = vld [vmem:[%s4832 + $0x21] sm:$0xff]
        %v5094 = vld [vmem:[%s4832 + $0x31] sm:$0xff]
        %v5095 = vld [vmem:[%s4832 + $0x39] sm:$0xff]
        %v5096 = vld [vmem:[%s4832 + $0x49] sm:$0xff]
        %v5097 = vld [vmem:[%s4832 + $0x51] sm:$0xff]
        %v5098 = vld [vmem:[%s4832 + $0x61] sm:$0xff]
        %v5099 = vld [vmem:[%s4832 + $0x69] sm:$0xff]
        %v5100 = vld [vmem:[%s4832 + $0x79] sm:$0xff]
        %v5101 = vld [vmem:[%s4832 + $0x81] sm:$0xff]
        %v5102 = vld [vmem:[%s4832 + $0x91] sm:$0xff]
        %v5103 = vld [vmem:[%s4832 + $0x99] sm:$0xff]
        %v5104 = vld [vmem:[%s4832 + $0xa9] sm:$0xff]
        %v5105 = vld [vmem:[%s4832 + $0xb1] sm:$0xff]
        %v5106 = vld [vmem:[%s4832 + $0xc1] sm:$0xff]
        %v5107 = vld [vmem:[%s4832 + $0xc9] sm:$0xff]
        %v5108 = vld [vmem:[%s4832 + $0xd9] sm:$0xff]
        %v5109 = vld [vmem:[%s4832 + $0xe1] sm:$0xff]
        %v5110 = vld [vmem:[%s4832 + $0xf1] sm:$0xff]
        %v5111 = vld [vmem:[%s4832 + $0xf9] sm:$0xff]
        %v5112 = vld [vmem:[%s4832 + $0x109] sm:$0xff]
        %v5113 = vld [vmem:[%s4832 + $0x111] sm:$0xff]
        %v5114 = vld [vmem:[%s4832 + $0x121] sm:$0xff]
        %v5115 = vld [vmem:[%s4832 + $0x129] sm:$0xff]
        %v5116 = vld [vmem:[%s4832 + $0x139] sm:$0xff]
        %v5117 = vld [vmem:[%s4832 + $0x141] sm:$0xff]
        %v5118 = vld [vmem:[%s4832 + $0x151] sm:$0xff]
        %v5119 = vld [vmem:[%s4832 + $0x159] sm:$0xff]
        %v5120 = vld [vmem:[%s4832 + $0x169] sm:$0xff]
        %v5121 = vld [vmem:[%s4832 + $0x171] sm:$0xff]
        %v5122 = vld [vmem:[#allocation4] sm:$0xff]
        %v5123 = vld [vmem:[#allocation4 + $0x8] sm:$0xff]
        %v5124 = vld [vmem:[#allocation4 + $0x10] sm:$0xff]
        %v5125 = vld [vmem:[#allocation4 + $0x18] sm:$0xff]
        %v5126 = vld [vmem:[#allocation4 + $0x20] sm:$0xff]
        %v5127 = vld [vmem:[#allocation4 + $0x28] sm:$0xff]
        %v5128 = vld [vmem:[#allocation4 + $0x30] sm:$0xff]
        %v5129 = vld [vmem:[#allocation4 + $0x38] sm:$0xff]
        %v5130 = vld [vmem:[#allocation4 + $0x40] sm:$0xff]
        %v5131 = vld [vmem:[#allocation4 + $0x48] sm:$0xff]
        %v5132 = vld [vmem:[#allocation4 + $0x50] sm:$0xff]
        %v5133 = vld [vmem:[#allocation4 + $0x58] sm:$0xff]
        %v5134 = vld [vmem:[#allocation4 + $0x60] sm:$0xff]
        %v5135 = vld [vmem:[#allocation4 + $0x68] sm:$0xff]
        %v5136 = vld [vmem:[#allocation4 + $0x70] sm:$0xff]
        %v5137 = vld [vmem:[#allocation4 + $0x78] sm:$0xff]
        %v5138 = vld [vmem:[#allocation4 + $0x80] sm:$0xff]
        %v5139 = vld [vmem:[#allocation4 + $0x88] sm:$0xff]
        %v5140 = vld [vmem:[#allocation4 + $0x90] sm:$0xff]
        %v5141 = vld [vmem:[#allocation4 + $0x98] sm:$0xff]
        %v5142 = vld [vmem:[#allocation4 + $0xa0] sm:$0xff]
        %v5143 = vld [vmem:[#allocation4 + $0xa8] sm:$0xff]
        %v5144 = vld [vmem:[#allocation4 + $0xb0] sm:$0xff]
        %v5145 = vld [vmem:[#allocation4 + $0xb8] sm:$0xff]
        %v5146 = vld [vmem:[#allocation4 + $0xc0] sm:$0xff]
        %v5147 = vld [vmem:[#allocation4 + $0xc8] sm:$0xff]
        %v5148 = vld [vmem:[#allocation4 + $0xd0] sm:$0xff]
        %v5149 = vld [vmem:[#allocation4 + $0xd8] sm:$0xff]
        %v5150 = vld [vmem:[#allocation4 + $0xe0] sm:$0xff]
        %v5151 = vld [vmem:[#allocation4 + $0xe8] sm:$0xff]
        %v5152 = vld [vmem:[#allocation4 + $0xf0] sm:$0xff]
        %v5153 = vld [vmem:[#allocation4 + $0xf8] sm:$0xff]
        %v5154 = vld [vmem:[#allocation6 + $0x380] sm:$0xff]
        %v5155 = vld [vmem:[#allocation6 + $0x388] sm:$0xff]
        %v5156 = vld [vmem:[#allocation6 + $0x390] sm:$0xff]
        %v5157 = vld [vmem:[#allocation6 + $0x398] sm:$0xff]
        %v5158 = vld [vmem:[#allocation6 + $0x3a0] sm:$0xff]
        %v5159 = vld [vmem:[#allocation6 + $0x3a8] sm:$0xff]
        %v5160 = vld [vmem:[#allocation6 + $0x3b0] sm:$0xff]
        %v5161 = vld [vmem:[#allocation6 + $0x3b8] sm:$0xff]
        %v5162 = vld [vmem:[#allocation6 + $0x3c0] sm:$0xff]
        %v5163 = vld [vmem:[#allocation6 + $0x3c8] sm:$0xff]
        %v5164 = vld [vmem:[#allocation6 + $0x3d0] sm:$0xff]
        %v5165 = vld [vmem:[#allocation6 + $0x3d8] sm:$0xff]
        %v5166 = vld [vmem:[#allocation6 + $0x3e0] sm:$0xff]
        %v5167 = vld [vmem:[#allocation6 + $0x3e8] sm:$0xff]
        %v5168 = vld [vmem:[#allocation6 + $0x3f0] sm:$0xff]
        %v5169 = vld [vmem:[#allocation6 + $0x3f8] sm:$0xff]
        %5170 = vmatpush.msra.mxu0 %v5169
        %5171 = vmatpush.msra.mxu0 %v5168
        %5172 = vmatpush.msra.mxu0 %v5167
        %5173 = vmatpush.msra.mxu0 %v5166
        %5174 = vmatpush.msra.mxu0 %v5165
        %5175 = vmatpush.msra.mxu0 %v5164
        %5176 = vmatpush.msra.mxu0 %v5163
        %5177 = vmatpush.msra.mxu0 %v5162
        %5178 = vmatpush.msra.mxu0 %v5161
        %5179 = vmatpush.msra.mxu0 %v5160
        %5180 = vmatpush.msra.mxu0 %v5159
        %5181 = vmatpush.msra.mxu0 %v5158
        %5182 = vmatpush.msra.mxu0 %v5157
        %5183 = vmatpush.msra.mxu0 %v5156
        %5184 = vmatpush.msra.mxu0 %v5155
        %5185 = vmatpush.msra.mxu0 %v5154
        %5186 = vmatmul.f32.gmra.mxu0 %v5090
        %v5187 = vpop.f32.mrf.mxu0
        %v5188 = vadd.f32 0.0, %v5187
        %5189 = vmatmul.f32.gmra.mxu0 %v5091
        %v5190 = vpop.f32.mrf.mxu0
        %v5191 = vadd.f32 0.0, %v5190
        %5192 = vmatmul.f32.gmra.mxu0 %v5092
        %v5193 = vpop.f32.mrf.mxu0
        %v5194 = vadd.f32 0.0, %v5193
        %5195 = vmatmul.f32.gmra.mxu0 %v5093
        %v5196 = vpop.f32.mrf.mxu0
        %v5197 = vadd.f32 0.0, %v5196
        %5198 = vmatmul.f32.gmra.mxu0 %v5094
        %v5199 = vpop.f32.mrf.mxu0
        %v5200 = vadd.f32 0.0, %v5199
        %5201 = vmatmul.f32.gmra.mxu0 %v5095
        %v5202 = vpop.f32.mrf.mxu0
        %v5203 = vadd.f32 0.0, %v5202
        %5204 = vmatmul.f32.gmra.mxu0 %v5096
        %v5205 = vpop.f32.mrf.mxu0
        %v5206 = vadd.f32 0.0, %v5205
        %5207 = vmatmul.f32.gmra.mxu0 %v5097
        %v5208 = vpop.f32.mrf.mxu0
        %v5209 = vadd.f32 0.0, %v5208
        %5210 = vmatmul.f32.gmra.mxu0 %v5098
        %v5211 = vpop.f32.mrf.mxu0
        %v5212 = vadd.f32 0.0, %v5211
        %5213 = vmatmul.f32.gmra.mxu0 %v5099
        %v5214 = vpop.f32.mrf.mxu0
        %v5215 = vadd.f32 0.0, %v5214
        %5216 = vmatmul.f32.gmra.mxu0 %v5100
        %v5217 = vpop.f32.mrf.mxu0
        %v5218 = vadd.f32 0.0, %v5217
        %5219 = vmatmul.f32.gmra.mxu0 %v5101
        %v5220 = vpop.f32.mrf.mxu0
        %v5221 = vadd.f32 0.0, %v5220
        %5222 = vmatmul.f32.gmra.mxu0 %v5102
        %v5223 = vpop.f32.mrf.mxu0
        %v5224 = vadd.f32 0.0, %v5223
        %5225 = vmatmul.f32.gmra.mxu0 %v5103
        %v5226 = vpop.f32.mrf.mxu0
        %v5227 = vadd.f32 0.0, %v5226
        %5228 = vmatmul.f32.gmra.mxu0 %v5104
        %v5229 = vpop.f32.mrf.mxu0
        %v5230 = vadd.f32 0.0, %v5229
        %5231 = vmatmul.f32.gmra.mxu0 %v5105
        %v5232 = vpop.f32.mrf.mxu0
        %v5233 = vadd.f32 0.0, %v5232
        %5234 = vmatmul.f32.gmra.mxu0 %v5106
        %v5235 = vpop.f32.mrf.mxu0
        %v5236 = vadd.f32 0.0, %v5235
        %5237 = vmatmul.f32.gmra.mxu0 %v5107
        %v5238 = vpop.f32.mrf.mxu0
        %v5239 = vadd.f32 0.0, %v5238
        %5240 = vmatmul.f32.gmra.mxu0 %v5108
        %v5241 = vpop.f32.mrf.mxu0
        %v5242 = vadd.f32 0.0, %v5241
        %5243 = vmatmul.f32.gmra.mxu0 %v5109
        %v5244 = vpop.f32.mrf.mxu0
        %v5245 = vadd.f32 0.0, %v5244
        %5246 = vmatmul.f32.gmra.mxu0 %v5110
        %v5247 = vpop.f32.mrf.mxu0
        %v5248 = vadd.f32 0.0, %v5247
        %5249 = vmatmul.f32.gmra.mxu0 %v5111
        %v5250 = vpop.f32.mrf.mxu0
        %v5251 = vadd.f32 0.0, %v5250
        %5252 = vmatmul.f32.gmra.mxu0 %v5112
        %v5253 = vpop.f32.mrf.mxu0
        %v5254 = vadd.f32 0.0, %v5253
        %5255 = vmatmul.f32.gmra.mxu0 %v5113
        %v5256 = vpop.f32.mrf.mxu0
        %v5257 = vadd.f32 0.0, %v5256
        %5258 = vmatmul.f32.gmra.mxu0 %v5114
        %v5259 = vpop.f32.mrf.mxu0
        %v5260 = vadd.f32 0.0, %v5259
        %5261 = vmatmul.f32.gmra.mxu0 %v5115
        %v5262 = vpop.f32.mrf.mxu0
        %v5263 = vadd.f32 0.0, %v5262
        %5264 = vmatmul.f32.gmra.mxu0 %v5116
        %v5265 = vpop.f32.mrf.mxu0
        %v5266 = vadd.f32 0.0, %v5265
        %5267 = vmatmul.f32.gmra.mxu0 %v5117
        %v5268 = vpop.f32.mrf.mxu0
        %v5269 = vadd.f32 0.0, %v5268
        %5270 = vmatmul.f32.gmra.mxu0 %v5118
        %v5271 = vpop.f32.mrf.mxu0
        %v5272 = vadd.f32 0.0, %v5271
        %5273 = vmatmul.f32.gmra.mxu0 %v5119
        %v5274 = vpop.f32.mrf.mxu0
        %v5275 = vadd.f32 0.0, %v5274
        %5276 = vmatmul.f32.gmra.mxu0 %v5120
        %v5277 = vpop.f32.mrf.mxu0
        %v5278 = vadd.f32 0.0, %v5277
        %5279 = vmatmul.f32.gmra.mxu0 %v5121
        %v5280 = vpop.f32.mrf.mxu0
        %v5281 = vadd.f32 0.0, %v5280
        %5282 = vdwg.mxu0
        %v5283 = vadd.f32 %v5122, %v5188
        %v5284 = vadd.f32 %v5123, %v5191
        %v5285 = vadd.f32 %v5124, %v5194
        %v5286 = vadd.f32 %v5125, %v5197
        %v5287 = vadd.f32 %v5126, %v5200
        %v5288 = vadd.f32 %v5127, %v5203
        %v5289 = vadd.f32 %v5128, %v5206
        %v5290 = vadd.f32 %v5129, %v5209
        %v5291 = vadd.f32 %v5130, %v5212
        %v5292 = vadd.f32 %v5131, %v5215
        %v5293 = vadd.f32 %v5132, %v5218
        %v5294 = vadd.f32 %v5133, %v5221
        %v5295 = vadd.f32 %v5134, %v5224
        %v5296 = vadd.f32 %v5135, %v5227
        %v5297 = vadd.f32 %v5136, %v5230
        %v5298 = vadd.f32 %v5137, %v5233
        %v5299 = vadd.f32 %v5138, %v5236
        %v5300 = vadd.f32 %v5139, %v5239
        %v5301 = vadd.f32 %v5140, %v5242
        %v5302 = vadd.f32 %v5141, %v5245
        %v5303 = vadd.f32 %v5142, %v5248
        %v5304 = vadd.f32 %v5143, %v5251
        %v5305 = vadd.f32 %v5144, %v5254
        %v5306 = vadd.f32 %v5145, %v5257
        %v5307 = vadd.f32 %v5146, %v5260
        %v5308 = vadd.f32 %v5147, %v5263
        %v5309 = vadd.f32 %v5148, %v5266
        %v5310 = vadd.f32 %v5149, %v5269
        %v5311 = vadd.f32 %v5150, %v5272
        %v5312 = vadd.f32 %v5151, %v5275
        %v5313 = vadd.f32 %v5152, %v5278
        %v5314 = vadd.f32 %v5153, %v5281
        %5315 = vst [vmem:[#allocation4] sm:$0xff] %v5283
        %5316 = vst [vmem:[#allocation4 + $0x8] sm:$0xff] %v5284
        %5317 = vst [vmem:[#allocation4 + $0x10] sm:$0xff] %v5285
        %5318 = vst [vmem:[#allocation4 + $0x18] sm:$0xff] %v5286
        %5319 = vst [vmem:[#allocation4 + $0x20] sm:$0xff] %v5287
        %5320 = vst [vmem:[#allocation4 + $0x28] sm:$0xff] %v5288
        %5321 = vst [vmem:[#allocation4 + $0x30] sm:$0xff] %v5289
        %5322 = vst [vmem:[#allocation4 + $0x38] sm:$0xff] %v5290
        %5323 = vst [vmem:[#allocation4 + $0x40] sm:$0xff] %v5291
        %5324 = vst [vmem:[#allocation4 + $0x48] sm:$0xff] %v5292
        %5325 = vst [vmem:[#allocation4 + $0x50] sm:$0xff] %v5293
        %5326 = vst [vmem:[#allocation4 + $0x58] sm:$0xff] %v5294
        %5327 = vst [vmem:[#allocation4 + $0x60] sm:$0xff] %v5295
        %5328 = vst [vmem:[#allocation4 + $0x68] sm:$0xff] %v5296
        %5329 = vst [vmem:[#allocation4 + $0x70] sm:$0xff] %v5297
        %5330 = vst [vmem:[#allocation4 + $0x78] sm:$0xff] %v5298
        %5331 = vst [vmem:[#allocation4 + $0x80] sm:$0xff] %v5299
        %5332 = vst [vmem:[#allocation4 + $0x88] sm:$0xff] %v5300
        %5333 = vst [vmem:[#allocation4 + $0x90] sm:$0xff] %v5301
        %5334 = vst [vmem:[#allocation4 + $0x98] sm:$0xff] %v5302
        %5335 = vst [vmem:[#allocation4 + $0xa0] sm:$0xff] %v5303
        %5336 = vst [vmem:[#allocation4 + $0xa8] sm:$0xff] %v5304
        %5337 = vst [vmem:[#allocation4 + $0xb0] sm:$0xff] %v5305
        %5338 = vst [vmem:[#allocation4 + $0xb8] sm:$0xff] %v5306
        %5339 = vst [vmem:[#allocation4 + $0xc0] sm:$0xff] %v5307
        %5340 = vst [vmem:[#allocation4 + $0xc8] sm:$0xff] %v5308
        %5341 = vst [vmem:[#allocation4 + $0xd0] sm:$0xff] %v5309
        %5342 = vst [vmem:[#allocation4 + $0xd8] sm:$0xff] %v5310
        %5343 = vst [vmem:[#allocation4 + $0xe0] sm:$0xff] %v5311
        %5344 = vst [vmem:[#allocation4 + $0xe8] sm:$0xff] %v5312
        %5345 = vst [vmem:[#allocation4 + $0xf0] sm:$0xff] %v5313
        %5346 = vst [vmem:[#allocation4 + $0xf8] sm:$0xff] %v5314
        %v5347 = vld [vmem:[%s4832 + $0x2] sm:$0xff]
        %v5348 = vld [vmem:[%s4832 + $0xa] sm:$0xff]
        %v5349 = vld [vmem:[%s4832 + $0x1a] sm:$0xff]
        %v5350 = vld [vmem:[%s4832 + $0x22] sm:$0xff]
        %v5351 = vld [vmem:[%s4832 + $0x32] sm:$0xff]
        %v5352 = vld [vmem:[%s4832 + $0x3a] sm:$0xff]
        %v5353 = vld [vmem:[%s4832 + $0x4a] sm:$0xff]
        %v5354 = vld [vmem:[%s4832 + $0x52] sm:$0xff]
        %v5355 = vld [vmem:[%s4832 + $0x62] sm:$0xff]
        %v5356 = vld [vmem:[%s4832 + $0x6a] sm:$0xff]
        %v5357 = vld [vmem:[%s4832 + $0x7a] sm:$0xff]
        %v5358 = vld [vmem:[%s4832 + $0x82] sm:$0xff]
        %v5359 = vld [vmem:[%s4832 + $0x92] sm:$0xff]
        %v5360 = vld [vmem:[%s4832 + $0x9a] sm:$0xff]
        %v5361 = vld [vmem:[%s4832 + $0xaa] sm:$0xff]
        %v5362 = vld [vmem:[%s4832 + $0xb2] sm:$0xff]
        %v5363 = vld [vmem:[%s4832 + $0xc2] sm:$0xff]
        %v5364 = vld [vmem:[%s4832 + $0xca] sm:$0xff]
        %v5365 = vld [vmem:[%s4832 + $0xda] sm:$0xff]
        %v5366 = vld [vmem:[%s4832 + $0xe2] sm:$0xff]
        %v5367 = vld [vmem:[%s4832 + $0xf2] sm:$0xff]
        %v5368 = vld [vmem:[%s4832 + $0xfa] sm:$0xff]
        %v5369 = vld [vmem:[%s4832 + $0x10a] sm:$0xff]
        %v5370 = vld [vmem:[%s4832 + $0x112] sm:$0xff]
        %v5371 = vld [vmem:[%s4832 + $0x122] sm:$0xff]
        %v5372 = vld [vmem:[%s4832 + $0x12a] sm:$0xff]
        %v5373 = vld [vmem:[%s4832 + $0x13a] sm:$0xff]
        %v5374 = vld [vmem:[%s4832 + $0x142] sm:$0xff]
        %v5375 = vld [vmem:[%s4832 + $0x152] sm:$0xff]
        %v5376 = vld [vmem:[%s4832 + $0x15a] sm:$0xff]
        %v5377 = vld [vmem:[%s4832 + $0x16a] sm:$0xff]
        %v5378 = vld [vmem:[%s4832 + $0x172] sm:$0xff]
        %v5379 = vld [vmem:[#allocation4] sm:$0xff]
        %v5380 = vld [vmem:[#allocation4 + $0x8] sm:$0xff]
        %v5381 = vld [vmem:[#allocation4 + $0x10] sm:$0xff]
        %v5382 = vld [vmem:[#allocation4 + $0x18] sm:$0xff]
        %v5383 = vld [vmem:[#allocation4 + $0x20] sm:$0xff]
        %v5384 = vld [vmem:[#allocation4 + $0x28] sm:$0xff]
        %v5385 = vld [vmem:[#allocation4 + $0x30] sm:$0xff]
        %v5386 = vld [vmem:[#allocation4 + $0x38] sm:$0xff]
        %v5387 = vld [vmem:[#allocation4 + $0x40] sm:$0xff]
        %v5388 = vld [vmem:[#allocation4 + $0x48] sm:$0xff]
        %v5389 = vld [vmem:[#allocation4 + $0x50] sm:$0xff]
        %v5390 = vld [vmem:[#allocation4 + $0x58] sm:$0xff]
        %v5391 = vld [vmem:[#allocation4 + $0x60] sm:$0xff]
        %v5392 = vld [vmem:[#allocation4 + $0x68] sm:$0xff]
        %v5393 = vld [vmem:[#allocation4 + $0x70] sm:$0xff]
        %v5394 = vld [vmem:[#allocation4 + $0x78] sm:$0xff]
        %v5395 = vld [vmem:[#allocation4 + $0x80] sm:$0xff]
        %v5396 = vld [vmem:[#allocation4 + $0x88] sm:$0xff]
        %v5397 = vld [vmem:[#allocation4 + $0x90] sm:$0xff]
        %v5398 = vld [vmem:[#allocation4 + $0x98] sm:$0xff]
        %v5399 = vld [vmem:[#allocation4 + $0xa0] sm:$0xff]
        %v5400 = vld [vmem:[#allocation4 + $0xa8] sm:$0xff]
        %v5401 = vld [vmem:[#allocation4 + $0xb0] sm:$0xff]
        %v5402 = vld [vmem:[#allocation4 + $0xb8] sm:$0xff]
        %v5403 = vld [vmem:[#allocation4 + $0xc0] sm:$0xff]
        %v5404 = vld [vmem:[#allocation4 + $0xc8] sm:$0xff]
        %v5405 = vld [vmem:[#allocation4 + $0xd0] sm:$0xff]
        %v5406 = vld [vmem:[#allocation4 + $0xd8] sm:$0xff]
        %v5407 = vld [vmem:[#allocation4 + $0xe0] sm:$0xff]
        %v5408 = vld [vmem:[#allocation4 + $0xe8] sm:$0xff]
        %v5409 = vld [vmem:[#allocation4 + $0xf0] sm:$0xff]
        %v5410 = vld [vmem:[#allocation4 + $0xf8] sm:$0xff]
        %v5411 = vld [vmem:[#allocation6 + $0x400] sm:$0xff]
        %v5412 = vld [vmem:[#allocation6 + $0x408] sm:$0xff]
        %v5413 = vld [vmem:[#allocation6 + $0x410] sm:$0xff]
        %v5414 = vld [vmem:[#allocation6 + $0x418] sm:$0xff]
        %v5415 = vld [vmem:[#allocation6 + $0x420] sm:$0xff]
        %v5416 = vld [vmem:[#allocation6 + $0x428] sm:$0xff]
        %v5417 = vld [vmem:[#allocation6 + $0x430] sm:$0xff]
        %v5418 = vld [vmem:[#allocation6 + $0x438] sm:$0xff]
        %v5419 = vld [vmem:[#allocation6 + $0x440] sm:$0xff]
        %v5420 = vld [vmem:[#allocation6 + $0x448] sm:$0xff]
        %v5421 = vld [vmem:[#allocation6 + $0x450] sm:$0xff]
        %v5422 = vld [vmem:[#allocation6 + $0x458] sm:$0xff]
        %v5423 = vld [vmem:[#allocation6 + $0x460] sm:$0xff]
        %v5424 = vld [vmem:[#allocation6 + $0x468] sm:$0xff]
        %v5425 = vld [vmem:[#allocation6 + $0x470] sm:$0xff]
        %v5426 = vld [vmem:[#allocation6 + $0x478] sm:$0xff]
        %5427 = vmatpush.msra.mxu0 %v5426
        %5428 = vmatpush.msra.mxu0 %v5425
        %5429 = vmatpush.msra.mxu0 %v5424
        %5430 = vmatpush.msra.mxu0 %v5423
        %5431 = vmatpush.msra.mxu0 %v5422
        %5432 = vmatpush.msra.mxu0 %v5421
        %5433 = vmatpush.msra.mxu0 %v5420
        %5434 = vmatpush.msra.mxu0 %v5419
        %5435 = vmatpush.msra.mxu0 %v5418
        %5436 = vmatpush.msra.mxu0 %v5417
        %5437 = vmatpush.msra.mxu0 %v5416
        %5438 = vmatpush.msra.mxu0 %v5415
        %5439 = vmatpush.msra.mxu0 %v5414
        %5440 = vmatpush.msra.mxu0 %v5413
        %5441 = vmatpush.msra.mxu0 %v5412
        %5442 = vmatpush.msra.mxu0 %v5411
        %5443 = vmatmul.f32.gmra.mxu0 %v5347
        %v5444 = vpop.f32.mrf.mxu0
        %v5445 = vadd.f32 0.0, %v5444
        %5446 = vmatmul.f32.gmra.mxu0 %v5348
        %v5447 = vpop.f32.mrf.mxu0
        %v5448 = vadd.f32 0.0, %v5447
        %5449 = vmatmul.f32.gmra.mxu0 %v5349
        %v5450 = vpop.f32.mrf.mxu0
        %v5451 = vadd.f32 0.0, %v5450
        %5452 = vmatmul.f32.gmra.mxu0 %v5350
        %v5453 = vpop.f32.mrf.mxu0
        %v5454 = vadd.f32 0.0, %v5453
        %5455 = vmatmul.f32.gmra.mxu0 %v5351
        %v5456 = vpop.f32.mrf.mxu0
        %v5457 = vadd.f32 0.0, %v5456
        %5458 = vmatmul.f32.gmra.mxu0 %v5352
        %v5459 = vpop.f32.mrf.mxu0
        %v5460 = vadd.f32 0.0, %v5459
        %5461 = vmatmul.f32.gmra.mxu0 %v5353
        %v5462 = vpop.f32.mrf.mxu0
        %v5463 = vadd.f32 0.0, %v5462
        %5464 = vmatmul.f32.gmra.mxu0 %v5354
        %v5465 = vpop.f32.mrf.mxu0
        %v5466 = vadd.f32 0.0, %v5465
        %5467 = vmatmul.f32.gmra.mxu0 %v5355
        %v5468 = vpop.f32.mrf.mxu0
        %v5469 = vadd.f32 0.0, %v5468
        %5470 = vmatmul.f32.gmra.mxu0 %v5356
        %v5471 = vpop.f32.mrf.mxu0
        %v5472 = vadd.f32 0.0, %v5471
        %5473 = vmatmul.f32.gmra.mxu0 %v5357
        %v5474 = vpop.f32.mrf.mxu0
        %v5475 = vadd.f32 0.0, %v5474
        %5476 = vmatmul.f32.gmra.mxu0 %v5358
        %v5477 = vpop.f32.mrf.mxu0
        %v5478 = vadd.f32 0.0, %v5477
        %5479 = vmatmul.f32.gmra.mxu0 %v5359
        %v5480 = vpop.f32.mrf.mxu0
        %v5481 = vadd.f32 0.0, %v5480
        %5482 = vmatmul.f32.gmra.mxu0 %v5360
        %v5483 = vpop.f32.mrf.mxu0
        %v5484 = vadd.f32 0.0, %v5483
        %5485 = vmatmul.f32.gmra.mxu0 %v5361
        %v5486 = vpop.f32.mrf.mxu0
        %v5487 = vadd.f32 0.0, %v5486
        %5488 = vmatmul.f32.gmra.mxu0 %v5362
        %v5489 = vpop.f32.mrf.mxu0
        %v5490 = vadd.f32 0.0, %v5489
        %5491 = vmatmul.f32.gmra.mxu0 %v5363
        %v5492 = vpop.f32.mrf.mxu0
        %v5493 = vadd.f32 0.0, %v5492
        %5494 = vmatmul.f32.gmra.mxu0 %v5364
        %v5495 = vpop.f32.mrf.mxu0
        %v5496 = vadd.f32 0.0, %v5495
        %5497 = vmatmul.f32.gmra.mxu0 %v5365
        %v5498 = vpop.f32.mrf.mxu0
        %v5499 = vadd.f32 0.0, %v5498
        %5500 = vmatmul.f32.gmra.mxu0 %v5366
        %v5501 = vpop.f32.mrf.mxu0
        %v5502 = vadd.f32 0.0, %v5501
        %5503 = vmatmul.f32.gmra.mxu0 %v5367
        %v5504 = vpop.f32.mrf.mxu0
        %v5505 = vadd.f32 0.0, %v5504
        %5506 = vmatmul.f32.gmra.mxu0 %v5368
        %v5507 = vpop.f32.mrf.mxu0
        %v5508 = vadd.f32 0.0, %v5507
        %5509 = vmatmul.f32.gmra.mxu0 %v5369
        %v5510 = vpop.f32.mrf.mxu0
        %v5511 = vadd.f32 0.0, %v5510
        %5512 = vmatmul.f32.gmra.mxu0 %v5370
        %v5513 = vpop.f32.mrf.mxu0
        %v5514 = vadd.f32 0.0, %v5513
        %5515 = vmatmul.f32.gmra.mxu0 %v5371
        %v5516 = vpop.f32.mrf.mxu0
        %v5517 = vadd.f32 0.0, %v5516
        %5518 = vmatmul.f32.gmra.mxu0 %v5372
        %v5519 = vpop.f32.mrf.mxu0
        %v5520 = vadd.f32 0.0, %v5519
        %5521 = vmatmul.f32.gmra.mxu0 %v5373
        %v5522 = vpop.f32.mrf.mxu0
        %v5523 = vadd.f32 0.0, %v5522
        %5524 = vmatmul.f32.gmra.mxu0 %v5374
        %v5525 = vpop.f32.mrf.mxu0
        %v5526 = vadd.f32 0.0, %v5525
        %5527 = vmatmul.f32.gmra.mxu0 %v5375
        %v5528 = vpop.f32.mrf.mxu0
        %v5529 = vadd.f32 0.0, %v5528
        %5530 = vmatmul.f32.gmra.mxu0 %v5376
        %v5531 = vpop.f32.mrf.mxu0
        %v5532 = vadd.f32 0.0, %v5531
        %5533 = vmatmul.f32.gmra.mxu0 %v5377
        %v5534 = vpop.f32.mrf.mxu0
        %v5535 = vadd.f32 0.0, %v5534
        %5536 = vmatmul.f32.gmra.mxu0 %v5378
        %v5537 = vpop.f32.mrf.mxu0
        %v5538 = vadd.f32 0.0, %v5537
        %5539 = vdwg.mxu0
        %v5540 = vadd.f32 %v5379, %v5445
        %v5541 = vadd.f32 %v5380, %v5448
        %v5542 = vadd.f32 %v5381, %v5451
        %v5543 = vadd.f32 %v5382, %v5454
        %v5544 = vadd.f32 %v5383, %v5457
        %v5545 = vadd.f32 %v5384, %v5460
        %v5546 = vadd.f32 %v5385, %v5463
        %v5547 = vadd.f32 %v5386, %v5466
        %v5548 = vadd.f32 %v5387, %v5469
        %v5549 = vadd.f32 %v5388, %v5472
        %v5550 = vadd.f32 %v5389, %v5475
        %v5551 = vadd.f32 %v5390, %v5478
        %v5552 = vadd.f32 %v5391, %v5481
        %v5553 = vadd.f32 %v5392, %v5484
        %v5554 = vadd.f32 %v5393, %v5487
        %v5555 = vadd.f32 %v5394, %v5490
        %v5556 = vadd.f32 %v5395, %v5493
        %v5557 = vadd.f32 %v5396, %v5496
        %v5558 = vadd.f32 %v5397, %v5499
        %v5559 = vadd.f32 %v5398, %v5502
        %v5560 = vadd.f32 %v5399, %v5505
        %v5561 = vadd.f32 %v5400, %v5508
        %v5562 = vadd.f32 %v5401, %v5511
        %v5563 = vadd.f32 %v5402, %v5514
        %v5564 = vadd.f32 %v5403, %v5517
        %v5565 = vadd.f32 %v5404, %v5520
        %v5566 = vadd.f32 %v5405, %v5523
        %v5567 = vadd.f32 %v5406, %v5526
        %v5568 = vadd.f32 %v5407, %v5529
        %v5569 = vadd.f32 %v5408, %v5532
        %v5570 = vadd.f32 %v5409, %v5535
        %v5571 = vadd.f32 %v5410, %v5538
        %5572 = vst [vmem:[#allocation4] sm:$0xff] %v5540
        %5573 = vst [vmem:[#allocation4 + $0x8] sm:$0xff] %v5541
        %5574 = vst [vmem:[#allocation4 + $0x10] sm:$0xff] %v5542
        %5575 = vst [vmem:[#allocation4 + $0x18] sm:$0xff] %v5543
        %5576 = vst [vmem:[#allocation4 + $0x20] sm:$0xff] %v5544
        %5577 = vst [vmem:[#allocation4 + $0x28] sm:$0xff] %v5545
        %5578 = vst [vmem:[#allocation4 + $0x30] sm:$0xff] %v5546
        %5579 = vst [vmem:[#allocation4 + $0x38] sm:$0xff] %v5547
        %5580 = vst [vmem:[#allocation4 + $0x40] sm:$0xff] %v5548
        %5581 = vst [vmem:[#allocation4 + $0x48] sm:$0xff] %v5549
        %5582 = vst [vmem:[#allocation4 + $0x50] sm:$0xff] %v5550
        %5583 = vst [vmem:[#allocation4 + $0x58] sm:$0xff] %v5551
        %5584 = vst [vmem:[#allocation4 + $0x60] sm:$0xff] %v5552
        %5585 = vst [vmem:[#allocation4 + $0x68] sm:$0xff] %v5553
        %5586 = vst [vmem:[#allocation4 + $0x70] sm:$0xff] %v5554
        %5587 = vst [vmem:[#allocation4 + $0x78] sm:$0xff] %v5555
        %5588 = vst [vmem:[#allocation4 + $0x80] sm:$0xff] %v5556
        %5589 = vst [vmem:[#allocation4 + $0x88] sm:$0xff] %v5557
        %5590 = vst [vmem:[#allocation4 + $0x90] sm:$0xff] %v5558
        %5591 = vst [vmem:[#allocation4 + $0x98] sm:$0xff] %v5559
        %5592 = vst [vmem:[#allocation4 + $0xa0] sm:$0xff] %v5560
        %5593 = vst [vmem:[#allocation4 + $0xa8] sm:$0xff] %v5561
        %5594 = vst [vmem:[#allocation4 + $0xb0] sm:$0xff] %v5562
        %5595 = vst [vmem:[#allocation4 + $0xb8] sm:$0xff] %v5563
        %5596 = vst [vmem:[#allocation4 + $0xc0] sm:$0xff] %v5564
        %5597 = vst [vmem:[#allocation4 + $0xc8] sm:$0xff] %v5565
        %5598 = vst [vmem:[#allocation4 + $0xd0] sm:$0xff] %v5566
        %5599 = vst [vmem:[#allocation4 + $0xd8] sm:$0xff] %v5567
        %5600 = vst [vmem:[#allocation4 + $0xe0] sm:$0xff] %v5568
        %5601 = vst [vmem:[#allocation4 + $0xe8] sm:$0xff] %v5569
        %5602 = vst [vmem:[#allocation4 + $0xf0] sm:$0xff] %v5570
        %5603 = vst [vmem:[#allocation4 + $0xf8] sm:$0xff] %v5571
        %v5604 = vld [vmem:[#allocation4] sm:$0xff]
        %v5605 = vld [vmem:[#allocation4 + $0x8] sm:$0xff]
        %v5606 = vld [vmem:[#allocation4 + $0x10] sm:$0xff]
        %v5607 = vld [vmem:[#allocation4 + $0x18] sm:$0xff]
        %v5608 = vld [vmem:[#allocation4 + $0x20] sm:$0xff]
        %v5609 = vld [vmem:[#allocation4 + $0x28] sm:$0xff]
        %v5610 = vld [vmem:[#allocation4 + $0x30] sm:$0xff]
        %v5611 = vld [vmem:[#allocation4 + $0x38] sm:$0xff]
        %v5612 = vld [vmem:[#allocation4 + $0x40] sm:$0xff]
        %v5613 = vld [vmem:[#allocation4 + $0x48] sm:$0xff]
        %v5614 = vld [vmem:[#allocation4 + $0x50] sm:$0xff]
        %v5615 = vld [vmem:[#allocation4 + $0x58] sm:$0xff]
        %v5616 = vld [vmem:[#allocation4 + $0x60] sm:$0xff]
        %v5617 = vld [vmem:[#allocation4 + $0x68] sm:$0xff]
        %v5618 = vld [vmem:[#allocation4 + $0x70] sm:$0xff]
        %v5619 = vld [vmem:[#allocation4 + $0x78] sm:$0xff]
        %v5620 = vld [vmem:[#allocation4 + $0x80] sm:$0xff]
        %v5621 = vld [vmem:[#allocation4 + $0x88] sm:$0xff]
        %v5622 = vld [vmem:[#allocation4 + $0x90] sm:$0xff]
        %v5623 = vld [vmem:[#allocation4 + $0x98] sm:$0xff]
        %v5624 = vld [vmem:[#allocation4 + $0xa0] sm:$0xff]
        %v5625 = vld [vmem:[#allocation4 + $0xa8] sm:$0xff]
        %v5626 = vld [vmem:[#allocation4 + $0xb0] sm:$0xff]
        %v5627 = vld [vmem:[#allocation4 + $0xb8] sm:$0xff]
        %v5628 = vld [vmem:[#allocation4 + $0xc0] sm:$0xff]
        %v5629 = vld [vmem:[#allocation4 + $0xc8] sm:$0xff]
        %v5630 = vld [vmem:[#allocation4 + $0xd0] sm:$0xff]
        %v5631 = vld [vmem:[#allocation4 + $0xd8] sm:$0xff]
        %v5632 = vld [vmem:[#allocation4 + $0xe0] sm:$0xff]
        %v5633 = vld [vmem:[#allocation4 + $0xe8] sm:$0xff]
        %v5634 = vld [vmem:[#allocation4 + $0xf0] sm:$0xff]
        %v5635 = vld [vmem:[#allocation4 + $0xf8] sm:$0xff]
        %v5636 = vld [vmem:[%s4] sm:$0x1]
        %v5638 = vperm.slane %v5636, 0
        %v5640 = vadd.f32 %v5604, %v5638
        %v5641 = vadd.f32 %v5605, %v5638
        %v5642 = vadd.f32 %v5606, %v5638
        %v5643 = vadd.f32 %v5607, %v5638
        %v5644 = vadd.f32 %v5608, %v5638
        %v5645 = vadd.f32 %v5609, %v5638
        %v5646 = vadd.f32 %v5610, %v5638
        %v5647 = vadd.f32 %v5611, %v5638
        %v5648 = vadd.f32 %v5612, %v5638
        %v5649 = vadd.f32 %v5613, %v5638
        %v5650 = vadd.f32 %v5614, %v5638
        %v5651 = vadd.f32 %v5615, %v5638
        %v5652 = vadd.f32 %v5616, %v5638
        %v5653 = vadd.f32 %v5617, %v5638
        %v5654 = vadd.f32 %v5618, %v5638
        %v5655 = vadd.f32 %v5619, %v5638
        %v5656 = vadd.f32 %v5620, %v5638
        %v5657 = vadd.f32 %v5621, %v5638
        %v5658 = vadd.f32 %v5622, %v5638
        %v5659 = vadd.f32 %v5623, %v5638
        %v5660 = vadd.f32 %v5624, %v5638
        %v5661 = vadd.f32 %v5625, %v5638
        %v5662 = vadd.f32 %v5626, %v5638
        %v5663 = vadd.f32 %v5627, %v5638
        %v5664 = vadd.f32 %v5628, %v5638
        %v5665 = vadd.f32 %v5629, %v5638
        %v5666 = vadd.f32 %v5630, %v5638
        %v5667 = vadd.f32 %v5631, %v5638
        %v5668 = vadd.f32 %v5632, %v5638
        %v5669 = vadd.f32 %v5633, %v5638
        %v5670 = vadd.f32 %v5634, %v5638
        %v5671 = vadd.f32 %v5635, %v5638
        %v5672 = vld [vmem:[%s2159 + $0x1] sm:$0xff]
        %v5673 = vld [vmem:[%s2159 + $0x9] sm:$0xff]
        %v5674 = vld [vmem:[%s2159 + $0x19] sm:$0xff]
        %v5675 = vld [vmem:[%s2159 + $0x21] sm:$0xff]
        %v5676 = vld [vmem:[%s2159 + $0x31] sm:$0xff]
        %v5677 = vld [vmem:[%s2159 + $0x39] sm:$0xff]
        %v5678 = vld [vmem:[%s2159 + $0x49] sm:$0xff]
        %v5679 = vld [vmem:[%s2159 + $0x51] sm:$0xff]
        %v5680 = vld [vmem:[%s2159 + $0x61] sm:$0xff]
        %v5681 = vld [vmem:[%s2159 + $0x69] sm:$0xff]
        %v5682 = vld [vmem:[%s2159 + $0x79] sm:$0xff]
        %v5683 = vld [vmem:[%s2159 + $0x81] sm:$0xff]
        %v5684 = vld [vmem:[%s2159 + $0x91] sm:$0xff]
        %v5685 = vld [vmem:[%s2159 + $0x99] sm:$0xff]
        %v5686 = vld [vmem:[%s2159 + $0xa9] sm:$0xff]
        %v5687 = vld [vmem:[%s2159 + $0xb1] sm:$0xff]
        %v5688 = vld [vmem:[%s2159 + $0xc1] sm:$0xff]
        %v5689 = vld [vmem:[%s2159 + $0xc9] sm:$0xff]
        %v5690 = vld [vmem:[%s2159 + $0xd9] sm:$0xff]
        %v5691 = vld [vmem:[%s2159 + $0xe1] sm:$0xff]
        %v5692 = vld [vmem:[%s2159 + $0xf1] sm:$0xff]
        %v5693 = vld [vmem:[%s2159 + $0xf9] sm:$0xff]
        %v5694 = vld [vmem:[%s2159 + $0x109] sm:$0xff]
        %v5695 = vld [vmem:[%s2159 + $0x111] sm:$0xff]
        %v5696 = vld [vmem:[%s2159 + $0x121] sm:$0xff]
        %v5697 = vld [vmem:[%s2159 + $0x129] sm:$0xff]
        %v5698 = vld [vmem:[%s2159 + $0x139] sm:$0xff]
        %v5699 = vld [vmem:[%s2159 + $0x141] sm:$0xff]
        %v5700 = vld [vmem:[%s2159 + $0x151] sm:$0xff]
        %v5701 = vld [vmem:[%s2159 + $0x159] sm:$0xff]
        %v5702 = vld [vmem:[%s2159 + $0x169] sm:$0xff]
        %v5703 = vld [vmem:[%s2159 + $0x171] sm:$0xff]
        %v5704 = vadd.f32 %v5640, %v5672
        %v5705 = vadd.f32 %v5641, %v5673
        %v5706 = vadd.f32 %v5642, %v5674
        %v5707 = vadd.f32 %v5643, %v5675
        %v5708 = vadd.f32 %v5644, %v5676
        %v5709 = vadd.f32 %v5645, %v5677
        %v5710 = vadd.f32 %v5646, %v5678
        %v5711 = vadd.f32 %v5647, %v5679
        %v5712 = vadd.f32 %v5648, %v5680
        %v5713 = vadd.f32 %v5649, %v5681
        %v5714 = vadd.f32 %v5650, %v5682
        %v5715 = vadd.f32 %v5651, %v5683
        %v5716 = vadd.f32 %v5652, %v5684
        %v5717 = vadd.f32 %v5653, %v5685
        %v5718 = vadd.f32 %v5654, %v5686
        %v5719 = vadd.f32 %v5655, %v5687
        %v5720 = vadd.f32 %v5656, %v5688
        %v5721 = vadd.f32 %v5657, %v5689
        %v5722 = vadd.f32 %v5658, %v5690
        %v5723 = vadd.f32 %v5659, %v5691
        %v5724 = vadd.f32 %v5660, %v5692
        %v5725 = vadd.f32 %v5661, %v5693
        %v5726 = vadd.f32 %v5662, %v5694
        %v5727 = vadd.f32 %v5663, %v5695
        %v5728 = vadd.f32 %v5664, %v5696
        %v5729 = vadd.f32 %v5665, %v5697
        %v5730 = vadd.f32 %v5666, %v5698
        %v5731 = vadd.f32 %v5667, %v5699
        %v5732 = vadd.f32 %v5668, %v5700
        %v5733 = vadd.f32 %v5669, %v5701
        %v5734 = vadd.f32 %v5670, %v5702
        %v5735 = vadd.f32 %v5671, %v5703
        %vm5736 = vcmask 31744
        %5737 = vst.msk [vmem:[%s219] sm:$0xff] %vm5736, %v5704
        %5738 = vst.msk [vmem:[%s219 + $0x8] sm:$0xff] %vm5736, %v5705
        %5739 = vst.msk [vmem:[%s219 + $0x10] sm:$0xff] %vm5736, %v5706
        %5740 = vst.msk [vmem:[%s219 + $0x18] sm:$0xff] %vm5736, %v5707
        %5741 = vst.msk [vmem:[%s219 + $0x20] sm:$0xff] %vm5736, %v5708
        %5742 = vst.msk [vmem:[%s219 + $0x28] sm:$0xff] %vm5736, %v5709
        %5743 = vst.msk [vmem:[%s219 + $0x30] sm:$0xff] %vm5736, %v5710
        %5744 = vst.msk [vmem:[%s219 + $0x38] sm:$0xff] %vm5736, %v5711
        %5745 = vst.msk [vmem:[%s219 + $0x40] sm:$0xff] %vm5736, %v5712
        %5746 = vst.msk [vmem:[%s219 + $0x48] sm:$0xff] %vm5736, %v5713
        %5747 = vst.msk [vmem:[%s219 + $0x50] sm:$0xff] %vm5736, %v5714
        %5748 = vst.msk [vmem:[%s219 + $0x58] sm:$0xff] %vm5736, %v5715
        %5749 = vst.msk [vmem:[%s219 + $0x60] sm:$0xff] %vm5736, %v5716
        %5750 = vst.msk [vmem:[%s219 + $0x68] sm:$0xff] %vm5736, %v5717
        %5751 = vst.msk [vmem:[%s219 + $0x70] sm:$0xff] %vm5736, %v5718
        %5752 = vst.msk [vmem:[%s219 + $0x78] sm:$0xff] %vm5736, %v5719
        %5753 = vst.msk [vmem:[%s219 + $0x80] sm:$0xff] %vm5736, %v5720
        %5754 = vst.msk [vmem:[%s219 + $0x88] sm:$0xff] %vm5736, %v5721
        %5755 = vst.msk [vmem:[%s219 + $0x90] sm:$0xff] %vm5736, %v5722
        %5756 = vst.msk [vmem:[%s219 + $0x98] sm:$0xff] %vm5736, %v5723
        %5757 = vst.msk [vmem:[%s219 + $0xa0] sm:$0xff] %vm5736, %v5724
        %5758 = vst.msk [vmem:[%s219 + $0xa8] sm:$0xff] %vm5736, %v5725
        %5759 = vst.msk [vmem:[%s219 + $0xb0] sm:$0xff] %vm5736, %v5726
        %5760 = vst.msk [vmem:[%s219 + $0xb8] sm:$0xff] %vm5736, %v5727
        %5761 = vst.msk [vmem:[%s219 + $0xc0] sm:$0xff] %vm5736, %v5728
        %5762 = vst.msk [vmem:[%s219 + $0xc8] sm:$0xff] %vm5736, %v5729
        %5763 = vst.msk [vmem:[%s219 + $0xd0] sm:$0xff] %vm5736, %v5730
        %5764 = vst.msk [vmem:[%s219 + $0xd8] sm:$0xff] %vm5736, %v5731
        %5765 = vst.msk [vmem:[%s219 + $0xe0] sm:$0xff] %vm5736, %v5732
        %5766 = vst.msk [vmem:[%s219 + $0xe8] sm:$0xff] %vm5736, %v5733
        %5767 = vst.msk [vmem:[%s219 + $0xf0] sm:$0xff] %vm5736, %v5734
        %5768 = vst.msk [vmem:[%s219 + $0xf8] sm:$0xff] %vm5736, %v5735
        %s5769 = smul.u32 16, %s22
        %p5770 = scmp.lt.s32.totalorder %s21, 1
        %s5771 = scalar_select %p5770, %s21, 1
        %p5772 = scmp.lt.s32.totalorder %s5769, 15
        %s5773 = scalar_select %p5772, %s5769, 15
        %s5774 = smul.addr %s5773, 2
        %s5775 = smul.addr %s5771, 32
        %s5776 = sadd.s32 %s5774, %s5775
        %s5777 = smul.addr %s5776, 8
        %s5778 = scalar_lea.vmem %s5, %s5777
        // Predicated region
        $region63: #{tpu_custom_call.1} parent=35 // pred_check
          %p5779 = pneg %p133
        $region64: #{tpu_custom_call.1} parent=35 // pred_check_branch
          %5781 = sbr.rel (%p5779) target = $region66
        $region65: #{tpu_custom_call.1} parent=35 // pred_region
          %s5782 = smul.u32 16, %s22
        $region66: #{tpu_custom_call.1} parent=35 // pred_fallthru
          _
      $region36: #{tpu_custom_call.1} parent=5 // pred_fallthru
        _
      %p5783 = scmp.le.s32.totalorder 2, %s12
      // Predicated region
      $region67: #{tpu_custom_call.1} parent=5 // pred_check
        %p5784 = pneg %p5783
      $region68: #{tpu_custom_call.1} parent=5 // pred_check_branch
        %5786 = sbr.rel (%p5784) target = $region70
      $region69: #{tpu_custom_call.1} parent=5 // pred_region
        %s5787 = ssub.s32 %s12, 2
        // Predicated region
        $region71: #{tpu_custom_call.1} parent=69 // pred_check
          %p5788 = pneg %p139
        $region72: #{tpu_custom_call.1} parent=69 // pred_check_branch
          %5790 = sbr.rel (%p5788) target = $region74
        $region73: #{tpu_custom_call.1} parent=69 // pred_region
          %s5791 = smul.u32 16, %s24
          %p5792 = scmp.lt.s32.totalorder %s23, 1
          %s5793 = scalar_select %p5792, %s23, 1
          %p5794 = scmp.lt.s32.totalorder %s5791, 15
          %s5795 = scalar_select %p5794, %s5791, 15
          %s5796 = smul.addr %s5795, 2
          %s5797 = smul.addr %s5793, 32
          %s5798 = sadd.s32 %s5796, %s5797
          %s5799 = smul.addr %s5798, 8
          %s5800 = scalar_lea.vmem %s5, %s5799
        $region74: #{tpu_custom_call.1} parent=69 // pred_fallthru
          _
      $region70: #{tpu_custom_call.1} parent=5 // pred_fallthru
        _
    $region6: #{tpu_custom_call.1} parent=1 // loop_footer
      %s16 = sadd.s32 1, %s12
    $region7: #{tpu_custom_call.1} parent=1 // loop_footer_branch
      %11 = sbr.rel target = $region3
    $region8: #{tpu_custom_call.1} parent=1 // loop_exit
      _
    %5801 = vsyncpa [#allocation7], 1
    %s5802 = scalar_lea.sflag [#allocation7], 1
    %5803 = vsyncpa %s5802, 1
  %5804 = vsyncmov [#allocation5]
  %s5805 = vpop.sfrf %5804
  %p5806 = scmp.eq.s32.totalorder %s5805, 0
  %p5807 = pneg %p5806
  %5809 = shalt.err (%p5807)

</llo_original>
